<compile_context>
chip_gen: v7x
topology: tpu7x:2x2x1
jax: 0.10.0
libtpu: 0.0.40
codegen_flags: <defaults>
</compile_context>

<pallas_src>
import functools
import math

import jax
import jax.numpy as jnp
from jax.experimental import pallas as pl
from jax.experimental.pallas import tpu as pltpu


def _vmem_limit():
    try:
        cap = pltpu.get_tpu_info().vmem_capacity_bytes
    except Exception:
        cap = 64 * 1024 * 1024          # conservative fallback (fits every gen)
    return int(min(96 * 1024 * 1024, (cap * 3) // 4))


_VMEM_LIMIT = _vmem_limit()


def _pick_tile(n, cap, unit):
    """Largest t <= cap with n % t == 0 and (t % unit == 0 or t == n)."""
    for t in range(min(cap, n), 0, -1):
        if n % t == 0 and (t % unit == 0 or t == n):
            return t
    return n


# ---------------------------------------------------------------------------
# fused Mamba branch kernel (per (batch, time-chunk) grid step):
#   in_proj -> depthwise causal conv + SiLU -> x_proj (delta,B,C) -> dt_proj
#   + softplus -> selective scan (state carried across chunks) -> SiLU gate
#   + out_proj -> residual -> LayerNorm.
# ---------------------------------------------------------------------------
def _mamba_branch_kernel(x_ref, win_ref, cw_ref, cb_ref, wx_ref, wdt_ref,
                         bdt_ref, at_ref, dvec_ref, wout_ref, lng_ref, lnb_ref,
                         o_ref, dA_s, dBx_s, hcar, ccar,
                         *, d_inner, n_state, dt_rank, d_conv, reverse, eps):
    f32 = jnp.float32
    Lc, _ = x_ref.shape
    ED, N, R, K = d_inner, n_state, dt_rank, d_conv

    c = pl.program_id(1)

    # ---- chunk 0: reset the carried scan state and conv boundary rows ------
    @pl.when(c == 0)
    def _():
        hcar[...] = jnp.zeros_like(hcar)
        ccar[...] = jnp.zeros_like(ccar)

    # ---- fused in_proj (bias-free); the x chunk doubles as the residual ----
    xd = x_ref[...]                                            # (Lc, D) f32
    xz = jnp.dot(xd.astype(jnp.bfloat16), win_ref[...],
                 preferred_element_type=f32)                   # (Lc, 2*ED)
    x_in = xz[:, :ED]
    z = xz[:, ED:]

    # ---- depthwise causal conv (anti-causal for the reverse branch) --------
    # Boundary rows come from the adjacent (previously processed) chunk.
    cc = ccar[...]                                             # (K-1, ED) f32
    if reverse:
        x_ext = jnp.concatenate([x_in, cc], axis=0)            # (Lc+K-1, ED)
        ccar[...] = x_in[:K - 1, :]                            # carry for next chunk
    else:
        x_ext = jnp.concatenate([cc, x_in], axis=0)
        ccar[...] = x_in[Lc - (K - 1):, :]
    cw = cw_ref[...]                                           # (K, ED) f32
    acc = jnp.zeros((Lc, ED), f32) + cb_ref[...]
    for k in range(K):                                         # K is tiny (static taps)
        off = (K - 1 - k) if reverse else k
        acc = acc + cw[k:k + 1, :] * x_ext[off:off + Lc, :]
    xc = acc * jax.nn.sigmoid(acc)                             # SiLU, (Lc, ED), f32

    # ---- x_proj: ONE matmul yields the delta slice, B and C ----------------
    dbc = jnp.dot(xc.astype(jnp.bfloat16), wx_ref[...],
                  preferred_element_type=f32)                  # (Lc, R+2N)
    d_r = dbc[:, :R]
    Bm = dbc[:, R:R + N]
    Cm = dbc[:, R + N:R + 2 * N]

    # ---- dt_proj + softplus (f32 accumulation / activation) ----------------
    dt_lin = jnp.dot(d_r.astype(jnp.bfloat16), wdt_ref[...],
                     preferred_element_type=f32) + bdt_ref[...]
    dt = jnp.log1p(jnp.exp(-jnp.abs(dt_lin))) + jnp.maximum(dt_lin, 0.0)

    # ---- hoisted per-state slabs, time-major (row = t*N + n) ---------------
    # Static loop over n with strided sublane stores; no replication matmuls.
    A_all = at_ref[...]                                        # (N, ED) = -exp(A_log)^T
    dtxc = dt * xc
    for n in range(N):
        dA_s[pl.ds(n, Lc, stride=N), :] = jnp.exp(dt * A_all[n:n + 1, :])
        dBx_s[pl.ds(n, Lc, stride=N), :] = dtxc * Bm[:, n:n + 1]

    # ---- serial selective scan: contiguous (N, ED) tiles; h overwrites dBx -
    def step(i, h):
        t = (Lc - 1 - i) if reverse else i
        off = pl.multiple_of(t * N, N)
        h = dA_s[pl.ds(off, N), :] * h + dBx_s[pl.ds(off, N), :]
        dBx_s[pl.ds(off, N), :] = h            # read above precedes this overwrite
        return h

    h_last = jax.lax.fori_loop(0, Lc, step, hcar[...], unroll=min(8, Lc))
    hcar[...] = h_last                         # carry scan state to next chunk

    # ---- y[t] = sum_n C[t,n] * h[t,n,:]  + D * xc[t] ------------------------
    y = dvec_ref[...] * xc
    for n in range(N):
        y = y + Cm[:, n:n + 1] * dBx_s[pl.ds(n, Lc, stride=N), :]

    # ---- SiLU gate + out_proj + residual + LayerNorm ------------------------
    g = y * (z * jax.nn.sigmoid(z))
    out = jnp.dot(g.astype(jnp.bfloat16), wout_ref[...],
                  preferred_element_type=f32)                  # (Lc, D)
    v = out + xd
    mu = jnp.mean(v, axis=-1, keepdims=True)
    var = jnp.mean((v - mu) * (v - mu), axis=-1, keepdims=True)
    o_ref[...] = ((v - mu) * jax.lax.rsqrt(var + eps) * lng_ref[...]
                  + lnb_ref[...]).astype(o_ref.dtype)


def _pick_chunk(L, cap):
    for t in range(min(cap, L), 0, -1):
        if L % t == 0 and (t % 8 == 0 or t == L):
            return t
    return L


def mamba_branch(x, p, ln_g, ln_b, cfg, *, reverse, lc_max=64):
    """Full MambaBlock (+ residual + LayerNorm). reverse=True == flip/block/flip."""
    B, L, D = x.shape
    ED, N, K, R = cfg["d_inner"], cfg["d_state"], cfg["d_conv"], cfg["dt_rank"]
    Lc = _pick_chunk(L, lc_max)
    nc = L // Lc
    assert Lc >= K - 1, "conv boundary carry spans at most one chunk"
    assert N % 8 == 0, "d_state must be a multiple of the f32 sublane count"

    bf16 = jnp.bfloat16
    w_in = p["in_w"].astype(bf16)                  # (D, 2*ED) fused in_proj
    wx = p["xproj_w"].astype(bf16)                 # (ED, R+2N) delta|B|C
    w_dt = p["dt_w"].astype(bf16)                  # (R, ED)
    w_out = p["out_w"].astype(bf16)                # (ED, D)
    a_t = (-jnp.exp(p["A_log"])).T                 # (N, ED) f32, untiled
    d_vec = p["D"].reshape(1, ED)

    if reverse:
        xmap = lambda b, c: (b, nc - 1 - c, 0)     # walk chunks last -> first
    else:
        xmap = lambda b, c: (b, c, 0)
    wmap = lambda b, c: (0, 0)

    kernel = functools.partial(_mamba_branch_kernel, d_inner=ED, n_state=N,
                               dt_rank=R, d_conv=K, reverse=reverse, eps=1e-5)

    return pl.pallas_call(
        kernel,
        out_shape=jax.ShapeDtypeStruct((B, L, D), jnp.float32),
        grid=(B, nc),
        in_specs=[
            pl.BlockSpec((None, Lc, D), xmap),     # x chunk (in_proj in + residual)
            pl.BlockSpec((D, 2 * ED), wmap),       # in_proj weight (bf16, fused x|z)
            pl.BlockSpec((K, ED), wmap),           # depthwise conv weight (f32)
            pl.BlockSpec((1, ED), wmap),           # conv bias
            pl.BlockSpec((ED, R + 2 * N), wmap),   # x_proj weight (bf16)
            pl.BlockSpec((R, ED), wmap),           # dt_proj weight (bf16)
            pl.BlockSpec((1, ED), wmap),           # dt_proj bias
            pl.BlockSpec((N, ED), wmap),           # A^T, untiled
            pl.BlockSpec((1, ED), wmap),           # D (skip) vector
            pl.BlockSpec((ED, D), wmap),           # out_proj weight (bf16)
            pl.BlockSpec((1, D), wmap),            # LayerNorm gamma
            pl.BlockSpec((1, D), wmap),            # LayerNorm beta
        ],
        out_specs=pl.BlockSpec((None, Lc, D), xmap),
        scratch_shapes=[
            pltpu.VMEM((Lc * N, ED), jnp.float32),   # dA slab (time-major)
            pltpu.VMEM((Lc * N, ED), jnp.float32),   # dBx slab, reused to hold h
            pltpu.VMEM((N, ED), jnp.float32),        # scan state carried over chunks
            pltpu.VMEM((K - 1, ED), jnp.float32),    # conv boundary rows carry
        ],
        compiler_params=pltpu.CompilerParams(
            dimension_semantics=("parallel", "arbitrary"),
            vmem_limit_bytes=_VMEM_LIMIT),
    )(x, w_in, p["conv_w"], p["conv_b"], wx, w_dt, p["dt_b"],
      a_t, d_vec, w_out, ln_g, ln_b)


# ---------------------------------------------------------------------------
# fused FFN + residual + LayerNorm, row-tiled with an F (hidden) reduction
# axis:  LN(W2 relu(W1 x + b1) + b2 + res)  [+ x] .
# ---------------------------------------------------------------------------
def _ffn_add_ln_kernel(x_ref, res_ref, w1_ref, b1_ref, w2_ref, b2_ref,
                       g_ref, bb_ref, o_ref, acc_ref, *, eps, add_x):
    j = pl.program_id(1)

    @pl.when(j == 0)
    def _():
        acc_ref[...] = jnp.zeros_like(acc_ref)

    h = jnp.dot(x_ref[...].astype(jnp.bfloat16), w1_ref[...],
                preferred_element_type=jnp.float32) + b1_ref[...]
    h = jnp.maximum(h, 0.0)                                    # ReLU (per F tile)
    acc_ref[...] += jnp.dot(h.astype(jnp.bfloat16), w2_ref[...],
                            preferred_element_type=jnp.float32)

    @pl.when(j == pl.num_programs(1) - 1)
    def _():
        v = acc_ref[...] + b2_ref[...] + res_ref[...]
        mu = jnp.mean(v, axis=-1, keepdims=True)
        var = jnp.mean((v - mu) * (v - mu), axis=-1, keepdims=True)
        out = (v - mu) * jax.lax.rsqrt(var + eps) * g_ref[...] + bb_ref[...]
        if add_x:
            out = out + x_ref[...]
        o_ref[...] = out.astype(o_ref.dtype)


def ffn_add_ln(x, res, w1, b1, w2, b2, gamma, beta, *, add_x):
    M, D = x.shape
    F = w1.shape[1]
    tm = _pick_tile(M, 512, 8)       # >=256 whenever M permits (v6e/v7x MXU)
    tf = _pick_tile(F, 512, 128)     # stream the hidden dim; bounds weight VMEM
    w1b = w1.astype(jnp.bfloat16)
    w2b = w2.astype(jnp.bfloat16)
    return pl.pallas_call(
        functools.partial(_ffn_add_ln_kernel, eps=1e-5, add_x=add_x),
        out_shape=jax.ShapeDtypeStruct((M, D), jnp.float32),
        grid=(M // tm, F // tf),
        in_specs=[
            pl.BlockSpec((tm, D), lambda i, j: (i, 0)),
            pl.BlockSpec((tm, D), lambda i, j: (i, 0)),
            pl.BlockSpec((D, tf), lambda i, j: (0, j)),
            pl.BlockSpec((1, tf), lambda i, j: (0, j)),
            pl.BlockSpec((tf, D), lambda i, j: (j, 0)),
            pl.BlockSpec((1, D), lambda i, j: (0, 0)),
            pl.BlockSpec((1, D), lambda i, j: (0, 0)),
            pl.BlockSpec((1, D), lambda i, j: (0, 0)),
        ],
        out_specs=pl.BlockSpec((tm, D), lambda i, j: (i, 0)),
        scratch_shapes=[pltpu.VMEM((tm, D), jnp.float32)],
        compiler_params=pltpu.CompilerParams(
            dimension_semantics=("parallel", "arbitrary"),
            vmem_limit_bytes=_VMEM_LIMIT),
        cost_estimate=pl.CostEstimate(
            flops=4 * M * D * F, transcendentals=0,
            bytes_accessed=4 * 3 * M * D + 2 * 2 * D * F),
    )(x, res, w1b, b1, w2b, b2, gamma, beta)


# ---------------------------------------------------------------------------
# BiMamba encoder layer wrapper
# ---------------------------------------------------------------------------
def bimamba_encoder_layer(x, params, cfg, *, lc_max=64):
    # TODO(synk): nn.Dropout is identity in eval mode; no stochastic masking applied.
    B, L, D = x.shape

    # forward / backward Mamba branches (+ residual + norm1/norm3); the reverse
    # branch is handled fully in-kernel (no host-level flips).
    xf = mamba_branch(x, params["mamba_f"], params["ln1_g"], params["ln1_b"],
                      cfg, reverse=False, lc_max=lc_max)
    xb = mamba_branch(x, params["mamba_b"], params["ln3_g"], params["ln3_b"],
                      cfg, reverse=True, lc_max=lc_max)

    xf_flat = xf.reshape(B * L, D)
    xb_flat = xb.reshape(B * L, D)

    # x_f = norm2(ffn1(x_f) + x_f)
    xf2 = ffn_add_ln(xf_flat, xf_flat,
                     params["ffn1_w1"], params["ffn1_b1"],
                     params["ffn1_w2"], params["ffn1_b2"],
                     params["ln2_g"], params["ln2_b"], add_x=False)
    # matches the PyTorch reference: ffn2 consumes the post-norm2 x_f, and the
    # final residual adds that same tensor:  out = x_f + norm4(ffn2(x_f) + x_b)
    out = ffn_add_ln(xf2, xb_flat,
                     params["ffn2_w1"], params["ffn2_b1"],
                     params["ffn2_w2"], params["ffn2_b2"],
                     params["ln4_g"], params["ln4_b"], add_x=True)
    return out.reshape(B, L, D)


# ---------------------------------------------------------------------------
# deterministic init (mirrors the PyTorch module's parameter shapes)
# ---------------------------------------------------------------------------
def init_params(key, cfg, d_ff):
    D, ED = cfg["d_model"], cfg["d_inner"]
    N, K, R = cfg["d_state"], cfg["d_conv"], cfg["dt_rank"]
    keys = iter(jax.random.split(key, 32))

    def lin(kin, kout):
        s = 1.0 / math.sqrt(kin)
        return jax.random.uniform(next(keys), (kin, kout), jnp.float32, -s, s)

    def vec(n, scale):
        return jax.random.uniform(next(keys), (1, n), jnp.float32, -scale, scale)

    def mamba_params():
        return {
            "in_w": lin(D, 2 * ED),                            # in_proj (bias=False)
            "conv_w": jax.random.uniform(next(keys), (K, ED), jnp.float32,
                                         -1.0 / math.sqrt(K), 1.0 / math.sqrt(K)),
            "conv_b": vec(ED, 1.0 / math.sqrt(K)),
            "xproj_w": lin(ED, R + 2 * N),                     # x_proj (bias=False)
            "dt_w": lin(R, ED),                                # dt_proj (bias=True)
            "dt_b": vec(ED, 1.0 / math.sqrt(R)),
            "A_log": jnp.log(jnp.broadcast_to(
                jnp.arange(1, N + 1, dtype=jnp.float32), (ED, N))),
            "D": jnp.ones((ED,), jnp.float32),
            "out_w": lin(ED, D),                               # out_proj (bias=False)
        }

    params = {"mamba_f": mamba_params(), "mamba_b": mamba_params()}
    for i in (1, 2, 3, 4):
        params[f"ln{i}_g"] = jnp.ones((1, D), jnp.float32)
        params[f"ln{i}_b"] = jnp.zeros((1, D), jnp.float32)
    for name in ("ffn1", "ffn2"):
        params[f"{name}_w1"] = lin(D, d_ff)
        params[f"{name}_b1"] = vec(d_ff, 1.0 / math.sqrt(D))
        params[f"{name}_w2"] = lin(d_ff, D)
        params[f"{name}_b2"] = vec(D, 1.0 / math.sqrt(d_ff))
    return params


if __name__ == "__main__":
    cfg = {"d_model": 32, "d_state": 16, "d_conv": 4, "expand": 2}
    cfg["d_inner"] = cfg["expand"] * cfg["d_model"]
    cfg["dt_rank"] = math.ceil(cfg["d_model"] / 16)
    d_ff = 64
    B, L = 2, 16          # L=16 with lc_max=8 -> two time chunks per branch

    key = jax.random.PRNGKey(0)
    kx, kp = jax.random.split(key)
    x = jax.random.normal(kx, (B, L, cfg["d_model"]), jnp.float32)
    params = init_params(kp, cfg, d_ff)

    fwd = jax.jit(functools.partial(bimamba_encoder_layer, cfg=cfg, lc_max=8))
    out = jax.block_until_ready(fwd(x, params))

    assert out.shape == (B, L, cfg["d_model"])
    assert bool(jnp.all(jnp.isfinite(out)))
    print("KERNEL_OK")
</pallas_src>

<mosaic_0001>
module attributes {stable_mosaic.version = 11 : i64} {
  func.func @_mamba_branch_kernel(%arg0: i32, %arg1: i32, %arg2: memref<1x8x32xf32, #tpu.memory_space<vmem>>, %arg3: memref<32x128xbf16, #tpu.memory_space<vmem>>, %arg4: memref<4x64xf32, #tpu.memory_space<vmem>>, %arg5: memref<1x64xf32, #tpu.memory_space<vmem>>, %arg6: memref<64x34xbf16, #tpu.memory_space<vmem>>, %arg7: memref<2x64xbf16, #tpu.memory_space<vmem>>, %arg8: memref<1x64xf32, #tpu.memory_space<vmem>>, %arg9: memref<16x64xf32, #tpu.memory_space<vmem>>, %arg10: memref<1x64xf32, #tpu.memory_space<vmem>>, %arg11: memref<64x32xbf16, #tpu.memory_space<vmem>>, %arg12: memref<1x32xf32, #tpu.memory_space<vmem>>, %arg13: memref<1x32xf32, #tpu.memory_space<vmem>>, %arg14: memref<1x8x32xf32, #tpu.memory_space<vmem>>, %arg15: memref<128x64xf32, #tpu.memory_space<vmem>>, %arg16: memref<128x64xf32, #tpu.memory_space<vmem>>, %arg17: memref<16x64xf32, #tpu.memory_space<vmem>>, %arg18: memref<3x64xf32, #tpu.memory_space<vmem>>) attributes {dimension_semantics = [#tpu.dimension_semantics<parallel>, #tpu.dimension_semantics<arbitrary>], iteration_bounds = array<i64: 2, 2>, scalar_prefetch = 0 : i64, scratch_operands = 4 : i64, tpu.core_type = #tpu.core_type<tc>, window_params = [{transform_indices = @transform_0, window_bounds = array<i64: 1, 8, 32>}, {pipeline_mode = #tpu.pipeline_mode<synchronous>, transform_indices = @transform_1, window_bounds = array<i64: 32, 128>}, {pipeline_mode = #tpu.pipeline_mode<synchronous>, transform_indices = @transform_2, window_bounds = array<i64: 4, 64>}, {pipeline_mode = #tpu.pipeline_mode<synchronous>, transform_indices = @transform_3, window_bounds = array<i64: 1, 64>}, {pipeline_mode = #tpu.pipeline_mode<synchronous>, transform_indices = @transform_4, window_bounds = array<i64: 64, 34>}, {pipeline_mode = #tpu.pipeline_mode<synchronous>, transform_indices = @transform_5, window_bounds = array<i64: 2, 64>}, {pipeline_mode = #tpu.pipeline_mode<synchronous>, transform_indices = @transform_6, window_bounds = array<i64: 1, 64>}, {pipeline_mode = #tpu.pipeline_mode<synchronous>, transform_indices = @transform_7, window_bounds = array<i64: 16, 64>}, {pipeline_mode = #tpu.pipeline_mode<synchronous>, transform_indices = @transform_8, window_bounds = array<i64: 1, 64>}, {pipeline_mode = #tpu.pipeline_mode<synchronous>, transform_indices = @transform_9, window_bounds = array<i64: 64, 32>}, {pipeline_mode = #tpu.pipeline_mode<synchronous>, transform_indices = @transform_10, window_bounds = array<i64: 1, 32>}, {pipeline_mode = #tpu.pipeline_mode<synchronous>, transform_indices = @transform_11, window_bounds = array<i64: 1, 32>}, {transform_indices = @transform_12, window_bounds = array<i64: 1, 8, 32>}]} {
    %c0_i32 = arith.constant 0 : i32
    %0 = arith.cmpi eq, %arg1, %c0_i32 : i32
    %1 = arith.extui %0 : i1 to i32
    %c0_i32_0 = arith.constant 0 : i32
    %2 = arith.cmpi ne, %1, %c0_i32_0 : i32
    scf.if %2 {
      %cst_162 = arith.constant 0.000000e+00 : f32
      %416 = vector.broadcast %cst_162 : f32 to vector<16x64xf32>
      %c0_163 = arith.constant 0 : index
      %c0_164 = arith.constant 0 : index
      %417 = vector.load %arg17[%c0_163, %c0_164] : memref<16x64xf32, #tpu.memory_space<vmem>>, vector<16x64xf32>
      tpu.vector_store %arg17[%c0_163, %c0_164], %416 {strides = array<i32>} : memref<16x64xf32, #tpu.memory_space<vmem>>, vector<16x64xf32>,
      %cst_165 = arith.constant 0.000000e+00 : f32
      %418 = vector.broadcast %cst_165 : f32 to vector<3x64xf32>
      %c0_166 = arith.constant 0 : index
      %c0_167 = arith.constant 0 : index
      %419 = vector.load %arg18[%c0_166, %c0_167] : memref<3x64xf32, #tpu.memory_space<vmem>>, vector<3x64xf32>
      tpu.vector_store %arg18[%c0_166, %c0_167], %418 {strides = array<i32>} : memref<3x64xf32, #tpu.memory_space<vmem>>, vector<3x64xf32>,
    } else {
    }
    %c0 = arith.constant 0 : index
    %c0_1 = arith.constant 0 : index
    %c0_2 = arith.constant 0 : index
    %3 = vector.load %arg2[%c0, %c0_1, %c0_2] : memref<1x8x32xf32, #tpu.memory_space<vmem>>, vector<1x8x32xf32>
    %4 = vector.shape_cast %3 : vector<1x8x32xf32> to vector<8x32xf32>
    %5 = arith.truncf %4 : vector<8x32xf32> to vector<8x32xbf16>
    %c0_3 = arith.constant 0 : index
    %c0_4 = arith.constant 0 : index
    %6 = vector.load %arg3[%c0_3, %c0_4] : memref<32x128xbf16, #tpu.memory_space<vmem>>, vector<32x128xbf16>
    %cst = arith.constant dense<0.000000e+00> : vector<8x128xf32>
    %7 = tpu.matmul %5, %6, %cst {dimension_numbers = #tpu.dot_dimension_numbers<[1], [0], [0], [1], [0, 0, 1, 1], [], []>} : vector<8x32xbf16>, vector<32x128xbf16>, vector<8x128xf32> -> vector<8x128xf32>
    %8 = vector.extract_strided_slice %7 {offsets = [0, 0], sizes = [8, 64], strides = [1, 1]} : vector<8x128xf32> to vector<8x64xf32>
    %9 = vector.extract_strided_slice %7 {offsets = [0, 64], sizes = [8, 64], strides = [1, 1]} : vector<8x128xf32> to vector<8x64xf32>
    %c0_5 = arith.constant 0 : index
    %c0_6 = arith.constant 0 : index
    %10 = vector.load %arg18[%c0_5, %c0_6] : memref<3x64xf32, #tpu.memory_space<vmem>>, vector<3x64xf32>
    %11 = tpu.concatenate %10, %8 in 0 : vector<3x64xf32>, vector<8x64xf32> -> vector<11x64xf32>
    %12 = vector.extract_strided_slice %8 {offsets = [5, 0], sizes = [3, 64], strides = [1, 1]} : vector<8x64xf32> to vector<3x64xf32>
    %c0_7 = arith.constant 0 : index
    %c0_8 = arith.constant 0 : index
    %13 = vector.load %arg18[%c0_7, %c0_8] : memref<3x64xf32, #tpu.memory_space<vmem>>, vector<3x64xf32>
    tpu.vector_store %arg18[%c0_7, %c0_8], %12 {strides = array<i32>} : memref<3x64xf32, #tpu.memory_space<vmem>>, vector<3x64xf32>,
    %c0_9 = arith.constant 0 : index
    %c0_10 = arith.constant 0 : index
    %14 = vector.load %arg4[%c0_9, %c0_10] : memref<4x64xf32, #tpu.memory_space<vmem>>, vector<4x64xf32>
    %cst_11 = arith.constant 0.000000e+00 : f32
    %15 = vector.broadcast %cst_11 : f32 to vector<8x64xf32>
    %c0_12 = arith.constant 0 : index
    %c0_13 = arith.constant 0 : index
    %16 = vector.load %arg5[%c0_12, %c0_13] : memref<1x64xf32, #tpu.memory_space<vmem>>, vector<1x64xf32>
    %17 = vector.broadcast %16 : vector<1x64xf32> to vector<8x64xf32>
    %18 = arith.addf %15, %17 : vector<8x64xf32>
    %19 = vector.extract_strided_slice %14 {offsets = [0, 0], sizes = [1, 64], strides = [1, 1]} : vector<4x64xf32> to vector<1x64xf32>
    %20 = vector.extract_strided_slice %11 {offsets = [0, 0], sizes = [8, 64], strides = [1, 1]} : vector<11x64xf32> to vector<8x64xf32>
    %21 = vector.broadcast %19 : vector<1x64xf32> to vector<8x64xf32>
    %22 = arith.mulf %21, %20 : vector<8x64xf32>
    %23 = arith.addf %18, %22 : vector<8x64xf32>
    %24 = vector.extract_strided_slice %14 {offsets = [1, 0], sizes = [1, 64], strides = [1, 1]} : vector<4x64xf32> to vector<1x64xf32>
    %25 = vector.extract_strided_slice %11 {offsets = [1, 0], sizes = [8, 64], strides = [1, 1]} : vector<11x64xf32> to vector<8x64xf32>
    %26 = vector.broadcast %24 : vector<1x64xf32> to vector<8x64xf32>
    %27 = arith.mulf %26, %25 : vector<8x64xf32>
    %28 = arith.addf %23, %27 : vector<8x64xf32>
    %29 = vector.extract_strided_slice %14 {offsets = [2, 0], sizes = [1, 64], strides = [1, 1]} : vector<4x64xf32> to vector<1x64xf32>
    %30 = vector.extract_strided_slice %11 {offsets = [2, 0], sizes = [8, 64], strides = [1, 1]} : vector<11x64xf32> to vector<8x64xf32>
    %31 = vector.broadcast %29 : vector<1x64xf32> to vector<8x64xf32>
    %32 = arith.mulf %31, %30 : vector<8x64xf32>
    %33 = arith.addf %28, %32 : vector<8x64xf32>
    %34 = vector.extract_strided_slice %14 {offsets = [3, 0], sizes = [1, 64], strides = [1, 1]} : vector<4x64xf32> to vector<1x64xf32>
    %35 = vector.extract_strided_slice %11 {offsets = [3, 0], sizes = [8, 64], strides = [1, 1]} : vector<11x64xf32> to vector<8x64xf32>
    %36 = vector.broadcast %34 : vector<1x64xf32> to vector<8x64xf32>
    %37 = arith.mulf %36, %35 : vector<8x64xf32>
    %38 = arith.addf %33, %37 : vector<8x64xf32>
    %39 = arith.negf %38 : vector<8x64xf32>
    %40 = math.exp %39 : vector<8x64xf32>
    %cst_14 = arith.constant 1.000000e+00 : f32
    %41 = vector.broadcast %cst_14 : f32 to vector<8x64xf32>
    %42 = arith.addf %41, %40 : vector<8x64xf32>
    %43 = arith.divf %41, %42 : vector<8x64xf32>
    %44 = arith.mulf %38, %43 : vector<8x64xf32>
    %45 = arith.truncf %44 : vector<8x64xf32> to vector<8x64xbf16>
    %c0_15 = arith.constant 0 : index
    %c0_16 = arith.constant 0 : index
    %46 = vector.load %arg6[%c0_15, %c0_16] : memref<64x34xbf16, #tpu.memory_space<vmem>>, vector<64x34xbf16>
    %cst_17 = arith.constant dense<0.000000e+00> : vector<8x34xf32>
    %47 = tpu.matmul %45, %46, %cst_17 {dimension_numbers = #tpu.dot_dimension_numbers<[1], [0], [0], [1], [0, 0, 1, 1], [], []>} : vector<8x64xbf16>, vector<64x34xbf16>, vector<8x34xf32> -> vector<8x34xf32>
    %48 = vector.extract_strided_slice %47 {offsets = [0, 0], sizes = [8, 2], strides = [1, 1]} : vector<8x34xf32> to vector<8x2xf32>
    %49 = vector.extract_strided_slice %47 {offsets = [0, 2], sizes = [8, 16], strides = [1, 1]} : vector<8x34xf32> to vector<8x16xf32>
    %50 = vector.extract_strided_slice %47 {offsets = [0, 18], sizes = [8, 16], strides = [1, 1]} : vector<8x34xf32> to vector<8x16xf32>
    %51 = arith.truncf %48 : vector<8x2xf32> to vector<8x2xbf16>
    %c0_18 = arith.constant 0 : index
    %c0_19 = arith.constant 0 : index
    %52 = vector.load %arg7[%c0_18, %c0_19] : memref<2x64xbf16, #tpu.memory_space<vmem>>, vector<2x64xbf16>
    %cst_20 = arith.constant dense<0.000000e+00> : vector<8x64xf32>
    %53 = tpu.matmul %51, %52, %cst_20 {dimension_numbers = #tpu.dot_dimension_numbers<[1], [0], [0], [1], [0, 0, 1, 1], [], []>} : vector<8x2xbf16>, vector<2x64xbf16>, vector<8x64xf32> -> vector<8x64xf32>
    %c0_21 = arith.constant 0 : index
    %c0_22 = arith.constant 0 : index
    %54 = vector.load %arg8[%c0_21, %c0_22] : memref<1x64xf32, #tpu.memory_space<vmem>>, vector<1x64xf32>
    %55 = vector.broadcast %54 : vector<1x64xf32> to vector<8x64xf32>
    %56 = arith.addf %53, %55 : vector<8x64xf32>
    %57 = math.absf %56 : vector<8x64xf32>
    %cst_23 = arith.constant 0.000000e+00 : f32
    %58 = vector.broadcast %cst_23 : f32 to vector<8x64xf32>
    %59 = arith.subf %58, %57 : vector<8x64xf32>
    %60 = math.exp %59 : vector<8x64xf32>
    %61 = math.log1p %60 : vector<8x64xf32>
    %cst_24 = arith.constant 0.000000e+00 : f32
    %62 = vector.broadcast %cst_24 : f32 to vector<8x64xf32>
    %63 = arith.maximumf %56, %62 : vector<8x64xf32>
    %64 = arith.addf %61, %63 : vector<8x64xf32>
    %c0_25 = arith.constant 0 : index
    %c0_26 = arith.constant 0 : index
    %65 = vector.load %arg9[%c0_25, %c0_26] : memref<16x64xf32, #tpu.memory_space<vmem>>, vector<16x64xf32>
    %66 = arith.mulf %64, %44 : vector<8x64xf32>
    %67 = vector.extract_strided_slice %65 {offsets = [0, 0], sizes = [1, 64], strides = [1, 1]} : vector<16x64xf32> to vector<1x64xf32>
    %68 = vector.broadcast %67 : vector<1x64xf32> to vector<8x64xf32>
    %69 = arith.mulf %64, %68 : vector<8x64xf32>
    %70 = math.exp %69 : vector<8x64xf32>
    %c0_27 = arith.constant 0 : index
    %c0_28 = arith.constant 0 : index
    %71 = tpu.strided_load %arg15[%c0_27, %c0_28] {strides = array<i32: 16, 1>} : memref<128x64xf32, #tpu.memory_space<vmem>>, vector<8x64xf32>
    tpu.strided_store %arg15[%c0_27, %c0_28], %70 {strides = array<i32: 16, 1>} : memref<128x64xf32, #tpu.memory_space<vmem>>, vector<8x64xf32>
    %72 = vector.extract_strided_slice %49 {offsets = [0, 0], sizes = [8, 1], strides = [1, 1]} : vector<8x16xf32> to vector<8x1xf32>
    %73 = vector.broadcast %72 : vector<8x1xf32> to vector<8x64xf32>
    %74 = arith.mulf %66, %73 : vector<8x64xf32>
    %c0_29 = arith.constant 0 : index
    %c0_30 = arith.constant 0 : index
    %75 = tpu.strided_load %arg16[%c0_29, %c0_30] {strides = array<i32: 16, 1>} : memref<128x64xf32, #tpu.memory_space<vmem>>, vector<8x64xf32>
    tpu.strided_store %arg16[%c0_29, %c0_30], %74 {strides = array<i32: 16, 1>} : memref<128x64xf32, #tpu.memory_space<vmem>>, vector<8x64xf32>
    %76 = vector.extract_strided_slice %65 {offsets = [1, 0], sizes = [1, 64], strides = [1, 1]} : vector<16x64xf32> to vector<1x64xf32>
    %77 = vector.broadcast %76 : vector<1x64xf32> to vector<8x64xf32>
    %78 = arith.mulf %64, %77 : vector<8x64xf32>
    %79 = math.exp %78 : vector<8x64xf32>
    %c1 = arith.constant 1 : index
    %c0_31 = arith.constant 0 : index
    %80 = tpu.strided_load %arg15[%c1, %c0_31] {strides = array<i32: 16, 1>} : memref<128x64xf32, #tpu.memory_space<vmem>>, vector<8x64xf32>
    tpu.strided_store %arg15[%c1, %c0_31], %79 {strides = array<i32: 16, 1>} : memref<128x64xf32, #tpu.memory_space<vmem>>, vector<8x64xf32>
    %81 = vector.extract_strided_slice %49 {offsets = [0, 1], sizes = [8, 1], strides = [1, 1]} : vector<8x16xf32> to vector<8x1xf32>
    %82 = vector.broadcast %81 : vector<8x1xf32> to vector<8x64xf32>
    %83 = arith.mulf %66, %82 : vector<8x64xf32>
    %c1_32 = arith.constant 1 : index
    %c0_33 = arith.constant 0 : index
    %84 = tpu.strided_load %arg16[%c1_32, %c0_33] {strides = array<i32: 16, 1>} : memref<128x64xf32, #tpu.memory_space<vmem>>, vector<8x64xf32>
    tpu.strided_store %arg16[%c1_32, %c0_33], %83 {strides = array<i32: 16, 1>} : memref<128x64xf32, #tpu.memory_space<vmem>>, vector<8x64xf32>
    %85 = vector.extract_strided_slice %65 {offsets = [2, 0], sizes = [1, 64], strides = [1, 1]} : vector<16x64xf32> to vector<1x64xf32>
    %86 = vector.broadcast %85 : vector<1x64xf32> to vector<8x64xf32>
    %87 = arith.mulf %64, %86 : vector<8x64xf32>
    %88 = math.exp %87 : vector<8x64xf32>
    %c2 = arith.constant 2 : index
    %c0_34 = arith.constant 0 : index
    %89 = tpu.strided_load %arg15[%c2, %c0_34] {strides = array<i32: 16, 1>} : memref<128x64xf32, #tpu.memory_space<vmem>>, vector<8x64xf32>
    tpu.strided_store %arg15[%c2, %c0_34], %88 {strides = array<i32: 16, 1>} : memref<128x64xf32, #tpu.memory_space<vmem>>, vector<8x64xf32>
    %90 = vector.extract_strided_slice %49 {offsets = [0, 2], sizes = [8, 1], strides = [1, 1]} : vector<8x16xf32> to vector<8x1xf32>
    %91 = vector.broadcast %90 : vector<8x1xf32> to vector<8x64xf32>
    %92 = arith.mulf %66, %91 : vector<8x64xf32>
    %c2_35 = arith.constant 2 : index
    %c0_36 = arith.constant 0 : index
    %93 = tpu.strided_load %arg16[%c2_35, %c0_36] {strides = array<i32: 16, 1>} : memref<128x64xf32, #tpu.memory_space<vmem>>, vector<8x64xf32>
    tpu.strided_store %arg16[%c2_35, %c0_36], %92 {strides = array<i32: 16, 1>} : memref<128x64xf32, #tpu.memory_space<vmem>>, vector<8x64xf32>
    %94 = vector.extract_strided_slice %65 {offsets = [3, 0], sizes = [1, 64], strides = [1, 1]} : vector<16x64xf32> to vector<1x64xf32>
    %95 = vector.broadcast %94 : vector<1x64xf32> to vector<8x64xf32>
    %96 = arith.mulf %64, %95 : vector<8x64xf32>
    %97 = math.exp %96 : vector<8x64xf32>
    %c3 = arith.constant 3 : index
    %c0_37 = arith.constant 0 : index
    %98 = tpu.strided_load %arg15[%c3, %c0_37] {strides = array<i32: 16, 1>} : memref<128x64xf32, #tpu.memory_space<vmem>>, vector<8x64xf32>
    tpu.strided_store %arg15[%c3, %c0_37], %97 {strides = array<i32: 16, 1>} : memref<128x64xf32, #tpu.memory_space<vmem>>, vector<8x64xf32>
    %99 = vector.extract_strided_slice %49 {offsets = [0, 3], sizes = [8, 1], strides = [1, 1]} : vector<8x16xf32> to vector<8x1xf32>
    %100 = vector.broadcast %99 : vector<8x1xf32> to vector<8x64xf32>
    %101 = arith.mulf %66, %100 : vector<8x64xf32>
    %c3_38 = arith.constant 3 : index
    %c0_39 = arith.constant 0 : index
    %102 = tpu.strided_load %arg16[%c3_38, %c0_39] {strides = array<i32: 16, 1>} : memref<128x64xf32, #tpu.memory_space<vmem>>, vector<8x64xf32>
    tpu.strided_store %arg16[%c3_38, %c0_39], %101 {strides = array<i32: 16, 1>} : memref<128x64xf32, #tpu.memory_space<vmem>>, vector<8x64xf32>
    %103 = vector.extract_strided_slice %65 {offsets = [4, 0], sizes = [1, 64], strides = [1, 1]} : vector<16x64xf32> to vector<1x64xf32>
    %104 = vector.broadcast %103 : vector<1x64xf32> to vector<8x64xf32>
    %105 = arith.mulf %64, %104 : vector<8x64xf32>
    %106 = math.exp %105 : vector<8x64xf32>
    %c4 = arith.constant 4 : index
    %c0_40 = arith.constant 0 : index
    %107 = tpu.strided_load %arg15[%c4, %c0_40] {strides = array<i32: 16, 1>} : memref<128x64xf32, #tpu.memory_space<vmem>>, vector<8x64xf32>
    tpu.strided_store %arg15[%c4, %c0_40], %106 {strides = array<i32: 16, 1>} : memref<128x64xf32, #tpu.memory_space<vmem>>, vector<8x64xf32>
    %108 = vector.extract_strided_slice %49 {offsets = [0, 4], sizes = [8, 1], strides = [1, 1]} : vector<8x16xf32> to vector<8x1xf32>
    %109 = vector.broadcast %108 : vector<8x1xf32> to vector<8x64xf32>
    %110 = arith.mulf %66, %109 : vector<8x64xf32>
    %c4_41 = arith.constant 4 : index
    %c0_42 = arith.constant 0 : index
    %111 = tpu.strided_load %arg16[%c4_41, %c0_42] {strides = array<i32: 16, 1>} : memref<128x64xf32, #tpu.memory_space<vmem>>, vector<8x64xf32>
    tpu.strided_store %arg16[%c4_41, %c0_42], %110 {strides = array<i32: 16, 1>} : memref<128x64xf32, #tpu.memory_space<vmem>>, vector<8x64xf32>
    %112 = vector.extract_strided_slice %65 {offsets = [5, 0], sizes = [1, 64], strides = [1, 1]} : vector<16x64xf32> to vector<1x64xf32>
    %113 = vector.broadcast %112 : vector<1x64xf32> to vector<8x64xf32>
    %114 = arith.mulf %64, %113 : vector<8x64xf32>
    %115 = math.exp %114 : vector<8x64xf32>
    %c5 = arith.constant 5 : index
    %c0_43 = arith.constant 0 : index
    %116 = tpu.strided_load %arg15[%c5, %c0_43] {strides = array<i32: 16, 1>} : memref<128x64xf32, #tpu.memory_space<vmem>>, vector<8x64xf32>
    tpu.strided_store %arg15[%c5, %c0_43], %115 {strides = array<i32: 16, 1>} : memref<128x64xf32, #tpu.memory_space<vmem>>, vector<8x64xf32>
    %117 = vector.extract_strided_slice %49 {offsets = [0, 5], sizes = [8, 1], strides = [1, 1]} : vector<8x16xf32> to vector<8x1xf32>
    %118 = vector.broadcast %117 : vector<8x1xf32> to vector<8x64xf32>
    %119 = arith.mulf %66, %118 : vector<8x64xf32>
    %c5_44 = arith.constant 5 : index
    %c0_45 = arith.constant 0 : index
    %120 = tpu.strided_load %arg16[%c5_44, %c0_45] {strides = array<i32: 16, 1>} : memref<128x64xf32, #tpu.memory_space<vmem>>, vector<8x64xf32>
    tpu.strided_store %arg16[%c5_44, %c0_45], %119 {strides = array<i32: 16, 1>} : memref<128x64xf32, #tpu.memory_space<vmem>>, vector<8x64xf32>
    %121 = vector.extract_strided_slice %65 {offsets = [6, 0], sizes = [1, 64], strides = [1, 1]} : vector<16x64xf32> to vector<1x64xf32>
    %122 = vector.broadcast %121 : vector<1x64xf32> to vector<8x64xf32>
    %123 = arith.mulf %64, %122 : vector<8x64xf32>
    %124 = math.exp %123 : vector<8x64xf32>
    %c6 = arith.constant 6 : index
    %c0_46 = arith.constant 0 : index
    %125 = tpu.strided_load %arg15[%c6, %c0_46] {strides = array<i32: 16, 1>} : memref<128x64xf32, #tpu.memory_space<vmem>>, vector<8x64xf32>
    tpu.strided_store %arg15[%c6, %c0_46], %124 {strides = array<i32: 16, 1>} : memref<128x64xf32, #tpu.memory_space<vmem>>, vector<8x64xf32>
    %126 = vector.extract_strided_slice %49 {offsets = [0, 6], sizes = [8, 1], strides = [1, 1]} : vector<8x16xf32> to vector<8x1xf32>
    %127 = vector.broadcast %126 : vector<8x1xf32> to vector<8x64xf32>
    %128 = arith.mulf %66, %127 : vector<8x64xf32>
    %c6_47 = arith.constant 6 : index
    %c0_48 = arith.constant 0 : index
    %129 = tpu.strided_load %arg16[%c6_47, %c0_48] {strides = array<i32: 16, 1>} : memref<128x64xf32, #tpu.memory_space<vmem>>, vector<8x64xf32>
    tpu.strided_store %arg16[%c6_47, %c0_48], %128 {strides = array<i32: 16, 1>} : memref<128x64xf32, #tpu.memory_space<vmem>>, vector<8x64xf32>
    %130 = vector.extract_strided_slice %65 {offsets = [7, 0], sizes = [1, 64], strides = [1, 1]} : vector<16x64xf32> to vector<1x64xf32>
    %131 = vector.broadcast %130 : vector<1x64xf32> to vector<8x64xf32>
    %132 = arith.mulf %64, %131 : vector<8x64xf32>
    %133 = math.exp %132 : vector<8x64xf32>
    %c7 = arith.constant 7 : index
    %c0_49 = arith.constant 0 : index
    %134 = tpu.strided_load %arg15[%c7, %c0_49] {strides = array<i32: 16, 1>} : memref<128x64xf32, #tpu.memory_space<vmem>>, vector<8x64xf32>
    tpu.strided_store %arg15[%c7, %c0_49], %133 {strides = array<i32: 16, 1>} : memref<128x64xf32, #tpu.memory_space<vmem>>, vector<8x64xf32>
    %135 = vector.extract_strided_slice %49 {offsets = [0, 7], sizes = [8, 1], strides = [1, 1]} : vector<8x16xf32> to vector<8x1xf32>
    %136 = vector.broadcast %135 : vector<8x1xf32> to vector<8x64xf32>
    %137 = arith.mulf %66, %136 : vector<8x64xf32>
    %c7_50 = arith.constant 7 : index
    %c0_51 = arith.constant 0 : index
    %138 = tpu.strided_load %arg16[%c7_50, %c0_51] {strides = array<i32: 16, 1>} : memref<128x64xf32, #tpu.memory_space<vmem>>, vector<8x64xf32>
    tpu.strided_store %arg16[%c7_50, %c0_51], %137 {strides = array<i32: 16, 1>} : memref<128x64xf32, #tpu.memory_space<vmem>>, vector<8x64xf32>
    %139 = vector.extract_strided_slice %65 {offsets = [8, 0], sizes = [1, 64], strides = [1, 1]} : vector<16x64xf32> to vector<1x64xf32>
    %140 = vector.broadcast %139 : vector<1x64xf32> to vector<8x64xf32>
    %141 = arith.mulf %64, %140 : vector<8x64xf32>
    %142 = math.exp %141 : vector<8x64xf32>
    %c8 = arith.constant 8 : index
    %c0_52 = arith.constant 0 : index
    %143 = tpu.strided_load %arg15[%c8, %c0_52] {strides = array<i32: 16, 1>} : memref<128x64xf32, #tpu.memory_space<vmem>>, vector<8x64xf32>
    tpu.strided_store %arg15[%c8, %c0_52], %142 {strides = array<i32: 16, 1>} : memref<128x64xf32, #tpu.memory_space<vmem>>, vector<8x64xf32>
    %144 = vector.extract_strided_slice %49 {offsets = [0, 8], sizes = [8, 1], strides = [1, 1]} : vector<8x16xf32> to vector<8x1xf32>
    %145 = vector.broadcast %144 : vector<8x1xf32> to vector<8x64xf32>
    %146 = arith.mulf %66, %145 : vector<8x64xf32>
    %c8_53 = arith.constant 8 : index
    %c0_54 = arith.constant 0 : index
    %147 = tpu.strided_load %arg16[%c8_53, %c0_54] {strides = array<i32: 16, 1>} : memref<128x64xf32, #tpu.memory_space<vmem>>, vector<8x64xf32>
    tpu.strided_store %arg16[%c8_53, %c0_54], %146 {strides = array<i32: 16, 1>} : memref<128x64xf32, #tpu.memory_space<vmem>>, vector<8x64xf32>
    %148 = vector.extract_strided_slice %65 {offsets = [9, 0], sizes = [1, 64], strides = [1, 1]} : vector<16x64xf32> to vector<1x64xf32>
    %149 = vector.broadcast %148 : vector<1x64xf32> to vector<8x64xf32>
    %150 = arith.mulf %64, %149 : vector<8x64xf32>
    %151 = math.exp %150 : vector<8x64xf32>
    %c9 = arith.constant 9 : index
    %c0_55 = arith.constant 0 : index
    %152 = tpu.strided_load %arg15[%c9, %c0_55] {strides = array<i32: 16, 1>} : memref<128x64xf32, #tpu.memory_space<vmem>>, vector<8x64xf32>
    tpu.strided_store %arg15[%c9, %c0_55], %151 {strides = array<i32: 16, 1>} : memref<128x64xf32, #tpu.memory_space<vmem>>, vector<8x64xf32>
    %153 = vector.extract_strided_slice %49 {offsets = [0, 9], sizes = [8, 1], strides = [1, 1]} : vector<8x16xf32> to vector<8x1xf32>
    %154 = vector.broadcast %153 : vector<8x1xf32> to vector<8x64xf32>
    %155 = arith.mulf %66, %154 : vector<8x64xf32>
    %c9_56 = arith.constant 9 : index
    %c0_57 = arith.constant 0 : index
    %156 = tpu.strided_load %arg16[%c9_56, %c0_57] {strides = array<i32: 16, 1>} : memref<128x64xf32, #tpu.memory_space<vmem>>, vector<8x64xf32>
    tpu.strided_store %arg16[%c9_56, %c0_57], %155 {strides = array<i32: 16, 1>} : memref<128x64xf32, #tpu.memory_space<vmem>>, vector<8x64xf32>
    %157 = vector.extract_strided_slice %65 {offsets = [10, 0], sizes = [1, 64], strides = [1, 1]} : vector<16x64xf32> to vector<1x64xf32>
    %158 = vector.broadcast %157 : vector<1x64xf32> to vector<8x64xf32>
    %159 = arith.mulf %64, %158 : vector<8x64xf32>
    %160 = math.exp %159 : vector<8x64xf32>
    %c10 = arith.constant 10 : index
    %c0_58 = arith.constant 0 : index
    %161 = tpu.strided_load %arg15[%c10, %c0_58] {strides = array<i32: 16, 1>} : memref<128x64xf32, #tpu.memory_space<vmem>>, vector<8x64xf32>
    tpu.strided_store %arg15[%c10, %c0_58], %160 {strides = array<i32: 16, 1>} : memref<128x64xf32, #tpu.memory_space<vmem>>, vector<8x64xf32>
    %162 = vector.extract_strided_slice %49 {offsets = [0, 10], sizes = [8, 1], strides = [1, 1]} : vector<8x16xf32> to vector<8x1xf32>
    %163 = vector.broadcast %162 : vector<8x1xf32> to vector<8x64xf32>
    %164 = arith.mulf %66, %163 : vector<8x64xf32>
    %c10_59 = arith.constant 10 : index
    %c0_60 = arith.constant 0 : index
    %165 = tpu.strided_load %arg16[%c10_59, %c0_60] {strides = array<i32: 16, 1>} : memref<128x64xf32, #tpu.memory_space<vmem>>, vector<8x64xf32>
    tpu.strided_store %arg16[%c10_59, %c0_60], %164 {strides = array<i32: 16, 1>} : memref<128x64xf32, #tpu.memory_space<vmem>>, vector<8x64xf32>
    %166 = vector.extract_strided_slice %65 {offsets = [11, 0], sizes = [1, 64], strides = [1, 1]} : vector<16x64xf32> to vector<1x64xf32>
    %167 = vector.broadcast %166 : vector<1x64xf32> to vector<8x64xf32>
    %168 = arith.mulf %64, %167 : vector<8x64xf32>
    %169 = math.exp %168 : vector<8x64xf32>
    %c11 = arith.constant 11 : index
    %c0_61 = arith.constant 0 : index
    %170 = tpu.strided_load %arg15[%c11, %c0_61] {strides = array<i32: 16, 1>} : memref<128x64xf32, #tpu.memory_space<vmem>>, vector<8x64xf32>
    tpu.strided_store %arg15[%c11, %c0_61], %169 {strides = array<i32: 16, 1>} : memref<128x64xf32, #tpu.memory_space<vmem>>, vector<8x64xf32>
    %171 = vector.extract_strided_slice %49 {offsets = [0, 11], sizes = [8, 1], strides = [1, 1]} : vector<8x16xf32> to vector<8x1xf32>
    %172 = vector.broadcast %171 : vector<8x1xf32> to vector<8x64xf32>
    %173 = arith.mulf %66, %172 : vector<8x64xf32>
    %c11_62 = arith.constant 11 : index
    %c0_63 = arith.constant 0 : index
    %174 = tpu.strided_load %arg16[%c11_62, %c0_63] {strides = array<i32: 16, 1>} : memref<128x64xf32, #tpu.memory_space<vmem>>, vector<8x64xf32>
    tpu.strided_store %arg16[%c11_62, %c0_63], %173 {strides = array<i32: 16, 1>} : memref<128x64xf32, #tpu.memory_space<vmem>>, vector<8x64xf32>
    %175 = vector.extract_strided_slice %65 {offsets = [12, 0], sizes = [1, 64], strides = [1, 1]} : vector<16x64xf32> to vector<1x64xf32>
    %176 = vector.broadcast %175 : vector<1x64xf32> to vector<8x64xf32>
    %177 = arith.mulf %64, %176 : vector<8x64xf32>
    %178 = math.exp %177 : vector<8x64xf32>
    %c12 = arith.constant 12 : index
    %c0_64 = arith.constant 0 : index
    %179 = tpu.strided_load %arg15[%c12, %c0_64] {strides = array<i32: 16, 1>} : memref<128x64xf32, #tpu.memory_space<vmem>>, vector<8x64xf32>
    tpu.strided_store %arg15[%c12, %c0_64], %178 {strides = array<i32: 16, 1>} : memref<128x64xf32, #tpu.memory_space<vmem>>, vector<8x64xf32>
    %180 = vector.extract_strided_slice %49 {offsets = [0, 12], sizes = [8, 1], strides = [1, 1]} : vector<8x16xf32> to vector<8x1xf32>
    %181 = vector.broadcast %180 : vector<8x1xf32> to vector<8x64xf32>
    %182 = arith.mulf %66, %181 : vector<8x64xf32>
    %c12_65 = arith.constant 12 : index
    %c0_66 = arith.constant 0 : index
    %183 = tpu.strided_load %arg16[%c12_65, %c0_66] {strides = array<i32: 16, 1>} : memref<128x64xf32, #tpu.memory_space<vmem>>, vector<8x64xf32>
    tpu.strided_store %arg16[%c12_65, %c0_66], %182 {strides = array<i32: 16, 1>} : memref<128x64xf32, #tpu.memory_space<vmem>>, vector<8x64xf32>
    %184 = vector.extract_strided_slice %65 {offsets = [13, 0], sizes = [1, 64], strides = [1, 1]} : vector<16x64xf32> to vector<1x64xf32>
    %185 = vector.broadcast %184 : vector<1x64xf32> to vector<8x64xf32>
    %186 = arith.mulf %64, %185 : vector<8x64xf32>
    %187 = math.exp %186 : vector<8x64xf32>
    %c13 = arith.constant 13 : index
    %c0_67 = arith.constant 0 : index
    %188 = tpu.strided_load %arg15[%c13, %c0_67] {strides = array<i32: 16, 1>} : memref<128x64xf32, #tpu.memory_space<vmem>>, vector<8x64xf32>
    tpu.strided_store %arg15[%c13, %c0_67], %187 {strides = array<i32: 16, 1>} : memref<128x64xf32, #tpu.memory_space<vmem>>, vector<8x64xf32>
    %189 = vector.extract_strided_slice %49 {offsets = [0, 13], sizes = [8, 1], strides = [1, 1]} : vector<8x16xf32> to vector<8x1xf32>
    %190 = vector.broadcast %189 : vector<8x1xf32> to vector<8x64xf32>
    %191 = arith.mulf %66, %190 : vector<8x64xf32>
    %c13_68 = arith.constant 13 : index
    %c0_69 = arith.constant 0 : index
    %192 = tpu.strided_load %arg16[%c13_68, %c0_69] {strides = array<i32: 16, 1>} : memref<128x64xf32, #tpu.memory_space<vmem>>, vector<8x64xf32>
    tpu.strided_store %arg16[%c13_68, %c0_69], %191 {strides = array<i32: 16, 1>} : memref<128x64xf32, #tpu.memory_space<vmem>>, vector<8x64xf32>
    %193 = vector.extract_strided_slice %65 {offsets = [14, 0], sizes = [1, 64], strides = [1, 1]} : vector<16x64xf32> to vector<1x64xf32>
    %194 = vector.broadcast %193 : vector<1x64xf32> to vector<8x64xf32>
    %195 = arith.mulf %64, %194 : vector<8x64xf32>
    %196 = math.exp %195 : vector<8x64xf32>
    %c14 = arith.constant 14 : index
    %c0_70 = arith.constant 0 : index
    %197 = tpu.strided_load %arg15[%c14, %c0_70] {strides = array<i32: 16, 1>} : memref<128x64xf32, #tpu.memory_space<vmem>>, vector<8x64xf32>
    tpu.strided_store %arg15[%c14, %c0_70], %196 {strides = array<i32: 16, 1>} : memref<128x64xf32, #tpu.memory_space<vmem>>, vector<8x64xf32>
    %198 = vector.extract_strided_slice %49 {offsets = [0, 14], sizes = [8, 1], strides = [1, 1]} : vector<8x16xf32> to vector<8x1xf32>
    %199 = vector.broadcast %198 : vector<8x1xf32> to vector<8x64xf32>
    %200 = arith.mulf %66, %199 : vector<8x64xf32>
    %c14_71 = arith.constant 14 : index
    %c0_72 = arith.constant 0 : index
    %201 = tpu.strided_load %arg16[%c14_71, %c0_72] {strides = array<i32: 16, 1>} : memref<128x64xf32, #tpu.memory_space<vmem>>, vector<8x64xf32>
    tpu.strided_store %arg16[%c14_71, %c0_72], %200 {strides = array<i32: 16, 1>} : memref<128x64xf32, #tpu.memory_space<vmem>>, vector<8x64xf32>
    %202 = vector.extract_strided_slice %65 {offsets = [15, 0], sizes = [1, 64], strides = [1, 1]} : vector<16x64xf32> to vector<1x64xf32>
    %203 = vector.broadcast %202 : vector<1x64xf32> to vector<8x64xf32>
    %204 = arith.mulf %64, %203 : vector<8x64xf32>
    %205 = math.exp %204 : vector<8x64xf32>
    %c15 = arith.constant 15 : index
    %c0_73 = arith.constant 0 : index
    %206 = tpu.strided_load %arg15[%c15, %c0_73] {strides = array<i32: 16, 1>} : memref<128x64xf32, #tpu.memory_space<vmem>>, vector<8x64xf32>
    tpu.strided_store %arg15[%c15, %c0_73], %205 {strides = array<i32: 16, 1>} : memref<128x64xf32, #tpu.memory_space<vmem>>, vector<8x64xf32>
    %207 = vector.extract_strided_slice %49 {offsets = [0, 15], sizes = [8, 1], strides = [1, 1]} : vector<8x16xf32> to vector<8x1xf32>
    %208 = vector.broadcast %207 : vector<8x1xf32> to vector<8x64xf32>
    %209 = arith.mulf %66, %208 : vector<8x64xf32>
    %c15_74 = arith.constant 15 : index
    %c0_75 = arith.constant 0 : index
    %210 = tpu.strided_load %arg16[%c15_74, %c0_75] {strides = array<i32: 16, 1>} : memref<128x64xf32, #tpu.memory_space<vmem>>, vector<8x64xf32>
    tpu.strided_store %arg16[%c15_74, %c0_75], %209 {strides = array<i32: 16, 1>} : memref<128x64xf32, #tpu.memory_space<vmem>>, vector<8x64xf32>
    %c0_76 = arith.constant 0 : index
    %c0_77 = arith.constant 0 : index
    %211 = vector.load %arg17[%c0_76, %c0_77] : memref<16x64xf32, #tpu.memory_space<vmem>>, vector<16x64xf32>
    %c0_i32_78 = arith.constant 0 : i32
    %c16_i32 = arith.constant 16 : i32
    %212 = arith.muli %c0_i32_78, %c16_i32 : i32
    %213 = tpu.assume_multiple %212, 16 : i32
    %214 = arith.index_cast %213 : i32 to index
    %c0_79 = arith.constant 0 : index
    %215 = vector.load %arg15[%214, %c0_79] : memref<128x64xf32, #tpu.memory_space<vmem>>, vector<16x64xf32>
    %216 = arith.mulf %215, %211 : vector<16x64xf32>
    %217 = arith.index_cast %213 : i32 to index
    %c0_80 = arith.constant 0 : index
    %218 = vector.load %arg16[%217, %c0_80] : memref<128x64xf32, #tpu.memory_space<vmem>>, vector<16x64xf32>
    %219 = arith.addf %216, %218 : vector<16x64xf32>
    %220 = arith.index_cast %213 : i32 to index
    %c0_81 = arith.constant 0 : index
    %221 = vector.load %arg16[%220, %c0_81] : memref<128x64xf32, #tpu.memory_space<vmem>>, vector<16x64xf32>
    tpu.vector_store %arg16[%220, %c0_81], %219 {strides = array<i32>} : memref<128x64xf32, #tpu.memory_space<vmem>>, vector<16x64xf32>,
    %c1_i32 = arith.constant 1 : i32
    %c16_i32_82 = arith.constant 16 : i32
    %222 = arith.muli %c1_i32, %c16_i32_82 : i32
    %223 = tpu.assume_multiple %222, 16 : i32
    %224 = arith.index_cast %223 : i32 to index
    %c0_83 = arith.constant 0 : index
    %225 = vector.load %arg15[%224, %c0_83] : memref<128x64xf32, #tpu.memory_space<vmem>>, vector<16x64xf32>
    %226 = arith.mulf %225, %219 : vector<16x64xf32>
    %227 = arith.index_cast %223 : i32 to index
    %c0_84 = arith.constant 0 : index
    %228 = vector.load %arg16[%227, %c0_84] : memref<128x64xf32, #tpu.memory_space<vmem>>, vector<16x64xf32>
    %229 = arith.addf %226, %228 : vector<16x64xf32>
    %230 = arith.index_cast %223 : i32 to index
    %c0_85 = arith.constant 0 : index
    %231 = vector.load %arg16[%230, %c0_85] : memref<128x64xf32, #tpu.memory_space<vmem>>, vector<16x64xf32>
    tpu.vector_store %arg16[%230, %c0_85], %229 {strides = array<i32>} : memref<128x64xf32, #tpu.memory_space<vmem>>, vector<16x64xf32>,
    %c2_i32 = arith.constant 2 : i32
    %c16_i32_86 = arith.constant 16 : i32
    %232 = arith.muli %c2_i32, %c16_i32_86 : i32
    %233 = tpu.assume_multiple %232, 16 : i32
    %234 = arith.index_cast %233 : i32 to index
    %c0_87 = arith.constant 0 : index
    %235 = vector.load %arg15[%234, %c0_87] : memref<128x64xf32, #tpu.memory_space<vmem>>, vector<16x64xf32>
    %236 = arith.mulf %235, %229 : vector<16x64xf32>
    %237 = arith.index_cast %233 : i32 to index
    %c0_88 = arith.constant 0 : index
    %238 = vector.load %arg16[%237, %c0_88] : memref<128x64xf32, #tpu.memory_space<vmem>>, vector<16x64xf32>
    %239 = arith.addf %236, %238 : vector<16x64xf32>
    %240 = arith.index_cast %233 : i32 to index
    %c0_89 = arith.constant 0 : index
    %241 = vector.load %arg16[%240, %c0_89] : memref<128x64xf32, #tpu.memory_space<vmem>>, vector<16x64xf32>
    tpu.vector_store %arg16[%240, %c0_89], %239 {strides = array<i32>} : memref<128x64xf32, #tpu.memory_space<vmem>>, vector<16x64xf32>,
    %c3_i32 = arith.constant 3 : i32
    %c16_i32_90 = arith.constant 16 : i32
    %242 = arith.muli %c3_i32, %c16_i32_90 : i32
    %243 = tpu.assume_multiple %242, 16 : i32
    %244 = arith.index_cast %243 : i32 to index
    %c0_91 = arith.constant 0 : index
    %245 = vector.load %arg15[%244, %c0_91] : memref<128x64xf32, #tpu.memory_space<vmem>>, vector<16x64xf32>
    %246 = arith.mulf %245, %239 : vector<16x64xf32>
    %247 = arith.index_cast %243 : i32 to index
    %c0_92 = arith.constant 0 : index
    %248 = vector.load %arg16[%247, %c0_92] : memref<128x64xf32, #tpu.memory_space<vmem>>, vector<16x64xf32>
    %249 = arith.addf %246, %248 : vector<16x64xf32>
    %250 = arith.index_cast %243 : i32 to index
    %c0_93 = arith.constant 0 : index
    %251 = vector.load %arg16[%250, %c0_93] : memref<128x64xf32, #tpu.memory_space<vmem>>, vector<16x64xf32>
    tpu.vector_store %arg16[%250, %c0_93], %249 {strides = array<i32>} : memref<128x64xf32, #tpu.memory_space<vmem>>, vector<16x64xf32>,
    %c4_i32 = arith.constant 4 : i32
    %c16_i32_94 = arith.constant 16 : i32
    %252 = arith.muli %c4_i32, %c16_i32_94 : i32
    %253 = tpu.assume_multiple %252, 16 : i32
    %254 = arith.index_cast %253 : i32 to index
    %c0_95 = arith.constant 0 : index
    %255 = vector.load %arg15[%254, %c0_95] : memref<128x64xf32, #tpu.memory_space<vmem>>, vector<16x64xf32>
    %256 = arith.mulf %255, %249 : vector<16x64xf32>
    %257 = arith.index_cast %253 : i32 to index
    %c0_96 = arith.constant 0 : index
    %258 = vector.load %arg16[%257, %c0_96] : memref<128x64xf32, #tpu.memory_space<vmem>>, vector<16x64xf32>
    %259 = arith.addf %256, %258 : vector<16x64xf32>
    %260 = arith.index_cast %253 : i32 to index
    %c0_97 = arith.constant 0 : index
    %261 = vector.load %arg16[%260, %c0_97] : memref<128x64xf32, #tpu.memory_space<vmem>>, vector<16x64xf32>
    tpu.vector_store %arg16[%260, %c0_97], %259 {strides = array<i32>} : memref<128x64xf32, #tpu.memory_space<vmem>>, vector<16x64xf32>,
    %c5_i32 = arith.constant 5 : i32
    %c16_i32_98 = arith.constant 16 : i32
    %262 = arith.muli %c5_i32, %c16_i32_98 : i32
    %263 = tpu.assume_multiple %262, 16 : i32
    %264 = arith.index_cast %263 : i32 to index
    %c0_99 = arith.constant 0 : index
    %265 = vector.load %arg15[%264, %c0_99] : memref<128x64xf32, #tpu.memory_space<vmem>>, vector<16x64xf32>
    %266 = arith.mulf %265, %259 : vector<16x64xf32>
    %267 = arith.index_cast %263 : i32 to index
    %c0_100 = arith.constant 0 : index
    %268 = vector.load %arg16[%267, %c0_100] : memref<128x64xf32, #tpu.memory_space<vmem>>, vector<16x64xf32>
    %269 = arith.addf %266, %268 : vector<16x64xf32>
    %270 = arith.index_cast %263 : i32 to index
    %c0_101 = arith.constant 0 : index
    %271 = vector.load %arg16[%270, %c0_101] : memref<128x64xf32, #tpu.memory_space<vmem>>, vector<16x64xf32>
    tpu.vector_store %arg16[%270, %c0_101], %269 {strides = array<i32>} : memref<128x64xf32, #tpu.memory_space<vmem>>, vector<16x64xf32>,
    %c6_i32 = arith.constant 6 : i32
    %c16_i32_102 = arith.constant 16 : i32
    %272 = arith.muli %c6_i32, %c16_i32_102 : i32
    %273 = tpu.assume_multiple %272, 16 : i32
    %274 = arith.index_cast %273 : i32 to index
    %c0_103 = arith.constant 0 : index
    %275 = vector.load %arg15[%274, %c0_103] : memref<128x64xf32, #tpu.memory_space<vmem>>, vector<16x64xf32>
    %276 = arith.mulf %275, %269 : vector<16x64xf32>
    %277 = arith.index_cast %273 : i32 to index
    %c0_104 = arith.constant 0 : index
    %278 = vector.load %arg16[%277, %c0_104] : memref<128x64xf32, #tpu.memory_space<vmem>>, vector<16x64xf32>
    %279 = arith.addf %276, %278 : vector<16x64xf32>
    %280 = arith.index_cast %273 : i32 to index
    %c0_105 = arith.constant 0 : index
    %281 = vector.load %arg16[%280, %c0_105] : memref<128x64xf32, #tpu.memory_space<vmem>>, vector<16x64xf32>
    tpu.vector_store %arg16[%280, %c0_105], %279 {strides = array<i32>} : memref<128x64xf32, #tpu.memory_space<vmem>>, vector<16x64xf32>,
    %c7_i32 = arith.constant 7 : i32
    %c16_i32_106 = arith.constant 16 : i32
    %282 = arith.muli %c7_i32, %c16_i32_106 : i32
    %283 = tpu.assume_multiple %282, 16 : i32
    %284 = arith.index_cast %283 : i32 to index
    %c0_107 = arith.constant 0 : index
    %285 = vector.load %arg15[%284, %c0_107] : memref<128x64xf32, #tpu.memory_space<vmem>>, vector<16x64xf32>
    %286 = arith.mulf %285, %279 : vector<16x64xf32>
    %287 = arith.index_cast %283 : i32 to index
    %c0_108 = arith.constant 0 : index
    %288 = vector.load %arg16[%287, %c0_108] : memref<128x64xf32, #tpu.memory_space<vmem>>, vector<16x64xf32>
    %289 = arith.addf %286, %288 : vector<16x64xf32>
    %290 = arith.index_cast %283 : i32 to index
    %c0_109 = arith.constant 0 : index
    %291 = vector.load %arg16[%290, %c0_109] : memref<128x64xf32, #tpu.memory_space<vmem>>, vector<16x64xf32>
    tpu.vector_store %arg16[%290, %c0_109], %289 {strides = array<i32>} : memref<128x64xf32, #tpu.memory_space<vmem>>, vector<16x64xf32>,
    %c8_i32 = arith.constant 8 : i32
    %c0_110 = arith.constant 0 : index
    %c0_111 = arith.constant 0 : index
    %292 = vector.load %arg17[%c0_110, %c0_111] : memref<16x64xf32, #tpu.memory_space<vmem>>, vector<16x64xf32>
    tpu.vector_store %arg17[%c0_110, %c0_111], %289 {strides = array<i32>} : memref<16x64xf32, #tpu.memory_space<vmem>>, vector<16x64xf32>,
    %c0_112 = arith.constant 0 : index
    %c0_113 = arith.constant 0 : index
    %293 = vector.load %arg10[%c0_112, %c0_113] : memref<1x64xf32, #tpu.memory_space<vmem>>, vector<1x64xf32>
    %294 = vector.broadcast %293 : vector<1x64xf32> to vector<8x64xf32>
    %295 = arith.mulf %294, %44 : vector<8x64xf32>
    %296 = vector.extract_strided_slice %50 {offsets = [0, 0], sizes = [8, 1], strides = [1, 1]} : vector<8x16xf32> to vector<8x1xf32>
    %c0_114 = arith.constant 0 : index
    %c0_115 = arith.constant 0 : index
    %297 = tpu.strided_load %arg16[%c0_114, %c0_115] {strides = array<i32: 16, 1>} : memref<128x64xf32, #tpu.memory_space<vmem>>, vector<8x64xf32>
    %298 = vector.broadcast %296 : vector<8x1xf32> to vector<8x64xf32>
    %299 = arith.mulf %298, %297 : vector<8x64xf32>
    %300 = arith.addf %295, %299 : vector<8x64xf32>
    %301 = vector.extract_strided_slice %50 {offsets = [0, 1], sizes = [8, 1], strides = [1, 1]} : vector<8x16xf32> to vector<8x1xf32>
    %c1_116 = arith.constant 1 : index
    %c0_117 = arith.constant 0 : index
    %302 = tpu.strided_load %arg16[%c1_116, %c0_117] {strides = array<i32: 16, 1>} : memref<128x64xf32, #tpu.memory_space<vmem>>, vector<8x64xf32>
    %303 = vector.broadcast %301 : vector<8x1xf32> to vector<8x64xf32>
    %304 = arith.mulf %303, %302 : vector<8x64xf32>
    %305 = arith.addf %300, %304 : vector<8x64xf32>
    %306 = vector.extract_strided_slice %50 {offsets = [0, 2], sizes = [8, 1], strides = [1, 1]} : vector<8x16xf32> to vector<8x1xf32>
    %c2_118 = arith.constant 2 : index
    %c0_119 = arith.constant 0 : index
    %307 = tpu.strided_load %arg16[%c2_118, %c0_119] {strides = array<i32: 16, 1>} : memref<128x64xf32, #tpu.memory_space<vmem>>, vector<8x64xf32>
    %308 = vector.broadcast %306 : vector<8x1xf32> to vector<8x64xf32>
    %309 = arith.mulf %308, %307 : vector<8x64xf32>
    %310 = arith.addf %305, %309 : vector<8x64xf32>
    %311 = vector.extract_strided_slice %50 {offsets = [0, 3], sizes = [8, 1], strides = [1, 1]} : vector<8x16xf32> to vector<8x1xf32>
    %c3_120 = arith.constant 3 : index
    %c0_121 = arith.constant 0 : index
    %312 = tpu.strided_load %arg16[%c3_120, %c0_121] {strides = array<i32: 16, 1>} : memref<128x64xf32, #tpu.memory_space<vmem>>, vector<8x64xf32>
    %313 = vector.broadcast %311 : vector<8x1xf32> to vector<8x64xf32>
    %314 = arith.mulf %313, %312 : vector<8x64xf32>
    %315 = arith.addf %310, %314 : vector<8x64xf32>
    %316 = vector.extract_strided_slice %50 {offsets = [0, 4], sizes = [8, 1], strides = [1, 1]} : vector<8x16xf32> to vector<8x1xf32>
    %c4_122 = arith.constant 4 : index
    %c0_123 = arith.constant 0 : index
    %317 = tpu.strided_load %arg16[%c4_122, %c0_123] {strides = array<i32: 16, 1>} : memref<128x64xf32, #tpu.memory_space<vmem>>, vector<8x64xf32>
    %318 = vector.broadcast %316 : vector<8x1xf32> to vector<8x64xf32>
    %319 = arith.mulf %318, %317 : vector<8x64xf32>
    %320 = arith.addf %315, %319 : vector<8x64xf32>
    %321 = vector.extract_strided_slice %50 {offsets = [0, 5], sizes = [8, 1], strides = [1, 1]} : vector<8x16xf32> to vector<8x1xf32>
    %c5_124 = arith.constant 5 : index
    %c0_125 = arith.constant 0 : index
    %322 = tpu.strided_load %arg16[%c5_124, %c0_125] {strides = array<i32: 16, 1>} : memref<128x64xf32, #tpu.memory_space<vmem>>, vector<8x64xf32>
    %323 = vector.broadcast %321 : vector<8x1xf32> to vector<8x64xf32>
    %324 = arith.mulf %323, %322 : vector<8x64xf32>
    %325 = arith.addf %320, %324 : vector<8x64xf32>
    %326 = vector.extract_strided_slice %50 {offsets = [0, 6], sizes = [8, 1], strides = [1, 1]} : vector<8x16xf32> to vector<8x1xf32>
    %c6_126 = arith.constant 6 : index
    %c0_127 = arith.constant 0 : index
    %327 = tpu.strided_load %arg16[%c6_126, %c0_127] {strides = array<i32: 16, 1>} : memref<128x64xf32, #tpu.memory_space<vmem>>, vector<8x64xf32>
    %328 = vector.broadcast %326 : vector<8x1xf32> to vector<8x64xf32>
    %329 = arith.mulf %328, %327 : vector<8x64xf32>
    %330 = arith.addf %325, %329 : vector<8x64xf32>
    %331 = vector.extract_strided_slice %50 {offsets = [0, 7], sizes = [8, 1], strides = [1, 1]} : vector<8x16xf32> to vector<8x1xf32>
    %c7_128 = arith.constant 7 : index
    %c0_129 = arith.constant 0 : index
    %332 = tpu.strided_load %arg16[%c7_128, %c0_129] {strides = array<i32: 16, 1>} : memref<128x64xf32, #tpu.memory_space<vmem>>, vector<8x64xf32>
    %333 = vector.broadcast %331 : vector<8x1xf32> to vector<8x64xf32>
    %334 = arith.mulf %333, %332 : vector<8x64xf32>
    %335 = arith.addf %330, %334 : vector<8x64xf32>
    %336 = vector.extract_strided_slice %50 {offsets = [0, 8], sizes = [8, 1], strides = [1, 1]} : vector<8x16xf32> to vector<8x1xf32>
    %c8_130 = arith.constant 8 : index
    %c0_131 = arith.constant 0 : index
    %337 = tpu.strided_load %arg16[%c8_130, %c0_131] {strides = array<i32: 16, 1>} : memref<128x64xf32, #tpu.memory_space<vmem>>, vector<8x64xf32>
    %338 = vector.broadcast %336 : vector<8x1xf32> to vector<8x64xf32>
    %339 = arith.mulf %338, %337 : vector<8x64xf32>
    %340 = arith.addf %335, %339 : vector<8x64xf32>
    %341 = vector.extract_strided_slice %50 {offsets = [0, 9], sizes = [8, 1], strides = [1, 1]} : vector<8x16xf32> to vector<8x1xf32>
    %c9_132 = arith.constant 9 : index
    %c0_133 = arith.constant 0 : index
    %342 = tpu.strided_load %arg16[%c9_132, %c0_133] {strides = array<i32: 16, 1>} : memref<128x64xf32, #tpu.memory_space<vmem>>, vector<8x64xf32>
    %343 = vector.broadcast %341 : vector<8x1xf32> to vector<8x64xf32>
    %344 = arith.mulf %343, %342 : vector<8x64xf32>
    %345 = arith.addf %340, %344 : vector<8x64xf32>
    %346 = vector.extract_strided_slice %50 {offsets = [0, 10], sizes = [8, 1], strides = [1, 1]} : vector<8x16xf32> to vector<8x1xf32>
    %c10_134 = arith.constant 10 : index
    %c0_135 = arith.constant 0 : index
    %347 = tpu.strided_load %arg16[%c10_134, %c0_135] {strides = array<i32: 16, 1>} : memref<128x64xf32, #tpu.memory_space<vmem>>, vector<8x64xf32>
    %348 = vector.broadcast %346 : vector<8x1xf32> to vector<8x64xf32>
    %349 = arith.mulf %348, %347 : vector<8x64xf32>
    %350 = arith.addf %345, %349 : vector<8x64xf32>
    %351 = vector.extract_strided_slice %50 {offsets = [0, 11], sizes = [8, 1], strides = [1, 1]} : vector<8x16xf32> to vector<8x1xf32>
    %c11_136 = arith.constant 11 : index
    %c0_137 = arith.constant 0 : index
    %352 = tpu.strided_load %arg16[%c11_136, %c0_137] {strides = array<i32: 16, 1>} : memref<128x64xf32, #tpu.memory_space<vmem>>, vector<8x64xf32>
    %353 = vector.broadcast %351 : vector<8x1xf32> to vector<8x64xf32>
    %354 = arith.mulf %353, %352 : vector<8x64xf32>
    %355 = arith.addf %350, %354 : vector<8x64xf32>
    %356 = vector.extract_strided_slice %50 {offsets = [0, 12], sizes = [8, 1], strides = [1, 1]} : vector<8x16xf32> to vector<8x1xf32>
    %c12_138 = arith.constant 12 : index
    %c0_139 = arith.constant 0 : index
    %357 = tpu.strided_load %arg16[%c12_138, %c0_139] {strides = array<i32: 16, 1>} : memref<128x64xf32, #tpu.memory_space<vmem>>, vector<8x64xf32>
    %358 = vector.broadcast %356 : vector<8x1xf32> to vector<8x64xf32>
    %359 = arith.mulf %358, %357 : vector<8x64xf32>
    %360 = arith.addf %355, %359 : vector<8x64xf32>
    %361 = vector.extract_strided_slice %50 {offsets = [0, 13], sizes = [8, 1], strides = [1, 1]} : vector<8x16xf32> to vector<8x1xf32>
    %c13_140 = arith.constant 13 : index
    %c0_141 = arith.constant 0 : index
    %362 = tpu.strided_load %arg16[%c13_140, %c0_141] {strides = array<i32: 16, 1>} : memref<128x64xf32, #tpu.memory_space<vmem>>, vector<8x64xf32>
    %363 = vector.broadcast %361 : vector<8x1xf32> to vector<8x64xf32>
    %364 = arith.mulf %363, %362 : vector<8x64xf32>
    %365 = arith.addf %360, %364 : vector<8x64xf32>
    %366 = vector.extract_strided_slice %50 {offsets = [0, 14], sizes = [8, 1], strides = [1, 1]} : vector<8x16xf32> to vector<8x1xf32>
    %c14_142 = arith.constant 14 : index
    %c0_143 = arith.constant 0 : index
    %367 = tpu.strided_load %arg16[%c14_142, %c0_143] {strides = array<i32: 16, 1>} : memref<128x64xf32, #tpu.memory_space<vmem>>, vector<8x64xf32>
    %368 = vector.broadcast %366 : vector<8x1xf32> to vector<8x64xf32>
    %369 = arith.mulf %368, %367 : vector<8x64xf32>
    %370 = arith.addf %365, %369 : vector<8x64xf32>
    %371 = vector.extract_strided_slice %50 {offsets = [0, 15], sizes = [8, 1], strides = [1, 1]} : vector<8x16xf32> to vector<8x1xf32>
    %c15_144 = arith.constant 15 : index
    %c0_145 = arith.constant 0 : index
    %372 = tpu.strided_load %arg16[%c15_144, %c0_145] {strides = array<i32: 16, 1>} : memref<128x64xf32, #tpu.memory_space<vmem>>, vector<8x64xf32>
    %373 = vector.broadcast %371 : vector<8x1xf32> to vector<8x64xf32>
    %374 = arith.mulf %373, %372 : vector<8x64xf32>
    %375 = arith.addf %370, %374 : vector<8x64xf32>
    %376 = arith.negf %9 : vector<8x64xf32>
    %377 = math.exp %376 : vector<8x64xf32>
    %cst_146 = arith.constant 1.000000e+00 : f32
    %378 = vector.broadcast %cst_146 : f32 to vector<8x64xf32>
    %379 = arith.addf %378, %377 : vector<8x64xf32>
    %380 = arith.divf %378, %379 : vector<8x64xf32>
    %381 = arith.mulf %9, %380 : vector<8x64xf32>
    %382 = arith.mulf %375, %381 : vector<8x64xf32>
    %383 = arith.truncf %382 : vector<8x64xf32> to vector<8x64xbf16>
    %c0_147 = arith.constant 0 : index
    %c0_148 = arith.constant 0 : index
    %384 = vector.load %arg11[%c0_147, %c0_148] : memref<64x32xbf16, #tpu.memory_space<vmem>>, vector<64x32xbf16>
    %cst_149 = arith.constant dense<0.000000e+00> : vector<8x32xf32>
    %385 = tpu.matmul %383, %384, %cst_149 {dimension_numbers = #tpu.dot_dimension_numbers<[1], [0], [0], [1], [0, 0, 1, 1], [], []>} : vector<8x64xbf16>, vector<64x32xbf16>, vector<8x32xf32> -> vector<8x32xf32>
    %386 = arith.addf %385, %4 : vector<8x32xf32>
    %cst_150 = arith.constant dense<0.000000e+00> : vector<8xf32>
    %387 = vector.multi_reduction <add>, %386, %cst_150 [1] : vector<8x32xf32> to vector<8xf32>
    %388 = vector.shape_cast %387 : vector<8xf32> to vector<8x1xf32>
    %cst_151 = arith.constant 3.200000e+01 : f32
    %389 = vector.broadcast %cst_151 : f32 to vector<8x1xf32>
    %390 = arith.divf %388, %389 : vector<8x1xf32>
    %391 = vector.broadcast %390 : vector<8x1xf32> to vector<8x32xf32>
    %392 = arith.subf %386, %391 : vector<8x32xf32>
    %393 = vector.broadcast %390 : vector<8x1xf32> to vector<8x32xf32>
    %394 = arith.subf %386, %393 : vector<8x32xf32>
    %395 = arith.mulf %392, %394 : vector<8x32xf32>
    %cst_152 = arith.constant dense<0.000000e+00> : vector<8xf32>
    %396 = vector.multi_reduction <add>, %395, %cst_152 [1] : vector<8x32xf32> to vector<8xf32>
    %397 = vector.shape_cast %396 : vector<8xf32> to vector<8x1xf32>
    %cst_153 = arith.constant 3.200000e+01 : f32
    %398 = vector.broadcast %cst_153 : f32 to vector<8x1xf32>
    %399 = arith.divf %397, %398 : vector<8x1xf32>
    %400 = vector.broadcast %390 : vector<8x1xf32> to vector<8x32xf32>
    %401 = arith.subf %386, %400 : vector<8x32xf32>
    %cst_154 = arith.constant 9.99999974E-6 : f32
    %402 = vector.broadcast %cst_154 : f32 to vector<8x1xf32>
    %403 = arith.addf %399, %402 : vector<8x1xf32>
    %404 = math.rsqrt %403 : vector<8x1xf32>
    %405 = vector.broadcast %404 : vector<8x1xf32> to vector<8x32xf32>
    %406 = arith.mulf %401, %405 : vector<8x32xf32>
    %c0_155 = arith.constant 0 : index
    %c0_156 = arith.constant 0 : index
    %407 = vector.load %arg12[%c0_155, %c0_156] : memref<1x32xf32, #tpu.memory_space<vmem>>, vector<1x32xf32>
    %408 = vector.broadcast %407 : vector<1x32xf32> to vector<8x32xf32>
    %409 = arith.mulf %406, %408 : vector<8x32xf32>
    %c0_157 = arith.constant 0 : index
    %c0_158 = arith.constant 0 : index
    %410 = vector.load %arg13[%c0_157, %c0_158] : memref<1x32xf32, #tpu.memory_space<vmem>>, vector<1x32xf32>
    %411 = vector.broadcast %410 : vector<1x32xf32> to vector<8x32xf32>
    %412 = arith.addf %409, %411 : vector<8x32xf32>
    %c0_159 = arith.constant 0 : index
    %c0_160 = arith.constant 0 : index
    %c0_161 = arith.constant 0 : index
    %413 = vector.load %arg14[%c0_159, %c0_160, %c0_161] : memref<1x8x32xf32, #tpu.memory_space<vmem>>, vector<1x8x32xf32>
    %414 = vector.shape_cast %413 : vector<1x8x32xf32> to vector<8x32xf32>
    %415 = vector.shape_cast %412 : vector<8x32xf32> to vector<1x8x32xf32>
    tpu.vector_store %arg14[%c0_159, %c0_160, %c0_161], %415 {strides = array<i32>} : memref<1x8x32xf32, #tpu.memory_space<vmem>>, vector<1x8x32xf32>,
    return
  }
  func.func @transform_0(%arg0: i32, %arg1: i32) -> (i32, i32, i32) {
    %c0_i32 = arith.constant 0 : i32
    %c0_i32_0 = arith.constant 0 : i32
    return %arg0, %arg1, %c0_i32 : i32, i32, i32
  }
  func.func @transform_1(%arg0: i32, %arg1: i32) -> (i32, i32) {
    %c0_i32 = arith.constant 0 : i32
    %c0_i32_0 = arith.constant 0 : i32
    %c0_i32_1 = arith.constant 0 : i32
    return %c0_i32, %c0_i32_0 : i32, i32
  }
  func.func @transform_2(%arg0: i32, %arg1: i32) -> (i32, i32) {
    %c0_i32 = arith.constant 0 : i32
    %c0_i32_0 = arith.constant 0 : i32
    %c0_i32_1 = arith.constant 0 : i32
    return %c0_i32, %c0_i32_0 : i32, i32
  }
  func.func @transform_3(%arg0: i32, %arg1: i32) -> (i32, i32) {
    %c0_i32 = arith.constant 0 : i32
    %c0_i32_0 = arith.constant 0 : i32
    %c0_i32_1 = arith.constant 0 : i32
    return %c0_i32, %c0_i32_0 : i32, i32
  }
  func.func @transform_4(%arg0: i32, %arg1: i32) -> (i32, i32) {
    %c0_i32 = arith.constant 0 : i32
    %c0_i32_0 = arith.constant 0 : i32
    %c0_i32_1 = arith.constant 0 : i32
    return %c0_i32, %c0_i32_0 : i32, i32
  }
  func.func @transform_5(%arg0: i32, %arg1: i32) -> (i32, i32) {
    %c0_i32 = arith.constant 0 : i32
    %c0_i32_0 = arith.constant 0 : i32
    %c0_i32_1 = arith.constant 0 : i32
    return %c0_i32, %c0_i32_0 : i32, i32
  }
  func.func @transform_6(%arg0: i32, %arg1: i32) -> (i32, i32) {
    %c0_i32 = arith.constant 0 : i32
    %c0_i32_0 = arith.constant 0 : i32
    %c0_i32_1 = arith.constant 0 : i32
    return %c0_i32, %c0_i32_0 : i32, i32
  }
  func.func @transform_7(%arg0: i32, %arg1: i32) -> (i32, i32) {
    %c0_i32 = arith.constant 0 : i32
    %c0_i32_0 = arith.constant 0 : i32
    %c0_i32_1 = arith.constant 0 : i32
    return %c0_i32, %c0_i32_0 : i32, i32
  }
  func.func @transform_8(%arg0: i32, %arg1: i32) -> (i32, i32) {
    %c0_i32 = arith.constant 0 : i32
    %c0_i32_0 = arith.constant 0 : i32
    %c0_i32_1 = arith.constant 0 : i32
    return %c0_i32, %c0_i32_0 : i32, i32
  }
  func.func @transform_9(%arg0: i32, %arg1: i32) -> (i32, i32) {
    %c0_i32 = arith.constant 0 : i32
    %c0_i32_0 = arith.constant 0 : i32
    %c0_i32_1 = arith.constant 0 : i32
    return %c0_i32, %c0_i32_0 : i32, i32
  }
  func.func @transform_10(%arg0: i32, %arg1: i32) -> (i32, i32) {
    %c0_i32 = arith.constant 0 : i32
    %c0_i32_0 = arith.constant 0 : i32
    %c0_i32_1 = arith.constant 0 : i32
    return %c0_i32, %c0_i32_0 : i32, i32
  }
  func.func @transform_11(%arg0: i32, %arg1: i32) -> (i32, i32) {
    %c0_i32 = arith.constant 0 : i32
    %c0_i32_0 = arith.constant 0 : i32
    %c0_i32_1 = arith.constant 0 : i32
    return %c0_i32, %c0_i32_0 : i32, i32
  }
  func.func @transform_12(%arg0: i32, %arg1: i32) -> (i32, i32, i32) {
    %c0_i32 = arith.constant 0 : i32
    %c0_i32_0 = arith.constant 0 : i32
    return %arg0, %arg1, %c0_i32 : i32, i32, i32
  }
}

module attributes {stable_mosaic.version = 11 : i64} {
  func.func @_ffn_add_ln_kernel(%arg0: i32, %arg1: i32, %arg2: memref<32x32xf32, #tpu.memory_space<vmem>>, %arg3: memref<32x32xf32, #tpu.memory_space<vmem>>, %arg4: memref<32x64xbf16, #tpu.memory_space<vmem>>, %arg5: memref<1x64xf32, #tpu.memory_space<vmem>>, %arg6: memref<64x32xbf16, #tpu.memory_space<vmem>>, %arg7: memref<1x32xf32, #tpu.memory_space<vmem>>, %arg8: memref<1x32xf32, #tpu.memory_space<vmem>>, %arg9: memref<1x32xf32, #tpu.memory_space<vmem>>, %arg10: memref<32x32xf32, #tpu.memory_space<vmem>>, %arg11: memref<32x32xf32, #tpu.memory_space<vmem>>) attributes {dimension_semantics = [#tpu.dimension_semantics<parallel>, #tpu.dimension_semantics<arbitrary>], iteration_bounds = array<i64: 1, 1>, scalar_prefetch = 0 : i64, scratch_operands = 1 : i64, tpu.core_type = #tpu.core_type<tc>, window_params = [{transform_indices = @transform_0, window_bounds = array<i64: 32, 32>}, {transform_indices = @transform_1, window_bounds = array<i64: 32, 32>}, {transform_indices = @transform_2, window_bounds = array<i64: 32, 64>}, {transform_indices = @transform_3, window_bounds = array<i64: 1, 64>}, {transform_indices = @transform_4, window_bounds = array<i64: 64, 32>}, {pipeline_mode = #tpu.pipeline_mode<synchronous>, transform_indices = @transform_5, window_bounds = array<i64: 1, 32>}, {pipeline_mode = #tpu.pipeline_mode<synchronous>, transform_indices = @transform_6, window_bounds = array<i64: 1, 32>}, {pipeline_mode = #tpu.pipeline_mode<synchronous>, transform_indices = @transform_7, window_bounds = array<i64: 1, 32>}, {transform_indices = @transform_8, window_bounds = array<i64: 32, 32>}]} {
    %c0_i32 = arith.constant 0 : i32
    %0 = arith.cmpi eq, %arg1, %c0_i32 : i32
    %1 = arith.extui %0 : i1 to i32
    %c0_i32_0 = arith.constant 0 : i32
    %2 = arith.cmpi ne, %1, %c0_i32_0 : i32
    scf.if %2 {
      %cst_16 = arith.constant 0.000000e+00 : f32
      %21 = vector.broadcast %cst_16 : f32 to vector<32x32xf32>
      %c0_17 = arith.constant 0 : index
      %c0_18 = arith.constant 0 : index
      %22 = vector.load %arg11[%c0_17, %c0_18] : memref<32x32xf32, #tpu.memory_space<vmem>>, vector<32x32xf32>
      tpu.vector_store %arg11[%c0_17, %c0_18], %21 {strides = array<i32>} : memref<32x32xf32, #tpu.memory_space<vmem>>, vector<32x32xf32>,
    } else {
    }
    %c0 = arith.constant 0 : index
    %c0_1 = arith.constant 0 : index
    %3 = vector.load %arg2[%c0, %c0_1] : memref<32x32xf32, #tpu.memory_space<vmem>>, vector<32x32xf32>
    %4 = arith.truncf %3 : vector<32x32xf32> to vector<32x32xbf16>
    %c0_2 = arith.constant 0 : index
    %c0_3 = arith.constant 0 : index
    %5 = vector.load %arg4[%c0_2, %c0_3] : memref<32x64xbf16, #tpu.memory_space<vmem>>, vector<32x64xbf16>
    %cst = arith.constant dense<0.000000e+00> : vector<32x64xf32>
    %6 = tpu.matmul %4, %5, %cst {dimension_numbers = #tpu.dot_dimension_numbers<[1], [0], [0], [1], [0, 0, 1, 1], [], []>} : vector<32x32xbf16>, vector<32x64xbf16>, vector<32x64xf32> -> vector<32x64xf32>
    %c0_4 = arith.constant 0 : index
    %c0_5 = arith.constant 0 : index
    %7 = vector.load %arg5[%c0_4, %c0_5] : memref<1x64xf32, #tpu.memory_space<vmem>>, vector<1x64xf32>
    %8 = vector.broadcast %7 : vector<1x64xf32> to vector<32x64xf32>
    %9 = arith.addf %6, %8 : vector<32x64xf32>
    %cst_6 = arith.constant 0.000000e+00 : f32
    %10 = vector.broadcast %cst_6 : f32 to vector<32x64xf32>
    %11 = arith.maximumf %9, %10 : vector<32x64xf32>
    %c0_7 = arith.constant 0 : index
    %c0_8 = arith.constant 0 : index
    %12 = vector.load %arg11[%c0_7, %c0_8] : memref<32x32xf32, #tpu.memory_space<vmem>>, vector<32x32xf32>
    %13 = arith.truncf %11 : vector<32x64xf32> to vector<32x64xbf16>
    %c0_9 = arith.constant 0 : index
    %c0_10 = arith.constant 0 : index
    %14 = vector.load %arg6[%c0_9, %c0_10] : memref<64x32xbf16, #tpu.memory_space<vmem>>, vector<64x32xbf16>
    %cst_11 = arith.constant dense<0.000000e+00> : vector<32x32xf32>
    %15 = tpu.matmul %13, %14, %cst_11 {dimension_numbers = #tpu.dot_dimension_numbers<[1], [0], [0], [1], [0, 0, 1, 1], [], []>} : vector<32x64xbf16>, vector<64x32xbf16>, vector<32x32xf32> -> vector<32x32xf32>
    %16 = arith.addf %12, %15 : vector<32x32xf32>
    %c0_12 = arith.constant 0 : index
    %c0_13 = arith.constant 0 : index
    %17 = vector.load %arg11[%c0_12, %c0_13] : memref<32x32xf32, #tpu.memory_space<vmem>>, vector<32x32xf32>
    tpu.vector_store %arg11[%c0_12, %c0_13], %16 {strides = array<i32>} : memref<32x32xf32, #tpu.memory_space<vmem>>, vector<32x32xf32>,
    %c0_i32_14 = arith.constant 0 : i32
    %18 = arith.cmpi eq, %arg1, %c0_i32_14 : i32
    %19 = arith.extui %18 : i1 to i32
    %c0_i32_15 = arith.constant 0 : i32
    %20 = arith.cmpi ne, %19, %c0_i32_15 : i32
    scf.if %20 {
      %c0_16 = arith.constant 0 : index
      %c0_17 = arith.constant 0 : index
      %21 = vector.load %arg11[%c0_16, %c0_17] : memref<32x32xf32, #tpu.memory_space<vmem>>, vector<32x32xf32>
      %c0_18 = arith.constant 0 : index
      %c0_19 = arith.constant 0 : index
      %22 = vector.load %arg7[%c0_18, %c0_19] : memref<1x32xf32, #tpu.memory_space<vmem>>, vector<1x32xf32>
      %23 = vector.broadcast %22 : vector<1x32xf32> to vector<32x32xf32>
      %24 = arith.addf %21, %23 : vector<32x32xf32>
      %c0_20 = arith.constant 0 : index
      %c0_21 = arith.constant 0 : index
      %25 = vector.load %arg3[%c0_20, %c0_21] : memref<32x32xf32, #tpu.memory_space<vmem>>, vector<32x32xf32>
      %26 = arith.addf %24, %25 : vector<32x32xf32>
      %cst_22 = arith.constant dense<0.000000e+00> : vector<32xf32>
      %27 = vector.multi_reduction <add>, %26, %cst_22 [1] : vector<32x32xf32> to vector<32xf32>
      %28 = vector.shape_cast %27 : vector<32xf32> to vector<32x1xf32>
      %cst_23 = arith.constant 3.200000e+01 : f32
      %29 = vector.broadcast %cst_23 : f32 to vector<32x1xf32>
      %30 = arith.divf %28, %29 : vector<32x1xf32>
      %31 = vector.broadcast %30 : vector<32x1xf32> to vector<32x32xf32>
      %32 = arith.subf %26, %31 : vector<32x32xf32>
      %33 = vector.broadcast %30 : vector<32x1xf32> to vector<32x32xf32>
      %34 = arith.subf %26, %33 : vector<32x32xf32>
      %35 = arith.mulf %32, %34 : vector<32x32xf32>
      %cst_24 = arith.constant dense<0.000000e+00> : vector<32xf32>
      %36 = vector.multi_reduction <add>, %35, %cst_24 [1] : vector<32x32xf32> to vector<32xf32>
      %37 = vector.shape_cast %36 : vector<32xf32> to vector<32x1xf32>
      %cst_25 = arith.constant 3.200000e+01 : f32
      %38 = vector.broadcast %cst_25 : f32 to vector<32x1xf32>
      %39 = arith.divf %37, %38 : vector<32x1xf32>
      %40 = vector.broadcast %30 : vector<32x1xf32> to vector<32x32xf32>
      %41 = arith.subf %26, %40 : vector<32x32xf32>
      %cst_26 = arith.constant 9.99999974E-6 : f32
      %42 = vector.broadcast %cst_26 : f32 to vector<32x1xf32>
      %43 = arith.addf %39, %42 : vector<32x1xf32>
      %44 = math.rsqrt %43 : vector<32x1xf32>
      %45 = vector.broadcast %44 : vector<32x1xf32> to vector<32x32xf32>
      %46 = arith.mulf %41, %45 : vector<32x32xf32>
      %c0_27 = arith.constant 0 : index
      %c0_28 = arith.constant 0 : index
      %47 = vector.load %arg8[%c0_27, %c0_28] : memref<1x32xf32, #tpu.memory_space<vmem>>, vector<1x32xf32>
      %48 = vector.broadcast %47 : vector<1x32xf32> to vector<32x32xf32>
      %49 = arith.mulf %46, %48 : vector<32x32xf32>
      %c0_29 = arith.constant 0 : index
      %c0_30 = arith.constant 0 : index
      %50 = vector.load %arg9[%c0_29, %c0_30] : memref<1x32xf32, #tpu.memory_space<vmem>>, vector<1x32xf32>
      %51 = vector.broadcast %50 : vector<1x32xf32> to vector<32x32xf32>
      %52 = arith.addf %49, %51 : vector<32x32xf32>
      %c0_31 = arith.constant 0 : index
      %c0_32 = arith.constant 0 : index
      %53 = vector.load %arg10[%c0_31, %c0_32] : memref<32x32xf32, #tpu.memory_space<vmem>>, vector<32x32xf32>
      tpu.vector_store %arg10[%c0_31, %c0_32], %52 {strides = array<i32>} : memref<32x32xf32, #tpu.memory_space<vmem>>, vector<32x32xf32>,
    } else {
    }
    return
  }
  func.func @transform_0(%arg0: i32, %arg1: i32) -> (i32, i32) {
    %c0_i32 = arith.constant 0 : i32
    %c0_i32_0 = arith.constant 0 : i32
    return %arg0, %c0_i32 : i32, i32
  }
  func.func @transform_1(%arg0: i32, %arg1: i32) -> (i32, i32) {
    %c0_i32 = arith.constant 0 : i32
    %c0_i32_0 = arith.constant 0 : i32
    return %arg0, %c0_i32 : i32, i32
  }
  func.func @transform_2(%arg0: i32, %arg1: i32) -> (i32, i32) {
    %c0_i32 = arith.constant 0 : i32
    %c0_i32_0 = arith.constant 0 : i32
    return %c0_i32, %arg1 : i32, i32
  }
  func.func @transform_3(%arg0: i32, %arg1: i32) -> (i32, i32) {
    %c0_i32 = arith.constant 0 : i32
    %c0_i32_0 = arith.constant 0 : i32
    return %c0_i32, %arg1 : i32, i32
  }
  func.func @transform_4(%arg0: i32, %arg1: i32) -> (i32, i32) {
    %c0_i32 = arith.constant 0 : i32
    %c0_i32_0 = arith.constant 0 : i32
    return %arg1, %c0_i32 : i32, i32
  }
  func.func @transform_5(%arg0: i32, %arg1: i32) -> (i32, i32) {
    %c0_i32 = arith.constant 0 : i32
    %c0_i32_0 = arith.constant 0 : i32
    %c0_i32_1 = arith.constant 0 : i32
    return %c0_i32, %c0_i32_0 : i32, i32
  }
  func.func @transform_6(%arg0: i32, %arg1: i32) -> (i32, i32) {
    %c0_i32 = arith.constant 0 : i32
    %c0_i32_0 = arith.constant 0 : i32
    %c0_i32_1 = arith.constant 0 : i32
    return %c0_i32, %c0_i32_0 : i32, i32
  }
  func.func @transform_7(%arg0: i32, %arg1: i32) -> (i32, i32) {
    %c0_i32 = arith.constant 0 : i32
    %c0_i32_0 = arith.constant 0 : i32
    %c0_i32_1 = arith.constant 0 : i32
    return %c0_i32, %c0_i32_0 : i32, i32
  }
  func.func @transform_8(%arg0: i32, %arg1: i32) -> (i32, i32) {
    %c0_i32 = arith.constant 0 : i32
    %c0_i32_0 = arith.constant 0 : i32
    return %arg0, %c0_i32 : i32, i32
  }
}

module attributes {stable_mosaic.version = 11 : i64} {
  func.func @_ffn_add_ln_kernel(%arg0: i32, %arg1: i32, %arg2: memref<32x32xf32, #tpu.memory_space<vmem>>, %arg3: memref<32x32xf32, #tpu.memory_space<vmem>>, %arg4: memref<32x64xbf16, #tpu.memory_space<vmem>>, %arg5: memref<1x64xf32, #tpu.memory_space<vmem>>, %arg6: memref<64x32xbf16, #tpu.memory_space<vmem>>, %arg7: memref<1x32xf32, #tpu.memory_space<vmem>>, %arg8: memref<1x32xf32, #tpu.memory_space<vmem>>, %arg9: memref<1x32xf32, #tpu.memory_space<vmem>>, %arg10: memref<32x32xf32, #tpu.memory_space<vmem>>, %arg11: memref<32x32xf32, #tpu.memory_space<vmem>>) attributes {dimension_semantics = [#tpu.dimension_semantics<parallel>, #tpu.dimension_semantics<arbitrary>], iteration_bounds = array<i64: 1, 1>, scalar_prefetch = 0 : i64, scratch_operands = 1 : i64, tpu.core_type = #tpu.core_type<tc>, window_params = [{transform_indices = @transform_0, window_bounds = array<i64: 32, 32>}, {transform_indices = @transform_1, window_bounds = array<i64: 32, 32>}, {transform_indices = @transform_2, window_bounds = array<i64: 32, 64>}, {transform_indices = @transform_3, window_bounds = array<i64: 1, 64>}, {transform_indices = @transform_4, window_bounds = array<i64: 64, 32>}, {pipeline_mode = #tpu.pipeline_mode<synchronous>, transform_indices = @transform_5, window_bounds = array<i64: 1, 32>}, {pipeline_mode = #tpu.pipeline_mode<synchronous>, transform_indices = @transform_6, window_bounds = array<i64: 1, 32>}, {pipeline_mode = #tpu.pipeline_mode<synchronous>, transform_indices = @transform_7, window_bounds = array<i64: 1, 32>}, {transform_indices = @transform_8, window_bounds = array<i64: 32, 32>}]} {
    %c0_i32 = arith.constant 0 : i32
    %0 = arith.cmpi eq, %arg1, %c0_i32 : i32
    %1 = arith.extui %0 : i1 to i32
    %c0_i32_0 = arith.constant 0 : i32
    %2 = arith.cmpi ne, %1, %c0_i32_0 : i32
    scf.if %2 {
      %cst_16 = arith.constant 0.000000e+00 : f32
      %21 = vector.broadcast %cst_16 : f32 to vector<32x32xf32>
      %c0_17 = arith.constant 0 : index
      %c0_18 = arith.constant 0 : index
      %22 = vector.load %arg11[%c0_17, %c0_18] : memref<32x32xf32, #tpu.memory_space<vmem>>, vector<32x32xf32>
      tpu.vector_store %arg11[%c0_17, %c0_18], %21 {strides = array<i32>} : memref<32x32xf32, #tpu.memory_space<vmem>>, vector<32x32xf32>,
    } else {
    }
    %c0 = arith.constant 0 : index
    %c0_1 = arith.constant 0 : index
    %3 = vector.load %arg2[%c0, %c0_1] : memref<32x32xf32, #tpu.memory_space<vmem>>, vector<32x32xf32>
    %4 = arith.truncf %3 : vector<32x32xf32> to vector<32x32xbf16>
    %c0_2 = arith.constant 0 : index
    %c0_3 = arith.constant 0 : index
    %5 = vector.load %arg4[%c0_2, %c0_3] : memref<32x64xbf16, #tpu.memory_space<vmem>>, vector<32x64xbf16>
    %cst = arith.constant dense<0.000000e+00> : vector<32x64xf32>
    %6 = tpu.matmul %4, %5, %cst {dimension_numbers = #tpu.dot_dimension_numbers<[1], [0], [0], [1], [0, 0, 1, 1], [], []>} : vector<32x32xbf16>, vector<32x64xbf16>, vector<32x64xf32> -> vector<32x64xf32>
    %c0_4 = arith.constant 0 : index
    %c0_5 = arith.constant 0 : index
    %7 = vector.load %arg5[%c0_4, %c0_5] : memref<1x64xf32, #tpu.memory_space<vmem>>, vector<1x64xf32>
    %8 = vector.broadcast %7 : vector<1x64xf32> to vector<32x64xf32>
    %9 = arith.addf %6, %8 : vector<32x64xf32>
    %cst_6 = arith.constant 0.000000e+00 : f32
    %10 = vector.broadcast %cst_6 : f32 to vector<32x64xf32>
    %11 = arith.maximumf %9, %10 : vector<32x64xf32>
    %c0_7 = arith.constant 0 : index
    %c0_8 = arith.constant 0 : index
    %12 = vector.load %arg11[%c0_7, %c0_8] : memref<32x32xf32, #tpu.memory_space<vmem>>, vector<32x32xf32>
    %13 = arith.truncf %11 : vector<32x64xf32> to vector<32x64xbf16>
    %c0_9 = arith.constant 0 : index
    %c0_10 = arith.constant 0 : index
    %14 = vector.load %arg6[%c0_9, %c0_10] : memref<64x32xbf16, #tpu.memory_space<vmem>>, vector<64x32xbf16>
    %cst_11 = arith.constant dense<0.000000e+00> : vector<32x32xf32>
    %15 = tpu.matmul %13, %14, %cst_11 {dimension_numbers = #tpu.dot_dimension_numbers<[1], [0], [0], [1], [0, 0, 1, 1], [], []>} : vector<32x64xbf16>, vector<64x32xbf16>, vector<32x32xf32> -> vector<32x32xf32>
    %16 = arith.addf %12, %15 : vector<32x32xf32>
    %c0_12 = arith.constant 0 : index
    %c0_13 = arith.constant 0 : index
    %17 = vector.load %arg11[%c0_12, %c0_13] : memref<32x32xf32, #tpu.memory_space<vmem>>, vector<32x32xf32>
    tpu.vector_store %arg11[%c0_12, %c0_13], %16 {strides = array<i32>} : memref<32x32xf32, #tpu.memory_space<vmem>>, vector<32x32xf32>,
    %c0_i32_14 = arith.constant 0 : i32
    %18 = arith.cmpi eq, %arg1, %c0_i32_14 : i32
    %19 = arith.extui %18 : i1 to i32
    %c0_i32_15 = arith.constant 0 : i32
    %20 = arith.cmpi ne, %19, %c0_i32_15 : i32
    scf.if %20 {
      %c0_16 = arith.constant 0 : index
      %c0_17 = arith.constant 0 : index
      %21 = vector.load %arg11[%c0_16, %c0_17] : memref<32x32xf32, #tpu.memory_space<vmem>>, vector<32x32xf32>
      %c0_18 = arith.constant 0 : index
      %c0_19 = arith.constant 0 : index
      %22 = vector.load %arg7[%c0_18, %c0_19] : memref<1x32xf32, #tpu.memory_space<vmem>>, vector<1x32xf32>
      %23 = vector.broadcast %22 : vector<1x32xf32> to vector<32x32xf32>
      %24 = arith.addf %21, %23 : vector<32x32xf32>
      %c0_20 = arith.constant 0 : index
      %c0_21 = arith.constant 0 : index
      %25 = vector.load %arg3[%c0_20, %c0_21] : memref<32x32xf32, #tpu.memory_space<vmem>>, vector<32x32xf32>
      %26 = arith.addf %24, %25 : vector<32x32xf32>
      %cst_22 = arith.constant dense<0.000000e+00> : vector<32xf32>
      %27 = vector.multi_reduction <add>, %26, %cst_22 [1] : vector<32x32xf32> to vector<32xf32>
      %28 = vector.shape_cast %27 : vector<32xf32> to vector<32x1xf32>
      %cst_23 = arith.constant 3.200000e+01 : f32
      %29 = vector.broadcast %cst_23 : f32 to vector<32x1xf32>
      %30 = arith.divf %28, %29 : vector<32x1xf32>
      %31 = vector.broadcast %30 : vector<32x1xf32> to vector<32x32xf32>
      %32 = arith.subf %26, %31 : vector<32x32xf32>
      %33 = vector.broadcast %30 : vector<32x1xf32> to vector<32x32xf32>
      %34 = arith.subf %26, %33 : vector<32x32xf32>
      %35 = arith.mulf %32, %34 : vector<32x32xf32>
      %cst_24 = arith.constant dense<0.000000e+00> : vector<32xf32>
      %36 = vector.multi_reduction <add>, %35, %cst_24 [1] : vector<32x32xf32> to vector<32xf32>
      %37 = vector.shape_cast %36 : vector<32xf32> to vector<32x1xf32>
      %cst_25 = arith.constant 3.200000e+01 : f32
      %38 = vector.broadcast %cst_25 : f32 to vector<32x1xf32>
      %39 = arith.divf %37, %38 : vector<32x1xf32>
      %40 = vector.broadcast %30 : vector<32x1xf32> to vector<32x32xf32>
      %41 = arith.subf %26, %40 : vector<32x32xf32>
      %cst_26 = arith.constant 9.99999974E-6 : f32
      %42 = vector.broadcast %cst_26 : f32 to vector<32x1xf32>
      %43 = arith.addf %39, %42 : vector<32x1xf32>
      %44 = math.rsqrt %43 : vector<32x1xf32>
      %45 = vector.broadcast %44 : vector<32x1xf32> to vector<32x32xf32>
      %46 = arith.mulf %41, %45 : vector<32x32xf32>
      %c0_27 = arith.constant 0 : index
      %c0_28 = arith.constant 0 : index
      %47 = vector.load %arg8[%c0_27, %c0_28] : memref<1x32xf32, #tpu.memory_space<vmem>>, vector<1x32xf32>
      %48 = vector.broadcast %47 : vector<1x32xf32> to vector<32x32xf32>
      %49 = arith.mulf %46, %48 : vector<32x32xf32>
      %c0_29 = arith.constant 0 : index
      %c0_30 = arith.constant 0 : index
      %50 = vector.load %arg9[%c0_29, %c0_30] : memref<1x32xf32, #tpu.memory_space<vmem>>, vector<1x32xf32>
      %51 = vector.broadcast %50 : vector<1x32xf32> to vector<32x32xf32>
      %52 = arith.addf %49, %51 : vector<32x32xf32>
      %c0_31 = arith.constant 0 : index
      %c0_32 = arith.constant 0 : index
      %53 = vector.load %arg2[%c0_31, %c0_32] : memref<32x32xf32, #tpu.memory_space<vmem>>, vector<32x32xf32>
      %54 = arith.addf %52, %53 : vector<32x32xf32>
      %c0_33 = arith.constant 0 : index
      %c0_34 = arith.constant 0 : index
      %55 = vector.load %arg10[%c0_33, %c0_34] : memref<32x32xf32, #tpu.memory_space<vmem>>, vector<32x32xf32>
      tpu.vector_store %arg10[%c0_33, %c0_34], %54 {strides = array<i32>} : memref<32x32xf32, #tpu.memory_space<vmem>>, vector<32x32xf32>,
    } else {
    }
    return
  }
  func.func @transform_0(%arg0: i32, %arg1: i32) -> (i32, i32) {
    %c0_i32 = arith.constant 0 : i32
    %c0_i32_0 = arith.constant 0 : i32
    return %arg0, %c0_i32 : i32, i32
  }
  func.func @transform_1(%arg0: i32, %arg1: i32) -> (i32, i32) {
    %c0_i32 = arith.constant 0 : i32
    %c0_i32_0 = arith.constant 0 : i32
    return %arg0, %c0_i32 : i32, i32
  }
  func.func @transform_2(%arg0: i32, %arg1: i32) -> (i32, i32) {
    %c0_i32 = arith.constant 0 : i32
    %c0_i32_0 = arith.constant 0 : i32
    return %c0_i32, %arg1 : i32, i32
  }
  func.func @transform_3(%arg0: i32, %arg1: i32) -> (i32, i32) {
    %c0_i32 = arith.constant 0 : i32
    %c0_i32_0 = arith.constant 0 : i32
    return %c0_i32, %arg1 : i32, i32
  }
  func.func @transform_4(%arg0: i32, %arg1: i32) -> (i32, i32) {
    %c0_i32 = arith.constant 0 : i32
    %c0_i32_0 = arith.constant 0 : i32
    return %arg1, %c0_i32 : i32, i32
  }
  func.func @transform_5(%arg0: i32, %arg1: i32) -> (i32, i32) {
    %c0_i32 = arith.constant 0 : i32
    %c0_i32_0 = arith.constant 0 : i32
    %c0_i32_1 = arith.constant 0 : i32
    return %c0_i32, %c0_i32_0 : i32, i32
  }
  func.func @transform_6(%arg0: i32, %arg1: i32) -> (i32, i32) {
    %c0_i32 = arith.constant 0 : i32
    %c0_i32_0 = arith.constant 0 : i32
    %c0_i32_1 = arith.constant 0 : i32
    return %c0_i32, %c0_i32_0 : i32, i32
  }
  func.func @transform_7(%arg0: i32, %arg1: i32) -> (i32, i32) {
    %c0_i32 = arith.constant 0 : i32
    %c0_i32_0 = arith.constant 0 : i32
    %c0_i32_1 = arith.constant 0 : i32
    return %c0_i32, %c0_i32_0 : i32, i32
  }
  func.func @transform_8(%arg0: i32, %arg1: i32) -> (i32, i32) {
    %c0_i32 = arith.constant 0 : i32
    %c0_i32_0 = arith.constant 0 : i32
    return %arg0, %c0_i32 : i32, i32
  }
}

module attributes {stable_mosaic.version = 11 : i64} {
  func.func @_mamba_branch_kernel(%arg0: i32, %arg1: i32, %arg2: memref<1x8x32xf32, #tpu.memory_space<vmem>>, %arg3: memref<32x128xbf16, #tpu.memory_space<vmem>>, %arg4: memref<4x64xf32, #tpu.memory_space<vmem>>, %arg5: memref<1x64xf32, #tpu.memory_space<vmem>>, %arg6: memref<64x34xbf16, #tpu.memory_space<vmem>>, %arg7: memref<2x64xbf16, #tpu.memory_space<vmem>>, %arg8: memref<1x64xf32, #tpu.memory_space<vmem>>, %arg9: memref<16x64xf32, #tpu.memory_space<vmem>>, %arg10: memref<1x64xf32, #tpu.memory_space<vmem>>, %arg11: memref<64x32xbf16, #tpu.memory_space<vmem>>, %arg12: memref<1x32xf32, #tpu.memory_space<vmem>>, %arg13: memref<1x32xf32, #tpu.memory_space<vmem>>, %arg14: memref<1x8x32xf32, #tpu.memory_space<vmem>>, %arg15: memref<128x64xf32, #tpu.memory_space<vmem>>, %arg16: memref<128x64xf32, #tpu.memory_space<vmem>>, %arg17: memref<16x64xf32, #tpu.memory_space<vmem>>, %arg18: memref<3x64xf32, #tpu.memory_space<vmem>>) attributes {dimension_semantics = [#tpu.dimension_semantics<parallel>, #tpu.dimension_semantics<arbitrary>], iteration_bounds = array<i64: 2, 2>, scalar_prefetch = 0 : i64, scratch_operands = 4 : i64, tpu.core_type = #tpu.core_type<tc>, window_params = [{transform_indices = @transform_0, window_bounds = array<i64: 1, 8, 32>}, {pipeline_mode = #tpu.pipeline_mode<synchronous>, transform_indices = @transform_1, window_bounds = array<i64: 32, 128>}, {pipeline_mode = #tpu.pipeline_mode<synchronous>, transform_indices = @transform_2, window_bounds = array<i64: 4, 64>}, {pipeline_mode = #tpu.pipeline_mode<synchronous>, transform_indices = @transform_3, window_bounds = array<i64: 1, 64>}, {pipeline_mode = #tpu.pipeline_mode<synchronous>, transform_indices = @transform_4, window_bounds = array<i64: 64, 34>}, {pipeline_mode = #tpu.pipeline_mode<synchronous>, transform_indices = @transform_5, window_bounds = array<i64: 2, 64>}, {pipeline_mode = #tpu.pipeline_mode<synchronous>, transform_indices = @transform_6, window_bounds = array<i64: 1, 64>}, {pipeline_mode = #tpu.pipeline_mode<synchronous>, transform_indices = @transform_7, window_bounds = array<i64: 16, 64>}, {pipeline_mode = #tpu.pipeline_mode<synchronous>, transform_indices = @transform_8, window_bounds = array<i64: 1, 64>}, {pipeline_mode = #tpu.pipeline_mode<synchronous>, transform_indices = @transform_9, window_bounds = array<i64: 64, 32>}, {pipeline_mode = #tpu.pipeline_mode<synchronous>, transform_indices = @transform_10, window_bounds = array<i64: 1, 32>}, {pipeline_mode = #tpu.pipeline_mode<synchronous>, transform_indices = @transform_11, window_bounds = array<i64: 1, 32>}, {transform_indices = @transform_12, window_bounds = array<i64: 1, 8, 32>}]} {
    %c0_i32 = arith.constant 0 : i32
    %0 = arith.cmpi eq, %arg1, %c0_i32 : i32
    %1 = arith.extui %0 : i1 to i32
    %c0_i32_0 = arith.constant 0 : i32
    %2 = arith.cmpi ne, %1, %c0_i32_0 : i32
    scf.if %2 {
      %cst_170 = arith.constant 0.000000e+00 : f32
      %424 = vector.broadcast %cst_170 : f32 to vector<16x64xf32>
      %c0_171 = arith.constant 0 : index
      %c0_172 = arith.constant 0 : index
      %425 = vector.load %arg17[%c0_171, %c0_172] : memref<16x64xf32, #tpu.memory_space<vmem>>, vector<16x64xf32>
      tpu.vector_store %arg17[%c0_171, %c0_172], %424 {strides = array<i32>} : memref<16x64xf32, #tpu.memory_space<vmem>>, vector<16x64xf32>,
      %cst_173 = arith.constant 0.000000e+00 : f32
      %426 = vector.broadcast %cst_173 : f32 to vector<3x64xf32>
      %c0_174 = arith.constant 0 : index
      %c0_175 = arith.constant 0 : index
      %427 = vector.load %arg18[%c0_174, %c0_175] : memref<3x64xf32, #tpu.memory_space<vmem>>, vector<3x64xf32>
      tpu.vector_store %arg18[%c0_174, %c0_175], %426 {strides = array<i32>} : memref<3x64xf32, #tpu.memory_space<vmem>>, vector<3x64xf32>,
    } else {
    }
    %c0 = arith.constant 0 : index
    %c0_1 = arith.constant 0 : index
    %c0_2 = arith.constant 0 : index
    %3 = vector.load %arg2[%c0, %c0_1, %c0_2] : memref<1x8x32xf32, #tpu.memory_space<vmem>>, vector<1x8x32xf32>
    %4 = vector.shape_cast %3 : vector<1x8x32xf32> to vector<8x32xf32>
    %5 = arith.truncf %4 : vector<8x32xf32> to vector<8x32xbf16>
    %c0_3 = arith.constant 0 : index
    %c0_4 = arith.constant 0 : index
    %6 = vector.load %arg3[%c0_3, %c0_4] : memref<32x128xbf16, #tpu.memory_space<vmem>>, vector<32x128xbf16>
    %cst = arith.constant dense<0.000000e+00> : vector<8x128xf32>
    %7 = tpu.matmul %5, %6, %cst {dimension_numbers = #tpu.dot_dimension_numbers<[1], [0], [0], [1], [0, 0, 1, 1], [], []>} : vector<8x32xbf16>, vector<32x128xbf16>, vector<8x128xf32> -> vector<8x128xf32>
    %8 = vector.extract_strided_slice %7 {offsets = [0, 0], sizes = [8, 64], strides = [1, 1]} : vector<8x128xf32> to vector<8x64xf32>
    %9 = vector.extract_strided_slice %7 {offsets = [0, 64], sizes = [8, 64], strides = [1, 1]} : vector<8x128xf32> to vector<8x64xf32>
    %c0_5 = arith.constant 0 : index
    %c0_6 = arith.constant 0 : index
    %10 = vector.load %arg18[%c0_5, %c0_6] : memref<3x64xf32, #tpu.memory_space<vmem>>, vector<3x64xf32>
    %11 = tpu.concatenate %8, %10 in 0 : vector<8x64xf32>, vector<3x64xf32> -> vector<11x64xf32>
    %12 = vector.extract_strided_slice %8 {offsets = [0, 0], sizes = [3, 64], strides = [1, 1]} : vector<8x64xf32> to vector<3x64xf32>
    %c0_7 = arith.constant 0 : index
    %c0_8 = arith.constant 0 : index
    %13 = vector.load %arg18[%c0_7, %c0_8] : memref<3x64xf32, #tpu.memory_space<vmem>>, vector<3x64xf32>
    tpu.vector_store %arg18[%c0_7, %c0_8], %12 {strides = array<i32>} : memref<3x64xf32, #tpu.memory_space<vmem>>, vector<3x64xf32>,
    %c0_9 = arith.constant 0 : index
    %c0_10 = arith.constant 0 : index
    %14 = vector.load %arg4[%c0_9, %c0_10] : memref<4x64xf32, #tpu.memory_space<vmem>>, vector<4x64xf32>
    %cst_11 = arith.constant 0.000000e+00 : f32
    %15 = vector.broadcast %cst_11 : f32 to vector<8x64xf32>
    %c0_12 = arith.constant 0 : index
    %c0_13 = arith.constant 0 : index
    %16 = vector.load %arg5[%c0_12, %c0_13] : memref<1x64xf32, #tpu.memory_space<vmem>>, vector<1x64xf32>
    %17 = vector.broadcast %16 : vector<1x64xf32> to vector<8x64xf32>
    %18 = arith.addf %15, %17 : vector<8x64xf32>
    %19 = vector.extract_strided_slice %14 {offsets = [0, 0], sizes = [1, 64], strides = [1, 1]} : vector<4x64xf32> to vector<1x64xf32>
    %20 = vector.extract_strided_slice %11 {offsets = [3, 0], sizes = [8, 64], strides = [1, 1]} : vector<11x64xf32> to vector<8x64xf32>
    %21 = vector.broadcast %19 : vector<1x64xf32> to vector<8x64xf32>
    %22 = arith.mulf %21, %20 : vector<8x64xf32>
    %23 = arith.addf %18, %22 : vector<8x64xf32>
    %24 = vector.extract_strided_slice %14 {offsets = [1, 0], sizes = [1, 64], strides = [1, 1]} : vector<4x64xf32> to vector<1x64xf32>
    %25 = vector.extract_strided_slice %11 {offsets = [2, 0], sizes = [8, 64], strides = [1, 1]} : vector<11x64xf32> to vector<8x64xf32>
    %26 = vector.broadcast %24 : vector<1x64xf32> to vector<8x64xf32>
    %27 = arith.mulf %26, %25 : vector<8x64xf32>
    %28 = arith.addf %23, %27 : vector<8x64xf32>
    %29 = vector.extract_strided_slice %14 {offsets = [2, 0], sizes = [1, 64], strides = [1, 1]} : vector<4x64xf32> to vector<1x64xf32>
    %30 = vector.extract_strided_slice %11 {offsets = [1, 0], sizes = [8, 64], strides = [1, 1]} : vector<11x64xf32> to vector<8x64xf32>
    %31 = vector.broadcast %29 : vector<1x64xf32> to vector<8x64xf32>
    %32 = arith.mulf %31, %30 : vector<8x64xf32>
    %33 = arith.addf %28, %32 : vector<8x64xf32>
    %34 = vector.extract_strided_slice %14 {offsets = [3, 0], sizes = [1, 64], strides = [1, 1]} : vector<4x64xf32> to vector<1x64xf32>
    %35 = vector.extract_strided_slice %11 {offsets = [0, 0], sizes = [8, 64], strides = [1, 1]} : vector<11x64xf32> to vector<8x64xf32>
    %36 = vector.broadcast %34 : vector<1x64xf32> to vector<8x64xf32>
    %37 = arith.mulf %36, %35 : vector<8x64xf32>
    %38 = arith.addf %33, %37 : vector<8x64xf32>
    %39 = arith.negf %38 : vector<8x64xf32>
    %40 = math.exp %39 : vector<8x64xf32>
    %cst_14 = arith.constant 1.000000e+00 : f32
    %41 = vector.broadcast %cst_14 : f32 to vector<8x64xf32>
    %42 = arith.addf %41, %40 : vector<8x64xf32>
    %43 = arith.divf %41, %42 : vector<8x64xf32>
    %44 = arith.mulf %38, %43 : vector<8x64xf32>
    %45 = arith.truncf %44 : vector<8x64xf32> to vector<8x64xbf16>
    %c0_15 = arith.constant 0 : index
    %c0_16 = arith.constant 0 : index
    %46 = vector.load %arg6[%c0_15, %c0_16] : memref<64x34xbf16, #tpu.memory_space<vmem>>, vector<64x34xbf16>
    %cst_17 = arith.constant dense<0.000000e+00> : vector<8x34xf32>
    %47 = tpu.matmul %45, %46, %cst_17 {dimension_numbers = #tpu.dot_dimension_numbers<[1], [0], [0], [1], [0, 0, 1, 1], [], []>} : vector<8x64xbf16>, vector<64x34xbf16>, vector<8x34xf32> -> vector<8x34xf32>
    %48 = vector.extract_strided_slice %47 {offsets = [0, 0], sizes = [8, 2], strides = [1, 1]} : vector<8x34xf32> to vector<8x2xf32>
    %49 = vector.extract_strided_slice %47 {offsets = [0, 2], sizes = [8, 16], strides = [1, 1]} : vector<8x34xf32> to vector<8x16xf32>
    %50 = vector.extract_strided_slice %47 {offsets = [0, 18], sizes = [8, 16], strides = [1, 1]} : vector<8x34xf32> to vector<8x16xf32>
    %51 = arith.truncf %48 : vector<8x2xf32> to vector<8x2xbf16>
    %c0_18 = arith.constant 0 : index
    %c0_19 = arith.constant 0 : index
    %52 = vector.load %arg7[%c0_18, %c0_19] : memref<2x64xbf16, #tpu.memory_space<vmem>>, vector<2x64xbf16>
    %cst_20 = arith.constant dense<0.000000e+00> : vector<8x64xf32>
    %53 = tpu.matmul %51, %52, %cst_20 {dimension_numbers = #tpu.dot_dimension_numbers<[1], [0], [0], [1], [0, 0, 1, 1], [], []>} : vector<8x2xbf16>, vector<2x64xbf16>, vector<8x64xf32> -> vector<8x64xf32>
    %c0_21 = arith.constant 0 : index
    %c0_22 = arith.constant 0 : index
    %54 = vector.load %arg8[%c0_21, %c0_22] : memref<1x64xf32, #tpu.memory_space<vmem>>, vector<1x64xf32>
    %55 = vector.broadcast %54 : vector<1x64xf32> to vector<8x64xf32>
    %56 = arith.addf %53, %55 : vector<8x64xf32>
    %57 = math.absf %56 : vector<8x64xf32>
    %cst_23 = arith.constant 0.000000e+00 : f32
    %58 = vector.broadcast %cst_23 : f32 to vector<8x64xf32>
    %59 = arith.subf %58, %57 : vector<8x64xf32>
    %60 = math.exp %59 : vector<8x64xf32>
    %61 = math.log1p %60 : vector<8x64xf32>
    %cst_24 = arith.constant 0.000000e+00 : f32
    %62 = vector.broadcast %cst_24 : f32 to vector<8x64xf32>
    %63 = arith.maximumf %56, %62 : vector<8x64xf32>
    %64 = arith.addf %61, %63 : vector<8x64xf32>
    %c0_25 = arith.constant 0 : index
    %c0_26 = arith.constant 0 : index
    %65 = vector.load %arg9[%c0_25, %c0_26] : memref<16x64xf32, #tpu.memory_space<vmem>>, vector<16x64xf32>
    %66 = arith.mulf %64, %44 : vector<8x64xf32>
    %67 = vector.extract_strided_slice %65 {offsets = [0, 0], sizes = [1, 64], strides = [1, 1]} : vector<16x64xf32> to vector<1x64xf32>
    %68 = vector.broadcast %67 : vector<1x64xf32> to vector<8x64xf32>
    %69 = arith.mulf %64, %68 : vector<8x64xf32>
    %70 = math.exp %69 : vector<8x64xf32>
    %c0_27 = arith.constant 0 : index
    %c0_28 = arith.constant 0 : index
    %71 = tpu.strided_load %arg15[%c0_27, %c0_28] {strides = array<i32: 16, 1>} : memref<128x64xf32, #tpu.memory_space<vmem>>, vector<8x64xf32>
    tpu.strided_store %arg15[%c0_27, %c0_28], %70 {strides = array<i32: 16, 1>} : memref<128x64xf32, #tpu.memory_space<vmem>>, vector<8x64xf32>
    %72 = vector.extract_strided_slice %49 {offsets = [0, 0], sizes = [8, 1], strides = [1, 1]} : vector<8x16xf32> to vector<8x1xf32>
    %73 = vector.broadcast %72 : vector<8x1xf32> to vector<8x64xf32>
    %74 = arith.mulf %66, %73 : vector<8x64xf32>
    %c0_29 = arith.constant 0 : index
    %c0_30 = arith.constant 0 : index
    %75 = tpu.strided_load %arg16[%c0_29, %c0_30] {strides = array<i32: 16, 1>} : memref<128x64xf32, #tpu.memory_space<vmem>>, vector<8x64xf32>
    tpu.strided_store %arg16[%c0_29, %c0_30], %74 {strides = array<i32: 16, 1>} : memref<128x64xf32, #tpu.memory_space<vmem>>, vector<8x64xf32>
    %76 = vector.extract_strided_slice %65 {offsets = [1, 0], sizes = [1, 64], strides = [1, 1]} : vector<16x64xf32> to vector<1x64xf32>
    %77 = vector.broadcast %76 : vector<1x64xf32> to vector<8x64xf32>
    %78 = arith.mulf %64, %77 : vector<8x64xf32>
    %79 = math.exp %78 : vector<8x64xf32>
    %c1 = arith.constant 1 : index
    %c0_31 = arith.constant 0 : index
    %80 = tpu.strided_load %arg15[%c1, %c0_31] {strides = array<i32: 16, 1>} : memref<128x64xf32, #tpu.memory_space<vmem>>, vector<8x64xf32>
    tpu.strided_store %arg15[%c1, %c0_31], %79 {strides = array<i32: 16, 1>} : memref<128x64xf32, #tpu.memory_space<vmem>>, vector<8x64xf32>
    %81 = vector.extract_strided_slice %49 {offsets = [0, 1], sizes = [8, 1], strides = [1, 1]} : vector<8x16xf32> to vector<8x1xf32>
    %82 = vector.broadcast %81 : vector<8x1xf32> to vector<8x64xf32>
    %83 = arith.mulf %66, %82 : vector<8x64xf32>
    %c1_32 = arith.constant 1 : index
    %c0_33 = arith.constant 0 : index
    %84 = tpu.strided_load %arg16[%c1_32, %c0_33] {strides = array<i32: 16, 1>} : memref<128x64xf32, #tpu.memory_space<vmem>>, vector<8x64xf32>
    tpu.strided_store %arg16[%c1_32, %c0_33], %83 {strides = array<i32: 16, 1>} : memref<128x64xf32, #tpu.memory_space<vmem>>, vector<8x64xf32>
    %85 = vector.extract_strided_slice %65 {offsets = [2, 0], sizes = [1, 64], strides = [1, 1]} : vector<16x64xf32> to vector<1x64xf32>
    %86 = vector.broadcast %85 : vector<1x64xf32> to vector<8x64xf32>
    %87 = arith.mulf %64, %86 : vector<8x64xf32>
    %88 = math.exp %87 : vector<8x64xf32>
    %c2 = arith.constant 2 : index
    %c0_34 = arith.constant 0 : index
    %89 = tpu.strided_load %arg15[%c2, %c0_34] {strides = array<i32: 16, 1>} : memref<128x64xf32, #tpu.memory_space<vmem>>, vector<8x64xf32>
    tpu.strided_store %arg15[%c2, %c0_34], %88 {strides = array<i32: 16, 1>} : memref<128x64xf32, #tpu.memory_space<vmem>>, vector<8x64xf32>
    %90 = vector.extract_strided_slice %49 {offsets = [0, 2], sizes = [8, 1], strides = [1, 1]} : vector<8x16xf32> to vector<8x1xf32>
    %91 = vector.broadcast %90 : vector<8x1xf32> to vector<8x64xf32>
    %92 = arith.mulf %66, %91 : vector<8x64xf32>
    %c2_35 = arith.constant 2 : index
    %c0_36 = arith.constant 0 : index
    %93 = tpu.strided_load %arg16[%c2_35, %c0_36] {strides = array<i32: 16, 1>} : memref<128x64xf32, #tpu.memory_space<vmem>>, vector<8x64xf32>
    tpu.strided_store %arg16[%c2_35, %c0_36], %92 {strides = array<i32: 16, 1>} : memref<128x64xf32, #tpu.memory_space<vmem>>, vector<8x64xf32>
    %94 = vector.extract_strided_slice %65 {offsets = [3, 0], sizes = [1, 64], strides = [1, 1]} : vector<16x64xf32> to vector<1x64xf32>
    %95 = vector.broadcast %94 : vector<1x64xf32> to vector<8x64xf32>
    %96 = arith.mulf %64, %95 : vector<8x64xf32>
    %97 = math.exp %96 : vector<8x64xf32>
    %c3 = arith.constant 3 : index
    %c0_37 = arith.constant 0 : index
    %98 = tpu.strided_load %arg15[%c3, %c0_37] {strides = array<i32: 16, 1>} : memref<128x64xf32, #tpu.memory_space<vmem>>, vector<8x64xf32>
    tpu.strided_store %arg15[%c3, %c0_37], %97 {strides = array<i32: 16, 1>} : memref<128x64xf32, #tpu.memory_space<vmem>>, vector<8x64xf32>
    %99 = vector.extract_strided_slice %49 {offsets = [0, 3], sizes = [8, 1], strides = [1, 1]} : vector<8x16xf32> to vector<8x1xf32>
    %100 = vector.broadcast %99 : vector<8x1xf32> to vector<8x64xf32>
    %101 = arith.mulf %66, %100 : vector<8x64xf32>
    %c3_38 = arith.constant 3 : index
    %c0_39 = arith.constant 0 : index
    %102 = tpu.strided_load %arg16[%c3_38, %c0_39] {strides = array<i32: 16, 1>} : memref<128x64xf32, #tpu.memory_space<vmem>>, vector<8x64xf32>
    tpu.strided_store %arg16[%c3_38, %c0_39], %101 {strides = array<i32: 16, 1>} : memref<128x64xf32, #tpu.memory_space<vmem>>, vector<8x64xf32>
    %103 = vector.extract_strided_slice %65 {offsets = [4, 0], sizes = [1, 64], strides = [1, 1]} : vector<16x64xf32> to vector<1x64xf32>
    %104 = vector.broadcast %103 : vector<1x64xf32> to vector<8x64xf32>
    %105 = arith.mulf %64, %104 : vector<8x64xf32>
    %106 = math.exp %105 : vector<8x64xf32>
    %c4 = arith.constant 4 : index
    %c0_40 = arith.constant 0 : index
    %107 = tpu.strided_load %arg15[%c4, %c0_40] {strides = array<i32: 16, 1>} : memref<128x64xf32, #tpu.memory_space<vmem>>, vector<8x64xf32>
    tpu.strided_store %arg15[%c4, %c0_40], %106 {strides = array<i32: 16, 1>} : memref<128x64xf32, #tpu.memory_space<vmem>>, vector<8x64xf32>
    %108 = vector.extract_strided_slice %49 {offsets = [0, 4], sizes = [8, 1], strides = [1, 1]} : vector<8x16xf32> to vector<8x1xf32>
    %109 = vector.broadcast %108 : vector<8x1xf32> to vector<8x64xf32>
    %110 = arith.mulf %66, %109 : vector<8x64xf32>
    %c4_41 = arith.constant 4 : index
    %c0_42 = arith.constant 0 : index
    %111 = tpu.strided_load %arg16[%c4_41, %c0_42] {strides = array<i32: 16, 1>} : memref<128x64xf32, #tpu.memory_space<vmem>>, vector<8x64xf32>
    tpu.strided_store %arg16[%c4_41, %c0_42], %110 {strides = array<i32: 16, 1>} : memref<128x64xf32, #tpu.memory_space<vmem>>, vector<8x64xf32>
    %112 = vector.extract_strided_slice %65 {offsets = [5, 0], sizes = [1, 64], strides = [1, 1]} : vector<16x64xf32> to vector<1x64xf32>
    %113 = vector.broadcast %112 : vector<1x64xf32> to vector<8x64xf32>
    %114 = arith.mulf %64, %113 : vector<8x64xf32>
    %115 = math.exp %114 : vector<8x64xf32>
    %c5 = arith.constant 5 : index
    %c0_43 = arith.constant 0 : index
    %116 = tpu.strided_load %arg15[%c5, %c0_43] {strides = array<i32: 16, 1>} : memref<128x64xf32, #tpu.memory_space<vmem>>, vector<8x64xf32>
    tpu.strided_store %arg15[%c5, %c0_43], %115 {strides = array<i32: 16, 1>} : memref<128x64xf32, #tpu.memory_space<vmem>>, vector<8x64xf32>
    %117 = vector.extract_strided_slice %49 {offsets = [0, 5], sizes = [8, 1], strides = [1, 1]} : vector<8x16xf32> to vector<8x1xf32>
    %118 = vector.broadcast %117 : vector<8x1xf32> to vector<8x64xf32>
    %119 = arith.mulf %66, %118 : vector<8x64xf32>
    %c5_44 = arith.constant 5 : index
    %c0_45 = arith.constant 0 : index
    %120 = tpu.strided_load %arg16[%c5_44, %c0_45] {strides = array<i32: 16, 1>} : memref<128x64xf32, #tpu.memory_space<vmem>>, vector<8x64xf32>
    tpu.strided_store %arg16[%c5_44, %c0_45], %119 {strides = array<i32: 16, 1>} : memref<128x64xf32, #tpu.memory_space<vmem>>, vector<8x64xf32>
    %121 = vector.extract_strided_slice %65 {offsets = [6, 0], sizes = [1, 64], strides = [1, 1]} : vector<16x64xf32> to vector<1x64xf32>
    %122 = vector.broadcast %121 : vector<1x64xf32> to vector<8x64xf32>
    %123 = arith.mulf %64, %122 : vector<8x64xf32>
    %124 = math.exp %123 : vector<8x64xf32>
    %c6 = arith.constant 6 : index
    %c0_46 = arith.constant 0 : index
    %125 = tpu.strided_load %arg15[%c6, %c0_46] {strides = array<i32: 16, 1>} : memref<128x64xf32, #tpu.memory_space<vmem>>, vector<8x64xf32>
    tpu.strided_store %arg15[%c6, %c0_46], %124 {strides = array<i32: 16, 1>} : memref<128x64xf32, #tpu.memory_space<vmem>>, vector<8x64xf32>
    %126 = vector.extract_strided_slice %49 {offsets = [0, 6], sizes = [8, 1], strides = [1, 1]} : vector<8x16xf32> to vector<8x1xf32>
    %127 = vector.broadcast %126 : vector<8x1xf32> to vector<8x64xf32>
    %128 = arith.mulf %66, %127 : vector<8x64xf32>
    %c6_47 = arith.constant 6 : index
    %c0_48 = arith.constant 0 : index
    %129 = tpu.strided_load %arg16[%c6_47, %c0_48] {strides = array<i32: 16, 1>} : memref<128x64xf32, #tpu.memory_space<vmem>>, vector<8x64xf32>
    tpu.strided_store %arg16[%c6_47, %c0_48], %128 {strides = array<i32: 16, 1>} : memref<128x64xf32, #tpu.memory_space<vmem>>, vector<8x64xf32>
    %130 = vector.extract_strided_slice %65 {offsets = [7, 0], sizes = [1, 64], strides = [1, 1]} : vector<16x64xf32> to vector<1x64xf32>
    %131 = vector.broadcast %130 : vector<1x64xf32> to vector<8x64xf32>
    %132 = arith.mulf %64, %131 : vector<8x64xf32>
    %133 = math.exp %132 : vector<8x64xf32>
    %c7 = arith.constant 7 : index
    %c0_49 = arith.constant 0 : index
    %134 = tpu.strided_load %arg15[%c7, %c0_49] {strides = array<i32: 16, 1>} : memref<128x64xf32, #tpu.memory_space<vmem>>, vector<8x64xf32>
    tpu.strided_store %arg15[%c7, %c0_49], %133 {strides = array<i32: 16, 1>} : memref<128x64xf32, #tpu.memory_space<vmem>>, vector<8x64xf32>
    %135 = vector.extract_strided_slice %49 {offsets = [0, 7], sizes = [8, 1], strides = [1, 1]} : vector<8x16xf32> to vector<8x1xf32>
    %136 = vector.broadcast %135 : vector<8x1xf32> to vector<8x64xf32>
    %137 = arith.mulf %66, %136 : vector<8x64xf32>
    %c7_50 = arith.constant 7 : index
    %c0_51 = arith.constant 0 : index
    %138 = tpu.strided_load %arg16[%c7_50, %c0_51] {strides = array<i32: 16, 1>} : memref<128x64xf32, #tpu.memory_space<vmem>>, vector<8x64xf32>
    tpu.strided_store %arg16[%c7_50, %c0_51], %137 {strides = array<i32: 16, 1>} : memref<128x64xf32, #tpu.memory_space<vmem>>, vector<8x64xf32>
    %139 = vector.extract_strided_slice %65 {offsets = [8, 0], sizes = [1, 64], strides = [1, 1]} : vector<16x64xf32> to vector<1x64xf32>
    %140 = vector.broadcast %139 : vector<1x64xf32> to vector<8x64xf32>
    %141 = arith.mulf %64, %140 : vector<8x64xf32>
    %142 = math.exp %141 : vector<8x64xf32>
    %c8 = arith.constant 8 : index
    %c0_52 = arith.constant 0 : index
    %143 = tpu.strided_load %arg15[%c8, %c0_52] {strides = array<i32: 16, 1>} : memref<128x64xf32, #tpu.memory_space<vmem>>, vector<8x64xf32>
    tpu.strided_store %arg15[%c8, %c0_52], %142 {strides = array<i32: 16, 1>} : memref<128x64xf32, #tpu.memory_space<vmem>>, vector<8x64xf32>
    %144 = vector.extract_strided_slice %49 {offsets = [0, 8], sizes = [8, 1], strides = [1, 1]} : vector<8x16xf32> to vector<8x1xf32>
    %145 = vector.broadcast %144 : vector<8x1xf32> to vector<8x64xf32>
    %146 = arith.mulf %66, %145 : vector<8x64xf32>
    %c8_53 = arith.constant 8 : index
    %c0_54 = arith.constant 0 : index
    %147 = tpu.strided_load %arg16[%c8_53, %c0_54] {strides = array<i32: 16, 1>} : memref<128x64xf32, #tpu.memory_space<vmem>>, vector<8x64xf32>
    tpu.strided_store %arg16[%c8_53, %c0_54], %146 {strides = array<i32: 16, 1>} : memref<128x64xf32, #tpu.memory_space<vmem>>, vector<8x64xf32>
    %148 = vector.extract_strided_slice %65 {offsets = [9, 0], sizes = [1, 64], strides = [1, 1]} : vector<16x64xf32> to vector<1x64xf32>
    %149 = vector.broadcast %148 : vector<1x64xf32> to vector<8x64xf32>
    %150 = arith.mulf %64, %149 : vector<8x64xf32>
    %151 = math.exp %150 : vector<8x64xf32>
    %c9 = arith.constant 9 : index
    %c0_55 = arith.constant 0 : index
    %152 = tpu.strided_load %arg15[%c9, %c0_55] {strides = array<i32: 16, 1>} : memref<128x64xf32, #tpu.memory_space<vmem>>, vector<8x64xf32>
    tpu.strided_store %arg15[%c9, %c0_55], %151 {strides = array<i32: 16, 1>} : memref<128x64xf32, #tpu.memory_space<vmem>>, vector<8x64xf32>
    %153 = vector.extract_strided_slice %49 {offsets = [0, 9], sizes = [8, 1], strides = [1, 1]} : vector<8x16xf32> to vector<8x1xf32>
    %154 = vector.broadcast %153 : vector<8x1xf32> to vector<8x64xf32>
    %155 = arith.mulf %66, %154 : vector<8x64xf32>
    %c9_56 = arith.constant 9 : index
    %c0_57 = arith.constant 0 : index
    %156 = tpu.strided_load %arg16[%c9_56, %c0_57] {strides = array<i32: 16, 1>} : memref<128x64xf32, #tpu.memory_space<vmem>>, vector<8x64xf32>
    tpu.strided_store %arg16[%c9_56, %c0_57], %155 {strides = array<i32: 16, 1>} : memref<128x64xf32, #tpu.memory_space<vmem>>, vector<8x64xf32>
    %157 = vector.extract_strided_slice %65 {offsets = [10, 0], sizes = [1, 64], strides = [1, 1]} : vector<16x64xf32> to vector<1x64xf32>
    %158 = vector.broadcast %157 : vector<1x64xf32> to vector<8x64xf32>
    %159 = arith.mulf %64, %158 : vector<8x64xf32>
    %160 = math.exp %159 : vector<8x64xf32>
    %c10 = arith.constant 10 : index
    %c0_58 = arith.constant 0 : index
    %161 = tpu.strided_load %arg15[%c10, %c0_58] {strides = array<i32: 16, 1>} : memref<128x64xf32, #tpu.memory_space<vmem>>, vector<8x64xf32>
    tpu.strided_store %arg15[%c10, %c0_58], %160 {strides = array<i32: 16, 1>} : memref<128x64xf32, #tpu.memory_space<vmem>>, vector<8x64xf32>
    %162 = vector.extract_strided_slice %49 {offsets = [0, 10], sizes = [8, 1], strides = [1, 1]} : vector<8x16xf32> to vector<8x1xf32>
    %163 = vector.broadcast %162 : vector<8x1xf32> to vector<8x64xf32>
    %164 = arith.mulf %66, %163 : vector<8x64xf32>
    %c10_59 = arith.constant 10 : index
    %c0_60 = arith.constant 0 : index
    %165 = tpu.strided_load %arg16[%c10_59, %c0_60] {strides = array<i32: 16, 1>} : memref<128x64xf32, #tpu.memory_space<vmem>>, vector<8x64xf32>
    tpu.strided_store %arg16[%c10_59, %c0_60], %164 {strides = array<i32: 16, 1>} : memref<128x64xf32, #tpu.memory_space<vmem>>, vector<8x64xf32>
    %166 = vector.extract_strided_slice %65 {offsets = [11, 0], sizes = [1, 64], strides = [1, 1]} : vector<16x64xf32> to vector<1x64xf32>
    %167 = vector.broadcast %166 : vector<1x64xf32> to vector<8x64xf32>
    %168 = arith.mulf %64, %167 : vector<8x64xf32>
    %169 = math.exp %168 : vector<8x64xf32>
    %c11 = arith.constant 11 : index
    %c0_61 = arith.constant 0 : index
    %170 = tpu.strided_load %arg15[%c11, %c0_61] {strides = array<i32: 16, 1>} : memref<128x64xf32, #tpu.memory_space<vmem>>, vector<8x64xf32>
    tpu.strided_store %arg15[%c11, %c0_61], %169 {strides = array<i32: 16, 1>} : memref<128x64xf32, #tpu.memory_space<vmem>>, vector<8x64xf32>
    %171 = vector.extract_strided_slice %49 {offsets = [0, 11], sizes = [8, 1], strides = [1, 1]} : vector<8x16xf32> to vector<8x1xf32>
    %172 = vector.broadcast %171 : vector<8x1xf32> to vector<8x64xf32>
    %173 = arith.mulf %66, %172 : vector<8x64xf32>
    %c11_62 = arith.constant 11 : index
    %c0_63 = arith.constant 0 : index
    %174 = tpu.strided_load %arg16[%c11_62, %c0_63] {strides = array<i32: 16, 1>} : memref<128x64xf32, #tpu.memory_space<vmem>>, vector<8x64xf32>
    tpu.strided_store %arg16[%c11_62, %c0_63], %173 {strides = array<i32: 16, 1>} : memref<128x64xf32, #tpu.memory_space<vmem>>, vector<8x64xf32>
    %175 = vector.extract_strided_slice %65 {offsets = [12, 0], sizes = [1, 64], strides = [1, 1]} : vector<16x64xf32> to vector<1x64xf32>
    %176 = vector.broadcast %175 : vector<1x64xf32> to vector<8x64xf32>
    %177 = arith.mulf %64, %176 : vector<8x64xf32>
    %178 = math.exp %177 : vector<8x64xf32>
    %c12 = arith.constant 12 : index
    %c0_64 = arith.constant 0 : index
    %179 = tpu.strided_load %arg15[%c12, %c0_64] {strides = array<i32: 16, 1>} : memref<128x64xf32, #tpu.memory_space<vmem>>, vector<8x64xf32>
    tpu.strided_store %arg15[%c12, %c0_64], %178 {strides = array<i32: 16, 1>} : memref<128x64xf32, #tpu.memory_space<vmem>>, vector<8x64xf32>
    %180 = vector.extract_strided_slice %49 {offsets = [0, 12], sizes = [8, 1], strides = [1, 1]} : vector<8x16xf32> to vector<8x1xf32>
    %181 = vector.broadcast %180 : vector<8x1xf32> to vector<8x64xf32>
    %182 = arith.mulf %66, %181 : vector<8x64xf32>
    %c12_65 = arith.constant 12 : index
    %c0_66 = arith.constant 0 : index
    %183 = tpu.strided_load %arg16[%c12_65, %c0_66] {strides = array<i32: 16, 1>} : memref<128x64xf32, #tpu.memory_space<vmem>>, vector<8x64xf32>
    tpu.strided_store %arg16[%c12_65, %c0_66], %182 {strides = array<i32: 16, 1>} : memref<128x64xf32, #tpu.memory_space<vmem>>, vector<8x64xf32>
    %184 = vector.extract_strided_slice %65 {offsets = [13, 0], sizes = [1, 64], strides = [1, 1]} : vector<16x64xf32> to vector<1x64xf32>
    %185 = vector.broadcast %184 : vector<1x64xf32> to vector<8x64xf32>
    %186 = arith.mulf %64, %185 : vector<8x64xf32>
    %187 = math.exp %186 : vector<8x64xf32>
    %c13 = arith.constant 13 : index
    %c0_67 = arith.constant 0 : index
    %188 = tpu.strided_load %arg15[%c13, %c0_67] {strides = array<i32: 16, 1>} : memref<128x64xf32, #tpu.memory_space<vmem>>, vector<8x64xf32>
    tpu.strided_store %arg15[%c13, %c0_67], %187 {strides = array<i32: 16, 1>} : memref<128x64xf32, #tpu.memory_space<vmem>>, vector<8x64xf32>
    %189 = vector.extract_strided_slice %49 {offsets = [0, 13], sizes = [8, 1], strides = [1, 1]} : vector<8x16xf32> to vector<8x1xf32>
    %190 = vector.broadcast %189 : vector<8x1xf32> to vector<8x64xf32>
    %191 = arith.mulf %66, %190 : vector<8x64xf32>
    %c13_68 = arith.constant 13 : index
    %c0_69 = arith.constant 0 : index
    %192 = tpu.strided_load %arg16[%c13_68, %c0_69] {strides = array<i32: 16, 1>} : memref<128x64xf32, #tpu.memory_space<vmem>>, vector<8x64xf32>
    tpu.strided_store %arg16[%c13_68, %c0_69], %191 {strides = array<i32: 16, 1>} : memref<128x64xf32, #tpu.memory_space<vmem>>, vector<8x64xf32>
    %193 = vector.extract_strided_slice %65 {offsets = [14, 0], sizes = [1, 64], strides = [1, 1]} : vector<16x64xf32> to vector<1x64xf32>
    %194 = vector.broadcast %193 : vector<1x64xf32> to vector<8x64xf32>
    %195 = arith.mulf %64, %194 : vector<8x64xf32>
    %196 = math.exp %195 : vector<8x64xf32>
    %c14 = arith.constant 14 : index
    %c0_70 = arith.constant 0 : index
    %197 = tpu.strided_load %arg15[%c14, %c0_70] {strides = array<i32: 16, 1>} : memref<128x64xf32, #tpu.memory_space<vmem>>, vector<8x64xf32>
    tpu.strided_store %arg15[%c14, %c0_70], %196 {strides = array<i32: 16, 1>} : memref<128x64xf32, #tpu.memory_space<vmem>>, vector<8x64xf32>
    %198 = vector.extract_strided_slice %49 {offsets = [0, 14], sizes = [8, 1], strides = [1, 1]} : vector<8x16xf32> to vector<8x1xf32>
    %199 = vector.broadcast %198 : vector<8x1xf32> to vector<8x64xf32>
    %200 = arith.mulf %66, %199 : vector<8x64xf32>
    %c14_71 = arith.constant 14 : index
    %c0_72 = arith.constant 0 : index
    %201 = tpu.strided_load %arg16[%c14_71, %c0_72] {strides = array<i32: 16, 1>} : memref<128x64xf32, #tpu.memory_space<vmem>>, vector<8x64xf32>
    tpu.strided_store %arg16[%c14_71, %c0_72], %200 {strides = array<i32: 16, 1>} : memref<128x64xf32, #tpu.memory_space<vmem>>, vector<8x64xf32>
    %202 = vector.extract_strided_slice %65 {offsets = [15, 0], sizes = [1, 64], strides = [1, 1]} : vector<16x64xf32> to vector<1x64xf32>
    %203 = vector.broadcast %202 : vector<1x64xf32> to vector<8x64xf32>
    %204 = arith.mulf %64, %203 : vector<8x64xf32>
    %205 = math.exp %204 : vector<8x64xf32>
    %c15 = arith.constant 15 : index
    %c0_73 = arith.constant 0 : index
    %206 = tpu.strided_load %arg15[%c15, %c0_73] {strides = array<i32: 16, 1>} : memref<128x64xf32, #tpu.memory_space<vmem>>, vector<8x64xf32>
    tpu.strided_store %arg15[%c15, %c0_73], %205 {strides = array<i32: 16, 1>} : memref<128x64xf32, #tpu.memory_space<vmem>>, vector<8x64xf32>
    %207 = vector.extract_strided_slice %49 {offsets = [0, 15], sizes = [8, 1], strides = [1, 1]} : vector<8x16xf32> to vector<8x1xf32>
    %208 = vector.broadcast %207 : vector<8x1xf32> to vector<8x64xf32>
    %209 = arith.mulf %66, %208 : vector<8x64xf32>
    %c15_74 = arith.constant 15 : index
    %c0_75 = arith.constant 0 : index
    %210 = tpu.strided_load %arg16[%c15_74, %c0_75] {strides = array<i32: 16, 1>} : memref<128x64xf32, #tpu.memory_space<vmem>>, vector<8x64xf32>
    tpu.strided_store %arg16[%c15_74, %c0_75], %209 {strides = array<i32: 16, 1>} : memref<128x64xf32, #tpu.memory_space<vmem>>, vector<8x64xf32>
    %c0_76 = arith.constant 0 : index
    %c0_77 = arith.constant 0 : index
    %211 = vector.load %arg17[%c0_76, %c0_77] : memref<16x64xf32, #tpu.memory_space<vmem>>, vector<16x64xf32>
    %c0_i32_78 = arith.constant 0 : i32
    %c7_i32 = arith.constant 7 : i32
    %212 = arith.subi %c7_i32, %c0_i32_78 : i32
    %c16_i32 = arith.constant 16 : i32
    %213 = arith.muli %212, %c16_i32 : i32
    %214 = tpu.assume_multiple %213, 16 : i32
    %215 = arith.index_cast %214 : i32 to index
    %c0_79 = arith.constant 0 : index
    %216 = vector.load %arg15[%215, %c0_79] : memref<128x64xf32, #tpu.memory_space<vmem>>, vector<16x64xf32>
    %217 = arith.mulf %216, %211 : vector<16x64xf32>
    %218 = arith.index_cast %214 : i32 to index
    %c0_80 = arith.constant 0 : index
    %219 = vector.load %arg16[%218, %c0_80] : memref<128x64xf32, #tpu.memory_space<vmem>>, vector<16x64xf32>
    %220 = arith.addf %217, %219 : vector<16x64xf32>
    %221 = arith.index_cast %214 : i32 to index
    %c0_81 = arith.constant 0 : index
    %222 = vector.load %arg16[%221, %c0_81] : memref<128x64xf32, #tpu.memory_space<vmem>>, vector<16x64xf32>
    tpu.vector_store %arg16[%221, %c0_81], %220 {strides = array<i32>} : memref<128x64xf32, #tpu.memory_space<vmem>>, vector<16x64xf32>,
    %c1_i32 = arith.constant 1 : i32
    %c7_i32_82 = arith.constant 7 : i32
    %223 = arith.subi %c7_i32_82, %c1_i32 : i32
    %c16_i32_83 = arith.constant 16 : i32
    %224 = arith.muli %223, %c16_i32_83 : i32
    %225 = tpu.assume_multiple %224, 16 : i32
    %226 = arith.index_cast %225 : i32 to index
    %c0_84 = arith.constant 0 : index
    %227 = vector.load %arg15[%226, %c0_84] : memref<128x64xf32, #tpu.memory_space<vmem>>, vector<16x64xf32>
    %228 = arith.mulf %227, %220 : vector<16x64xf32>
    %229 = arith.index_cast %225 : i32 to index
    %c0_85 = arith.constant 0 : index
    %230 = vector.load %arg16[%229, %c0_85] : memref<128x64xf32, #tpu.memory_space<vmem>>, vector<16x64xf32>
    %231 = arith.addf %228, %230 : vector<16x64xf32>
    %232 = arith.index_cast %225 : i32 to index
    %c0_86 = arith.constant 0 : index
    %233 = vector.load %arg16[%232, %c0_86] : memref<128x64xf32, #tpu.memory_space<vmem>>, vector<16x64xf32>
    tpu.vector_store %arg16[%232, %c0_86], %231 {strides = array<i32>} : memref<128x64xf32, #tpu.memory_space<vmem>>, vector<16x64xf32>,
    %c2_i32 = arith.constant 2 : i32
    %c7_i32_87 = arith.constant 7 : i32
    %234 = arith.subi %c7_i32_87, %c2_i32 : i32
    %c16_i32_88 = arith.constant 16 : i32
    %235 = arith.muli %234, %c16_i32_88 : i32
    %236 = tpu.assume_multiple %235, 16 : i32
    %237 = arith.index_cast %236 : i32 to index
    %c0_89 = arith.constant 0 : index
    %238 = vector.load %arg15[%237, %c0_89] : memref<128x64xf32, #tpu.memory_space<vmem>>, vector<16x64xf32>
    %239 = arith.mulf %238, %231 : vector<16x64xf32>
    %240 = arith.index_cast %236 : i32 to index
    %c0_90 = arith.constant 0 : index
    %241 = vector.load %arg16[%240, %c0_90] : memref<128x64xf32, #tpu.memory_space<vmem>>, vector<16x64xf32>
    %242 = arith.addf %239, %241 : vector<16x64xf32>
    %243 = arith.index_cast %236 : i32 to index
    %c0_91 = arith.constant 0 : index
    %244 = vector.load %arg16[%243, %c0_91] : memref<128x64xf32, #tpu.memory_space<vmem>>, vector<16x64xf32>
    tpu.vector_store %arg16[%243, %c0_91], %242 {strides = array<i32>} : memref<128x64xf32, #tpu.memory_space<vmem>>, vector<16x64xf32>,
    %c3_i32 = arith.constant 3 : i32
    %c7_i32_92 = arith.constant 7 : i32
    %245 = arith.subi %c7_i32_92, %c3_i32 : i32
    %c16_i32_93 = arith.constant 16 : i32
    %246 = arith.muli %245, %c16_i32_93 : i32
    %247 = tpu.assume_multiple %246, 16 : i32
    %248 = arith.index_cast %247 : i32 to index
    %c0_94 = arith.constant 0 : index
    %249 = vector.load %arg15[%248, %c0_94] : memref<128x64xf32, #tpu.memory_space<vmem>>, vector<16x64xf32>
    %250 = arith.mulf %249, %242 : vector<16x64xf32>
    %251 = arith.index_cast %247 : i32 to index
    %c0_95 = arith.constant 0 : index
    %252 = vector.load %arg16[%251, %c0_95] : memref<128x64xf32, #tpu.memory_space<vmem>>, vector<16x64xf32>
    %253 = arith.addf %250, %252 : vector<16x64xf32>
    %254 = arith.index_cast %247 : i32 to index
    %c0_96 = arith.constant 0 : index
    %255 = vector.load %arg16[%254, %c0_96] : memref<128x64xf32, #tpu.memory_space<vmem>>, vector<16x64xf32>
    tpu.vector_store %arg16[%254, %c0_96], %253 {strides = array<i32>} : memref<128x64xf32, #tpu.memory_space<vmem>>, vector<16x64xf32>,
    %c4_i32 = arith.constant 4 : i32
    %c7_i32_97 = arith.constant 7 : i32
    %256 = arith.subi %c7_i32_97, %c4_i32 : i32
    %c16_i32_98 = arith.constant 16 : i32
    %257 = arith.muli %256, %c16_i32_98 : i32
    %258 = tpu.assume_multiple %257, 16 : i32
    %259 = arith.index_cast %258 : i32 to index
    %c0_99 = arith.constant 0 : index
    %260 = vector.load %arg15[%259, %c0_99] : memref<128x64xf32, #tpu.memory_space<vmem>>, vector<16x64xf32>
    %261 = arith.mulf %260, %253 : vector<16x64xf32>
    %262 = arith.index_cast %258 : i32 to index
    %c0_100 = arith.constant 0 : index
    %263 = vector.load %arg16[%262, %c0_100] : memref<128x64xf32, #tpu.memory_space<vmem>>, vector<16x64xf32>
    %264 = arith.addf %261, %263 : vector<16x64xf32>
    %265 = arith.index_cast %258 : i32 to index
    %c0_101 = arith.constant 0 : index
    %266 = vector.load %arg16[%265, %c0_101] : memref<128x64xf32, #tpu.memory_space<vmem>>, vector<16x64xf32>
    tpu.vector_store %arg16[%265, %c0_101], %264 {strides = array<i32>} : memref<128x64xf32, #tpu.memory_space<vmem>>, vector<16x64xf32>,
    %c5_i32 = arith.constant 5 : i32
    %c7_i32_102 = arith.constant 7 : i32
    %267 = arith.subi %c7_i32_102, %c5_i32 : i32
    %c16_i32_103 = arith.constant 16 : i32
    %268 = arith.muli %267, %c16_i32_103 : i32
    %269 = tpu.assume_multiple %268, 16 : i32
    %270 = arith.index_cast %269 : i32 to index
    %c0_104 = arith.constant 0 : index
    %271 = vector.load %arg15[%270, %c0_104] : memref<128x64xf32, #tpu.memory_space<vmem>>, vector<16x64xf32>
    %272 = arith.mulf %271, %264 : vector<16x64xf32>
    %273 = arith.index_cast %269 : i32 to index
    %c0_105 = arith.constant 0 : index
    %274 = vector.load %arg16[%273, %c0_105] : memref<128x64xf32, #tpu.memory_space<vmem>>, vector<16x64xf32>
    %275 = arith.addf %272, %274 : vector<16x64xf32>
    %276 = arith.index_cast %269 : i32 to index
    %c0_106 = arith.constant 0 : index
    %277 = vector.load %arg16[%276, %c0_106] : memref<128x64xf32, #tpu.memory_space<vmem>>, vector<16x64xf32>
    tpu.vector_store %arg16[%276, %c0_106], %275 {strides = array<i32>} : memref<128x64xf32, #tpu.memory_space<vmem>>, vector<16x64xf32>,
    %c6_i32 = arith.constant 6 : i32
    %c7_i32_107 = arith.constant 7 : i32
    %278 = arith.subi %c7_i32_107, %c6_i32 : i32
    %c16_i32_108 = arith.constant 16 : i32
    %279 = arith.muli %278, %c16_i32_108 : i32
    %280 = tpu.assume_multiple %279, 16 : i32
    %281 = arith.index_cast %280 : i32 to index
    %c0_109 = arith.constant 0 : index
    %282 = vector.load %arg15[%281, %c0_109] : memref<128x64xf32, #tpu.memory_space<vmem>>, vector<16x64xf32>
    %283 = arith.mulf %282, %275 : vector<16x64xf32>
    %284 = arith.index_cast %280 : i32 to index
    %c0_110 = arith.constant 0 : index
    %285 = vector.load %arg16[%284, %c0_110] : memref<128x64xf32, #tpu.memory_space<vmem>>, vector<16x64xf32>
    %286 = arith.addf %283, %285 : vector<16x64xf32>
    %287 = arith.index_cast %280 : i32 to index
    %c0_111 = arith.constant 0 : index
    %288 = vector.load %arg16[%287, %c0_111] : memref<128x64xf32, #tpu.memory_space<vmem>>, vector<16x64xf32>
    tpu.vector_store %arg16[%287, %c0_111], %286 {strides = array<i32>} : memref<128x64xf32, #tpu.memory_space<vmem>>, vector<16x64xf32>,
    %c7_i32_112 = arith.constant 7 : i32
    %c7_i32_113 = arith.constant 7 : i32
    %289 = arith.subi %c7_i32_113, %c7_i32_112 : i32
    %c16_i32_114 = arith.constant 16 : i32
    %290 = arith.muli %289, %c16_i32_114 : i32
    %291 = tpu.assume_multiple %290, 16 : i32
    %292 = arith.index_cast %291 : i32 to index
    %c0_115 = arith.constant 0 : index
    %293 = vector.load %arg15[%292, %c0_115] : memref<128x64xf32, #tpu.memory_space<vmem>>, vector<16x64xf32>
    %294 = arith.mulf %293, %286 : vector<16x64xf32>
    %295 = arith.index_cast %291 : i32 to index
    %c0_116 = arith.constant 0 : index
    %296 = vector.load %arg16[%295, %c0_116] : memref<128x64xf32, #tpu.memory_space<vmem>>, vector<16x64xf32>
    %297 = arith.addf %294, %296 : vector<16x64xf32>
    %298 = arith.index_cast %291 : i32 to index
    %c0_117 = arith.constant 0 : index
    %299 = vector.load %arg16[%298, %c0_117] : memref<128x64xf32, #tpu.memory_space<vmem>>, vector<16x64xf32>
    tpu.vector_store %arg16[%298, %c0_117], %297 {strides = array<i32>} : memref<128x64xf32, #tpu.memory_space<vmem>>, vector<16x64xf32>,
    %c8_i32 = arith.constant 8 : i32
    %c0_118 = arith.constant 0 : index
    %c0_119 = arith.constant 0 : index
    %300 = vector.load %arg17[%c0_118, %c0_119] : memref<16x64xf32, #tpu.memory_space<vmem>>, vector<16x64xf32>
    tpu.vector_store %arg17[%c0_118, %c0_119], %297 {strides = array<i32>} : memref<16x64xf32, #tpu.memory_space<vmem>>, vector<16x64xf32>,
    %c0_120 = arith.constant 0 : index
    %c0_121 = arith.constant 0 : index
    %301 = vector.load %arg10[%c0_120, %c0_121] : memref<1x64xf32, #tpu.memory_space<vmem>>, vector<1x64xf32>
    %302 = vector.broadcast %301 : vector<1x64xf32> to vector<8x64xf32>
    %303 = arith.mulf %302, %44 : vector<8x64xf32>
    %304 = vector.extract_strided_slice %50 {offsets = [0, 0], sizes = [8, 1], strides = [1, 1]} : vector<8x16xf32> to vector<8x1xf32>
    %c0_122 = arith.constant 0 : index
    %c0_123 = arith.constant 0 : index
    %305 = tpu.strided_load %arg16[%c0_122, %c0_123] {strides = array<i32: 16, 1>} : memref<128x64xf32, #tpu.memory_space<vmem>>, vector<8x64xf32>
    %306 = vector.broadcast %304 : vector<8x1xf32> to vector<8x64xf32>
    %307 = arith.mulf %306, %305 : vector<8x64xf32>
    %308 = arith.addf %303, %307 : vector<8x64xf32>
    %309 = vector.extract_strided_slice %50 {offsets = [0, 1], sizes = [8, 1], strides = [1, 1]} : vector<8x16xf32> to vector<8x1xf32>
    %c1_124 = arith.constant 1 : index
    %c0_125 = arith.constant 0 : index
    %310 = tpu.strided_load %arg16[%c1_124, %c0_125] {strides = array<i32: 16, 1>} : memref<128x64xf32, #tpu.memory_space<vmem>>, vector<8x64xf32>
    %311 = vector.broadcast %309 : vector<8x1xf32> to vector<8x64xf32>
    %312 = arith.mulf %311, %310 : vector<8x64xf32>
    %313 = arith.addf %308, %312 : vector<8x64xf32>
    %314 = vector.extract_strided_slice %50 {offsets = [0, 2], sizes = [8, 1], strides = [1, 1]} : vector<8x16xf32> to vector<8x1xf32>
    %c2_126 = arith.constant 2 : index
    %c0_127 = arith.constant 0 : index
    %315 = tpu.strided_load %arg16[%c2_126, %c0_127] {strides = array<i32: 16, 1>} : memref<128x64xf32, #tpu.memory_space<vmem>>, vector<8x64xf32>
    %316 = vector.broadcast %314 : vector<8x1xf32> to vector<8x64xf32>
    %317 = arith.mulf %316, %315 : vector<8x64xf32>
    %318 = arith.addf %313, %317 : vector<8x64xf32>
    %319 = vector.extract_strided_slice %50 {offsets = [0, 3], sizes = [8, 1], strides = [1, 1]} : vector<8x16xf32> to vector<8x1xf32>
    %c3_128 = arith.constant 3 : index
    %c0_129 = arith.constant 0 : index
    %320 = tpu.strided_load %arg16[%c3_128, %c0_129] {strides = array<i32: 16, 1>} : memref<128x64xf32, #tpu.memory_space<vmem>>, vector<8x64xf32>
    %321 = vector.broadcast %319 : vector<8x1xf32> to vector<8x64xf32>
    %322 = arith.mulf %321, %320 : vector<8x64xf32>
    %323 = arith.addf %318, %322 : vector<8x64xf32>
    %324 = vector.extract_strided_slice %50 {offsets = [0, 4], sizes = [8, 1], strides = [1, 1]} : vector<8x16xf32> to vector<8x1xf32>
    %c4_130 = arith.constant 4 : index
    %c0_131 = arith.constant 0 : index
    %325 = tpu.strided_load %arg16[%c4_130, %c0_131] {strides = array<i32: 16, 1>} : memref<128x64xf32, #tpu.memory_space<vmem>>, vector<8x64xf32>
    %326 = vector.broadcast %324 : vector<8x1xf32> to vector<8x64xf32>
    %327 = arith.mulf %326, %325 : vector<8x64xf32>
    %328 = arith.addf %323, %327 : vector<8x64xf32>
    %329 = vector.extract_strided_slice %50 {offsets = [0, 5], sizes = [8, 1], strides = [1, 1]} : vector<8x16xf32> to vector<8x1xf32>
    %c5_132 = arith.constant 5 : index
    %c0_133 = arith.constant 0 : index
    %330 = tpu.strided_load %arg16[%c5_132, %c0_133] {strides = array<i32: 16, 1>} : memref<128x64xf32, #tpu.memory_space<vmem>>, vector<8x64xf32>
    %331 = vector.broadcast %329 : vector<8x1xf32> to vector<8x64xf32>
    %332 = arith.mulf %331, %330 : vector<8x64xf32>
    %333 = arith.addf %328, %332 : vector<8x64xf32>
    %334 = vector.extract_strided_slice %50 {offsets = [0, 6], sizes = [8, 1], strides = [1, 1]} : vector<8x16xf32> to vector<8x1xf32>
    %c6_134 = arith.constant 6 : index
    %c0_135 = arith.constant 0 : index
    %335 = tpu.strided_load %arg16[%c6_134, %c0_135] {strides = array<i32: 16, 1>} : memref<128x64xf32, #tpu.memory_space<vmem>>, vector<8x64xf32>
    %336 = vector.broadcast %334 : vector<8x1xf32> to vector<8x64xf32>
    %337 = arith.mulf %336, %335 : vector<8x64xf32>
    %338 = arith.addf %333, %337 : vector<8x64xf32>
    %339 = vector.extract_strided_slice %50 {offsets = [0, 7], sizes = [8, 1], strides = [1, 1]} : vector<8x16xf32> to vector<8x1xf32>
    %c7_136 = arith.constant 7 : index
    %c0_137 = arith.constant 0 : index
    %340 = tpu.strided_load %arg16[%c7_136, %c0_137] {strides = array<i32: 16, 1>} : memref<128x64xf32, #tpu.memory_space<vmem>>, vector<8x64xf32>
    %341 = vector.broadcast %339 : vector<8x1xf32> to vector<8x64xf32>
    %342 = arith.mulf %341, %340 : vector<8x64xf32>
    %343 = arith.addf %338, %342 : vector<8x64xf32>
    %344 = vector.extract_strided_slice %50 {offsets = [0, 8], sizes = [8, 1], strides = [1, 1]} : vector<8x16xf32> to vector<8x1xf32>
    %c8_138 = arith.constant 8 : index
    %c0_139 = arith.constant 0 : index
    %345 = tpu.strided_load %arg16[%c8_138, %c0_139] {strides = array<i32: 16, 1>} : memref<128x64xf32, #tpu.memory_space<vmem>>, vector<8x64xf32>
    %346 = vector.broadcast %344 : vector<8x1xf32> to vector<8x64xf32>
    %347 = arith.mulf %346, %345 : vector<8x64xf32>
    %348 = arith.addf %343, %347 : vector<8x64xf32>
    %349 = vector.extract_strided_slice %50 {offsets = [0, 9], sizes = [8, 1], strides = [1, 1]} : vector<8x16xf32> to vector<8x1xf32>
    %c9_140 = arith.constant 9 : index
    %c0_141 = arith.constant 0 : index
    %350 = tpu.strided_load %arg16[%c9_140, %c0_141] {strides = array<i32: 16, 1>} : memref<128x64xf32, #tpu.memory_space<vmem>>, vector<8x64xf32>
    %351 = vector.broadcast %349 : vector<8x1xf32> to vector<8x64xf32>
    %352 = arith.mulf %351, %350 : vector<8x64xf32>
    %353 = arith.addf %348, %352 : vector<8x64xf32>
    %354 = vector.extract_strided_slice %50 {offsets = [0, 10], sizes = [8, 1], strides = [1, 1]} : vector<8x16xf32> to vector<8x1xf32>
    %c10_142 = arith.constant 10 : index
    %c0_143 = arith.constant 0 : index
    %355 = tpu.strided_load %arg16[%c10_142, %c0_143] {strides = array<i32: 16, 1>} : memref<128x64xf32, #tpu.memory_space<vmem>>, vector<8x64xf32>
    %356 = vector.broadcast %354 : vector<8x1xf32> to vector<8x64xf32>
    %357 = arith.mulf %356, %355 : vector<8x64xf32>
    %358 = arith.addf %353, %357 : vector<8x64xf32>
    %359 = vector.extract_strided_slice %50 {offsets = [0, 11], sizes = [8, 1], strides = [1, 1]} : vector<8x16xf32> to vector<8x1xf32>
    %c11_144 = arith.constant 11 : index
    %c0_145 = arith.constant 0 : index
    %360 = tpu.strided_load %arg16[%c11_144, %c0_145] {strides = array<i32: 16, 1>} : memref<128x64xf32, #tpu.memory_space<vmem>>, vector<8x64xf32>
    %361 = vector.broadcast %359 : vector<8x1xf32> to vector<8x64xf32>
    %362 = arith.mulf %361, %360 : vector<8x64xf32>
    %363 = arith.addf %358, %362 : vector<8x64xf32>
    %364 = vector.extract_strided_slice %50 {offsets = [0, 12], sizes = [8, 1], strides = [1, 1]} : vector<8x16xf32> to vector<8x1xf32>
    %c12_146 = arith.constant 12 : index
    %c0_147 = arith.constant 0 : index
    %365 = tpu.strided_load %arg16[%c12_146, %c0_147] {strides = array<i32: 16, 1>} : memref<128x64xf32, #tpu.memory_space<vmem>>, vector<8x64xf32>
    %366 = vector.broadcast %364 : vector<8x1xf32> to vector<8x64xf32>
    %367 = arith.mulf %366, %365 : vector<8x64xf32>
    %368 = arith.addf %363, %367 : vector<8x64xf32>
    %369 = vector.extract_strided_slice %50 {offsets = [0, 13], sizes = [8, 1], strides = [1, 1]} : vector<8x16xf32> to vector<8x1xf32>
    %c13_148 = arith.constant 13 : index
    %c0_149 = arith.constant 0 : index
    %370 = tpu.strided_load %arg16[%c13_148, %c0_149] {strides = array<i32: 16, 1>} : memref<128x64xf32, #tpu.memory_space<vmem>>, vector<8x64xf32>
    %371 = vector.broadcast %369 : vector<8x1xf32> to vector<8x64xf32>
    %372 = arith.mulf %371, %370 : vector<8x64xf32>
    %373 = arith.addf %368, %372 : vector<8x64xf32>
    %374 = vector.extract_strided_slice %50 {offsets = [0, 14], sizes = [8, 1], strides = [1, 1]} : vector<8x16xf32> to vector<8x1xf32>
    %c14_150 = arith.constant 14 : index
    %c0_151 = arith.constant 0 : index
    %375 = tpu.strided_load %arg16[%c14_150, %c0_151] {strides = array<i32: 16, 1>} : memref<128x64xf32, #tpu.memory_space<vmem>>, vector<8x64xf32>
    %376 = vector.broadcast %374 : vector<8x1xf32> to vector<8x64xf32>
    %377 = arith.mulf %376, %375 : vector<8x64xf32>
    %378 = arith.addf %373, %377 : vector<8x64xf32>
    %379 = vector.extract_strided_slice %50 {offsets = [0, 15], sizes = [8, 1], strides = [1, 1]} : vector<8x16xf32> to vector<8x1xf32>
    %c15_152 = arith.constant 15 : index
    %c0_153 = arith.constant 0 : index
    %380 = tpu.strided_load %arg16[%c15_152, %c0_153] {strides = array<i32: 16, 1>} : memref<128x64xf32, #tpu.memory_space<vmem>>, vector<8x64xf32>
    %381 = vector.broadcast %379 : vector<8x1xf32> to vector<8x64xf32>
    %382 = arith.mulf %381, %380 : vector<8x64xf32>
    %383 = arith.addf %378, %382 : vector<8x64xf32>
    %384 = arith.negf %9 : vector<8x64xf32>
    %385 = math.exp %384 : vector<8x64xf32>
    %cst_154 = arith.constant 1.000000e+00 : f32
    %386 = vector.broadcast %cst_154 : f32 to vector<8x64xf32>
    %387 = arith.addf %386, %385 : vector<8x64xf32>
    %388 = arith.divf %386, %387 : vector<8x64xf32>
    %389 = arith.mulf %9, %388 : vector<8x64xf32>
    %390 = arith.mulf %383, %389 : vector<8x64xf32>
    %391 = arith.truncf %390 : vector<8x64xf32> to vector<8x64xbf16>
    %c0_155 = arith.constant 0 : index
    %c0_156 = arith.constant 0 : index
    %392 = vector.load %arg11[%c0_155, %c0_156] : memref<64x32xbf16, #tpu.memory_space<vmem>>, vector<64x32xbf16>
    %cst_157 = arith.constant dense<0.000000e+00> : vector<8x32xf32>
    %393 = tpu.matmul %391, %392, %cst_157 {dimension_numbers = #tpu.dot_dimension_numbers<[1], [0], [0], [1], [0, 0, 1, 1], [], []>} : vector<8x64xbf16>, vector<64x32xbf16>, vector<8x32xf32> -> vector<8x32xf32>
    %394 = arith.addf %393, %4 : vector<8x32xf32>
    %cst_158 = arith.constant dense<0.000000e+00> : vector<8xf32>
    %395 = vector.multi_reduction <add>, %394, %cst_158 [1] : vector<8x32xf32> to vector<8xf32>
    %396 = vector.shape_cast %395 : vector<8xf32> to vector<8x1xf32>
    %cst_159 = arith.constant 3.200000e+01 : f32
    %397 = vector.broadcast %cst_159 : f32 to vector<8x1xf32>
    %398 = arith.divf %396, %397 : vector<8x1xf32>
    %399 = vector.broadcast %398 : vector<8x1xf32> to vector<8x32xf32>
    %400 = arith.subf %394, %399 : vector<8x32xf32>
    %401 = vector.broadcast %398 : vector<8x1xf32> to vector<8x32xf32>
    %402 = arith.subf %394, %401 : vector<8x32xf32>
    %403 = arith.mulf %400, %402 : vector<8x32xf32>
    %cst_160 = arith.constant dense<0.000000e+00> : vector<8xf32>
    %404 = vector.multi_reduction <add>, %403, %cst_160 [1] : vector<8x32xf32> to vector<8xf32>
    %405 = vector.shape_cast %404 : vector<8xf32> to vector<8x1xf32>
    %cst_161 = arith.constant 3.200000e+01 : f32
    %406 = vector.broadcast %cst_161 : f32 to vector<8x1xf32>
    %407 = arith.divf %405, %406 : vector<8x1xf32>
    %408 = vector.broadcast %398 : vector<8x1xf32> to vector<8x32xf32>
    %409 = arith.subf %394, %408 : vector<8x32xf32>
    %cst_162 = arith.constant 9.99999974E-6 : f32
    %410 = vector.broadcast %cst_162 : f32 to vector<8x1xf32>
    %411 = arith.addf %407, %410 : vector<8x1xf32>
    %412 = math.rsqrt %411 : vector<8x1xf32>
    %413 = vector.broadcast %412 : vector<8x1xf32> to vector<8x32xf32>
    %414 = arith.mulf %409, %413 : vector<8x32xf32>
    %c0_163 = arith.constant 0 : index
    %c0_164 = arith.constant 0 : index
    %415 = vector.load %arg12[%c0_163, %c0_164] : memref<1x32xf32, #tpu.memory_space<vmem>>, vector<1x32xf32>
    %416 = vector.broadcast %415 : vector<1x32xf32> to vector<8x32xf32>
    %417 = arith.mulf %414, %416 : vector<8x32xf32>
    %c0_165 = arith.constant 0 : index
    %c0_166 = arith.constant 0 : index
    %418 = vector.load %arg13[%c0_165, %c0_166] : memref<1x32xf32, #tpu.memory_space<vmem>>, vector<1x32xf32>
    %419 = vector.broadcast %418 : vector<1x32xf32> to vector<8x32xf32>
    %420 = arith.addf %417, %419 : vector<8x32xf32>
    %c0_167 = arith.constant 0 : index
    %c0_168 = arith.constant 0 : index
    %c0_169 = arith.constant 0 : index
    %421 = vector.load %arg14[%c0_167, %c0_168, %c0_169] : memref<1x8x32xf32, #tpu.memory_space<vmem>>, vector<1x8x32xf32>
    %422 = vector.shape_cast %421 : vector<1x8x32xf32> to vector<8x32xf32>
    %423 = vector.shape_cast %420 : vector<8x32xf32> to vector<1x8x32xf32>
    tpu.vector_store %arg14[%c0_167, %c0_168, %c0_169], %423 {strides = array<i32>} : memref<1x8x32xf32, #tpu.memory_space<vmem>>, vector<1x8x32xf32>,
    return
  }
  func.func @transform_0(%arg0: i32, %arg1: i32) -> (i32, i32, i32) {
    %c1_i32 = arith.constant 1 : i32
    %0 = arith.subi %c1_i32, %arg1 : i32
    %c0_i32 = arith.constant 0 : i32
    %c0_i32_0 = arith.constant 0 : i32
    return %arg0, %0, %c0_i32 : i32, i32, i32
  }
  func.func @transform_1(%arg0: i32, %arg1: i32) -> (i32, i32) {
    %c0_i32 = arith.constant 0 : i32
    %c0_i32_0 = arith.constant 0 : i32
    %c0_i32_1 = arith.constant 0 : i32
    return %c0_i32, %c0_i32_0 : i32, i32
  }
  func.func @transform_2(%arg0: i32, %arg1: i32) -> (i32, i32) {
    %c0_i32 = arith.constant 0 : i32
    %c0_i32_0 = arith.constant 0 : i32
    %c0_i32_1 = arith.constant 0 : i32
    return %c0_i32, %c0_i32_0 : i32, i32
  }
  func.func @transform_3(%arg0: i32, %arg1: i32) -> (i32, i32) {
    %c0_i32 = arith.constant 0 : i32
    %c0_i32_0 = arith.constant 0 : i32
    %c0_i32_1 = arith.constant 0 : i32
    return %c0_i32, %c0_i32_0 : i32, i32
  }
  func.func @transform_4(%arg0: i32, %arg1: i32) -> (i32, i32) {
    %c0_i32 = arith.constant 0 : i32
    %c0_i32_0 = arith.constant 0 : i32
    %c0_i32_1 = arith.constant 0 : i32
    return %c0_i32, %c0_i32_0 : i32, i32
  }
  func.func @transform_5(%arg0: i32, %arg1: i32) -> (i32, i32) {
    %c0_i32 = arith.constant 0 : i32
    %c0_i32_0 = arith.constant 0 : i32
    %c0_i32_1 = arith.constant 0 : i32
    return %c0_i32, %c0_i32_0 : i32, i32
  }
  func.func @transform_6(%arg0: i32, %arg1: i32) -> (i32, i32) {
    %c0_i32 = arith.constant 0 : i32
    %c0_i32_0 = arith.constant 0 : i32
    %c0_i32_1 = arith.constant 0 : i32
    return %c0_i32, %c0_i32_0 : i32, i32
  }
  func.func @transform_7(%arg0: i32, %arg1: i32) -> (i32, i32) {
    %c0_i32 = arith.constant 0 : i32
    %c0_i32_0 = arith.constant 0 : i32
    %c0_i32_1 = arith.constant 0 : i32
    return %c0_i32, %c0_i32_0 : i32, i32
  }
  func.func @transform_8(%arg0: i32, %arg1: i32) -> (i32, i32) {
    %c0_i32 = arith.constant 0 : i32
    %c0_i32_0 = arith.constant 0 : i32
    %c0_i32_1 = arith.constant 0 : i32
    return %c0_i32, %c0_i32_0 : i32, i32
  }
  func.func @transform_9(%arg0: i32, %arg1: i32) -> (i32, i32) {
    %c0_i32 = arith.constant 0 : i32
    %c0_i32_0 = arith.constant 0 : i32
    %c0_i32_1 = arith.constant 0 : i32
    return %c0_i32, %c0_i32_0 : i32, i32
  }
  func.func @transform_10(%arg0: i32, %arg1: i32) -> (i32, i32) {
    %c0_i32 = arith.constant 0 : i32
    %c0_i32_0 = arith.constant 0 : i32
    %c0_i32_1 = arith.constant 0 : i32
    return %c0_i32, %c0_i32_0 : i32, i32
  }
  func.func @transform_11(%arg0: i32, %arg1: i32) -> (i32, i32) {
    %c0_i32 = arith.constant 0 : i32
    %c0_i32_0 = arith.constant 0 : i32
    %c0_i32_1 = arith.constant 0 : i32
    return %c0_i32, %c0_i32_0 : i32, i32
  }
  func.func @transform_12(%arg0: i32, %arg1: i32) -> (i32, i32, i32) {
    %c1_i32 = arith.constant 1 : i32
    %0 = arith.subi %c1_i32, %arg1 : i32
    %c0_i32 = arith.constant 0 : i32
    %c0_i32_0 = arith.constant 0 : i32
    return %arg0, %0, %c0_i32 : i32, i32, i32
  }
}

</mosaic_0001>

<llo_original>
// kernel: bimamba_encoder_layer.6
$region0: #{bimamba_encoder_layer.6}
  #allocation0 [shape = 'u32[]', space=smem, size = 0x4, offset = 0x4, fixed_abs, tag = 'smem constant byte address 0x4 - core index']
  #allocation1 [shape = 'u32[144,128]{1,0:T(1,128)}', space=vmem, size = 0x12000, scoped, tag = 'internal scratch']
  #allocation2 [shape = 'f32[32,32]{1,0:T(8,128)}', space=vmem, size = 0x4000, scoped, tag = 'scratch operand']
  %s0 = inlined_call_operand.vmem [shape: f32[32,32], index: 0, kind: input, shape index: {}, may-alias: {0,1}]
  %s1 = inlined_call_operand.vmem [shape: f32[32,32], index: 1, kind: input, shape index: {}, may-alias: {0,1}]
  %s2 = inlined_call_operand.vmem [shape: bf16[32,64], index: 2, kind: input, shape index: {}]
  %s3 = inlined_call_operand.vmem [shape: f32[1,64], index: 3, kind: input, shape index: {}]
  %s4 = inlined_call_operand.vmem [shape: bf16[64,32], index: 4, kind: input, shape index: {}]
  %s5 = inlined_call_operand.vmem [shape: f32[1,32], index: 5, kind: input, shape index: {}]
  %s6 = inlined_call_operand.vmem [shape: f32[1,32], index: 6, kind: input, shape index: {}]
  %s7 = inlined_call_operand.vmem [shape: f32[1,32], index: 7, kind: input, shape index: {}]
  %s8 = inlined_call_operand.vmem [shape: f32[32,32], index: 8, kind: output, shape index: {}]
  %s9 = sld [smem:[#allocation0]]
  $region50: #{bimamba_encoder_layer.6} parent=0
    _
  %s11 = ssub.s32 1, %s9
  %s12 = scalar_select 0, %s11, %s9
  // Predicated region
  $region2: #{bimamba_encoder_layer.6} parent=0 // pred_check
    _
  $region3: #{bimamba_encoder_layer.6} parent=0 // pred_check_branch
    %14 = sbr.rel (0) target = $region5
  $region4: #{bimamba_encoder_layer.6} parent=0 // pred_region
    _
  $region5: #{bimamba_encoder_layer.6} parent=0 // pred_fallthru
    _
  // Predicated region
  $region6: #{bimamba_encoder_layer.6} parent=0 // pred_check
    _
  $region7: #{bimamba_encoder_layer.6} parent=0 // pred_check_branch
    %16 = sbr.rel (0) target = $region9
  $region8: #{bimamba_encoder_layer.6} parent=0 // pred_region
    _
  $region9: #{bimamba_encoder_layer.6} parent=0 // pred_fallthru
    _
  // Predicated region
  $region10: #{bimamba_encoder_layer.6} parent=0 // pred_check
    _
  $region11: #{bimamba_encoder_layer.6} parent=0 // pred_check_branch
    %18 = sbr.rel (0) target = $region13
  $region12: #{bimamba_encoder_layer.6} parent=0 // pred_region
    _
  $region13: #{bimamba_encoder_layer.6} parent=0 // pred_fallthru
    _
  // Predicated region
  $region14: #{bimamba_encoder_layer.6} parent=0 // pred_check
    _
  $region15: #{bimamba_encoder_layer.6} parent=0 // pred_check_branch
    %20 = sbr.rel (0) target = $region17
  $region16: #{bimamba_encoder_layer.6} parent=0 // pred_region
    _
  $region17: #{bimamba_encoder_layer.6} parent=0 // pred_fallthru
    _
  // Predicated region
  $region18: #{bimamba_encoder_layer.6} parent=0 // pred_check
    _
  $region19: #{bimamba_encoder_layer.6} parent=0 // pred_check_branch
    %22 = sbr.rel (0) target = $region21
  $region20: #{bimamba_encoder_layer.6} parent=0 // pred_region
    _
  $region21: #{bimamba_encoder_layer.6} parent=0 // pred_fallthru
    _
  // Predicated region
  $region22: #{bimamba_encoder_layer.6} parent=0 // pred_check
    _
  $region23: #{bimamba_encoder_layer.6} parent=0 // pred_check_branch
    %24 = sbr.rel (0) target = $region25
  $region24: #{bimamba_encoder_layer.6} parent=0 // pred_region
    _
  $region25: #{bimamba_encoder_layer.6} parent=0 // pred_fallthru
    _
  // Predicated region
  $region26: #{bimamba_encoder_layer.6} parent=0 // pred_check
    _
  $region27: #{bimamba_encoder_layer.6} parent=0 // pred_check_branch
    %26 = sbr.rel (0) target = $region29
  $region28: #{bimamba_encoder_layer.6} parent=0 // pred_region
    _
  $region29: #{bimamba_encoder_layer.6} parent=0 // pred_fallthru
    _
  // Predicated region
  $region30: #{bimamba_encoder_layer.6} parent=0 // pred_check
    _
  $region31: #{bimamba_encoder_layer.6} parent=0 // pred_check_branch
    %28 = sbr.rel (0) target = $region33
  $region32: #{bimamba_encoder_layer.6} parent=0 // pred_region
    _
  $region33: #{bimamba_encoder_layer.6} parent=0 // pred_fallthru
    _
  %p30 = scmp.eq.s32.totalorder 0, 0
  // Predicated region
  $region34: #{bimamba_encoder_layer.6} parent=0 // pred_check
    %p31 = pneg %p30
  $region35: #{bimamba_encoder_layer.6} parent=0 // pred_check_branch
    %33 = sbr.rel (%p31) target = $region37
  $region36: #{bimamba_encoder_layer.6} parent=0 // pred_region
    %vm34 = vcmask 261120
    %35 = vst.msk [vmem:[#allocation2] sm:$0xff] %vm34, 0.0
    %36 = vst.msk [vmem:[#allocation2 + $0x8] sm:$0xff] %vm34, 0.0
    %37 = vst.msk [vmem:[#allocation2 + $0x10] sm:$0xff] %vm34, 0.0
    %38 = vst.msk [vmem:[#allocation2 + $0x18] sm:$0xff] %vm34, 0.0
  $region37: #{bimamba_encoder_layer.6} parent=0 // pred_fallthru
    _
  %v39 = vld [vmem:[%s0] sm:$0xff]
  %v40 = vld [vmem:[%s0 + $0x8] sm:$0xff]
  %v41 = vld [vmem:[%s0 + $0x10] sm:$0xff]
  %v42 = vld [vmem:[%s0 + $0x18] sm:$0xff]
  %v43 = vpack.c.bf16 %v40, %v39
  %v44 = vpack.c.bf16 %v42, %v41
  %v45 = vld [vmem:[%s2] sm:$0xf]
  %v46 = vld [vmem:[%s2 + $0x4] sm:$0xf]
  %v47 = vld [vmem:[%s2 + $0x8] sm:$0xf]
  %v48 = vld [vmem:[%s2 + $0xc] sm:$0xf]
  %v49 = vld [vmem:[%s3] sm:$0x1]
  %v51 = vlaneseq
  %v52 = vshrl.u32 %v51, 7
  %v53 = vsub.s32 0, %v52
  %v54 = vrot.slane %v49, %v53
  %v60 = vunpack.c.l.b16 %v45
  %v61 = vunpack.c.l.b16 %v46
  %v62 = vunpack.c.l.b16 %v47
  %v63 = vunpack.c.l.b16 %v48
  %v64 = vpack.c.b16 %v61, %v60
  %v65 = vpack.c.b16 %v63, %v62
  %vm68 = vcmask 261120
  %v70 = vsel %vm68, %v43, 0
  %v73 = vsel %vm68, %v44, 0
  %75 = vmatprep.subr.bf16.mxu0 0
  %76 = vmatpush1.bf16.msra.mxu0 %v64
  %77 = vmatprep.subr.bf16.mxu0 0
  %78 = vmatpush1.bf16.msra.mxu0 %v65
  %79 = vmatprep.subr.bf16.mxu0 0
  %80 = vmatpush1.bf16.msra.mxu0 0
  %81 = vmatprep.subr.bf16.mxu0 0
  %82 = vmatpush1.bf16.msra.mxu0 0
  %83 = vmatprep.subr.bf16.mxu0 0
  %84 = vmatpush1.bf16.msra.mxu0 0
  %85 = vmatprep.subr.bf16.mxu0 0
  %86 = vmatpush1.bf16.msra.mxu0 0
  %87 = vmatprep.subr.bf16.mxu0 0
  %88 = vmatpush1.bf16.msra.mxu0 0
  %89 = vmatprep.subr.bf16.mxu0 0
  %90 = vmatpush1.bf16.msra.mxu0 0
  %91 = vmatprep.subr.bf16.mxu0 0
  %92 = vmatpush1.bf16.msra.mxu0 0
  %93 = vmatprep.subr.bf16.mxu0 0
  %94 = vmatpush1.bf16.msra.mxu0 0
  %95 = vmatprep.subr.bf16.mxu0 0
  %96 = vmatpush1.bf16.msra.mxu0 0
  %97 = vmatprep.subr.bf16.mxu0 0
  %98 = vmatpush1.bf16.msra.mxu0 0
  %99 = vmatprep.subr.bf16.mxu0 0
  %100 = vmatpush1.bf16.msra.mxu0 0
  %101 = vmatprep.subr.bf16.mxu0 0
  %102 = vmatpush1.bf16.msra.mxu0 0
  %103 = vmatprep.subr.bf16.mxu0 0
  %104 = vmatpush1.bf16.msra.mxu0 0
  %105 = vmatprep.subr.bf16.mxu0 0
  %106 = vmatpush1.bf16.msra.mxu0 0
  %107 = vmatprep.mubr.bf16.mxu0 0
  %108 = vmatmul.mubr.bf16.gmra.mrb[0].mxu0 %v70
  %v109 = vpop.f32.mrb[0].mxu0
  %v110 = vadd.f32 %v54, %v109
  %v111 = vpop.f32.mrb[0].mxu0
  %v112 = vpop.f32.mrb[0].mxu0
  %v113 = vadd.f32 %v54, %v112
  %v114 = vpop.f32.mrb[0].mxu0
  %115 = vmatprep.mubr.bf16.mxu0 0
  %116 = vmatmul.mubr.bf16.gmra.mrb[0].mxu0 %v73
  %v117 = vpop.f32.mrb[0].mxu0
  %v118 = vadd.f32 %v54, %v117
  %v119 = vpop.f32.mrb[0].mxu0
  %v120 = vpop.f32.mrb[0].mxu0
  %v121 = vadd.f32 %v54, %v120
  %v122 = vpop.f32.mrb[0].mxu0
  %123 = vdwg.mxu0
  %v124 = vmax.f32 %v110, 0.0
  %v125 = vmax.f32 %v113, 0.0
  %v126 = vmax.f32 %v118, 0.0
  %v127 = vmax.f32 %v121, 0.0
  %v128 = vld [vmem:[#allocation2] sm:$0xff]
  %v129 = vld [vmem:[#allocation2 + $0x8] sm:$0xff]
  %v130 = vld [vmem:[#allocation2 + $0x10] sm:$0xff]
  %v131 = vld [vmem:[#allocation2 + $0x18] sm:$0xff]
  %v132 = vpack.c.bf16 %v125, %v124
  %v133 = vpack.c.bf16 %v127, %v126
  %v134 = vld [vmem:[%s4] sm:$0xf]
  %v135 = vld [vmem:[%s4 + $0x4] sm:$0xf]
  %v136 = vld [vmem:[%s4 + $0x8] sm:$0xf]
  %v137 = vld [vmem:[%s4 + $0xc] sm:$0xf]
  %v138 = vld [vmem:[%s4 + $0x10] sm:$0xf]
  %v139 = vld [vmem:[%s4 + $0x14] sm:$0xf]
  %v140 = vld [vmem:[%s4 + $0x18] sm:$0xf]
  %v141 = vld [vmem:[%s4 + $0x1c] sm:$0xf]
  %v150 = vunpack.c.l.b16 %v134
  %v151 = vunpack.c.l.b16 %v135
  %v152 = vunpack.c.l.b16 %v136
  %v153 = vunpack.c.l.b16 %v137
  %v154 = vunpack.c.l.b16 %v138
  %v155 = vunpack.c.l.b16 %v139
  %v156 = vunpack.c.l.b16 %v140
  %v157 = vunpack.c.l.b16 %v141
  %v158 = vpack.c.b16 %v151, %v150
  %v159 = vpack.c.b16 %v153, %v152
  %v160 = vpack.c.b16 %v155, %v154
  %v161 = vpack.c.b16 %v157, %v156
  %vm166 = vcmask 523264
  %v168 = vsel %vm166, %v132, 0
  %v171 = vsel %vm166, %v133, 0
  %173 = vmatprep.subr.bf16.mxu0 0
  %174 = vmatpush1.bf16.msra.mxu0 %v158
  %175 = vmatprep.subr.bf16.mxu0 0
  %176 = vmatpush1.bf16.msra.mxu0 %v159
  %177 = vmatprep.subr.bf16.mxu0 0
  %178 = vmatpush1.bf16.msra.mxu0 %v160
  %179 = vmatprep.subr.bf16.mxu0 0
  %180 = vmatpush1.bf16.msra.mxu0 %v161
  %181 = vmatprep.subr.bf16.mxu0 0
  %182 = vmatpush1.bf16.msra.mxu0 0
  %183 = vmatprep.subr.bf16.mxu0 0
  %184 = vmatpush1.bf16.msra.mxu0 0
  %185 = vmatprep.subr.bf16.mxu0 0
  %186 = vmatpush1.bf16.msra.mxu0 0
  %187 = vmatprep.subr.bf16.mxu0 0
  %188 = vmatpush1.bf16.msra.mxu0 0
  %189 = vmatprep.subr.bf16.mxu0 0
  %190 = vmatpush1.bf16.msra.mxu0 0
  %191 = vmatprep.subr.bf16.mxu0 0
  %192 = vmatpush1.bf16.msra.mxu0 0
  %193 = vmatprep.subr.bf16.mxu0 0
  %194 = vmatpush1.bf16.msra.mxu0 0
  %195 = vmatprep.subr.bf16.mxu0 0
  %196 = vmatpush1.bf16.msra.mxu0 0
  %197 = vmatprep.subr.bf16.mxu0 0
  %198 = vmatpush1.bf16.msra.mxu0 0
  %199 = vmatprep.subr.bf16.mxu0 0
  %200 = vmatpush1.bf16.msra.mxu0 0
  %201 = vmatprep.subr.bf16.mxu0 0
  %202 = vmatpush1.bf16.msra.mxu0 0
  %203 = vmatprep.subr.bf16.mxu0 0
  %204 = vmatpush1.bf16.msra.mxu0 0
  %205 = vmatprep.mubr.bf16.mxu0 0
  %206 = vmatmul.mubr.bf16.gmra.mrb[0].mxu0 %v168
  %v207 = vpop.f32.mrb[0].mxu0
  %v208 = vadd.f32 0.0, %v207
  %v209 = vpop.f32.mrb[0].mxu0
  %v210 = vpop.f32.mrb[0].mxu0
  %v211 = vadd.f32 0.0, %v210
  %v212 = vpop.f32.mrb[0].mxu0
  %213 = vmatprep.mubr.bf16.mxu0 0
  %214 = vmatmul.mubr.bf16.gmra.mrb[0].mxu0 %v171
  %v215 = vpop.f32.mrb[0].mxu0
  %v216 = vadd.f32 0.0, %v215
  %v217 = vpop.f32.mrb[0].mxu0
  %v218 = vpop.f32.mrb[0].mxu0
  %v219 = vadd.f32 0.0, %v218
  %v220 = vpop.f32.mrb[0].mxu0
  %221 = vdwg.mxu0
  %v222 = vadd.f32 %v128, %v208
  %v223 = vadd.f32 %v129, %v211
  %v224 = vadd.f32 %v130, %v216
  %v225 = vadd.f32 %v131, %v219
  %226 = vst.msk [vmem:[#allocation2] sm:$0xff] %vm68, %v222
  %227 = vst.msk [vmem:[#allocation2 + $0x8] sm:$0xff] %vm68, %v223
  %228 = vst.msk [vmem:[#allocation2 + $0x10] sm:$0xff] %vm68, %v224
  %229 = vst.msk [vmem:[#allocation2 + $0x18] sm:$0xff] %vm68, %v225
  // Predicated region
  $region38: #{bimamba_encoder_layer.6} parent=0 // pred_check
    %p230 = pneg %p30
  $region39: #{bimamba_encoder_layer.6} parent=0 // pred_check_branch
    %232 = sbr.rel (%p230) target = $region41
  $region40: #{bimamba_encoder_layer.6} parent=0 // pred_region
    %v233 = vld [vmem:[#allocation2] sm:$0xff]
    %v234 = vld [vmem:[#allocation2 + $0x8] sm:$0xff]
    %v235 = vld [vmem:[#allocation2 + $0x10] sm:$0xff]
    %v236 = vld [vmem:[#allocation2 + $0x18] sm:$0xff]
    %v237 = vld [vmem:[%s5] sm:$0x1]
    %v239 = vlaneseq
    %v240 = vshrl.u32 %v239, 7
    %v241 = vsub.s32 0, %v240
    %v242 = vrot.slane %v237, %v241
    %v244 = vadd.f32 %v233, %v242
    %v245 = vadd.f32 %v234, %v242
    %v246 = vadd.f32 %v235, %v242
    %v247 = vadd.f32 %v236, %v242
    %v248 = vld [vmem:[%s1] sm:$0xff]
    %v249 = vld [vmem:[%s1 + $0x8] sm:$0xff]
    %v250 = vld [vmem:[%s1 + $0x10] sm:$0xff]
    %v251 = vld [vmem:[%s1 + $0x18] sm:$0xff]
    %v252 = vadd.f32 %v244, %v248
    %v253 = vadd.f32 %v245, %v249
    %v254 = vadd.f32 %v246, %v250
    %v255 = vadd.f32 %v247, %v251
    %v256 = vsel %vm68, %v252, 0.0
    %257 = vadd.xlane.f32.xlu0 %v256
    %v258 = vpop.xlane.xlu0 %257
    %v259 = vsel %vm68, %v253, 0.0
    %260 = vadd.xlane.f32.xlu0 %v259
    %v261 = vpop.xlane.xlu0 %260
    %v262 = vsel %vm68, %v254, 0.0
    %263 = vadd.xlane.f32.xlu0 %v262
    %v264 = vpop.xlane.xlu0 %263
    %v265 = vsel %vm68, %v255, 0.0
    %266 = vadd.xlane.f32.xlu0 %v265
    %v267 = vpop.xlane.xlu0 %266
    %v268 = vrcp.pop 32.0
    %v269 = vmul.f32 %v258, %v268
    %v270 = vmul.f32 %v261, %v268
    %v271 = vmul.f32 %v264, %v268
    %v272 = vmul.f32 %v267, %v268
    %v273 = vsub.f32 %v252, %v269
    %v274 = vsub.f32 %v253, %v270
    %v275 = vsub.f32 %v254, %v271
    %v276 = vsub.f32 %v255, %v272
    %v277 = vmul.f32 %v273, %v273
    %v278 = vmul.f32 %v274, %v274
    %v279 = vmul.f32 %v275, %v275
    %v280 = vmul.f32 %v276, %v276
    %v281 = vsel %vm68, %v277, 0.0
    %282 = vadd.xlane.f32.xlu0 %v281
    %v283 = vpop.xlane.xlu0 %282
    %v284 = vsel %vm68, %v278, 0.0
    %285 = vadd.xlane.f32.xlu0 %v284
    %v286 = vpop.xlane.xlu0 %285
    %v287 = vsel %vm68, %v279, 0.0
    %288 = vadd.xlane.f32.xlu0 %v287
    %v289 = vpop.xlane.xlu0 %288
    %v290 = vsel %vm68, %v280, 0.0
    %291 = vadd.xlane.f32.xlu0 %v290
    %v292 = vpop.xlane.xlu0 %291
    %v293 = vmul.f32 %v283, %v268
    %v294 = vmul.f32 %v286, %v268
    %v295 = vmul.f32 %v289, %v268
    %v296 = vmul.f32 %v292, %v268
    %v297 = vadd.f32 %v293, 1e-05
    %v298 = vadd.f32 %v294, 1e-05
    %v299 = vadd.f32 %v295, 1e-05
    %v300 = vadd.f32 %v296, 1e-05
    %v301 = vrsqrt.pop %v297
    %v302 = vrsqrt.pop %v298
    %v303 = vrsqrt.pop %v299
    %v304 = vrsqrt.pop %v300
    %v305 = vmul.f32 %v273, %v301
    %v306 = vmul.f32 %v274, %v302
    %v307 = vmul.f32 %v275, %v303
    %v308 = vmul.f32 %v276, %v304
    %v309 = vld [vmem:[%s6] sm:$0x1]
    %v311 = vlaneseq
    %v312 = vshrl.u32 %v311, 7
    %v313 = vsub.s32 0, %v312
    %v314 = vrot.slane %v309, %v313
    %v316 = vmul.f32 %v305, %v314
    %v317 = vmul.f32 %v306, %v314
    %v318 = vmul.f32 %v307, %v314
    %v319 = vmul.f32 %v308, %v314
    %v320 = vld [vmem:[%s7] sm:$0x1]
    %v322 = vlaneseq
    %v323 = vshrl.u32 %v322, 7
    %v324 = vsub.s32 0, %v323
    %v325 = vrot.slane %v320, %v324
    %v327 = vadd.f32 %v316, %v325
    %v328 = vadd.f32 %v317, %v325
    %v329 = vadd.f32 %v318, %v325
    %v330 = vadd.f32 %v319, %v325
    %331 = vst.msk [vmem:[%s8] sm:$0xff] %vm68, %v327
    %332 = vst.msk [vmem:[%s8 + $0x8] sm:$0xff] %vm68, %v328
    %333 = vst.msk [vmem:[%s8 + $0x10] sm:$0xff] %vm68, %v329
    %334 = vst.msk [vmem:[%s8 + $0x18] sm:$0xff] %vm68, %v330
  $region41: #{bimamba_encoder_layer.6} parent=0 // pred_fallthru
    _
  // Predicated region
  $region42: #{bimamba_encoder_layer.6} parent=0 // pred_check
    _
  $region43: #{bimamba_encoder_layer.6} parent=0 // pred_check_branch
    %336 = sbr.rel (0) target = $region45
  $region44: #{bimamba_encoder_layer.6} parent=0 // pred_region
    _
  $region45: #{bimamba_encoder_layer.6} parent=0 // pred_fallthru
    _
  // Predicated region
  $region46: #{bimamba_encoder_layer.6} parent=0 // pred_check
    _
  $region47: #{bimamba_encoder_layer.6} parent=0 // pred_check_branch
    %338 = sbr.rel (0) target = $region49
  $region48: #{bimamba_encoder_layer.6} parent=0 // pred_region
    _
  $region49: #{bimamba_encoder_layer.6} parent=0 // pred_fallthru
    _

// kernel: bimamba_encoder_layer.7
$region0: #{bimamba_encoder_layer.7}
  #allocation0 [shape = 'u32[]', space=smem, size = 0x4, offset = 0x4, fixed_abs, tag = 'smem constant byte address 0x4 - core index']
  #allocation1 [shape = 'u32[144,128]{1,0:T(1,128)}', space=vmem, size = 0x12000, scoped, tag = 'internal scratch']
  #allocation2 [shape = 'f32[32,32]{1,0:T(8,128)}', space=vmem, size = 0x4000, scoped, tag = 'scratch operand']
  %s0 = inlined_call_operand.vmem [shape: f32[32,32], index: 0, kind: input, shape index: {}]
  %s1 = inlined_call_operand.vmem [shape: f32[32,32], index: 1, kind: input, shape index: {}]
  %s2 = inlined_call_operand.vmem [shape: bf16[32,64], index: 2, kind: input, shape index: {}]
  %s3 = inlined_call_operand.vmem [shape: f32[1,64], index: 3, kind: input, shape index: {}]
  %s4 = inlined_call_operand.vmem [shape: bf16[64,32], index: 4, kind: input, shape index: {}]
  %s5 = inlined_call_operand.vmem [shape: f32[1,32], index: 5, kind: input, shape index: {}]
  %s6 = inlined_call_operand.vmem [shape: f32[1,32], index: 6, kind: input, shape index: {}]
  %s7 = inlined_call_operand.vmem [shape: f32[1,32], index: 7, kind: input, shape index: {}]
  %s8 = inlined_call_operand.hbm [shape: f32[32,32], index: 8, kind: output, shape index: {}]
  %s9 = sld [smem:[#allocation0]]
  $region50: #{bimamba_encoder_layer.7} parent=0
    _
  %s11 = ssub.s32 1, %s9
  %s12 = scalar_select 0, %s11, %s9
  $region1: #{bimamba_encoder_layer.7} parent=0
    #allocation3 [shape = 'u8[16384]{0}', space=vmem, size = 0x4000, scoped, tag = 'output window, operand 0, single buffered']
    #allocation4 [shape = 's32[1]{0}', space=sflag, size = 0x4, scoped, tag = 'scoped memory for bimamba_encoder_layer.7']
    %13 = vsyncpa [#allocation4], 0
    // Predicated region
    $region2: #{bimamba_encoder_layer.7} parent=1 // pred_check
      _
    $region3: #{bimamba_encoder_layer.7} parent=1 // pred_check_branch
      %15 = sbr.rel (0) target = $region5
    $region4: #{bimamba_encoder_layer.7} parent=1 // pred_region
      _
    $region5: #{bimamba_encoder_layer.7} parent=1 // pred_fallthru
      _
    // Predicated region
    $region6: #{bimamba_encoder_layer.7} parent=1 // pred_check
      _
    $region7: #{bimamba_encoder_layer.7} parent=1 // pred_check_branch
      %17 = sbr.rel (0) target = $region9
    $region8: #{bimamba_encoder_layer.7} parent=1 // pred_region
      _
    $region9: #{bimamba_encoder_layer.7} parent=1 // pred_fallthru
      _
    // Predicated region
    $region10: #{bimamba_encoder_layer.7} parent=1 // pred_check
      _
    $region11: #{bimamba_encoder_layer.7} parent=1 // pred_check_branch
      %19 = sbr.rel (0) target = $region13
    $region12: #{bimamba_encoder_layer.7} parent=1 // pred_region
      _
    $region13: #{bimamba_encoder_layer.7} parent=1 // pred_fallthru
      _
    // Predicated region
    $region14: #{bimamba_encoder_layer.7} parent=1 // pred_check
      _
    $region15: #{bimamba_encoder_layer.7} parent=1 // pred_check_branch
      %21 = sbr.rel (0) target = $region17
    $region16: #{bimamba_encoder_layer.7} parent=1 // pred_region
      _
    $region17: #{bimamba_encoder_layer.7} parent=1 // pred_fallthru
      _
    // Predicated region
    $region18: #{bimamba_encoder_layer.7} parent=1 // pred_check
      _
    $region19: #{bimamba_encoder_layer.7} parent=1 // pred_check_branch
      %23 = sbr.rel (0) target = $region21
    $region20: #{bimamba_encoder_layer.7} parent=1 // pred_region
      _
    $region21: #{bimamba_encoder_layer.7} parent=1 // pred_fallthru
      _
    // Predicated region
    $region22: #{bimamba_encoder_layer.7} parent=1 // pred_check
      _
    $region23: #{bimamba_encoder_layer.7} parent=1 // pred_check_branch
      %25 = sbr.rel (0) target = $region25
    $region24: #{bimamba_encoder_layer.7} parent=1 // pred_region
      _
    $region25: #{bimamba_encoder_layer.7} parent=1 // pred_fallthru
      _
    // Predicated region
    $region26: #{bimamba_encoder_layer.7} parent=1 // pred_check
      _
    $region27: #{bimamba_encoder_layer.7} parent=1 // pred_check_branch
      %27 = sbr.rel (0) target = $region29
    $region28: #{bimamba_encoder_layer.7} parent=1 // pred_region
      _
    $region29: #{bimamba_encoder_layer.7} parent=1 // pred_fallthru
      _
    // Predicated region
    $region30: #{bimamba_encoder_layer.7} parent=1 // pred_check
      _
    $region31: #{bimamba_encoder_layer.7} parent=1 // pred_check_branch
      %29 = sbr.rel (0) target = $region33
    $region32: #{bimamba_encoder_layer.7} parent=1 // pred_region
      _
    $region33: #{bimamba_encoder_layer.7} parent=1 // pred_fallthru
      _
    %p31 = scmp.eq.s32.totalorder 0, 0
    // Predicated region
    $region34: #{bimamba_encoder_layer.7} parent=1 // pred_check
      %p32 = pneg %p31
    $region35: #{bimamba_encoder_layer.7} parent=1 // pred_check_branch
      %34 = sbr.rel (%p32) target = $region37
    $region36: #{bimamba_encoder_layer.7} parent=1 // pred_region
      %vm35 = vcmask 261120
      %36 = vst.msk [vmem:[#allocation2] sm:$0xff] %vm35, 0.0
      %37 = vst.msk [vmem:[#allocation2 + $0x8] sm:$0xff] %vm35, 0.0
      %38 = vst.msk [vmem:[#allocation2 + $0x10] sm:$0xff] %vm35, 0.0
      %39 = vst.msk [vmem:[#allocation2 + $0x18] sm:$0xff] %vm35, 0.0
    $region37: #{bimamba_encoder_layer.7} parent=1 // pred_fallthru
      _
    %v40 = vld [vmem:[%s0] sm:$0xff]
    %v41 = vld [vmem:[%s0 + $0x8] sm:$0xff]
    %v42 = vld [vmem:[%s0 + $0x10] sm:$0xff]
    %v43 = vld [vmem:[%s0 + $0x18] sm:$0xff]
    %v44 = vpack.c.bf16 %v41, %v40
    %v45 = vpack.c.bf16 %v43, %v42
    %v46 = vld [vmem:[%s2] sm:$0xf]
    %v47 = vld [vmem:[%s2 + $0x4] sm:$0xf]
    %v48 = vld [vmem:[%s2 + $0x8] sm:$0xf]
    %v49 = vld [vmem:[%s2 + $0xc] sm:$0xf]
    %v50 = vld [vmem:[%s3] sm:$0x1]
    %v52 = vlaneseq
    %v53 = vshrl.u32 %v52, 7
    %v54 = vsub.s32 0, %v53
    %v55 = vrot.slane %v50, %v54
    %v61 = vunpack.c.l.b16 %v46
    %v62 = vunpack.c.l.b16 %v47
    %v63 = vunpack.c.l.b16 %v48
    %v64 = vunpack.c.l.b16 %v49
    %v65 = vpack.c.b16 %v62, %v61
    %v66 = vpack.c.b16 %v64, %v63
    %vm69 = vcmask 261120
    %v71 = vsel %vm69, %v44, 0
    %v74 = vsel %vm69, %v45, 0
    %76 = vmatprep.subr.bf16.mxu0 0
    %77 = vmatpush1.bf16.msra.mxu0 %v65
    %78 = vmatprep.subr.bf16.mxu0 0
    %79 = vmatpush1.bf16.msra.mxu0 %v66
    %80 = vmatprep.subr.bf16.mxu0 0
    %81 = vmatpush1.bf16.msra.mxu0 0
    %82 = vmatprep.subr.bf16.mxu0 0
    %83 = vmatpush1.bf16.msra.mxu0 0
    %84 = vmatprep.subr.bf16.mxu0 0
    %85 = vmatpush1.bf16.msra.mxu0 0
    %86 = vmatprep.subr.bf16.mxu0 0
    %87 = vmatpush1.bf16.msra.mxu0 0
    %88 = vmatprep.subr.bf16.mxu0 0
    %89 = vmatpush1.bf16.msra.mxu0 0
    %90 = vmatprep.subr.bf16.mxu0 0
    %91 = vmatpush1.bf16.msra.mxu0 0
    %92 = vmatprep.subr.bf16.mxu0 0
    %93 = vmatpush1.bf16.msra.mxu0 0
    %94 = vmatprep.subr.bf16.mxu0 0
    %95 = vmatpush1.bf16.msra.mxu0 0
    %96 = vmatprep.subr.bf16.mxu0 0
    %97 = vmatpush1.bf16.msra.mxu0 0
    %98 = vmatprep.subr.bf16.mxu0 0
    %99 = vmatpush1.bf16.msra.mxu0 0
    %100 = vmatprep.subr.bf16.mxu0 0
    %101 = vmatpush1.bf16.msra.mxu0 0
    %102 = vmatprep.subr.bf16.mxu0 0
    %103 = vmatpush1.bf16.msra.mxu0 0
    %104 = vmatprep.subr.bf16.mxu0 0
    %105 = vmatpush1.bf16.msra.mxu0 0
    %106 = vmatprep.subr.bf16.mxu0 0
    %107 = vmatpush1.bf16.msra.mxu0 0
    %108 = vmatprep.mubr.bf16.mxu0 0
    %109 = vmatmul.mubr.bf16.gmra.mrb[0].mxu0 %v71
    %v110 = vpop.f32.mrb[0].mxu0
    %v111 = vadd.f32 %v55, %v110
    %v112 = vpop.f32.mrb[0].mxu0
    %v113 = vpop.f32.mrb[0].mxu0
    %v114 = vadd.f32 %v55, %v113
    %v115 = vpop.f32.mrb[0].mxu0
    %116 = vmatprep.mubr.bf16.mxu0 0
    %117 = vmatmul.mubr.bf16.gmra.mrb[0].mxu0 %v74
    %v118 = vpop.f32.mrb[0].mxu0
    %v119 = vadd.f32 %v55, %v118
    %v120 = vpop.f32.mrb[0].mxu0
    %v121 = vpop.f32.mrb[0].mxu0
    %v122 = vadd.f32 %v55, %v121
    %v123 = vpop.f32.mrb[0].mxu0
    %124 = vdwg.mxu0
    %v125 = vmax.f32 %v111, 0.0
    %v126 = vmax.f32 %v114, 0.0
    %v127 = vmax.f32 %v119, 0.0
    %v128 = vmax.f32 %v122, 0.0
    %v129 = vld [vmem:[#allocation2] sm:$0xff]
    %v130 = vld [vmem:[#allocation2 + $0x8] sm:$0xff]
    %v131 = vld [vmem:[#allocation2 + $0x10] sm:$0xff]
    %v132 = vld [vmem:[#allocation2 + $0x18] sm:$0xff]
    %v133 = vpack.c.bf16 %v126, %v125
    %v134 = vpack.c.bf16 %v128, %v127
    %v135 = vld [vmem:[%s4] sm:$0xf]
    %v136 = vld [vmem:[%s4 + $0x4] sm:$0xf]
    %v137 = vld [vmem:[%s4 + $0x8] sm:$0xf]
    %v138 = vld [vmem:[%s4 + $0xc] sm:$0xf]
    %v139 = vld [vmem:[%s4 + $0x10] sm:$0xf]
    %v140 = vld [vmem:[%s4 + $0x14] sm:$0xf]
    %v141 = vld [vmem:[%s4 + $0x18] sm:$0xf]
    %v142 = vld [vmem:[%s4 + $0x1c] sm:$0xf]
    %v151 = vunpack.c.l.b16 %v135
    %v152 = vunpack.c.l.b16 %v136
    %v153 = vunpack.c.l.b16 %v137
    %v154 = vunpack.c.l.b16 %v138
    %v155 = vunpack.c.l.b16 %v139
    %v156 = vunpack.c.l.b16 %v140
    %v157 = vunpack.c.l.b16 %v141
    %v158 = vunpack.c.l.b16 %v142
    %v159 = vpack.c.b16 %v152, %v151
    %v160 = vpack.c.b16 %v154, %v153
    %v161 = vpack.c.b16 %v156, %v155
    %v162 = vpack.c.b16 %v158, %v157
    %vm167 = vcmask 523264
    %v169 = vsel %vm167, %v133, 0
    %v172 = vsel %vm167, %v134, 0
    %174 = vmatprep.subr.bf16.mxu0 0
    %175 = vmatpush1.bf16.msra.mxu0 %v159
    %176 = vmatprep.subr.bf16.mxu0 0
    %177 = vmatpush1.bf16.msra.mxu0 %v160
    %178 = vmatprep.subr.bf16.mxu0 0
    %179 = vmatpush1.bf16.msra.mxu0 %v161
    %180 = vmatprep.subr.bf16.mxu0 0
    %181 = vmatpush1.bf16.msra.mxu0 %v162
    %182 = vmatprep.subr.bf16.mxu0 0
    %183 = vmatpush1.bf16.msra.mxu0 0
    %184 = vmatprep.subr.bf16.mxu0 0
    %185 = vmatpush1.bf16.msra.mxu0 0
    %186 = vmatprep.subr.bf16.mxu0 0
    %187 = vmatpush1.bf16.msra.mxu0 0
    %188 = vmatprep.subr.bf16.mxu0 0
    %189 = vmatpush1.bf16.msra.mxu0 0
    %190 = vmatprep.subr.bf16.mxu0 0
    %191 = vmatpush1.bf16.msra.mxu0 0
    %192 = vmatprep.subr.bf16.mxu0 0
    %193 = vmatpush1.bf16.msra.mxu0 0
    %194 = vmatprep.subr.bf16.mxu0 0
    %195 = vmatpush1.bf16.msra.mxu0 0
    %196 = vmatprep.subr.bf16.mxu0 0
    %197 = vmatpush1.bf16.msra.mxu0 0
    %198 = vmatprep.subr.bf16.mxu0 0
    %199 = vmatpush1.bf16.msra.mxu0 0
    %200 = vmatprep.subr.bf16.mxu0 0
    %201 = vmatpush1.bf16.msra.mxu0 0
    %202 = vmatprep.subr.bf16.mxu0 0
    %203 = vmatpush1.bf16.msra.mxu0 0
    %204 = vmatprep.subr.bf16.mxu0 0
    %205 = vmatpush1.bf16.msra.mxu0 0
    %206 = vmatprep.mubr.bf16.mxu0 0
    %207 = vmatmul.mubr.bf16.gmra.mrb[0].mxu0 %v169
    %v208 = vpop.f32.mrb[0].mxu0
    %v209 = vadd.f32 0.0, %v208
    %v210 = vpop.f32.mrb[0].mxu0
    %v211 = vpop.f32.mrb[0].mxu0
    %v212 = vadd.f32 0.0, %v211
    %v213 = vpop.f32.mrb[0].mxu0
    %214 = vmatprep.mubr.bf16.mxu0 0
    %215 = vmatmul.mubr.bf16.gmra.mrb[0].mxu0 %v172
    %v216 = vpop.f32.mrb[0].mxu0
    %v217 = vadd.f32 0.0, %v216
    %v218 = vpop.f32.mrb[0].mxu0
    %v219 = vpop.f32.mrb[0].mxu0
    %v220 = vadd.f32 0.0, %v219
    %v221 = vpop.f32.mrb[0].mxu0
    %222 = vdwg.mxu0
    %v223 = vadd.f32 %v129, %v209
    %v224 = vadd.f32 %v130, %v212
    %v225 = vadd.f32 %v131, %v217
    %v226 = vadd.f32 %v132, %v220
    %227 = vst.msk [vmem:[#allocation2] sm:$0xff] %vm69, %v223
    %228 = vst.msk [vmem:[#allocation2 + $0x8] sm:$0xff] %vm69, %v224
    %229 = vst.msk [vmem:[#allocation2 + $0x10] sm:$0xff] %vm69, %v225
    %230 = vst.msk [vmem:[#allocation2 + $0x18] sm:$0xff] %vm69, %v226
    // Predicated region
    $region38: #{bimamba_encoder_layer.7} parent=1 // pred_check
      %p231 = pneg %p31
    $region39: #{bimamba_encoder_layer.7} parent=1 // pred_check_branch
      %233 = sbr.rel (%p231) target = $region41
    $region40: #{bimamba_encoder_layer.7} parent=1 // pred_region
      %v234 = vld [vmem:[#allocation2] sm:$0xff]
      %v235 = vld [vmem:[#allocation2 + $0x8] sm:$0xff]
      %v236 = vld [vmem:[#allocation2 + $0x10] sm:$0xff]
      %v237 = vld [vmem:[#allocation2 + $0x18] sm:$0xff]
      %v238 = vld [vmem:[%s5] sm:$0x1]
      %v240 = vlaneseq
      %v241 = vshrl.u32 %v240, 7
      %v242 = vsub.s32 0, %v241
      %v243 = vrot.slane %v238, %v242
      %v245 = vadd.f32 %v234, %v243
      %v246 = vadd.f32 %v235, %v243
      %v247 = vadd.f32 %v236, %v243
      %v248 = vadd.f32 %v237, %v243
      %v249 = vld [vmem:[%s1] sm:$0xff]
      %v250 = vld [vmem:[%s1 + $0x8] sm:$0xff]
      %v251 = vld [vmem:[%s1 + $0x10] sm:$0xff]
      %v252 = vld [vmem:[%s1 + $0x18] sm:$0xff]
      %v253 = vadd.f32 %v245, %v249
      %v254 = vadd.f32 %v246, %v250
      %v255 = vadd.f32 %v247, %v251
      %v256 = vadd.f32 %v248, %v252
      %v257 = vsel %vm69, %v253, 0.0
      %258 = vadd.xlane.f32.xlu0 %v257
      %v259 = vpop.xlane.xlu0 %258
      %v260 = vsel %vm69, %v254, 0.0
      %261 = vadd.xlane.f32.xlu0 %v260
      %v262 = vpop.xlane.xlu0 %261
      %v263 = vsel %vm69, %v255, 0.0
      %264 = vadd.xlane.f32.xlu0 %v263
      %v265 = vpop.xlane.xlu0 %264
      %v266 = vsel %vm69, %v256, 0.0
      %267 = vadd.xlane.f32.xlu0 %v266
      %v268 = vpop.xlane.xlu0 %267
      %v269 = vrcp.pop 32.0
      %v270 = vmul.f32 %v259, %v269
      %v271 = vmul.f32 %v262, %v269
      %v272 = vmul.f32 %v265, %v269
      %v273 = vmul.f32 %v268, %v269
      %v274 = vsub.f32 %v253, %v270
      %v275 = vsub.f32 %v254, %v271
      %v276 = vsub.f32 %v255, %v272
      %v277 = vsub.f32 %v256, %v273
      %v278 = vmul.f32 %v274, %v274
      %v279 = vmul.f32 %v275, %v275
      %v280 = vmul.f32 %v276, %v276
      %v281 = vmul.f32 %v277, %v277
      %v282 = vsel %vm69, %v278, 0.0
      %283 = vadd.xlane.f32.xlu0 %v282
      %v284 = vpop.xlane.xlu0 %283
      %v285 = vsel %vm69, %v279, 0.0
      %286 = vadd.xlane.f32.xlu0 %v285
      %v287 = vpop.xlane.xlu0 %286
      %v288 = vsel %vm69, %v280, 0.0
      %289 = vadd.xlane.f32.xlu0 %v288
      %v290 = vpop.xlane.xlu0 %289
      %v291 = vsel %vm69, %v281, 0.0
      %292 = vadd.xlane.f32.xlu0 %v291
      %v293 = vpop.xlane.xlu0 %292
      %v294 = vmul.f32 %v284, %v269
      %v295 = vmul.f32 %v287, %v269
      %v296 = vmul.f32 %v290, %v269
      %v297 = vmul.f32 %v293, %v269
      %v298 = vadd.f32 %v294, 1e-05
      %v299 = vadd.f32 %v295, 1e-05
      %v300 = vadd.f32 %v296, 1e-05
      %v301 = vadd.f32 %v297, 1e-05
      %v302 = vrsqrt.pop %v298
      %v303 = vrsqrt.pop %v299
      %v304 = vrsqrt.pop %v300
      %v305 = vrsqrt.pop %v301
      %v306 = vmul.f32 %v274, %v302
      %v307 = vmul.f32 %v275, %v303
      %v308 = vmul.f32 %v276, %v304
      %v309 = vmul.f32 %v277, %v305
      %v310 = vld [vmem:[%s6] sm:$0x1]
      %v312 = vlaneseq
      %v313 = vshrl.u32 %v312, 7
      %v314 = vsub.s32 0, %v313
      %v315 = vrot.slane %v310, %v314
      %v317 = vmul.f32 %v306, %v315
      %v318 = vmul.f32 %v307, %v315
      %v319 = vmul.f32 %v308, %v315
      %v320 = vmul.f32 %v309, %v315
      %v321 = vld [vmem:[%s7] sm:$0x1]
      %v323 = vlaneseq
      %v324 = vshrl.u32 %v323, 7
      %v325 = vsub.s32 0, %v324
      %v326 = vrot.slane %v321, %v325
      %v328 = vadd.f32 %v317, %v326
      %v329 = vadd.f32 %v318, %v326
      %v330 = vadd.f32 %v319, %v326
      %v331 = vadd.f32 %v320, %v326
      %v332 = vld [vmem:[%s0] sm:$0xff]
      %v333 = vld [vmem:[%s0 + $0x8] sm:$0xff]
      %v334 = vld [vmem:[%s0 + $0x10] sm:$0xff]
      %v335 = vld [vmem:[%s0 + $0x18] sm:$0xff]
      %v336 = vadd.f32 %v328, %v332
      %v337 = vadd.f32 %v329, %v333
      %v338 = vadd.f32 %v330, %v334
      %v339 = vadd.f32 %v331, %v335
      %340 = vst.msk [vmem:[#allocation3] sm:$0xff] %vm69, %v336
      %341 = vst.msk [vmem:[#allocation3 + $0x8] sm:$0xff] %vm69, %v337
      %342 = vst.msk [vmem:[#allocation3 + $0x10] sm:$0xff] %vm69, %v338
      %343 = vst.msk [vmem:[#allocation3 + $0x18] sm:$0xff] %vm69, %v339
    $region41: #{bimamba_encoder_layer.7} parent=1 // pred_fallthru
      _
    // Predicated region
    $region42: #{bimamba_encoder_layer.7} parent=1 // pred_check
      _
    $region43: #{bimamba_encoder_layer.7} parent=1 // pred_check_branch
      %345 = sbr.rel (0) target = $region45
    $region44: #{bimamba_encoder_layer.7} parent=1 // pred_region
      %s347 = ssub.s32 512, 512
      %348 = vsyncadd [#allocation4], %s347
      %s349 = sshll.u32 [#allocation3], 4
      %s350 = int_to_ptr.vmem [resolvable:$true] %s349
      %355 = dma.vmem_to_hbm [thread:$0]  %s350, 512, %s8, [#allocation4], 128, 128, 8
    $region45: #{bimamba_encoder_layer.7} parent=1 // pred_fallthru
      _
    // Predicated region
    $region46: #{bimamba_encoder_layer.7} parent=1 // pred_check
      _
    $region47: #{bimamba_encoder_layer.7} parent=1 // pred_check_branch
      %357 = sbr.rel (0) target = $region49
    $region48: #{bimamba_encoder_layer.7} parent=1 // pred_region
      %358 = dma.done [#allocation4], 512
    $region49: #{bimamba_encoder_layer.7} parent=1 // pred_fallthru
      _
    %359 = vsyncpa [#allocation4], 1

// kernel: bimamba_encoder_layer.4
$region0: #{bimamba_encoder_layer.4}
  #allocation0 [shape = 'u32[]', space=smem, size = 0x4, offset = 0x4, fixed_abs, tag = 'smem constant byte address 0x4 - core index']
  #allocation1 [shape = 'u32[144,128]{1,0:T(1,128)}', space=vmem, size = 0x12000, scoped, tag = 'internal scratch']
  #allocation2 [shape = 'f32[128,64]{1,0:T(8,128)}', space=vmem, size = 0x10000, scoped, tag = 'scratch operand']
  #allocation3 [shape = 'f32[128,64]{1,0:T(8,128)}', space=vmem, size = 0x10000, scoped, tag = 'scratch operand']
  #allocation4 [shape = 'f32[16,64]{1,0:T(8,128)}', space=vmem, size = 0x2000, scoped, tag = 'scratch operand']
  #allocation5 [shape = 'f32[3,64]{1,0:T(4,128)}', space=vmem, size = 0x800, scoped, tag = 'scratch operand']
  %s0 = inlined_call_operand.vmem [shape: f32[2,16,32], index: 0, kind: input, shape index: {}]
  %s1 = inlined_call_operand.vmem [shape: bf16[32,128], index: 1, kind: input, shape index: {}]
  %s2 = inlined_call_operand.vmem [shape: f32[4,64], index: 2, kind: input, shape index: {}]
  %s3 = inlined_call_operand.vmem [shape: f32[1,64], index: 3, kind: input, shape index: {}]
  %s4 = inlined_call_operand.vmem [shape: bf16[64,34], index: 4, kind: input, shape index: {}]
  %s5 = inlined_call_operand.vmem [shape: bf16[2,64], index: 5, kind: input, shape index: {}]
  %s6 = inlined_call_operand.vmem [shape: f32[1,64], index: 6, kind: input, shape index: {}]
  %s7 = inlined_call_operand.vmem [shape: f32[16,64], index: 7, kind: input, shape index: {}]
  %s8 = inlined_call_operand.vmem [shape: f32[1,64], index: 8, kind: input, shape index: {}]
  %s9 = inlined_call_operand.vmem [shape: bf16[64,32], index: 9, kind: input, shape index: {}]
  %s10 = inlined_call_operand.vmem [shape: f32[1,32], index: 10, kind: input, shape index: {}]
  %s11 = inlined_call_operand.vmem [shape: f32[1,32], index: 11, kind: input, shape index: {}]
  %s12 = inlined_call_operand.vmem [shape: f32[2,16,32], index: 12, kind: output, shape index: {}]
  %s13 = sld [smem:[#allocation0]]
  $region85: #{bimamba_encoder_layer.4} parent=0
    _
  %s15 = ssub.s32 1, %s13
  %s16 = scalar_select 0, %s15, %s13
  loop: start=0, step=1, limit=6
  $region2: #{bimamba_encoder_layer.4} parent=0 // loop_pre_header
    _
  $region3: #{bimamba_encoder_layer.4} parent=0 // loop_header
    %s18 = sphi 0, %s22
    %p19 = scmp.ge.s32.totalorder %s18, 6
    %s25 = sphi 0, %s37
    %s26 = sphi 0, %s33
    %s27 = sphi 0, %s25
    %s28 = sphi 0, %s26
    %s29 = sphi 0, %s27
    %s30 = sphi 0, %s28
    %s42 = sphi 0, %s44
    %s45 = sphi 0, %s42
    %s46 = sphi 0, %s45
    %s62 = sphi 0, %s46
    %s66 = sphi 0, %s66
    %s68 = sphi 0, %s66
    %s69 = sphi 0, %s68
    %s83 = sphi 0, %s69
    %s87 = sphi 0, %s87
    %s89 = sphi 0, %s87
    %s90 = sphi 0, %s89
    %s104 = sphi 0, %s90
    %s108 = sphi 0, %s108
    %s110 = sphi 0, %s108
    %s111 = sphi 0, %s110
    %s125 = sphi 0, %s111
    %s129 = sphi 0, %s129
    %s131 = sphi 0, %s129
    %s132 = sphi 0, %s131
    %s146 = sphi 0, %s132
    %s150 = sphi 0, %s150
    %s152 = sphi 0, %s150
    %s153 = sphi 0, %s152
    %s167 = sphi 0, %s153
    %s171 = sphi 0, %s171
    %s173 = sphi 0, %s171
    %s174 = sphi 0, %s173
    %s188 = sphi 0, %s174
    %s192 = sphi 0, %s192
    %s194 = sphi 0, %s192
    %s195 = sphi 0, %s194
    %s209 = sphi 0, %s195
    %s213 = sphi 0, %s213
    %s215 = sphi 0, %s213
    %s216 = sphi 0, %s215
    %s230 = sphi 0, %s216
    %s234 = sphi 0, %s234
    %s236 = sphi 0, %s234
    %s237 = sphi 0, %s236
    %s251 = sphi 0, %s237
    %s255 = sphi 0, %s255
    %s257 = sphi 0, %s255
    %s258 = sphi 0, %s257
    %s272 = sphi 0, %s258
    %s276 = sphi 0, %s276
    %s278 = sphi 0, %s276
    %s279 = sphi 0, %s278
    %s293 = sphi 0, %s279
    %s301 = sphi 0, %s303
    %s304 = sphi 0, %s301
    %s305 = sphi 0, %s304
    %s321 = sphi 0, %s305
  $region4: #{bimamba_encoder_layer.4} parent=0 // loop_header_branch
    %21 = sbr.rel (%p19) target = $region8
  $region5: #{bimamba_encoder_layer.4} parent=0 // loop_body
    %s23 = ssub.s32 %s18, 1
    %s24 = ssub.s32 %s18, 2
    %s31 = sadd.s32 1, %s26
    %p32 = scmp.ge.s32.totalorder %s31, 2
    %s33 = scalar_select %p32, 0, %s31
    %s34 = sadd.s32 1, %s25
    %s35 = scalar_select %p32, %s34, %s25
    %p36 = scmp.ge.s32.totalorder %s35, 2
    %s37 = scalar_select %p36, 0, %s35
    %s38 = ssub.s32 %s25, %s37
    %s39 = ssub.s32 %s26, %s33
    %s40 = sor.u32 %s38, %s39
    %p41 = scmp.eq.s32.totalorder %s40, 0
    %s43 = sadd.s32 %s42, 1
    %s44 = scalar_select %p41, %s42, %s43
    %p47 = pneg %p41
    %p48 = scmp.eq.s32.totalorder %s18, 3
    %p49 = por %p47, %p48
    %p50 = scmp.ne.s32.totalorder %s42, %s45
    %p51 = scmp.eq.s32.totalorder %s18, 0
    %p52 = por %p50, %p51
    %p53 = scmp.ne.s32.totalorder %s42, %s45
    %p54 = scmp.eq.s32.totalorder %s23, 3
    %p55 = por %p53, %p54
    %p56 = scmp.ne.s32.totalorder %s45, %s46
    %p57 = scmp.eq.s32.totalorder %s23, 0
    %p58 = por %p56, %p57
    %p59 = scmp.ne.s32.totalorder %s45, %s46
    %p60 = scmp.eq.s32.totalorder %s24, 3
    %p61 = por %p59, %p60
    %p63 = scmp.ne.s32.totalorder %s46, %s62
    %p64 = scmp.eq.s32.totalorder %s24, 0
    %p65 = por %p63, %p64
    %s67 = sadd.s32 %s66, 1
    %p70 = scmp.eq.s32.totalorder %s18, 3
    %p71 = scmp.ne.s32.totalorder %s66, %s68
    %p72 = scmp.eq.s32.totalorder %s18, 0
    %p73 = por %p71, %p72
    %p74 = scmp.ne.s32.totalorder %s66, %s68
    %p75 = scmp.eq.s32.totalorder %s23, 3
    %p76 = por %p74, %p75
    %p77 = scmp.ne.s32.totalorder %s68, %s69
    %p78 = scmp.eq.s32.totalorder %s23, 0
    %p79 = por %p77, %p78
    %p80 = scmp.ne.s32.totalorder %s68, %s69
    %p81 = scmp.eq.s32.totalorder %s24, 3
    %p82 = por %p80, %p81
    %p84 = scmp.ne.s32.totalorder %s69, %s83
    %p85 = scmp.eq.s32.totalorder %s24, 0
    %p86 = por %p84, %p85
    %s88 = sadd.s32 %s87, 1
    %p91 = scmp.eq.s32.totalorder %s18, 3
    %p92 = scmp.ne.s32.totalorder %s87, %s89
    %p93 = scmp.eq.s32.totalorder %s18, 0
    %p94 = por %p92, %p93
    %p95 = scmp.ne.s32.totalorder %s87, %s89
    %p96 = scmp.eq.s32.totalorder %s23, 3
    %p97 = por %p95, %p96
    %p98 = scmp.ne.s32.totalorder %s89, %s90
    %p99 = scmp.eq.s32.totalorder %s23, 0
    %p100 = por %p98, %p99
    %p101 = scmp.ne.s32.totalorder %s89, %s90
    %p102 = scmp.eq.s32.totalorder %s24, 3
    %p103 = por %p101, %p102
    %p105 = scmp.ne.s32.totalorder %s90, %s104
    %p106 = scmp.eq.s32.totalorder %s24, 0
    %p107 = por %p105, %p106
    %s109 = sadd.s32 %s108, 1
    %p112 = scmp.eq.s32.totalorder %s18, 3
    %p113 = scmp.ne.s32.totalorder %s108, %s110
    %p114 = scmp.eq.s32.totalorder %s18, 0
    %p115 = por %p113, %p114
    %p116 = scmp.ne.s32.totalorder %s108, %s110
    %p117 = scmp.eq.s32.totalorder %s23, 3
    %p118 = por %p116, %p117
    %p119 = scmp.ne.s32.totalorder %s110, %s111
    %p120 = scmp.eq.s32.totalorder %s23, 0
    %p121 = por %p119, %p120
    %p122 = scmp.ne.s32.totalorder %s110, %s111
    %p123 = scmp.eq.s32.totalorder %s24, 3
    %p124 = por %p122, %p123
    %p126 = scmp.ne.s32.totalorder %s111, %s125
    %p127 = scmp.eq.s32.totalorder %s24, 0
    %p128 = por %p126, %p127
    %s130 = sadd.s32 %s129, 1
    %p133 = scmp.eq.s32.totalorder %s18, 3
    %p134 = scmp.ne.s32.totalorder %s129, %s131
    %p135 = scmp.eq.s32.totalorder %s18, 0
    %p136 = por %p134, %p135
    %p137 = scmp.ne.s32.totalorder %s129, %s131
    %p138 = scmp.eq.s32.totalorder %s23, 3
    %p139 = por %p137, %p138
    %p140 = scmp.ne.s32.totalorder %s131, %s132
    %p141 = scmp.eq.s32.totalorder %s23, 0
    %p142 = por %p140, %p141
    %p143 = scmp.ne.s32.totalorder %s131, %s132
    %p144 = scmp.eq.s32.totalorder %s24, 3
    %p145 = por %p143, %p144
    %p147 = scmp.ne.s32.totalorder %s132, %s146
    %p148 = scmp.eq.s32.totalorder %s24, 0
    %p149 = por %p147, %p148
    %s151 = sadd.s32 %s150, 1
    %p154 = scmp.eq.s32.totalorder %s18, 3
    %p155 = scmp.ne.s32.totalorder %s150, %s152
    %p156 = scmp.eq.s32.totalorder %s18, 0
    %p157 = por %p155, %p156
    %p158 = scmp.ne.s32.totalorder %s150, %s152
    %p159 = scmp.eq.s32.totalorder %s23, 3
    %p160 = por %p158, %p159
    %p161 = scmp.ne.s32.totalorder %s152, %s153
    %p162 = scmp.eq.s32.totalorder %s23, 0
    %p163 = por %p161, %p162
    %p164 = scmp.ne.s32.totalorder %s152, %s153
    %p165 = scmp.eq.s32.totalorder %s24, 3
    %p166 = por %p164, %p165
    %p168 = scmp.ne.s32.totalorder %s153, %s167
    %p169 = scmp.eq.s32.totalorder %s24, 0
    %p170 = por %p168, %p169
    %s172 = sadd.s32 %s171, 1
    %p175 = scmp.eq.s32.totalorder %s18, 3
    %p176 = scmp.ne.s32.totalorder %s171, %s173
    %p177 = scmp.eq.s32.totalorder %s18, 0
    %p178 = por %p176, %p177
    %p179 = scmp.ne.s32.totalorder %s171, %s173
    %p180 = scmp.eq.s32.totalorder %s23, 3
    %p181 = por %p179, %p180
    %p182 = scmp.ne.s32.totalorder %s173, %s174
    %p183 = scmp.eq.s32.totalorder %s23, 0
    %p184 = por %p182, %p183
    %p185 = scmp.ne.s32.totalorder %s173, %s174
    %p186 = scmp.eq.s32.totalorder %s24, 3
    %p187 = por %p185, %p186
    %p189 = scmp.ne.s32.totalorder %s174, %s188
    %p190 = scmp.eq.s32.totalorder %s24, 0
    %p191 = por %p189, %p190
    %s193 = sadd.s32 %s192, 1
    %p196 = scmp.eq.s32.totalorder %s18, 3
    %p197 = scmp.ne.s32.totalorder %s192, %s194
    %p198 = scmp.eq.s32.totalorder %s18, 0
    %p199 = por %p197, %p198
    %p200 = scmp.ne.s32.totalorder %s192, %s194
    %p201 = scmp.eq.s32.totalorder %s23, 3
    %p202 = por %p200, %p201
    %p203 = scmp.ne.s32.totalorder %s194, %s195
    %p204 = scmp.eq.s32.totalorder %s23, 0
    %p205 = por %p203, %p204
    %p206 = scmp.ne.s32.totalorder %s194, %s195
    %p207 = scmp.eq.s32.totalorder %s24, 3
    %p208 = por %p206, %p207
    %p210 = scmp.ne.s32.totalorder %s195, %s209
    %p211 = scmp.eq.s32.totalorder %s24, 0
    %p212 = por %p210, %p211
    %s214 = sadd.s32 %s213, 1
    %p217 = scmp.eq.s32.totalorder %s18, 3
    %p218 = scmp.ne.s32.totalorder %s213, %s215
    %p219 = scmp.eq.s32.totalorder %s18, 0
    %p220 = por %p218, %p219
    %p221 = scmp.ne.s32.totalorder %s213, %s215
    %p222 = scmp.eq.s32.totalorder %s23, 3
    %p223 = por %p221, %p222
    %p224 = scmp.ne.s32.totalorder %s215, %s216
    %p225 = scmp.eq.s32.totalorder %s23, 0
    %p226 = por %p224, %p225
    %p227 = scmp.ne.s32.totalorder %s215, %s216
    %p228 = scmp.eq.s32.totalorder %s24, 3
    %p229 = por %p227, %p228
    %p231 = scmp.ne.s32.totalorder %s216, %s230
    %p232 = scmp.eq.s32.totalorder %s24, 0
    %p233 = por %p231, %p232
    %s235 = sadd.s32 %s234, 1
    %p238 = scmp.eq.s32.totalorder %s18, 3
    %p239 = scmp.ne.s32.totalorder %s234, %s236
    %p240 = scmp.eq.s32.totalorder %s18, 0
    %p241 = por %p239, %p240
    %p242 = scmp.ne.s32.totalorder %s234, %s236
    %p243 = scmp.eq.s32.totalorder %s23, 3
    %p244 = por %p242, %p243
    %p245 = scmp.ne.s32.totalorder %s236, %s237
    %p246 = scmp.eq.s32.totalorder %s23, 0
    %p247 = por %p245, %p246
    %p248 = scmp.ne.s32.totalorder %s236, %s237
    %p249 = scmp.eq.s32.totalorder %s24, 3
    %p250 = por %p248, %p249
    %p252 = scmp.ne.s32.totalorder %s237, %s251
    %p253 = scmp.eq.s32.totalorder %s24, 0
    %p254 = por %p252, %p253
    %s256 = sadd.s32 %s255, 1
    %p259 = scmp.eq.s32.totalorder %s18, 3
    %p260 = scmp.ne.s32.totalorder %s255, %s257
    %p261 = scmp.eq.s32.totalorder %s18, 0
    %p262 = por %p260, %p261
    %p263 = scmp.ne.s32.totalorder %s255, %s257
    %p264 = scmp.eq.s32.totalorder %s23, 3
    %p265 = por %p263, %p264
    %p266 = scmp.ne.s32.totalorder %s257, %s258
    %p267 = scmp.eq.s32.totalorder %s23, 0
    %p268 = por %p266, %p267
    %p269 = scmp.ne.s32.totalorder %s257, %s258
    %p270 = scmp.eq.s32.totalorder %s24, 3
    %p271 = por %p269, %p270
    %p273 = scmp.ne.s32.totalorder %s258, %s272
    %p274 = scmp.eq.s32.totalorder %s24, 0
    %p275 = por %p273, %p274
    %s277 = sadd.s32 %s276, 1
    %p280 = scmp.eq.s32.totalorder %s18, 3
    %p281 = scmp.ne.s32.totalorder %s276, %s278
    %p282 = scmp.eq.s32.totalorder %s18, 0
    %p283 = por %p281, %p282
    %p284 = scmp.ne.s32.totalorder %s276, %s278
    %p285 = scmp.eq.s32.totalorder %s23, 3
    %p286 = por %p284, %p285
    %p287 = scmp.ne.s32.totalorder %s278, %s279
    %p288 = scmp.eq.s32.totalorder %s23, 0
    %p289 = por %p287, %p288
    %p290 = scmp.ne.s32.totalorder %s278, %s279
    %p291 = scmp.eq.s32.totalorder %s24, 3
    %p292 = por %p290, %p291
    %p294 = scmp.ne.s32.totalorder %s279, %s293
    %p295 = scmp.eq.s32.totalorder %s24, 0
    %p296 = por %p294, %p295
    %s297 = ssub.s32 %s25, %s37
    %s298 = ssub.s32 %s26, %s33
    %s299 = sor.u32 %s297, %s298
    %p300 = scmp.eq.s32.totalorder %s299, 0
    %s302 = sadd.s32 %s301, 1
    %s303 = scalar_select %p300, %s301, %s302
    %p306 = pneg %p300
    %p307 = scmp.eq.s32.totalorder %s18, 3
    %p308 = por %p306, %p307
    %p309 = scmp.ne.s32.totalorder %s301, %s304
    %p310 = scmp.eq.s32.totalorder %s18, 0
    %p311 = por %p309, %p310
    %p312 = scmp.ne.s32.totalorder %s301, %s304
    %p313 = scmp.eq.s32.totalorder %s23, 3
    %p314 = por %p312, %p313
    %p315 = scmp.ne.s32.totalorder %s304, %s305
    %p316 = scmp.eq.s32.totalorder %s23, 0
    %p317 = por %p315, %p316
    %p318 = scmp.ne.s32.totalorder %s304, %s305
    %p319 = scmp.eq.s32.totalorder %s24, 3
    %p320 = por %p318, %p319
    %p322 = scmp.ne.s32.totalorder %s305, %s321
    %p323 = scmp.eq.s32.totalorder %s24, 0
    %p324 = por %p322, %p323
    %p325 = scmp.le.s32.totalorder 1, %s18
    %p326 = scmp.lt.s32.totalorder %s18, 5
    %p327 = pnand %p325, %p326
    %p328 = pneg %p327
    // Predicated region
    $region9: #{bimamba_encoder_layer.4} parent=5 // pred_check
      _
    $region10: #{bimamba_encoder_layer.4} parent=5 // pred_check_branch
      %330 = sbr.rel (%p327) target = $region12
    $region11: #{bimamba_encoder_layer.4} parent=5 // pred_region
      %s331 = ssub.s32 %s18, 1
      // Predicated region
      $region13: #{bimamba_encoder_layer.4} parent=11 // pred_check
        %p332 = pneg %p79
      $region14: #{bimamba_encoder_layer.4} parent=11 // pred_check_branch
        %334 = sbr.rel (%p332) target = $region16
      $region15: #{bimamba_encoder_layer.4} parent=11 // pred_region
        _
      $region16: #{bimamba_encoder_layer.4} parent=11 // pred_fallthru
        _
      // Predicated region
      $region17: #{bimamba_encoder_layer.4} parent=11 // pred_check
        %p335 = pneg %p100
      $region18: #{bimamba_encoder_layer.4} parent=11 // pred_check_branch
        %337 = sbr.rel (%p335) target = $region20
      $region19: #{bimamba_encoder_layer.4} parent=11 // pred_region
        _
      $region20: #{bimamba_encoder_layer.4} parent=11 // pred_fallthru
        _
      // Predicated region
      $region21: #{bimamba_encoder_layer.4} parent=11 // pred_check
        %p338 = pneg %p121
      $region22: #{bimamba_encoder_layer.4} parent=11 // pred_check_branch
        %340 = sbr.rel (%p338) target = $region24
      $region23: #{bimamba_encoder_layer.4} parent=11 // pred_region
        _
      $region24: #{bimamba_encoder_layer.4} parent=11 // pred_fallthru
        _
      // Predicated region
      $region25: #{bimamba_encoder_layer.4} parent=11 // pred_check
        %p341 = pneg %p142
      $region26: #{bimamba_encoder_layer.4} parent=11 // pred_check_branch
        %343 = sbr.rel (%p341) target = $region28
      $region27: #{bimamba_encoder_layer.4} parent=11 // pred_region
        _
      $region28: #{bimamba_encoder_layer.4} parent=11 // pred_fallthru
        _
      // Predicated region
      $region29: #{bimamba_encoder_layer.4} parent=11 // pred_check
        %p344 = pneg %p163
      $region30: #{bimamba_encoder_layer.4} parent=11 // pred_check_branch
        %346 = sbr.rel (%p344) target = $region32
      $region31: #{bimamba_encoder_layer.4} parent=11 // pred_region
        _
      $region32: #{bimamba_encoder_layer.4} parent=11 // pred_fallthru
        _
      // Predicated region
      $region33: #{bimamba_encoder_layer.4} parent=11 // pred_check
        %p347 = pneg %p184
      $region34: #{bimamba_encoder_layer.4} parent=11 // pred_check_branch
        %349 = sbr.rel (%p347) target = $region36
      $region35: #{bimamba_encoder_layer.4} parent=11 // pred_region
        _
      $region36: #{bimamba_encoder_layer.4} parent=11 // pred_fallthru
        _
      // Predicated region
      $region37: #{bimamba_encoder_layer.4} parent=11 // pred_check
        %p350 = pneg %p205
      $region38: #{bimamba_encoder_layer.4} parent=11 // pred_check_branch
        %352 = sbr.rel (%p350) target = $region40
      $region39: #{bimamba_encoder_layer.4} parent=11 // pred_region
        _
      $region40: #{bimamba_encoder_layer.4} parent=11 // pred_fallthru
        _
      // Predicated region
      $region41: #{bimamba_encoder_layer.4} parent=11 // pred_check
        %p353 = pneg %p226
      $region42: #{bimamba_encoder_layer.4} parent=11 // pred_check_branch
        %355 = sbr.rel (%p353) target = $region44
      $region43: #{bimamba_encoder_layer.4} parent=11 // pred_region
        _
      $region44: #{bimamba_encoder_layer.4} parent=11 // pred_fallthru
        _
      // Predicated region
      $region45: #{bimamba_encoder_layer.4} parent=11 // pred_check
        %p356 = pneg %p247
      $region46: #{bimamba_encoder_layer.4} parent=11 // pred_check_branch
        %358 = sbr.rel (%p356) target = $region48
      $region47: #{bimamba_encoder_layer.4} parent=11 // pred_region
        _
      $region48: #{bimamba_encoder_layer.4} parent=11 // pred_fallthru
        _
      // Predicated region
      $region49: #{bimamba_encoder_layer.4} parent=11 // pred_check
        %p359 = pneg %p268
      $region50: #{bimamba_encoder_layer.4} parent=11 // pred_check_branch
        %361 = sbr.rel (%p359) target = $region52
      $region51: #{bimamba_encoder_layer.4} parent=11 // pred_region
        _
      $region52: #{bimamba_encoder_layer.4} parent=11 // pred_fallthru
        _
      // Predicated region
      $region53: #{bimamba_encoder_layer.4} parent=11 // pred_check
        %p362 = pneg %p289
      $region54: #{bimamba_encoder_layer.4} parent=11 // pred_check_branch
        %364 = sbr.rel (%p362) target = $region56
      $region55: #{bimamba_encoder_layer.4} parent=11 // pred_region
        _
      $region56: #{bimamba_encoder_layer.4} parent=11 // pred_fallthru
        _
    $region12: #{bimamba_encoder_layer.4} parent=5 // pred_fallthru
      _
    %p365 = scmp.lt.s32.totalorder %s18, 4
    // Predicated region
    $region57: #{bimamba_encoder_layer.4} parent=5 // pred_check
      %p366 = pneg %p365
    $region58: #{bimamba_encoder_layer.4} parent=5 // pred_check_branch
      %368 = sbr.rel (%p366) target = $region60
    $region59: #{bimamba_encoder_layer.4} parent=5 // pred_region
      // Predicated region
      $region61: #{bimamba_encoder_layer.4} parent=59 // pred_check
        %p369 = pneg %p52
      $region62: #{bimamba_encoder_layer.4} parent=59 // pred_check_branch
        %371 = sbr.rel (%p369) target = $region64
      $region63: #{bimamba_encoder_layer.4} parent=59 // pred_region
        %p372 = scmp.lt.s32.totalorder %s25, 1
        %s373 = scalar_select %p372, %s25, 1
        %p374 = scmp.lt.s32.totalorder %s26, 1
        %s375 = scalar_select %p374, %s26, 1
        %s376 = smul.addr %s373, 2
        %s377 = sadd.s32 %s375, %s376
        %s378 = smul.addr %s377, 8
        %s379 = scalar_lea.vmem %s0, %s378
      $region64: #{bimamba_encoder_layer.4} parent=59 // pred_fallthru
        _
    $region60: #{bimamba_encoder_layer.4} parent=5 // pred_fallthru
      _
    %p380 = scmp.le.s32.totalorder 1, %s18
    %p381 = scmp.lt.s32.totalorder %s18, 5
    %p382 = pnand %p380, %p381
    %p383 = pneg %p382
    // Predicated region
    $region65: #{bimamba_encoder_layer.4} parent=5 // pred_check
      _
    $region66: #{bimamba_encoder_layer.4} parent=5 // pred_check_branch
      %385 = sbr.rel (%p382) target = $region68
    $region67: #{bimamba_encoder_layer.4} parent=5 // pred_region
      %s386 = ssub.s32 %s18, 1
      %p387 = scmp.lt.s32.totalorder %s27, 1
      %s388 = scalar_select %p387, %s27, 1
      %p389 = scmp.lt.s32.totalorder %s28, 1
      %s390 = scalar_select %p389, %s28, 1
      %s391 = smul.addr %s388, 2
      %s392 = sadd.s32 %s390, %s391
      %s393 = smul.addr %s392, 8
      %s394 = scalar_lea.vmem %s0, %s393
      %p395 = pneg %p58
      %p396 = pneg %p55
      %p397 = pneg %p79
      %p398 = pneg %p76
      %p399 = pneg %p100
      %p400 = pneg %p97
      %p401 = pneg %p121
      %p402 = pneg %p118
      %p403 = pneg %p142
      %p404 = pneg %p139
      %p405 = pneg %p163
      %p406 = pneg %p160
      %p407 = pneg %p184
      %p408 = pneg %p181
      %p409 = pneg %p205
      %p410 = pneg %p202
      %p411 = pneg %p226
      %p412 = pneg %p223
      %p413 = pneg %p247
      %p414 = pneg %p244
      %p415 = pneg %p268
      %p416 = pneg %p265
      %p417 = pneg %p289
      %p418 = pneg %p286
      %p419 = pneg %p317
      %p420 = pneg %p314
      %p421 = scmp.lt.s32.totalorder %s27, 1
      %s422 = scalar_select %p421, %s27, 1
      %p423 = scmp.lt.s32.totalorder %s28, 1
      %s424 = scalar_select %p423, %s28, 1
      %s425 = smul.addr %s422, 2
      %s426 = sadd.s32 %s424, %s425
      %s427 = smul.addr %s426, 8
      %s428 = scalar_lea.vmem %s12, %s427
      %p429 = scmp.lt.s32.totalorder %s27, 1
      %s430 = scalar_select %p429, %s27, 1
      %p431 = scmp.lt.s32.totalorder %s28, 1
      %s432 = scalar_select %p431, %s28, 1
      %s433 = smul.addr %s430, 2
      %s434 = sadd.s32 %s432, %s433
      %s435 = smul.addr %s434, 8
      %s436 = scalar_lea.vmem %s0, %s435
      %p437 = scmp.lt.s32.totalorder %s27, 1
      %s438 = scalar_select %p437, %s27, 1
      %p439 = scmp.lt.s32.totalorder %s28, 1
      %s440 = scalar_select %p439, %s28, 1
      %s441 = smul.addr %s438, 2
      %s442 = sadd.s32 %s440, %s441
      %s443 = smul.addr %s442, 8
      %s444 = scalar_lea.vmem %s12, %s443
      %p446 = scmp.eq.s32.totalorder %s28, 0
      // Predicated region
      $region69: #{bimamba_encoder_layer.4} parent=67 // pred_check
        %p447 = pneg %p446
      $region70: #{bimamba_encoder_layer.4} parent=67 // pred_check_branch
        %449 = sbr.rel (%p447) target = $region72
      $region71: #{bimamba_encoder_layer.4} parent=67 // pred_region
        %vm450 = vcmask 523264
        %451 = vst.msk [vmem:[#allocation4] sm:$0xff] %vm450, 0.0
        %452 = vst.msk [vmem:[#allocation4 + $0x8] sm:$0xff] %vm450, 0.0
        %vm453 = vcmask 518144
        %454 = vst.msk [vmem:[#allocation5] sm:$0x7] %vm453, 0.0
      $region72: #{bimamba_encoder_layer.4} parent=67 // pred_fallthru
        _
      %v455 = vld [vmem:[%s436] sm:$0xff]
      %v456 = vpack.c.bf16 %v455, %v455
      %v457 = vld [vmem:[%s1] sm:$0xf]
      %v458 = vld [vmem:[%s1 + $0x4] sm:$0xf]
      %v459 = vld [vmem:[%s1 + $0x8] sm:$0xf]
      %v460 = vld [vmem:[%s1 + $0xc] sm:$0xf]
      %v465 = vunpack.c.l.b16 %v457
      %v466 = vunpack.c.l.b16 %v458
      %v467 = vunpack.c.l.b16 %v459
      %v468 = vunpack.c.l.b16 %v460
      %v469 = vpack.c.b16 %v466, %v465
      %v470 = vpack.c.b16 %v468, %v467
      %vm473 = vcmask 261120
      %v475 = vsel %vm473, %v456, 0
      %477 = vmatprep.subr.bf16.mxu0 0
      %478 = vmatpush1.bf16.msra.mxu0 %v469
      %479 = vmatprep.subr.bf16.mxu0 0
      %480 = vmatpush1.bf16.msra.mxu0 %v470
      %481 = vmatprep.subr.bf16.mxu0 0
      %482 = vmatpush1.bf16.msra.mxu0 0
      %483 = vmatprep.subr.bf16.mxu0 0
      %484 = vmatpush1.bf16.msra.mxu0 0
      %485 = vmatprep.subr.bf16.mxu0 0
      %486 = vmatpush1.bf16.msra.mxu0 0
      %487 = vmatprep.subr.bf16.mxu0 0
      %488 = vmatpush1.bf16.msra.mxu0 0
      %489 = vmatprep.subr.bf16.mxu0 0
      %490 = vmatpush1.bf16.msra.mxu0 0
      %491 = vmatprep.subr.bf16.mxu0 0
      %492 = vmatpush1.bf16.msra.mxu0 0
      %493 = vmatprep.subr.bf16.mxu0 0
      %494 = vmatpush1.bf16.msra.mxu0 0
      %495 = vmatprep.subr.bf16.mxu0 0
      %496 = vmatpush1.bf16.msra.mxu0 0
      %497 = vmatprep.subr.bf16.mxu0 0
      %498 = vmatpush1.bf16.msra.mxu0 0
      %499 = vmatprep.subr.bf16.mxu0 0
      %500 = vmatpush1.bf16.msra.mxu0 0
      %501 = vmatprep.subr.bf16.mxu0 0
      %502 = vmatpush1.bf16.msra.mxu0 0
      %503 = vmatprep.subr.bf16.mxu0 0
      %504 = vmatpush1.bf16.msra.mxu0 0
      %505 = vmatprep.subr.bf16.mxu0 0
      %506 = vmatpush1.bf16.msra.mxu0 0
      %507 = vmatprep.subr.bf16.mxu0 0
      %508 = vmatpush1.bf16.msra.mxu0 0
      %509 = vmatprep.mubr.bf16.mxu0 0
      %510 = vmatmul.mubr.bf16.gmra.mrb[0].mxu0 %v475
      %v511 = vpop.f32.mrb[0].mxu0
      %v512 = vadd.f32 0.0, %v511
      %v513 = vpop.f32.mrb[0].mxu0
      %v514 = vpop.f32.mrb[0].mxu0
      %v515 = vpop.f32.mrb[0].mxu0
      %516 = vdwg.mxu0
      %v517 = vld [vmem:[#allocation5] sm:$0x7]
      %v519 = vrot.slane %v512, 5
      %vm521 = vcmask 1042432
      %v522 = vsel %vm521, %v517, %v519
      %vm523 = vcmask 523269
      %524 = vst.msk [vmem:[#allocation5 - $0x5] sm:$0xe0] %vm523, %v512
      %v525 = vld [vmem:[%s2] sm:$0xf]
      %v526 = vld [vmem:[%s3] sm:$0x1]
      %v528 = vlaneseq
      %v529 = vshrl.u32 %v528, 7
      %v530 = vsub.s32 0, %v529
      %v531 = vrot.slane %v526, %v530
      %v533 = vadd.f32 %v531, 0.0
      %v534 = vlaneseq
      %v535 = vshrl.u32 %v534, 7
      %v536 = vsub.s32 0, %v535
      %v537 = vrot.slane %v525, %v536
      %v538 = vmul.f32 %v537, %v522
      %v539 = vadd.f32 %v533, %v538
      %v540 = vlaneseq
      %v541 = vshrl.u32 %v540, 7
      %v542 = vsub.s32 1, %v541
      %v543 = vrot.slane %v525, %v542
      %v544 = vmul.f32 %v543, %v522
      %v545 = vmul.f32 %v543, %v519
      %vm548 = vcmask 1046528
      %v549 = vrot.slane %v544, 1
      %v550 = vrot.slane %v545, 1
      %v551 = vsel %vm548, %v549, %v550
      %v553 = vadd.f32 %v539, %v551
      %v554 = vlaneseq
      %v555 = vshrl.u32 %v554, 7
      %v556 = vsub.s32 2, %v555
      %v557 = vrot.slane %v525, %v556
      %v558 = vmul.f32 %v557, %v522
      %v559 = vmul.f32 %v557, %v519
      %vm562 = vcmask 1045504
      %v563 = vrot.slane %v558, 2
      %v564 = vrot.slane %v559, 2
      %v565 = vsel %vm562, %v563, %v564
      %v567 = vadd.f32 %v553, %v565
      %v568 = vlaneseq
      %v569 = vshrl.u32 %v568, 7
      %v570 = vsub.s32 3, %v569
      %v571 = vrot.slane %v525, %v570
      %v572 = vmul.f32 %v571, %v522
      %v573 = vmul.f32 %v571, %v519
      %vm576 = vcmask 1044480
      %v577 = vrot.slane %v572, 3
      %v578 = vrot.slane %v573, 3
      %v579 = vsel %vm576, %v577, %v578
      %v581 = vadd.f32 %v567, %v579
      %v582 = vxor.u32 %v581, 2147483648
      %v583 = vmul.f32 %v582, 1.442695
      %v584 = vpow.pop %v583
      %v585 = vadd.f32 %v584, 1.0
      %v586 = vrcp.pop %v585
      %v587 = vmul.f32 1.0, %v586
      %v588 = vmul.f32 %v581, %v587
      %v589 = vpack.c.bf16 %v588, %v588
      %v590 = vld [vmem:[%s4] sm:$0xf]
      %v591 = vld [vmem:[%s4 + $0x4] sm:$0xf]
      %v592 = vld [vmem:[%s4 + $0x8] sm:$0xf]
      %v593 = vld [vmem:[%s4 + $0xc] sm:$0xf]
      %v594 = vld [vmem:[%s4 + $0x10] sm:$0xf]
      %v595 = vld [vmem:[%s4 + $0x14] sm:$0xf]
      %v596 = vld [vmem:[%s4 + $0x18] sm:$0xf]
      %v597 = vld [vmem:[%s4 + $0x1c] sm:$0xf]
      %v606 = vunpack.c.l.b16 %v590
      %v607 = vunpack.c.l.b16 %v591
      %v608 = vunpack.c.l.b16 %v592
      %v609 = vunpack.c.l.b16 %v593
      %v610 = vunpack.c.l.b16 %v594
      %v611 = vunpack.c.l.b16 %v595
      %v612 = vunpack.c.l.b16 %v596
      %v613 = vunpack.c.l.b16 %v597
      %v614 = vpack.c.b16 %v607, %v606
      %v615 = vpack.c.b16 %v609, %v608
      %v616 = vpack.c.b16 %v611, %v610
      %v617 = vpack.c.b16 %v613, %v612
      %vm622 = vcmask 523264
      %v624 = vsel %vm622, %v589, 0
      %626 = vmatprep.subr.bf16.mxu0 0
      %627 = vmatpush1.bf16.msra.mxu0 %v614
      %628 = vmatprep.subr.bf16.mxu0 0
      %629 = vmatpush1.bf16.msra.mxu0 %v615
      %630 = vmatprep.subr.bf16.mxu0 0
      %631 = vmatpush1.bf16.msra.mxu0 %v616
      %632 = vmatprep.subr.bf16.mxu0 0
      %633 = vmatpush1.bf16.msra.mxu0 %v617
      %634 = vmatprep.subr.bf16.mxu0 0
      %635 = vmatpush1.bf16.msra.mxu0 0
      %636 = vmatprep.subr.bf16.mxu0 0
      %637 = vmatpush1.bf16.msra.mxu0 0
      %638 = vmatprep.subr.bf16.mxu0 0
      %639 = vmatpush1.bf16.msra.mxu0 0
      %640 = vmatprep.subr.bf16.mxu0 0
      %641 = vmatpush1.bf16.msra.mxu0 0
      %642 = vmatprep.subr.bf16.mxu0 0
      %643 = vmatpush1.bf16.msra.mxu0 0
      %644 = vmatprep.subr.bf16.mxu0 0
      %645 = vmatpush1.bf16.msra.mxu0 0
      %646 = vmatprep.subr.bf16.mxu0 0
      %647 = vmatpush1.bf16.msra.mxu0 0
      %648 = vmatprep.subr.bf16.mxu0 0
      %649 = vmatpush1.bf16.msra.mxu0 0
      %650 = vmatprep.subr.bf16.mxu0 0
      %651 = vmatpush1.bf16.msra.mxu0 0
      %652 = vmatprep.subr.bf16.mxu0 0
      %653 = vmatpush1.bf16.msra.mxu0 0
      %654 = vmatprep.subr.bf16.mxu0 0
      %655 = vmatpush1.bf16.msra.mxu0 0
      %656 = vmatprep.subr.bf16.mxu0 0
      %657 = vmatpush1.bf16.msra.mxu0 0
      %658 = vmatprep.mubr.bf16.mxu0 0
      %659 = vmatmul.mubr.bf16.gmra.mrb[0].mxu0 %v624
      %v660 = vpop.f32.mrb[0].mxu0
      %v661 = vadd.f32 0.0, %v660
      %v662 = vpop.f32.mrb[0].mxu0
      %v663 = vpop.f32.mrb[0].mxu0
      %v664 = vpop.f32.mrb[0].mxu0
      %665 = vdwg.mxu0
      %v666 = vpack.c.bf16 %v661, %v661
      %v667 = vld [vmem:[%s5] sm:$0x1]
      %v668 = vld [vmem:[%s6] sm:$0x1]
      %v670 = vlaneseq
      %v671 = vshrl.u32 %v670, 7
      %v672 = vsub.s32 0, %v671
      %v673 = vrot.slane %v668, %v672
      %vm675 = vcmask 15360
      %v677 = vsel %vm675, %v666, 0
      %vm679 = vcmask 1040384
      %v681 = vsel %vm679, %v667, 0
      %683 = vmatprep.subr.bf16.mxu0 0
      %684 = vmatpush1.bf16.msra.mxu0 %v681
      %685 = vmatprep.subr.bf16.mxu0 0
      %686 = vmatpush1.bf16.msra.mxu0 0
      %687 = vmatprep.subr.bf16.mxu0 0
      %688 = vmatpush1.bf16.msra.mxu0 0
      %689 = vmatprep.subr.bf16.mxu0 0
      %690 = vmatpush1.bf16.msra.mxu0 0
      %691 = vmatprep.subr.bf16.mxu0 0
      %692 = vmatpush1.bf16.msra.mxu0 0
      %693 = vmatprep.subr.bf16.mxu0 0
      %694 = vmatpush1.bf16.msra.mxu0 0
      %695 = vmatprep.subr.bf16.mxu0 0
      %696 = vmatpush1.bf16.msra.mxu0 0
      %697 = vmatprep.subr.bf16.mxu0 0
      %698 = vmatpush1.bf16.msra.mxu0 0
      %699 = vmatprep.subr.bf16.mxu0 0
      %700 = vmatpush1.bf16.msra.mxu0 0
      %701 = vmatprep.subr.bf16.mxu0 0
      %702 = vmatpush1.bf16.msra.mxu0 0
      %703 = vmatprep.subr.bf16.mxu0 0
      %704 = vmatpush1.bf16.msra.mxu0 0
      %705 = vmatprep.subr.bf16.mxu0 0
      %706 = vmatpush1.bf16.msra.mxu0 0
      %707 = vmatprep.subr.bf16.mxu0 0
      %708 = vmatpush1.bf16.msra.mxu0 0
      %709 = vmatprep.subr.bf16.mxu0 0
      %710 = vmatpush1.bf16.msra.mxu0 0
      %711 = vmatprep.subr.bf16.mxu0 0
      %712 = vmatpush1.bf16.msra.mxu0 0
      %713 = vmatprep.subr.bf16.mxu0 0
      %714 = vmatpush1.bf16.msra.mxu0 0
      %715 = vmatprep.mubr.bf16.mxu0 0
      %716 = vmatmul.mubr.bf16.gmra.mrb[0].mxu0 %v677
      %v717 = vpop.f32.mrb[0].mxu0
      %v718 = vadd.f32 %v673, %v717
      %v719 = vpop.f32.mrb[0].mxu0
      %v720 = vpop.f32.mrb[0].mxu0
      %v721 = vpop.f32.mrb[0].mxu0
      %722 = vdwg.mxu0
      %v723 = vand.u32 2147483647, %v718
      %v724 = vsub.f32 0.0, %v723
      %v725 = vmul.f32 %v724, 1.442695
      %v726 = vpow.pop %v725
      %v727 = vadd.f32 %v726, 1.0
      %v728 = vlog2.pop %v727
      %v729 = vmul.f32 %v728, 0.6931472
      %v730 = vmul.f32 -0.5, %v726
      %v731 = vadd.f32 %v730, 1.0
      %v732 = vmul.f32 %v731, %v726
      %v733 = vand.u32 2147483647, %v726
      %vm734 = vcmp.lt.f32.partialorder %v733, 0.0004427343
      %v735 = vsel %vm734, %v732, %v729
      %v736 = vmax.f32 %v718, 0.0
      %v737 = vadd.f32 %v735, %v736
      %v738 = vld [vmem:[%s7] sm:$0xff]
      %v739 = vld [vmem:[%s7 + $0x8] sm:$0xff]
      %v740 = vmul.f32 %v737, %v588
      %v741 = vlaneseq
      %v742 = vshrl.u32 %v741, 7
      %v743 = vsub.s32 0, %v742
      %v744 = vrot.slane %v738, %v743
      %v745 = vmul.f32 %v737, %v744
      %v746 = vmul.f32 %v745, 1.442695
      %v747 = vpow.pop %v746
      %748 = vst [vmem:[#allocation2] ss:$16 sm:$0x3] %v747
      %749 = vst [vmem:[#allocation2] ss:$16 sm:$0xc] %v747
      %750 = vst [vmem:[#allocation2] ss:$16 sm:$0x30] %v747
      %751 = vst [vmem:[#allocation2] ss:$16 sm:$0xc0] %v747
      %753 = vset.pattern.permute.xlu0 2
      %754 = vperm.xlu0 %753, %v661
      %v755 = vpop.permute.xlu0 %754
      %v757 = vmul.f32 %v740, %v755
      %758 = vst [vmem:[#allocation3] ss:$16 sm:$0x3] %v757
      %759 = vst [vmem:[#allocation3] ss:$16 sm:$0xc] %v757
      %760 = vst [vmem:[#allocation3] ss:$16 sm:$0x30] %v757
      %761 = vst [vmem:[#allocation3] ss:$16 sm:$0xc0] %v757
      %v762 = vlaneseq
      %v763 = vshrl.u32 %v762, 7
      %v764 = vsub.s32 1, %v763
      %v765 = vrot.slane %v738, %v764
      %v766 = vmul.f32 %v737, %v765
      %v767 = vmul.f32 %v766, 1.442695
      %v768 = vpow.pop %v767
      %s769 = scalar_lea.vmem [#allocation2], 1
      %770 = vst [vmem:[%s769] ss:$16 sm:$0x3] %v768
      %771 = vst [vmem:[%s769] ss:$16 sm:$0xc] %v768
      %772 = vst [vmem:[%s769] ss:$16 sm:$0x30] %v768
      %773 = vst [vmem:[%s769] ss:$16 sm:$0xc0] %v768
      %774 = vset.pattern.permute.xlu0 3
      %775 = vperm.xlu0 %774, %v661
      %v776 = vpop.permute.xlu0 %775
      %v778 = vmul.f32 %v740, %v776
      %s779 = scalar_lea.vmem [#allocation3], 1
      %780 = vst [vmem:[%s779] ss:$16 sm:$0x3] %v778
      %781 = vst [vmem:[%s779] ss:$16 sm:$0xc] %v778
      %782 = vst [vmem:[%s779] ss:$16 sm:$0x30] %v778
      %783 = vst [vmem:[%s779] ss:$16 sm:$0xc0] %v778
      %v784 = vlaneseq
      %v785 = vshrl.u32 %v784, 7
      %v786 = vsub.s32 2, %v785
      %v787 = vrot.slane %v738, %v786
      %v788 = vmul.f32 %v737, %v787
      %v789 = vmul.f32 %v788, 1.442695
      %v790 = vpow.pop %v789
      %s791 = scalar_lea.vmem [#allocation2], 2
      %792 = vst [vmem:[%s791] ss:$16 sm:$0x3] %v790
      %793 = vst [vmem:[%s791] ss:$16 sm:$0xc] %v790
      %794 = vst [vmem:[%s791] ss:$16 sm:$0x30] %v790
      %795 = vst [vmem:[%s791] ss:$16 sm:$0xc0] %v790
      %796 = vset.pattern.permute.xlu0 4
      %797 = vperm.xlu0 %796, %v661
      %v798 = vpop.permute.xlu0 %797
      %v800 = vmul.f32 %v740, %v798
      %s801 = scalar_lea.vmem [#allocation3], 2
      %802 = vst [vmem:[%s801] ss:$16 sm:$0x3] %v800
      %803 = vst [vmem:[%s801] ss:$16 sm:$0xc] %v800
      %804 = vst [vmem:[%s801] ss:$16 sm:$0x30] %v800
      %805 = vst [vmem:[%s801] ss:$16 sm:$0xc0] %v800
      %v806 = vlaneseq
      %v807 = vshrl.u32 %v806, 7
      %v808 = vsub.s32 3, %v807
      %v809 = vrot.slane %v738, %v808
      %v810 = vmul.f32 %v737, %v809
      %v811 = vmul.f32 %v810, 1.442695
      %v812 = vpow.pop %v811
      %s813 = scalar_lea.vmem [#allocation2], 3
      %814 = vst [vmem:[%s813] ss:$16 sm:$0x3] %v812
      %815 = vst [vmem:[%s813] ss:$16 sm:$0xc] %v812
      %816 = vst [vmem:[%s813] ss:$16 sm:$0x30] %v812
      %817 = vst [vmem:[%s813] ss:$16 sm:$0xc0] %v812
      %818 = vset.pattern.permute.xlu0 5
      %819 = vperm.xlu0 %818, %v661
      %v820 = vpop.permute.xlu0 %819
      %v822 = vmul.f32 %v740, %v820
      %s823 = scalar_lea.vmem [#allocation3], 3
      %824 = vst [vmem:[%s823] ss:$16 sm:$0x3] %v822
      %825 = vst [vmem:[%s823] ss:$16 sm:$0xc] %v822
      %826 = vst [vmem:[%s823] ss:$16 sm:$0x30] %v822
      %827 = vst [vmem:[%s823] ss:$16 sm:$0xc0] %v822
      %v828 = vlaneseq
      %v829 = vshrl.u32 %v828, 7
      %v830 = vsub.s32 4, %v829
      %v831 = vrot.slane %v738, %v830
      %v832 = vmul.f32 %v737, %v831
      %v833 = vmul.f32 %v832, 1.442695
      %v834 = vpow.pop %v833
      %s835 = scalar_lea.vmem [#allocation2], 4
      %836 = vst [vmem:[%s835] ss:$16 sm:$0x3] %v834
      %837 = vst [vmem:[%s835] ss:$16 sm:$0xc] %v834
      %838 = vst [vmem:[%s835] ss:$16 sm:$0x30] %v834
      %839 = vst [vmem:[%s835] ss:$16 sm:$0xc0] %v834
      %840 = vset.pattern.permute.xlu0 6
      %841 = vperm.xlu0 %840, %v661
      %v842 = vpop.permute.xlu0 %841
      %v844 = vmul.f32 %v740, %v842
      %s845 = scalar_lea.vmem [#allocation3], 4
      %846 = vst [vmem:[%s845] ss:$16 sm:$0x3] %v844
      %847 = vst [vmem:[%s845] ss:$16 sm:$0xc] %v844
      %848 = vst [vmem:[%s845] ss:$16 sm:$0x30] %v844
      %849 = vst [vmem:[%s845] ss:$16 sm:$0xc0] %v844
      %v850 = vlaneseq
      %v851 = vshrl.u32 %v850, 7
      %v852 = vsub.s32 5, %v851
      %v853 = vrot.slane %v738, %v852
      %v854 = vmul.f32 %v737, %v853
      %v855 = vmul.f32 %v854, 1.442695
      %v856 = vpow.pop %v855
      %s857 = scalar_lea.vmem [#allocation2], 5
      %858 = vst [vmem:[%s857] ss:$16 sm:$0x3] %v856
      %859 = vst [vmem:[%s857] ss:$16 sm:$0xc] %v856
      %860 = vst [vmem:[%s857] ss:$16 sm:$0x30] %v856
      %861 = vst [vmem:[%s857] ss:$16 sm:$0xc0] %v856
      %862 = vset.pattern.permute.xlu0 7
      %863 = vperm.xlu0 %862, %v661
      %v864 = vpop.permute.xlu0 %863
      %v866 = vmul.f32 %v740, %v864
      %s867 = scalar_lea.vmem [#allocation3], 5
      %868 = vst [vmem:[%s867] ss:$16 sm:$0x3] %v866
      %869 = vst [vmem:[%s867] ss:$16 sm:$0xc] %v866
      %870 = vst [vmem:[%s867] ss:$16 sm:$0x30] %v866
      %871 = vst [vmem:[%s867] ss:$16 sm:$0xc0] %v866
      %v872 = vlaneseq
      %v873 = vshrl.u32 %v872, 7
      %v874 = vsub.s32 6, %v873
      %v875 = vrot.slane %v738, %v874
      %v876 = vmul.f32 %v737, %v875
      %v877 = vmul.f32 %v876, 1.442695
      %v878 = vpow.pop %v877
      %s879 = scalar_lea.vmem [#allocation2], 6
      %880 = vst [vmem:[%s879] ss:$16 sm:$0x3] %v878
      %881 = vst [vmem:[%s879] ss:$16 sm:$0xc] %v878
      %882 = vst [vmem:[%s879] ss:$16 sm:$0x30] %v878
      %883 = vst [vmem:[%s879] ss:$16 sm:$0xc0] %v878
      %884 = vset.pattern.permute.xlu0 8
      %885 = vperm.xlu0 %884, %v661
      %v886 = vpop.permute.xlu0 %885
      %v888 = vmul.f32 %v740, %v886
      %s889 = scalar_lea.vmem [#allocation3], 6
      %890 = vst [vmem:[%s889] ss:$16 sm:$0x3] %v888
      %891 = vst [vmem:[%s889] ss:$16 sm:$0xc] %v888
      %892 = vst [vmem:[%s889] ss:$16 sm:$0x30] %v888
      %893 = vst [vmem:[%s889] ss:$16 sm:$0xc0] %v888
      %v894 = vlaneseq
      %v895 = vshrl.u32 %v894, 7
      %v896 = vsub.s32 7, %v895
      %v897 = vrot.slane %v738, %v896
      %v898 = vmul.f32 %v737, %v897
      %v899 = vmul.f32 %v898, 1.442695
      %v900 = vpow.pop %v899
      %s901 = scalar_lea.vmem [#allocation2], 7
      %902 = vst [vmem:[%s901] ss:$16 sm:$0x3] %v900
      %903 = vst [vmem:[%s901] ss:$16 sm:$0xc] %v900
      %904 = vst [vmem:[%s901] ss:$16 sm:$0x30] %v900
      %905 = vst [vmem:[%s901] ss:$16 sm:$0xc0] %v900
      %906 = vset.pattern.permute.xlu0 9
      %907 = vperm.xlu0 %906, %v661
      %v908 = vpop.permute.xlu0 %907
      %v910 = vmul.f32 %v740, %v908
      %s911 = scalar_lea.vmem [#allocation3], 7
      %912 = vst [vmem:[%s911] ss:$16 sm:$0x3] %v910
      %913 = vst [vmem:[%s911] ss:$16 sm:$0xc] %v910
      %914 = vst [vmem:[%s911] ss:$16 sm:$0x30] %v910
      %915 = vst [vmem:[%s911] ss:$16 sm:$0xc0] %v910
      %v916 = vlaneseq
      %v917 = vshrl.u32 %v916, 7
      %v918 = vsub.s32 0, %v917
      %v919 = vrot.slane %v739, %v918
      %v920 = vmul.f32 %v737, %v919
      %v921 = vmul.f32 %v920, 1.442695
      %v922 = vpow.pop %v921
      %s923 = scalar_lea.vmem [#allocation2], 8
      %924 = vst [vmem:[%s923] ss:$16 sm:$0x3] %v922
      %925 = vst [vmem:[%s923] ss:$16 sm:$0xc] %v922
      %926 = vst [vmem:[%s923] ss:$16 sm:$0x30] %v922
      %927 = vst [vmem:[%s923] ss:$16 sm:$0xc0] %v922
      %928 = vset.pattern.permute.xlu0 10
      %929 = vperm.xlu0 %928, %v661
      %v930 = vpop.permute.xlu0 %929
      %v932 = vmul.f32 %v740, %v930
      %s933 = scalar_lea.vmem [#allocation3], 8
      %934 = vst [vmem:[%s933] ss:$16 sm:$0x3] %v932
      %935 = vst [vmem:[%s933] ss:$16 sm:$0xc] %v932
      %936 = vst [vmem:[%s933] ss:$16 sm:$0x30] %v932
      %937 = vst [vmem:[%s933] ss:$16 sm:$0xc0] %v932
      %v938 = vlaneseq
      %v939 = vshrl.u32 %v938, 7
      %v940 = vsub.s32 1, %v939
      %v941 = vrot.slane %v739, %v940
      %v942 = vmul.f32 %v737, %v941
      %v943 = vmul.f32 %v942, 1.442695
      %v944 = vpow.pop %v943
      %s945 = scalar_lea.vmem [#allocation2], 9
      %946 = vst [vmem:[%s945] ss:$16 sm:$0x3] %v944
      %947 = vst [vmem:[%s945] ss:$16 sm:$0xc] %v944
      %948 = vst [vmem:[%s945] ss:$16 sm:$0x30] %v944
      %949 = vst [vmem:[%s945] ss:$16 sm:$0xc0] %v944
      %950 = vset.pattern.permute.xlu0 11
      %951 = vperm.xlu0 %950, %v661
      %v952 = vpop.permute.xlu0 %951
      %v954 = vmul.f32 %v740, %v952
      %s955 = scalar_lea.vmem [#allocation3], 9
      %956 = vst [vmem:[%s955] ss:$16 sm:$0x3] %v954
      %957 = vst [vmem:[%s955] ss:$16 sm:$0xc] %v954
      %958 = vst [vmem:[%s955] ss:$16 sm:$0x30] %v954
      %959 = vst [vmem:[%s955] ss:$16 sm:$0xc0] %v954
      %v960 = vlaneseq
      %v961 = vshrl.u32 %v960, 7
      %v962 = vsub.s32 2, %v961
      %v963 = vrot.slane %v739, %v962
      %v964 = vmul.f32 %v737, %v963
      %v965 = vmul.f32 %v964, 1.442695
      %v966 = vpow.pop %v965
      %s967 = scalar_lea.vmem [#allocation2], 10
      %968 = vst [vmem:[%s967] ss:$16 sm:$0x3] %v966
      %969 = vst [vmem:[%s967] ss:$16 sm:$0xc] %v966
      %970 = vst [vmem:[%s967] ss:$16 sm:$0x30] %v966
      %971 = vst [vmem:[%s967] ss:$16 sm:$0xc0] %v966
      %972 = vset.pattern.permute.xlu0 12
      %973 = vperm.xlu0 %972, %v661
      %v974 = vpop.permute.xlu0 %973
      %v976 = vmul.f32 %v740, %v974
      %s977 = scalar_lea.vmem [#allocation3], 10
      %978 = vst [vmem:[%s977] ss:$16 sm:$0x3] %v976
      %979 = vst [vmem:[%s977] ss:$16 sm:$0xc] %v976
      %980 = vst [vmem:[%s977] ss:$16 sm:$0x30] %v976
      %981 = vst [vmem:[%s977] ss:$16 sm:$0xc0] %v976
      %v982 = vlaneseq
      %v983 = vshrl.u32 %v982, 7
      %v984 = vsub.s32 3, %v983
      %v985 = vrot.slane %v739, %v984
      %v986 = vmul.f32 %v737, %v985
      %v987 = vmul.f32 %v986, 1.442695
      %v988 = vpow.pop %v987
      %s989 = scalar_lea.vmem [#allocation2], 11
      %990 = vst [vmem:[%s989] ss:$16 sm:$0x3] %v988
      %991 = vst [vmem:[%s989] ss:$16 sm:$0xc] %v988
      %992 = vst [vmem:[%s989] ss:$16 sm:$0x30] %v988
      %993 = vst [vmem:[%s989] ss:$16 sm:$0xc0] %v988
      %994 = vset.pattern.permute.xlu0 13
      %995 = vperm.xlu0 %994, %v661
      %v996 = vpop.permute.xlu0 %995
      %v998 = vmul.f32 %v740, %v996
      %s999 = scalar_lea.vmem [#allocation3], 11
      %1000 = vst [vmem:[%s999] ss:$16 sm:$0x3] %v998
      %1001 = vst [vmem:[%s999] ss:$16 sm:$0xc] %v998
      %1002 = vst [vmem:[%s999] ss:$16 sm:$0x30] %v998
      %1003 = vst [vmem:[%s999] ss:$16 sm:$0xc0] %v998
      %v1004 = vlaneseq
      %v1005 = vshrl.u32 %v1004, 7
      %v1006 = vsub.s32 4, %v1005
      %v1007 = vrot.slane %v739, %v1006
      %v1008 = vmul.f32 %v737, %v1007
      %v1009 = vmul.f32 %v1008, 1.442695
      %v1010 = vpow.pop %v1009
      %s1011 = scalar_lea.vmem [#allocation2], 12
      %1012 = vst [vmem:[%s1011] ss:$16 sm:$0x3] %v1010
      %1013 = vst [vmem:[%s1011] ss:$16 sm:$0xc] %v1010
      %1014 = vst [vmem:[%s1011] ss:$16 sm:$0x30] %v1010
      %1015 = vst [vmem:[%s1011] ss:$16 sm:$0xc0] %v1010
      %1016 = vset.pattern.permute.xlu0 14
      %1017 = vperm.xlu0 %1016, %v661
      %v1018 = vpop.permute.xlu0 %1017
      %v1020 = vmul.f32 %v740, %v1018
      %s1021 = scalar_lea.vmem [#allocation3], 12
      %1022 = vst [vmem:[%s1021] ss:$16 sm:$0x3] %v1020
      %1023 = vst [vmem:[%s1021] ss:$16 sm:$0xc] %v1020
      %1024 = vst [vmem:[%s1021] ss:$16 sm:$0x30] %v1020
      %1025 = vst [vmem:[%s1021] ss:$16 sm:$0xc0] %v1020
      %v1026 = vlaneseq
      %v1027 = vshrl.u32 %v1026, 7
      %v1028 = vsub.s32 5, %v1027
      %v1029 = vrot.slane %v739, %v1028
      %v1030 = vmul.f32 %v737, %v1029
      %v1031 = vmul.f32 %v1030, 1.442695
      %v1032 = vpow.pop %v1031
      %s1033 = scalar_lea.vmem [#allocation2], 13
      %1034 = vst [vmem:[%s1033] ss:$16 sm:$0x3] %v1032
      %1035 = vst [vmem:[%s1033] ss:$16 sm:$0xc] %v1032
      %1036 = vst [vmem:[%s1033] ss:$16 sm:$0x30] %v1032
      %1037 = vst [vmem:[%s1033] ss:$16 sm:$0xc0] %v1032
      %1038 = vset.pattern.permute.xlu0 15
      %1039 = vperm.xlu0 %1038, %v661
      %v1040 = vpop.permute.xlu0 %1039
      %v1042 = vmul.f32 %v740, %v1040
      %s1043 = scalar_lea.vmem [#allocation3], 13
      %1044 = vst [vmem:[%s1043] ss:$16 sm:$0x3] %v1042
      %1045 = vst [vmem:[%s1043] ss:$16 sm:$0xc] %v1042
      %1046 = vst [vmem:[%s1043] ss:$16 sm:$0x30] %v1042
      %1047 = vst [vmem:[%s1043] ss:$16 sm:$0xc0] %v1042
      %v1048 = vlaneseq
      %v1049 = vshrl.u32 %v1048, 7
      %v1050 = vsub.s32 6, %v1049
      %v1051 = vrot.slane %v739, %v1050
      %v1052 = vmul.f32 %v737, %v1051
      %v1053 = vmul.f32 %v1052, 1.442695
      %v1054 = vpow.pop %v1053
      %s1055 = scalar_lea.vmem [#allocation2], 14
      %1056 = vst [vmem:[%s1055] ss:$16 sm:$0x3] %v1054
      %1057 = vst [vmem:[%s1055] ss:$16 sm:$0xc] %v1054
      %1058 = vst [vmem:[%s1055] ss:$16 sm:$0x30] %v1054
      %1059 = vst [vmem:[%s1055] ss:$16 sm:$0xc0] %v1054
      %1060 = vset.pattern.permute.xlu0 16
      %1061 = vperm.xlu0 %1060, %v661
      %v1062 = vpop.permute.xlu0 %1061
      %v1064 = vmul.f32 %v740, %v1062
      %s1065 = scalar_lea.vmem [#allocation3], 14
      %1066 = vst [vmem:[%s1065] ss:$16 sm:$0x3] %v1064
      %1067 = vst [vmem:[%s1065] ss:$16 sm:$0xc] %v1064
      %1068 = vst [vmem:[%s1065] ss:$16 sm:$0x30] %v1064
      %1069 = vst [vmem:[%s1065] ss:$16 sm:$0xc0] %v1064
      %v1070 = vlaneseq
      %v1071 = vshrl.u32 %v1070, 7
      %v1072 = vsub.s32 7, %v1071
      %v1073 = vrot.slane %v739, %v1072
      %v1074 = vmul.f32 %v737, %v1073
      %v1075 = vmul.f32 %v1074, 1.442695
      %v1076 = vpow.pop %v1075
      %s1077 = scalar_lea.vmem [#allocation2], 15
      %1078 = vst [vmem:[%s1077] ss:$16 sm:$0x3] %v1076
      %1079 = vst [vmem:[%s1077] ss:$16 sm:$0xc] %v1076
      %1080 = vst [vmem:[%s1077] ss:$16 sm:$0x30] %v1076
      %1081 = vst [vmem:[%s1077] ss:$16 sm:$0xc0] %v1076
      %1082 = vset.pattern.permute.xlu0 17
      %1083 = vperm.xlu0 %1082, %v661
      %v1084 = vpop.permute.xlu0 %1083
      %v1086 = vmul.f32 %v740, %v1084
      %s1087 = scalar_lea.vmem [#allocation3], 15
      %1088 = vst [vmem:[%s1087] ss:$16 sm:$0x3] %v1086
      %1089 = vst [vmem:[%s1087] ss:$16 sm:$0xc] %v1086
      %1090 = vst [vmem:[%s1087] ss:$16 sm:$0x30] %v1086
      %1091 = vst [vmem:[%s1087] ss:$16 sm:$0xc0] %v1086
      %v1092 = vld [vmem:[#allocation4] sm:$0xff]
      %v1093 = vld [vmem:[#allocation4 + $0x8] sm:$0xff]
      %v1094 = vld [vmem:[#allocation2] sm:$0xff]
      %v1095 = vld [vmem:[#allocation2 + $0x8] sm:$0xff]
      %v1096 = vmul.f32 %v1094, %v1092
      %v1097 = vmul.f32 %v1095, %v1093
      %v1098 = vld [vmem:[#allocation3] sm:$0xff]
      %v1099 = vld [vmem:[#allocation3 + $0x8] sm:$0xff]
      %v1100 = vadd.f32 %v1096, %v1098
      %v1101 = vadd.f32 %v1097, %v1099
      %1102 = vst.msk [vmem:[#allocation3] sm:$0xff] %vm622, %v1100
      %1103 = vst.msk [vmem:[#allocation3 + $0x8] sm:$0xff] %vm622, %v1101
      %s1104 = scalar_lea.vmem [#allocation2], 16
      %v1105 = vld [vmem:[%s1104] sm:$0xff]
      %v1106 = vld [vmem:[%s1104 + $0x8] sm:$0xff]
      %v1107 = vmul.f32 %v1105, %v1100
      %v1108 = vmul.f32 %v1106, %v1101
      %s1109 = scalar_lea.vmem [#allocation3], 16
      %v1110 = vld [vmem:[%s1109] sm:$0xff]
      %v1111 = vld [vmem:[%s1109 + $0x8] sm:$0xff]
      %v1112 = vadd.f32 %v1107, %v1110
      %v1113 = vadd.f32 %v1108, %v1111
      %1114 = vst.msk [vmem:[%s1109] sm:$0xff] %vm622, %v1112
      %1115 = vst.msk [vmem:[%s1109 + $0x8] sm:$0xff] %vm622, %v1113
      %s1116 = scalar_lea.vmem [#allocation2], 32
      %v1117 = vld [vmem:[%s1116] sm:$0xff]
      %v1118 = vld [vmem:[%s1116 + $0x8] sm:$0xff]
      %v1119 = vmul.f32 %v1117, %v1112
      %v1120 = vmul.f32 %v1118, %v1113
      %s1121 = scalar_lea.vmem [#allocation3], 32
      %v1122 = vld [vmem:[%s1121] sm:$0xff]
      %v1123 = vld [vmem:[%s1121 + $0x8] sm:$0xff]
      %v1124 = vadd.f32 %v1119, %v1122
      %v1125 = vadd.f32 %v1120, %v1123
      %1126 = vst.msk [vmem:[%s1121] sm:$0xff] %vm622, %v1124
      %1127 = vst.msk [vmem:[%s1121 + $0x8] sm:$0xff] %vm622, %v1125
      %s1128 = scalar_lea.vmem [#allocation2], 48
      %v1129 = vld [vmem:[%s1128] sm:$0xff]
      %v1130 = vld [vmem:[%s1128 + $0x8] sm:$0xff]
      %v1131 = vmul.f32 %v1129, %v1124
      %v1132 = vmul.f32 %v1130, %v1125
      %s1133 = scalar_lea.vmem [#allocation3], 48
      %v1134 = vld [vmem:[%s1133] sm:$0xff]
      %v1135 = vld [vmem:[%s1133 + $0x8] sm:$0xff]
      %v1136 = vadd.f32 %v1131, %v1134
      %v1137 = vadd.f32 %v1132, %v1135
      %1138 = vst.msk [vmem:[%s1133] sm:$0xff] %vm622, %v1136
      %1139 = vst.msk [vmem:[%s1133 + $0x8] sm:$0xff] %vm622, %v1137
      %s1140 = scalar_lea.vmem [#allocation2], 64
      %v1141 = vld [vmem:[%s1140] sm:$0xff]
      %v1142 = vld [vmem:[%s1140 + $0x8] sm:$0xff]
      %v1143 = vmul.f32 %v1141, %v1136
      %v1144 = vmul.f32 %v1142, %v1137
      %s1145 = scalar_lea.vmem [#allocation3], 64
      %v1146 = vld [vmem:[%s1145] sm:$0xff]
      %v1147 = vld [vmem:[%s1145 + $0x8] sm:$0xff]
      %v1148 = vadd.f32 %v1143, %v1146
      %v1149 = vadd.f32 %v1144, %v1147
      %1150 = vst.msk [vmem:[%s1145] sm:$0xff] %vm622, %v1148
      %1151 = vst.msk [vmem:[%s1145 + $0x8] sm:$0xff] %vm622, %v1149
      %s1152 = scalar_lea.vmem [#allocation2], 80
      %v1153 = vld [vmem:[%s1152] sm:$0xff]
      %v1154 = vld [vmem:[%s1152 + $0x8] sm:$0xff]
      %v1155 = vmul.f32 %v1153, %v1148
      %v1156 = vmul.f32 %v1154, %v1149
      %s1157 = scalar_lea.vmem [#allocation3], 80
      %v1158 = vld [vmem:[%s1157] sm:$0xff]
      %v1159 = vld [vmem:[%s1157 + $0x8] sm:$0xff]
      %v1160 = vadd.f32 %v1155, %v1158
      %v1161 = vadd.f32 %v1156, %v1159
      %1162 = vst.msk [vmem:[%s1157] sm:$0xff] %vm622, %v1160
      %1163 = vst.msk [vmem:[%s1157 + $0x8] sm:$0xff] %vm622, %v1161
      %s1164 = scalar_lea.vmem [#allocation2], 96
      %v1165 = vld [vmem:[%s1164] sm:$0xff]
      %v1166 = vld [vmem:[%s1164 + $0x8] sm:$0xff]
      %v1167 = vmul.f32 %v1165, %v1160
      %v1168 = vmul.f32 %v1166, %v1161
      %s1169 = scalar_lea.vmem [#allocation3], 96
      %v1170 = vld [vmem:[%s1169] sm:$0xff]
      %v1171 = vld [vmem:[%s1169 + $0x8] sm:$0xff]
      %v1172 = vadd.f32 %v1167, %v1170
      %v1173 = vadd.f32 %v1168, %v1171
      %1174 = vst.msk [vmem:[%s1169] sm:$0xff] %vm622, %v1172
      %1175 = vst.msk [vmem:[%s1169 + $0x8] sm:$0xff] %vm622, %v1173
      %s1176 = scalar_lea.vmem [#allocation2], 112
      %v1177 = vld [vmem:[%s1176] sm:$0xff]
      %v1178 = vld [vmem:[%s1176 + $0x8] sm:$0xff]
      %v1179 = vmul.f32 %v1177, %v1172
      %v1180 = vmul.f32 %v1178, %v1173
      %s1181 = scalar_lea.vmem [#allocation3], 112
      %v1182 = vld [vmem:[%s1181] sm:$0xff]
      %v1183 = vld [vmem:[%s1181 + $0x8] sm:$0xff]
      %v1184 = vadd.f32 %v1179, %v1182
      %v1185 = vadd.f32 %v1180, %v1183
      %1186 = vst.msk [vmem:[%s1181] sm:$0xff] %vm622, %v1184
      %1187 = vst.msk [vmem:[%s1181 + $0x8] sm:$0xff] %vm622, %v1185
      %1188 = vst.msk [vmem:[#allocation4] sm:$0xff] %vm622, %v1184
      %1189 = vst.msk [vmem:[#allocation4 + $0x8] sm:$0xff] %vm622, %v1185
      %v1190 = vld [vmem:[%s8] sm:$0x1]
      %v1192 = vlaneseq
      %v1193 = vshrl.u32 %v1192, 7
      %v1194 = vsub.s32 0, %v1193
      %v1195 = vrot.slane %v1190, %v1194
      %v1197 = vmul.f32 %v1195, %v588
      %v1198 = vld [vmem:[#allocation3] ss:$16 sm:$0x3]
      %v1199 = vld [vmem:[#allocation3] ss:$16 sm:$0xc]
      %v1200 = vor.u32 %v1198, %v1199
      %v1201 = vld [vmem:[#allocation3] ss:$16 sm:$0x30]
      %v1202 = vor.u32 %v1200, %v1201
      %v1203 = vld [vmem:[#allocation3] ss:$16 sm:$0xc0]
      %v1204 = vor.u32 %v1202, %v1203
      %1205 = vset.pattern.permute.xlu0 18
      %1206 = vperm.xlu0 %1205, %v661
      %v1207 = vpop.permute.xlu0 %1206
      %v1209 = vmul.f32 %v1207, %v1204
      %v1210 = vadd.f32 %v1197, %v1209
      %v1211 = vld [vmem:[%s779] ss:$16 sm:$0x3]
      %v1212 = vld [vmem:[%s779] ss:$16 sm:$0xc]
      %v1213 = vor.u32 %v1211, %v1212
      %v1214 = vld [vmem:[%s779] ss:$16 sm:$0x30]
      %v1215 = vor.u32 %v1213, %v1214
      %v1216 = vld [vmem:[%s779] ss:$16 sm:$0xc0]
      %v1217 = vor.u32 %v1215, %v1216
      %1218 = vset.pattern.permute.xlu0 19
      %1219 = vperm.xlu0 %1218, %v661
      %v1220 = vpop.permute.xlu0 %1219
      %v1222 = vmul.f32 %v1220, %v1217
      %v1223 = vadd.f32 %v1210, %v1222
      %v1224 = vld [vmem:[%s801] ss:$16 sm:$0x3]
      %v1225 = vld [vmem:[%s801] ss:$16 sm:$0xc]
      %v1226 = vor.u32 %v1224, %v1225
      %v1227 = vld [vmem:[%s801] ss:$16 sm:$0x30]
      %v1228 = vor.u32 %v1226, %v1227
      %v1229 = vld [vmem:[%s801] ss:$16 sm:$0xc0]
      %v1230 = vor.u32 %v1228, %v1229
      %1231 = vset.pattern.permute.xlu0 20
      %1232 = vperm.xlu0 %1231, %v661
      %v1233 = vpop.permute.xlu0 %1232
      %v1235 = vmul.f32 %v1233, %v1230
      %v1236 = vadd.f32 %v1223, %v1235
      %v1237 = vld [vmem:[%s823] ss:$16 sm:$0x3]
      %v1238 = vld [vmem:[%s823] ss:$16 sm:$0xc]
      %v1239 = vor.u32 %v1237, %v1238
      %v1240 = vld [vmem:[%s823] ss:$16 sm:$0x30]
      %v1241 = vor.u32 %v1239, %v1240
      %v1242 = vld [vmem:[%s823] ss:$16 sm:$0xc0]
      %v1243 = vor.u32 %v1241, %v1242
      %1244 = vset.pattern.permute.xlu0 21
      %1245 = vperm.xlu0 %1244, %v661
      %v1246 = vpop.permute.xlu0 %1245
      %v1248 = vmul.f32 %v1246, %v1243
      %v1249 = vadd.f32 %v1236, %v1248
      %v1250 = vld [vmem:[%s845] ss:$16 sm:$0x3]
      %v1251 = vld [vmem:[%s845] ss:$16 sm:$0xc]
      %v1252 = vor.u32 %v1250, %v1251
      %v1253 = vld [vmem:[%s845] ss:$16 sm:$0x30]
      %v1254 = vor.u32 %v1252, %v1253
      %v1255 = vld [vmem:[%s845] ss:$16 sm:$0xc0]
      %v1256 = vor.u32 %v1254, %v1255
      %1257 = vset.pattern.permute.xlu0 22
      %1258 = vperm.xlu0 %1257, %v661
      %v1259 = vpop.permute.xlu0 %1258
      %v1261 = vmul.f32 %v1259, %v1256
      %v1262 = vadd.f32 %v1249, %v1261
      %v1263 = vld [vmem:[%s867] ss:$16 sm:$0x3]
      %v1264 = vld [vmem:[%s867] ss:$16 sm:$0xc]
      %v1265 = vor.u32 %v1263, %v1264
      %v1266 = vld [vmem:[%s867] ss:$16 sm:$0x30]
      %v1267 = vor.u32 %v1265, %v1266
      %v1268 = vld [vmem:[%s867] ss:$16 sm:$0xc0]
      %v1269 = vor.u32 %v1267, %v1268
      %1270 = vset.pattern.permute.xlu0 23
      %1271 = vperm.xlu0 %1270, %v661
      %v1272 = vpop.permute.xlu0 %1271
      %v1274 = vmul.f32 %v1272, %v1269
      %v1275 = vadd.f32 %v1262, %v1274
      %v1276 = vld [vmem:[%s889] ss:$16 sm:$0x3]
      %v1277 = vld [vmem:[%s889] ss:$16 sm:$0xc]
      %v1278 = vor.u32 %v1276, %v1277
      %v1279 = vld [vmem:[%s889] ss:$16 sm:$0x30]
      %v1280 = vor.u32 %v1278, %v1279
      %v1281 = vld [vmem:[%s889] ss:$16 sm:$0xc0]
      %v1282 = vor.u32 %v1280, %v1281
      %1283 = vset.pattern.permute.xlu0 24
      %1284 = vperm.xlu0 %1283, %v661
      %v1285 = vpop.permute.xlu0 %1284
      %v1287 = vmul.f32 %v1285, %v1282
      %v1288 = vadd.f32 %v1275, %v1287
      %v1289 = vld [vmem:[%s911] ss:$16 sm:$0x3]
      %v1290 = vld [vmem:[%s911] ss:$16 sm:$0xc]
      %v1291 = vor.u32 %v1289, %v1290
      %v1292 = vld [vmem:[%s911] ss:$16 sm:$0x30]
      %v1293 = vor.u32 %v1291, %v1292
      %v1294 = vld [vmem:[%s911] ss:$16 sm:$0xc0]
      %v1295 = vor.u32 %v1293, %v1294
      %1296 = vset.pattern.permute.xlu0 25
      %1297 = vperm.xlu0 %1296, %v661
      %v1298 = vpop.permute.xlu0 %1297
      %v1300 = vmul.f32 %v1298, %v1295
      %v1301 = vadd.f32 %v1288, %v1300
      %v1302 = vld [vmem:[%s933] ss:$16 sm:$0x3]
      %v1303 = vld [vmem:[%s933] ss:$16 sm:$0xc]
      %v1304 = vor.u32 %v1302, %v1303
      %v1305 = vld [vmem:[%s933] ss:$16 sm:$0x30]
      %v1306 = vor.u32 %v1304, %v1305
      %v1307 = vld [vmem:[%s933] ss:$16 sm:$0xc0]
      %v1308 = vor.u32 %v1306, %v1307
      %1309 = vset.pattern.permute.xlu0 26
      %1310 = vperm.xlu0 %1309, %v661
      %v1311 = vpop.permute.xlu0 %1310
      %v1313 = vmul.f32 %v1311, %v1308
      %v1314 = vadd.f32 %v1301, %v1313
      %v1315 = vld [vmem:[%s955] ss:$16 sm:$0x3]
      %v1316 = vld [vmem:[%s955] ss:$16 sm:$0xc]
      %v1317 = vor.u32 %v1315, %v1316
      %v1318 = vld [vmem:[%s955] ss:$16 sm:$0x30]
      %v1319 = vor.u32 %v1317, %v1318
      %v1320 = vld [vmem:[%s955] ss:$16 sm:$0xc0]
      %v1321 = vor.u32 %v1319, %v1320
      %1322 = vset.pattern.permute.xlu0 27
      %1323 = vperm.xlu0 %1322, %v661
      %v1324 = vpop.permute.xlu0 %1323
      %v1326 = vmul.f32 %v1324, %v1321
      %v1327 = vadd.f32 %v1314, %v1326
      %v1328 = vld [vmem:[%s977] ss:$16 sm:$0x3]
      %v1329 = vld [vmem:[%s977] ss:$16 sm:$0xc]
      %v1330 = vor.u32 %v1328, %v1329
      %v1331 = vld [vmem:[%s977] ss:$16 sm:$0x30]
      %v1332 = vor.u32 %v1330, %v1331
      %v1333 = vld [vmem:[%s977] ss:$16 sm:$0xc0]
      %v1334 = vor.u32 %v1332, %v1333
      %1335 = vset.pattern.permute.xlu0 28
      %1336 = vperm.xlu0 %1335, %v661
      %v1337 = vpop.permute.xlu0 %1336
      %v1339 = vmul.f32 %v1337, %v1334
      %v1340 = vadd.f32 %v1327, %v1339
      %v1341 = vld [vmem:[%s999] ss:$16 sm:$0x3]
      %v1342 = vld [vmem:[%s999] ss:$16 sm:$0xc]
      %v1343 = vor.u32 %v1341, %v1342
      %v1344 = vld [vmem:[%s999] ss:$16 sm:$0x30]
      %v1345 = vor.u32 %v1343, %v1344
      %v1346 = vld [vmem:[%s999] ss:$16 sm:$0xc0]
      %v1347 = vor.u32 %v1345, %v1346
      %1348 = vset.pattern.permute.xlu0 29
      %1349 = vperm.xlu0 %1348, %v661
      %v1350 = vpop.permute.xlu0 %1349
      %v1352 = vmul.f32 %v1350, %v1347
      %v1353 = vadd.f32 %v1340, %v1352
      %v1354 = vld [vmem:[%s1021] ss:$16 sm:$0x3]
      %v1355 = vld [vmem:[%s1021] ss:$16 sm:$0xc]
      %v1356 = vor.u32 %v1354, %v1355
      %v1357 = vld [vmem:[%s1021] ss:$16 sm:$0x30]
      %v1358 = vor.u32 %v1356, %v1357
      %v1359 = vld [vmem:[%s1021] ss:$16 sm:$0xc0]
      %v1360 = vor.u32 %v1358, %v1359
      %1361 = vset.pattern.permute.xlu0 30
      %1362 = vperm.xlu0 %1361, %v661
      %v1363 = vpop.permute.xlu0 %1362
      %v1365 = vmul.f32 %v1363, %v1360
      %v1366 = vadd.f32 %v1353, %v1365
      %v1367 = vld [vmem:[%s1043] ss:$16 sm:$0x3]
      %v1368 = vld [vmem:[%s1043] ss:$16 sm:$0xc]
      %v1369 = vor.u32 %v1367, %v1368
      %v1370 = vld [vmem:[%s1043] ss:$16 sm:$0x30]
      %v1371 = vor.u32 %v1369, %v1370
      %v1372 = vld [vmem:[%s1043] ss:$16 sm:$0xc0]
      %v1373 = vor.u32 %v1371, %v1372
      %1374 = vset.pattern.permute.xlu0 31
      %1375 = vperm.xlu0 %1374, %v661
      %v1376 = vpop.permute.xlu0 %1375
      %v1378 = vmul.f32 %v1376, %v1373
      %v1379 = vadd.f32 %v1366, %v1378
      %v1380 = vld [vmem:[%s1065] ss:$16 sm:$0x3]
      %v1381 = vld [vmem:[%s1065] ss:$16 sm:$0xc]
      %v1382 = vor.u32 %v1380, %v1381
      %v1383 = vld [vmem:[%s1065] ss:$16 sm:$0x30]
      %v1384 = vor.u32 %v1382, %v1383
      %v1385 = vld [vmem:[%s1065] ss:$16 sm:$0xc0]
      %v1386 = vor.u32 %v1384, %v1385
      %1387 = vset.pattern.permute.xlu0 32
      %1388 = vperm.xlu0 %1387, %v661
      %v1389 = vpop.permute.xlu0 %1388
      %v1391 = vmul.f32 %v1389, %v1386
      %v1392 = vadd.f32 %v1379, %v1391
      %v1393 = vld [vmem:[%s1087] ss:$16 sm:$0x3]
      %v1394 = vld [vmem:[%s1087] ss:$16 sm:$0xc]
      %v1395 = vor.u32 %v1393, %v1394
      %v1396 = vld [vmem:[%s1087] ss:$16 sm:$0x30]
      %v1397 = vor.u32 %v1395, %v1396
      %v1398 = vld [vmem:[%s1087] ss:$16 sm:$0xc0]
      %v1399 = vor.u32 %v1397, %v1398
      %1400 = vset.pattern.permute.xlu0 33
      %1401 = vperm.xlu0 %1400, %v661
      %v1402 = vpop.permute.xlu0 %1401
      %v1404 = vmul.f32 %v1402, %v1399
      %v1405 = vadd.f32 %v1392, %v1404
      %v1406 = vxor.u32 %v512, 2147483648
      %v1407 = vmul.f32 %v1406, 1.442695
      %v1408 = vpow.pop %v1407
      %v1409 = vadd.f32 %v1408, 1.0
      %v1410 = vrcp.pop %v1409
      %v1411 = vmul.f32 1.0, %v1410
      %v1412 = vmul.f32 %v512, %v1411
      %1414 = vrot.lane.b32.xlu0 %v1412, 64
      %v1415 = vpop.permute.xlu0 %1414
      %v1417 = vmul.f32 %v1405, %v1415
      %v1418 = vpack.c.bf16 %v1417, %v1417
      %v1419 = vld [vmem:[%s9] sm:$0xf]
      %v1420 = vld [vmem:[%s9 + $0x4] sm:$0xf]
      %v1421 = vld [vmem:[%s9 + $0x8] sm:$0xf]
      %v1422 = vld [vmem:[%s9 + $0xc] sm:$0xf]
      %v1423 = vld [vmem:[%s9 + $0x10] sm:$0xf]
      %v1424 = vld [vmem:[%s9 + $0x14] sm:$0xf]
      %v1425 = vld [vmem:[%s9 + $0x18] sm:$0xf]
      %v1426 = vld [vmem:[%s9 + $0x1c] sm:$0xf]
      %v1435 = vunpack.c.l.b16 %v1419
      %v1436 = vunpack.c.l.b16 %v1420
      %v1437 = vunpack.c.l.b16 %v1421
      %v1438 = vunpack.c.l.b16 %v1422
      %v1439 = vunpack.c.l.b16 %v1423
      %v1440 = vunpack.c.l.b16 %v1424
      %v1441 = vunpack.c.l.b16 %v1425
      %v1442 = vunpack.c.l.b16 %v1426
      %v1443 = vpack.c.b16 %v1436, %v1435
      %v1444 = vpack.c.b16 %v1438, %v1437
      %v1445 = vpack.c.b16 %v1440, %v1439
      %v1446 = vpack.c.b16 %v1442, %v1441
      %v1452 = vsel %vm622, %v1418, 0
      %1454 = vmatprep.subr.bf16.mxu0 0
      %1455 = vmatpush1.bf16.msra.mxu0 %v1443
      %1456 = vmatprep.subr.bf16.mxu0 0
      %1457 = vmatpush1.bf16.msra.mxu0 %v1444
      %1458 = vmatprep.subr.bf16.mxu0 0
      %1459 = vmatpush1.bf16.msra.mxu0 %v1445
      %1460 = vmatprep.subr.bf16.mxu0 0
      %1461 = vmatpush1.bf16.msra.mxu0 %v1446
      %1462 = vmatprep.subr.bf16.mxu0 0
      %1463 = vmatpush1.bf16.msra.mxu0 0
      %1464 = vmatprep.subr.bf16.mxu0 0
      %1465 = vmatpush1.bf16.msra.mxu0 0
      %1466 = vmatprep.subr.bf16.mxu0 0
      %1467 = vmatpush1.bf16.msra.mxu0 0
      %1468 = vmatprep.subr.bf16.mxu0 0
      %1469 = vmatpush1.bf16.msra.mxu0 0
      %1470 = vmatprep.subr.bf16.mxu0 0
      %1471 = vmatpush1.bf16.msra.mxu0 0
      %1472 = vmatprep.subr.bf16.mxu0 0
      %1473 = vmatpush1.bf16.msra.mxu0 0
      %1474 = vmatprep.subr.bf16.mxu0 0
      %1475 = vmatpush1.bf16.msra.mxu0 0
      %1476 = vmatprep.subr.bf16.mxu0 0
      %1477 = vmatpush1.bf16.msra.mxu0 0
      %1478 = vmatprep.subr.bf16.mxu0 0
      %1479 = vmatpush1.bf16.msra.mxu0 0
      %1480 = vmatprep.subr.bf16.mxu0 0
      %1481 = vmatpush1.bf16.msra.mxu0 0
      %1482 = vmatprep.subr.bf16.mxu0 0
      %1483 = vmatpush1.bf16.msra.mxu0 0
      %1484 = vmatprep.subr.bf16.mxu0 0
      %1485 = vmatpush1.bf16.msra.mxu0 0
      %1486 = vmatprep.mubr.bf16.mxu0 0
      %1487 = vmatmul.mubr.bf16.gmra.mrb[0].mxu0 %v1452
      %v1488 = vpop.f32.mrb[0].mxu0
      %v1489 = vadd.f32 %v455, %v1488
      %v1490 = vpop.f32.mrb[0].mxu0
      %v1491 = vpop.f32.mrb[0].mxu0
      %v1492 = vpop.f32.mrb[0].mxu0
      %1493 = vdwg.mxu0
      %v1494 = vsel %vm473, %v1489, 0.0
      %1495 = vadd.xlane.f32.xlu0 %v1494
      %v1496 = vpop.xlane.xlu0 %1495
      %v1497 = vrcp.pop 32.0
      %v1498 = vmul.f32 %v1496, %v1497
      %v1499 = vsub.f32 %v1489, %v1498
      %v1500 = vmul.f32 %v1499, %v1499
      %v1501 = vsel %vm473, %v1500, 0.0
      %1502 = vadd.xlane.f32.xlu0 %v1501
      %v1503 = vpop.xlane.xlu0 %1502
      %v1504 = vmul.f32 %v1503, %v1497
      %v1505 = vadd.f32 %v1504, 1e-05
      %v1506 = vrsqrt.pop %v1505
      %v1507 = vmul.f32 %v1499, %v1506
      %v1508 = vld [vmem:[%s10] sm:$0x1]
      %v1510 = vlaneseq
      %v1511 = vshrl.u32 %v1510, 7
      %v1512 = vsub.s32 0, %v1511
      %v1513 = vrot.slane %v1508, %v1512
      %v1515 = vmul.f32 %v1507, %v1513
      %v1516 = vld [vmem:[%s11] sm:$0x1]
      %v1518 = vlaneseq
      %v1519 = vshrl.u32 %v1518, 7
      %v1520 = vsub.s32 0, %v1519
      %v1521 = vrot.slane %v1516, %v1520
      %v1523 = vadd.f32 %v1515, %v1521
      %1524 = vst.msk [vmem:[%s444] sm:$0xff] %vm473, %v1523
      %p1525 = scmp.lt.s32.totalorder %s27, 1
      %s1526 = scalar_select %p1525, %s27, 1
      %p1527 = scmp.lt.s32.totalorder %s28, 1
      %s1528 = scalar_select %p1527, %s28, 1
      %s1529 = smul.addr %s1526, 2
      %s1530 = sadd.s32 %s1528, %s1529
      %s1531 = smul.addr %s1530, 8
      %s1532 = scalar_lea.vmem %s12, %s1531
      // Predicated region
      $region73: #{bimamba_encoder_layer.4} parent=67 // pred_check
        %p1533 = pneg %p314
      $region74: #{bimamba_encoder_layer.4} parent=67 // pred_check_branch
        %1535 = sbr.rel (%p1533) target = $region76
      $region75: #{bimamba_encoder_layer.4} parent=67 // pred_region
        _
      $region76: #{bimamba_encoder_layer.4} parent=67 // pred_fallthru
        _
    $region68: #{bimamba_encoder_layer.4} parent=5 // pred_fallthru
      _
    %p1536 = scmp.le.s32.totalorder 2, %s18
    // Predicated region
    $region77: #{bimamba_encoder_layer.4} parent=5 // pred_check
      %p1537 = pneg %p1536
    $region78: #{bimamba_encoder_layer.4} parent=5 // pred_check_branch
      %1539 = sbr.rel (%p1537) target = $region80
    $region79: #{bimamba_encoder_layer.4} parent=5 // pred_region
      %s1540 = ssub.s32 %s18, 2
      // Predicated region
      $region81: #{bimamba_encoder_layer.4} parent=79 // pred_check
        %p1541 = pneg %p320
      $region82: #{bimamba_encoder_layer.4} parent=79 // pred_check_branch
        %1543 = sbr.rel (%p1541) target = $region84
      $region83: #{bimamba_encoder_layer.4} parent=79 // pred_region
        %p1544 = scmp.lt.s32.totalorder %s29, 1
        %s1545 = scalar_select %p1544, %s29, 1
        %p1546 = scmp.lt.s32.totalorder %s30, 1
        %s1547 = scalar_select %p1546, %s30, 1
        %s1548 = smul.addr %s1545, 2
        %s1549 = sadd.s32 %s1547, %s1548
        %s1550 = smul.addr %s1549, 8
        %s1551 = scalar_lea.vmem %s12, %s1550
      $region84: #{bimamba_encoder_layer.4} parent=79 // pred_fallthru
        _
    $region80: #{bimamba_encoder_layer.4} parent=5 // pred_fallthru
      _
  $region6: #{bimamba_encoder_layer.4} parent=0 // loop_footer
    %s22 = sadd.s32 1, %s18
  $region7: #{bimamba_encoder_layer.4} parent=0 // loop_footer_branch
    %17 = sbr.rel target = $region3
  $region8: #{bimamba_encoder_layer.4} parent=0 // loop_exit
    _

// kernel: bimamba_encoder_layer.5
$region0: #{bimamba_encoder_layer.5}
  #allocation0 [shape = 'u32[]', space=smem, size = 0x4, offset = 0x4, fixed_abs, tag = 'smem constant byte address 0x4 - core index']
  #allocation1 [shape = 'u32[144,128]{1,0:T(1,128)}', space=vmem, size = 0x12000, scoped, tag = 'internal scratch']
  #allocation2 [shape = 'f32[128,64]{1,0:T(8,128)}', space=vmem, size = 0x10000, scoped, tag = 'scratch operand']
  #allocation3 [shape = 'f32[128,64]{1,0:T(8,128)}', space=vmem, size = 0x10000, scoped, tag = 'scratch operand']
  #allocation4 [shape = 'f32[16,64]{1,0:T(8,128)}', space=vmem, size = 0x2000, scoped, tag = 'scratch operand']
  #allocation5 [shape = 'f32[3,64]{1,0:T(4,128)}', space=vmem, size = 0x800, scoped, tag = 'scratch operand']
  %s0 = inlined_call_operand.vmem [shape: f32[2,16,32], index: 0, kind: input, shape index: {}]
  %s1 = inlined_call_operand.vmem [shape: bf16[32,128], index: 1, kind: input, shape index: {}]
  %s2 = inlined_call_operand.vmem [shape: f32[4,64], index: 2, kind: input, shape index: {}]
  %s3 = inlined_call_operand.vmem [shape: f32[1,64], index: 3, kind: input, shape index: {}]
  %s4 = inlined_call_operand.vmem [shape: bf16[64,34], index: 4, kind: input, shape index: {}]
  %s5 = inlined_call_operand.vmem [shape: bf16[2,64], index: 5, kind: input, shape index: {}]
  %s6 = inlined_call_operand.vmem [shape: f32[1,64], index: 6, kind: input, shape index: {}]
  %s7 = inlined_call_operand.vmem [shape: f32[16,64], index: 7, kind: input, shape index: {}]
  %s8 = inlined_call_operand.vmem [shape: f32[1,64], index: 8, kind: input, shape index: {}]
  %s9 = inlined_call_operand.vmem [shape: bf16[64,32], index: 9, kind: input, shape index: {}]
  %s10 = inlined_call_operand.vmem [shape: f32[1,32], index: 10, kind: input, shape index: {}]
  %s11 = inlined_call_operand.vmem [shape: f32[1,32], index: 11, kind: input, shape index: {}]
  %s12 = inlined_call_operand.vmem [shape: f32[2,16,32], index: 12, kind: output, shape index: {}]
  %s13 = sld [smem:[#allocation0]]
  $region85: #{bimamba_encoder_layer.5} parent=0
    _
  %s15 = ssub.s32 1, %s13
  %s16 = scalar_select 0, %s15, %s13
  loop: start=0, step=1, limit=6
  $region2: #{bimamba_encoder_layer.5} parent=0 // loop_pre_header
    _
  $region3: #{bimamba_encoder_layer.5} parent=0 // loop_header
    %s18 = sphi 0, %s22
    %p19 = scmp.ge.s32.totalorder %s18, 6
    %s25 = sphi 0, %s37
    %s26 = sphi 0, %s33
    %s27 = sphi 0, %s25
    %s28 = sphi 0, %s26
    %s29 = sphi 0, %s27
    %s30 = sphi 0, %s28
    %s44 = sphi 0, %s46
    %s47 = sphi 0, %s44
    %s48 = sphi 0, %s47
    %s64 = sphi 0, %s48
    %s68 = sphi 0, %s68
    %s70 = sphi 0, %s68
    %s71 = sphi 0, %s70
    %s85 = sphi 0, %s71
    %s89 = sphi 0, %s89
    %s91 = sphi 0, %s89
    %s92 = sphi 0, %s91
    %s106 = sphi 0, %s92
    %s110 = sphi 0, %s110
    %s112 = sphi 0, %s110
    %s113 = sphi 0, %s112
    %s127 = sphi 0, %s113
    %s131 = sphi 0, %s131
    %s133 = sphi 0, %s131
    %s134 = sphi 0, %s133
    %s148 = sphi 0, %s134
    %s152 = sphi 0, %s152
    %s154 = sphi 0, %s152
    %s155 = sphi 0, %s154
    %s169 = sphi 0, %s155
    %s173 = sphi 0, %s173
    %s175 = sphi 0, %s173
    %s176 = sphi 0, %s175
    %s190 = sphi 0, %s176
    %s194 = sphi 0, %s194
    %s196 = sphi 0, %s194
    %s197 = sphi 0, %s196
    %s211 = sphi 0, %s197
    %s215 = sphi 0, %s215
    %s217 = sphi 0, %s215
    %s218 = sphi 0, %s217
    %s232 = sphi 0, %s218
    %s236 = sphi 0, %s236
    %s238 = sphi 0, %s236
    %s239 = sphi 0, %s238
    %s253 = sphi 0, %s239
    %s257 = sphi 0, %s257
    %s259 = sphi 0, %s257
    %s260 = sphi 0, %s259
    %s274 = sphi 0, %s260
    %s278 = sphi 0, %s278
    %s280 = sphi 0, %s278
    %s281 = sphi 0, %s280
    %s295 = sphi 0, %s281
    %s305 = sphi 0, %s307
    %s308 = sphi 0, %s305
    %s309 = sphi 0, %s308
    %s325 = sphi 0, %s309
  $region4: #{bimamba_encoder_layer.5} parent=0 // loop_header_branch
    %21 = sbr.rel (%p19) target = $region8
  $region5: #{bimamba_encoder_layer.5} parent=0 // loop_body
    %s23 = ssub.s32 %s18, 1
    %s24 = ssub.s32 %s18, 2
    %s31 = sadd.s32 1, %s26
    %p32 = scmp.ge.s32.totalorder %s31, 2
    %s33 = scalar_select %p32, 0, %s31
    %s34 = sadd.s32 1, %s25
    %s35 = scalar_select %p32, %s34, %s25
    %p36 = scmp.ge.s32.totalorder %s35, 2
    %s37 = scalar_select %p36, 0, %s35
    %s38 = ssub.s32 1, %s26
    %s39 = ssub.s32 1, %s33
    %s40 = ssub.s32 %s25, %s37
    %s41 = ssub.s32 %s38, %s39
    %s42 = sor.u32 %s40, %s41
    %p43 = scmp.eq.s32.totalorder %s42, 0
    %s45 = sadd.s32 %s44, 1
    %s46 = scalar_select %p43, %s44, %s45
    %p49 = pneg %p43
    %p50 = scmp.eq.s32.totalorder %s18, 3
    %p51 = por %p49, %p50
    %p52 = scmp.ne.s32.totalorder %s44, %s47
    %p53 = scmp.eq.s32.totalorder %s18, 0
    %p54 = por %p52, %p53
    %p55 = scmp.ne.s32.totalorder %s44, %s47
    %p56 = scmp.eq.s32.totalorder %s23, 3
    %p57 = por %p55, %p56
    %p58 = scmp.ne.s32.totalorder %s47, %s48
    %p59 = scmp.eq.s32.totalorder %s23, 0
    %p60 = por %p58, %p59
    %p61 = scmp.ne.s32.totalorder %s47, %s48
    %p62 = scmp.eq.s32.totalorder %s24, 3
    %p63 = por %p61, %p62
    %p65 = scmp.ne.s32.totalorder %s48, %s64
    %p66 = scmp.eq.s32.totalorder %s24, 0
    %p67 = por %p65, %p66
    %s69 = sadd.s32 %s68, 1
    %p72 = scmp.eq.s32.totalorder %s18, 3
    %p73 = scmp.ne.s32.totalorder %s68, %s70
    %p74 = scmp.eq.s32.totalorder %s18, 0
    %p75 = por %p73, %p74
    %p76 = scmp.ne.s32.totalorder %s68, %s70
    %p77 = scmp.eq.s32.totalorder %s23, 3
    %p78 = por %p76, %p77
    %p79 = scmp.ne.s32.totalorder %s70, %s71
    %p80 = scmp.eq.s32.totalorder %s23, 0
    %p81 = por %p79, %p80
    %p82 = scmp.ne.s32.totalorder %s70, %s71
    %p83 = scmp.eq.s32.totalorder %s24, 3
    %p84 = por %p82, %p83
    %p86 = scmp.ne.s32.totalorder %s71, %s85
    %p87 = scmp.eq.s32.totalorder %s24, 0
    %p88 = por %p86, %p87
    %s90 = sadd.s32 %s89, 1
    %p93 = scmp.eq.s32.totalorder %s18, 3
    %p94 = scmp.ne.s32.totalorder %s89, %s91
    %p95 = scmp.eq.s32.totalorder %s18, 0
    %p96 = por %p94, %p95
    %p97 = scmp.ne.s32.totalorder %s89, %s91
    %p98 = scmp.eq.s32.totalorder %s23, 3
    %p99 = por %p97, %p98
    %p100 = scmp.ne.s32.totalorder %s91, %s92
    %p101 = scmp.eq.s32.totalorder %s23, 0
    %p102 = por %p100, %p101
    %p103 = scmp.ne.s32.totalorder %s91, %s92
    %p104 = scmp.eq.s32.totalorder %s24, 3
    %p105 = por %p103, %p104
    %p107 = scmp.ne.s32.totalorder %s92, %s106
    %p108 = scmp.eq.s32.totalorder %s24, 0
    %p109 = por %p107, %p108
    %s111 = sadd.s32 %s110, 1
    %p114 = scmp.eq.s32.totalorder %s18, 3
    %p115 = scmp.ne.s32.totalorder %s110, %s112
    %p116 = scmp.eq.s32.totalorder %s18, 0
    %p117 = por %p115, %p116
    %p118 = scmp.ne.s32.totalorder %s110, %s112
    %p119 = scmp.eq.s32.totalorder %s23, 3
    %p120 = por %p118, %p119
    %p121 = scmp.ne.s32.totalorder %s112, %s113
    %p122 = scmp.eq.s32.totalorder %s23, 0
    %p123 = por %p121, %p122
    %p124 = scmp.ne.s32.totalorder %s112, %s113
    %p125 = scmp.eq.s32.totalorder %s24, 3
    %p126 = por %p124, %p125
    %p128 = scmp.ne.s32.totalorder %s113, %s127
    %p129 = scmp.eq.s32.totalorder %s24, 0
    %p130 = por %p128, %p129
    %s132 = sadd.s32 %s131, 1
    %p135 = scmp.eq.s32.totalorder %s18, 3
    %p136 = scmp.ne.s32.totalorder %s131, %s133
    %p137 = scmp.eq.s32.totalorder %s18, 0
    %p138 = por %p136, %p137
    %p139 = scmp.ne.s32.totalorder %s131, %s133
    %p140 = scmp.eq.s32.totalorder %s23, 3
    %p141 = por %p139, %p140
    %p142 = scmp.ne.s32.totalorder %s133, %s134
    %p143 = scmp.eq.s32.totalorder %s23, 0
    %p144 = por %p142, %p143
    %p145 = scmp.ne.s32.totalorder %s133, %s134
    %p146 = scmp.eq.s32.totalorder %s24, 3
    %p147 = por %p145, %p146
    %p149 = scmp.ne.s32.totalorder %s134, %s148
    %p150 = scmp.eq.s32.totalorder %s24, 0
    %p151 = por %p149, %p150
    %s153 = sadd.s32 %s152, 1
    %p156 = scmp.eq.s32.totalorder %s18, 3
    %p157 = scmp.ne.s32.totalorder %s152, %s154
    %p158 = scmp.eq.s32.totalorder %s18, 0
    %p159 = por %p157, %p158
    %p160 = scmp.ne.s32.totalorder %s152, %s154
    %p161 = scmp.eq.s32.totalorder %s23, 3
    %p162 = por %p160, %p161
    %p163 = scmp.ne.s32.totalorder %s154, %s155
    %p164 = scmp.eq.s32.totalorder %s23, 0
    %p165 = por %p163, %p164
    %p166 = scmp.ne.s32.totalorder %s154, %s155
    %p167 = scmp.eq.s32.totalorder %s24, 3
    %p168 = por %p166, %p167
    %p170 = scmp.ne.s32.totalorder %s155, %s169
    %p171 = scmp.eq.s32.totalorder %s24, 0
    %p172 = por %p170, %p171
    %s174 = sadd.s32 %s173, 1
    %p177 = scmp.eq.s32.totalorder %s18, 3
    %p178 = scmp.ne.s32.totalorder %s173, %s175
    %p179 = scmp.eq.s32.totalorder %s18, 0
    %p180 = por %p178, %p179
    %p181 = scmp.ne.s32.totalorder %s173, %s175
    %p182 = scmp.eq.s32.totalorder %s23, 3
    %p183 = por %p181, %p182
    %p184 = scmp.ne.s32.totalorder %s175, %s176
    %p185 = scmp.eq.s32.totalorder %s23, 0
    %p186 = por %p184, %p185
    %p187 = scmp.ne.s32.totalorder %s175, %s176
    %p188 = scmp.eq.s32.totalorder %s24, 3
    %p189 = por %p187, %p188
    %p191 = scmp.ne.s32.totalorder %s176, %s190
    %p192 = scmp.eq.s32.totalorder %s24, 0
    %p193 = por %p191, %p192
    %s195 = sadd.s32 %s194, 1
    %p198 = scmp.eq.s32.totalorder %s18, 3
    %p199 = scmp.ne.s32.totalorder %s194, %s196
    %p200 = scmp.eq.s32.totalorder %s18, 0
    %p201 = por %p199, %p200
    %p202 = scmp.ne.s32.totalorder %s194, %s196
    %p203 = scmp.eq.s32.totalorder %s23, 3
    %p204 = por %p202, %p203
    %p205 = scmp.ne.s32.totalorder %s196, %s197
    %p206 = scmp.eq.s32.totalorder %s23, 0
    %p207 = por %p205, %p206
    %p208 = scmp.ne.s32.totalorder %s196, %s197
    %p209 = scmp.eq.s32.totalorder %s24, 3
    %p210 = por %p208, %p209
    %p212 = scmp.ne.s32.totalorder %s197, %s211
    %p213 = scmp.eq.s32.totalorder %s24, 0
    %p214 = por %p212, %p213
    %s216 = sadd.s32 %s215, 1
    %p219 = scmp.eq.s32.totalorder %s18, 3
    %p220 = scmp.ne.s32.totalorder %s215, %s217
    %p221 = scmp.eq.s32.totalorder %s18, 0
    %p222 = por %p220, %p221
    %p223 = scmp.ne.s32.totalorder %s215, %s217
    %p224 = scmp.eq.s32.totalorder %s23, 3
    %p225 = por %p223, %p224
    %p226 = scmp.ne.s32.totalorder %s217, %s218
    %p227 = scmp.eq.s32.totalorder %s23, 0
    %p228 = por %p226, %p227
    %p229 = scmp.ne.s32.totalorder %s217, %s218
    %p230 = scmp.eq.s32.totalorder %s24, 3
    %p231 = por %p229, %p230
    %p233 = scmp.ne.s32.totalorder %s218, %s232
    %p234 = scmp.eq.s32.totalorder %s24, 0
    %p235 = por %p233, %p234
    %s237 = sadd.s32 %s236, 1
    %p240 = scmp.eq.s32.totalorder %s18, 3
    %p241 = scmp.ne.s32.totalorder %s236, %s238
    %p242 = scmp.eq.s32.totalorder %s18, 0
    %p243 = por %p241, %p242
    %p244 = scmp.ne.s32.totalorder %s236, %s238
    %p245 = scmp.eq.s32.totalorder %s23, 3
    %p246 = por %p244, %p245
    %p247 = scmp.ne.s32.totalorder %s238, %s239
    %p248 = scmp.eq.s32.totalorder %s23, 0
    %p249 = por %p247, %p248
    %p250 = scmp.ne.s32.totalorder %s238, %s239
    %p251 = scmp.eq.s32.totalorder %s24, 3
    %p252 = por %p250, %p251
    %p254 = scmp.ne.s32.totalorder %s239, %s253
    %p255 = scmp.eq.s32.totalorder %s24, 0
    %p256 = por %p254, %p255
    %s258 = sadd.s32 %s257, 1
    %p261 = scmp.eq.s32.totalorder %s18, 3
    %p262 = scmp.ne.s32.totalorder %s257, %s259
    %p263 = scmp.eq.s32.totalorder %s18, 0
    %p264 = por %p262, %p263
    %p265 = scmp.ne.s32.totalorder %s257, %s259
    %p266 = scmp.eq.s32.totalorder %s23, 3
    %p267 = por %p265, %p266
    %p268 = scmp.ne.s32.totalorder %s259, %s260
    %p269 = scmp.eq.s32.totalorder %s23, 0
    %p270 = por %p268, %p269
    %p271 = scmp.ne.s32.totalorder %s259, %s260
    %p272 = scmp.eq.s32.totalorder %s24, 3
    %p273 = por %p271, %p272
    %p275 = scmp.ne.s32.totalorder %s260, %s274
    %p276 = scmp.eq.s32.totalorder %s24, 0
    %p277 = por %p275, %p276
    %s279 = sadd.s32 %s278, 1
    %p282 = scmp.eq.s32.totalorder %s18, 3
    %p283 = scmp.ne.s32.totalorder %s278, %s280
    %p284 = scmp.eq.s32.totalorder %s18, 0
    %p285 = por %p283, %p284
    %p286 = scmp.ne.s32.totalorder %s278, %s280
    %p287 = scmp.eq.s32.totalorder %s23, 3
    %p288 = por %p286, %p287
    %p289 = scmp.ne.s32.totalorder %s280, %s281
    %p290 = scmp.eq.s32.totalorder %s23, 0
    %p291 = por %p289, %p290
    %p292 = scmp.ne.s32.totalorder %s280, %s281
    %p293 = scmp.eq.s32.totalorder %s24, 3
    %p294 = por %p292, %p293
    %p296 = scmp.ne.s32.totalorder %s281, %s295
    %p297 = scmp.eq.s32.totalorder %s24, 0
    %p298 = por %p296, %p297
    %s299 = ssub.s32 1, %s26
    %s300 = ssub.s32 1, %s33
    %s301 = ssub.s32 %s25, %s37
    %s302 = ssub.s32 %s299, %s300
    %s303 = sor.u32 %s301, %s302
    %p304 = scmp.eq.s32.totalorder %s303, 0
    %s306 = sadd.s32 %s305, 1
    %s307 = scalar_select %p304, %s305, %s306
    %p310 = pneg %p304
    %p311 = scmp.eq.s32.totalorder %s18, 3
    %p312 = por %p310, %p311
    %p313 = scmp.ne.s32.totalorder %s305, %s308
    %p314 = scmp.eq.s32.totalorder %s18, 0
    %p315 = por %p313, %p314
    %p316 = scmp.ne.s32.totalorder %s305, %s308
    %p317 = scmp.eq.s32.totalorder %s23, 3
    %p318 = por %p316, %p317
    %p319 = scmp.ne.s32.totalorder %s308, %s309
    %p320 = scmp.eq.s32.totalorder %s23, 0
    %p321 = por %p319, %p320
    %p322 = scmp.ne.s32.totalorder %s308, %s309
    %p323 = scmp.eq.s32.totalorder %s24, 3
    %p324 = por %p322, %p323
    %p326 = scmp.ne.s32.totalorder %s309, %s325
    %p327 = scmp.eq.s32.totalorder %s24, 0
    %p328 = por %p326, %p327
    %p329 = scmp.le.s32.totalorder 1, %s18
    %p330 = scmp.lt.s32.totalorder %s18, 5
    %p331 = pnand %p329, %p330
    %p332 = pneg %p331
    // Predicated region
    $region9: #{bimamba_encoder_layer.5} parent=5 // pred_check
      _
    $region10: #{bimamba_encoder_layer.5} parent=5 // pred_check_branch
      %334 = sbr.rel (%p331) target = $region12
    $region11: #{bimamba_encoder_layer.5} parent=5 // pred_region
      %s335 = ssub.s32 %s18, 1
      // Predicated region
      $region13: #{bimamba_encoder_layer.5} parent=11 // pred_check
        %p336 = pneg %p81
      $region14: #{bimamba_encoder_layer.5} parent=11 // pred_check_branch
        %338 = sbr.rel (%p336) target = $region16
      $region15: #{bimamba_encoder_layer.5} parent=11 // pred_region
        _
      $region16: #{bimamba_encoder_layer.5} parent=11 // pred_fallthru
        _
      // Predicated region
      $region17: #{bimamba_encoder_layer.5} parent=11 // pred_check
        %p339 = pneg %p102
      $region18: #{bimamba_encoder_layer.5} parent=11 // pred_check_branch
        %341 = sbr.rel (%p339) target = $region20
      $region19: #{bimamba_encoder_layer.5} parent=11 // pred_region
        _
      $region20: #{bimamba_encoder_layer.5} parent=11 // pred_fallthru
        _
      // Predicated region
      $region21: #{bimamba_encoder_layer.5} parent=11 // pred_check
        %p342 = pneg %p123
      $region22: #{bimamba_encoder_layer.5} parent=11 // pred_check_branch
        %344 = sbr.rel (%p342) target = $region24
      $region23: #{bimamba_encoder_layer.5} parent=11 // pred_region
        _
      $region24: #{bimamba_encoder_layer.5} parent=11 // pred_fallthru
        _
      // Predicated region
      $region25: #{bimamba_encoder_layer.5} parent=11 // pred_check
        %p345 = pneg %p144
      $region26: #{bimamba_encoder_layer.5} parent=11 // pred_check_branch
        %347 = sbr.rel (%p345) target = $region28
      $region27: #{bimamba_encoder_layer.5} parent=11 // pred_region
        _
      $region28: #{bimamba_encoder_layer.5} parent=11 // pred_fallthru
        _
      // Predicated region
      $region29: #{bimamba_encoder_layer.5} parent=11 // pred_check
        %p348 = pneg %p165
      $region30: #{bimamba_encoder_layer.5} parent=11 // pred_check_branch
        %350 = sbr.rel (%p348) target = $region32
      $region31: #{bimamba_encoder_layer.5} parent=11 // pred_region
        _
      $region32: #{bimamba_encoder_layer.5} parent=11 // pred_fallthru
        _
      // Predicated region
      $region33: #{bimamba_encoder_layer.5} parent=11 // pred_check
        %p351 = pneg %p186
      $region34: #{bimamba_encoder_layer.5} parent=11 // pred_check_branch
        %353 = sbr.rel (%p351) target = $region36
      $region35: #{bimamba_encoder_layer.5} parent=11 // pred_region
        _
      $region36: #{bimamba_encoder_layer.5} parent=11 // pred_fallthru
        _
      // Predicated region
      $region37: #{bimamba_encoder_layer.5} parent=11 // pred_check
        %p354 = pneg %p207
      $region38: #{bimamba_encoder_layer.5} parent=11 // pred_check_branch
        %356 = sbr.rel (%p354) target = $region40
      $region39: #{bimamba_encoder_layer.5} parent=11 // pred_region
        _
      $region40: #{bimamba_encoder_layer.5} parent=11 // pred_fallthru
        _
      // Predicated region
      $region41: #{bimamba_encoder_layer.5} parent=11 // pred_check
        %p357 = pneg %p228
      $region42: #{bimamba_encoder_layer.5} parent=11 // pred_check_branch
        %359 = sbr.rel (%p357) target = $region44
      $region43: #{bimamba_encoder_layer.5} parent=11 // pred_region
        _
      $region44: #{bimamba_encoder_layer.5} parent=11 // pred_fallthru
        _
      // Predicated region
      $region45: #{bimamba_encoder_layer.5} parent=11 // pred_check
        %p360 = pneg %p249
      $region46: #{bimamba_encoder_layer.5} parent=11 // pred_check_branch
        %362 = sbr.rel (%p360) target = $region48
      $region47: #{bimamba_encoder_layer.5} parent=11 // pred_region
        _
      $region48: #{bimamba_encoder_layer.5} parent=11 // pred_fallthru
        _
      // Predicated region
      $region49: #{bimamba_encoder_layer.5} parent=11 // pred_check
        %p363 = pneg %p270
      $region50: #{bimamba_encoder_layer.5} parent=11 // pred_check_branch
        %365 = sbr.rel (%p363) target = $region52
      $region51: #{bimamba_encoder_layer.5} parent=11 // pred_region
        _
      $region52: #{bimamba_encoder_layer.5} parent=11 // pred_fallthru
        _
      // Predicated region
      $region53: #{bimamba_encoder_layer.5} parent=11 // pred_check
        %p366 = pneg %p291
      $region54: #{bimamba_encoder_layer.5} parent=11 // pred_check_branch
        %368 = sbr.rel (%p366) target = $region56
      $region55: #{bimamba_encoder_layer.5} parent=11 // pred_region
        _
      $region56: #{bimamba_encoder_layer.5} parent=11 // pred_fallthru
        _
    $region12: #{bimamba_encoder_layer.5} parent=5 // pred_fallthru
      _
    %p369 = scmp.lt.s32.totalorder %s18, 4
    // Predicated region
    $region57: #{bimamba_encoder_layer.5} parent=5 // pred_check
      %p370 = pneg %p369
    $region58: #{bimamba_encoder_layer.5} parent=5 // pred_check_branch
      %372 = sbr.rel (%p370) target = $region60
    $region59: #{bimamba_encoder_layer.5} parent=5 // pred_region
      // Predicated region
      $region61: #{bimamba_encoder_layer.5} parent=59 // pred_check
        %p373 = pneg %p54
      $region62: #{bimamba_encoder_layer.5} parent=59 // pred_check_branch
        %375 = sbr.rel (%p373) target = $region64
      $region63: #{bimamba_encoder_layer.5} parent=59 // pred_region
        %s376 = ssub.s32 1, %s26
        %p377 = scmp.lt.s32.totalorder %s25, 1
        %s378 = scalar_select %p377, %s25, 1
        %p379 = scmp.lt.s32.totalorder %s376, 1
        %s380 = scalar_select %p379, %s376, 1
        %s381 = smul.addr %s378, 2
        %s382 = sadd.s32 %s380, %s381
        %s383 = smul.addr %s382, 8
        %s384 = scalar_lea.vmem %s0, %s383
        %s385 = ssub.s32 1, %s26
      $region64: #{bimamba_encoder_layer.5} parent=59 // pred_fallthru
        _
    $region60: #{bimamba_encoder_layer.5} parent=5 // pred_fallthru
      _
    %p386 = scmp.le.s32.totalorder 1, %s18
    %p387 = scmp.lt.s32.totalorder %s18, 5
    %p388 = pnand %p386, %p387
    %p389 = pneg %p388
    // Predicated region
    $region65: #{bimamba_encoder_layer.5} parent=5 // pred_check
      _
    $region66: #{bimamba_encoder_layer.5} parent=5 // pred_check_branch
      %391 = sbr.rel (%p388) target = $region68
    $region67: #{bimamba_encoder_layer.5} parent=5 // pred_region
      %s392 = ssub.s32 %s18, 1
      %s393 = ssub.s32 1, %s28
      %p394 = scmp.lt.s32.totalorder %s27, 1
      %s395 = scalar_select %p394, %s27, 1
      %p396 = scmp.lt.s32.totalorder %s393, 1
      %s397 = scalar_select %p396, %s393, 1
      %s398 = smul.addr %s395, 2
      %s399 = sadd.s32 %s397, %s398
      %s400 = smul.addr %s399, 8
      %s401 = scalar_lea.vmem %s0, %s400
      %p402 = pneg %p60
      %p403 = pneg %p57
      %p404 = pneg %p81
      %p405 = pneg %p78
      %p406 = pneg %p102
      %p407 = pneg %p99
      %p408 = pneg %p123
      %p409 = pneg %p120
      %p410 = pneg %p144
      %p411 = pneg %p141
      %p412 = pneg %p165
      %p413 = pneg %p162
      %p414 = pneg %p186
      %p415 = pneg %p183
      %p416 = pneg %p207
      %p417 = pneg %p204
      %p418 = pneg %p228
      %p419 = pneg %p225
      %p420 = pneg %p249
      %p421 = pneg %p246
      %p422 = pneg %p270
      %p423 = pneg %p267
      %p424 = pneg %p291
      %p425 = pneg %p288
      %p426 = pneg %p321
      %p427 = pneg %p318
      %s428 = ssub.s32 1, %s28
      %p429 = scmp.lt.s32.totalorder %s27, 1
      %s430 = scalar_select %p429, %s27, 1
      %p431 = scmp.lt.s32.totalorder %s428, 1
      %s432 = scalar_select %p431, %s428, 1
      %s433 = smul.addr %s430, 2
      %s434 = sadd.s32 %s432, %s433
      %s435 = smul.addr %s434, 8
      %s436 = scalar_lea.vmem %s12, %s435
      %s437 = ssub.s32 1, %s28
      %p438 = scmp.lt.s32.totalorder %s27, 1
      %s439 = scalar_select %p438, %s27, 1
      %p440 = scmp.lt.s32.totalorder %s437, 1
      %s441 = scalar_select %p440, %s437, 1
      %s442 = smul.addr %s439, 2
      %s443 = sadd.s32 %s441, %s442
      %s444 = smul.addr %s443, 8
      %s445 = scalar_lea.vmem %s0, %s444
      %s446 = ssub.s32 1, %s28
      %s447 = ssub.s32 1, %s28
      %p448 = scmp.lt.s32.totalorder %s27, 1
      %s449 = scalar_select %p448, %s27, 1
      %p450 = scmp.lt.s32.totalorder %s447, 1
      %s451 = scalar_select %p450, %s447, 1
      %s452 = smul.addr %s449, 2
      %s453 = sadd.s32 %s451, %s452
      %s454 = smul.addr %s453, 8
      %s455 = scalar_lea.vmem %s12, %s454
      %s456 = ssub.s32 1, %s28
      %p458 = scmp.eq.s32.totalorder %s28, 0
      // Predicated region
      $region69: #{bimamba_encoder_layer.5} parent=67 // pred_check
        %p459 = pneg %p458
      $region70: #{bimamba_encoder_layer.5} parent=67 // pred_check_branch
        %461 = sbr.rel (%p459) target = $region72
      $region71: #{bimamba_encoder_layer.5} parent=67 // pred_region
        %vm462 = vcmask 523264
        %463 = vst.msk [vmem:[#allocation4] sm:$0xff] %vm462, 0.0
        %464 = vst.msk [vmem:[#allocation4 + $0x8] sm:$0xff] %vm462, 0.0
        %vm465 = vcmask 518144
        %466 = vst.msk [vmem:[#allocation5] sm:$0x7] %vm465, 0.0
      $region72: #{bimamba_encoder_layer.5} parent=67 // pred_fallthru
        _
      %v467 = vld [vmem:[%s445] sm:$0xff]
      %v468 = vpack.c.bf16 %v467, %v467
      %v469 = vld [vmem:[%s1] sm:$0xf]
      %v470 = vld [vmem:[%s1 + $0x4] sm:$0xf]
      %v471 = vld [vmem:[%s1 + $0x8] sm:$0xf]
      %v472 = vld [vmem:[%s1 + $0xc] sm:$0xf]
      %v477 = vunpack.c.l.b16 %v469
      %v478 = vunpack.c.l.b16 %v470
      %v479 = vunpack.c.l.b16 %v471
      %v480 = vunpack.c.l.b16 %v472
      %v481 = vpack.c.b16 %v478, %v477
      %v482 = vpack.c.b16 %v480, %v479
      %vm485 = vcmask 261120
      %v487 = vsel %vm485, %v468, 0
      %489 = vmatprep.subr.bf16.mxu0 0
      %490 = vmatpush1.bf16.msra.mxu0 %v481
      %491 = vmatprep.subr.bf16.mxu0 0
      %492 = vmatpush1.bf16.msra.mxu0 %v482
      %493 = vmatprep.subr.bf16.mxu0 0
      %494 = vmatpush1.bf16.msra.mxu0 0
      %495 = vmatprep.subr.bf16.mxu0 0
      %496 = vmatpush1.bf16.msra.mxu0 0
      %497 = vmatprep.subr.bf16.mxu0 0
      %498 = vmatpush1.bf16.msra.mxu0 0
      %499 = vmatprep.subr.bf16.mxu0 0
      %500 = vmatpush1.bf16.msra.mxu0 0
      %501 = vmatprep.subr.bf16.mxu0 0
      %502 = vmatpush1.bf16.msra.mxu0 0
      %503 = vmatprep.subr.bf16.mxu0 0
      %504 = vmatpush1.bf16.msra.mxu0 0
      %505 = vmatprep.subr.bf16.mxu0 0
      %506 = vmatpush1.bf16.msra.mxu0 0
      %507 = vmatprep.subr.bf16.mxu0 0
      %508 = vmatpush1.bf16.msra.mxu0 0
      %509 = vmatprep.subr.bf16.mxu0 0
      %510 = vmatpush1.bf16.msra.mxu0 0
      %511 = vmatprep.subr.bf16.mxu0 0
      %512 = vmatpush1.bf16.msra.mxu0 0
      %513 = vmatprep.subr.bf16.mxu0 0
      %514 = vmatpush1.bf16.msra.mxu0 0
      %515 = vmatprep.subr.bf16.mxu0 0
      %516 = vmatpush1.bf16.msra.mxu0 0
      %517 = vmatprep.subr.bf16.mxu0 0
      %518 = vmatpush1.bf16.msra.mxu0 0
      %519 = vmatprep.subr.bf16.mxu0 0
      %520 = vmatpush1.bf16.msra.mxu0 0
      %521 = vmatprep.mubr.bf16.mxu0 0
      %522 = vmatmul.mubr.bf16.gmra.mrb[0].mxu0 %v487
      %v523 = vpop.f32.mrb[0].mxu0
      %v524 = vadd.f32 0.0, %v523
      %v525 = vpop.f32.mrb[0].mxu0
      %v526 = vpop.f32.mrb[0].mxu0
      %v527 = vpop.f32.mrb[0].mxu0
      %528 = vdwg.mxu0
      %v529 = vld [vmem:[#allocation5] sm:$0x7]
      %vm530 = vcmask 518144
      %531 = vst.msk [vmem:[#allocation5] sm:$0x7] %vm530, %v524
      %v532 = vld [vmem:[%s2] sm:$0xf]
      %v533 = vld [vmem:[%s3] sm:$0x1]
      %v535 = vlaneseq
      %v536 = vshrl.u32 %v535, 7
      %v537 = vsub.s32 0, %v536
      %v538 = vrot.slane %v533, %v537
      %v540 = vadd.f32 %v538, 0.0
      %v541 = vlaneseq
      %v542 = vshrl.u32 %v541, 7
      %v543 = vsub.s32 0, %v542
      %v544 = vrot.slane %v532, %v543
      %v545 = vmul.f32 %v544, %v524
      %v546 = vmul.f32 %v544, %v529
      %v547 = vadd.f32 %v540, %v545
      %v548 = vadd.f32 %v540, %v546
      %v549 = vlaneseq
      %v550 = vshrl.u32 %v549, 7
      %v551 = vsub.s32 1, %v550
      %v552 = vrot.slane %v532, %v551
      %v553 = vmul.f32 %v552, %v524
      %v554 = vmul.f32 %v552, %v529
      %vm557 = vcmask 1040384
      %v558 = vrot.slane %v553, 7
      %v559 = vrot.slane %v554, 7
      %v560 = vsel %vm557, %v558, %v559
      %v563 = vadd.f32 %v547, %v558
      %v564 = vadd.f32 %v548, %v560
      %v565 = vlaneseq
      %v566 = vshrl.u32 %v565, 7
      %v567 = vsub.s32 2, %v566
      %v568 = vrot.slane %v532, %v567
      %v569 = vmul.f32 %v568, %v524
      %v570 = vmul.f32 %v568, %v529
      %vm573 = vcmask 1041408
      %v574 = vrot.slane %v569, 6
      %v575 = vrot.slane %v570, 6
      %v576 = vsel %vm573, %v574, %v575
      %v579 = vadd.f32 %v563, %v574
      %v580 = vadd.f32 %v564, %v576
      %v581 = vlaneseq
      %v582 = vshrl.u32 %v581, 7
      %v583 = vsub.s32 3, %v582
      %v584 = vrot.slane %v532, %v583
      %v585 = vmul.f32 %v584, %v524
      %v587 = vrot.slane %v585, 5
      %v589 = vadd.f32 %v579, %v587
      %v590 = vadd.f32 %v580, %v587
      %v591 = vxor.u32 %v589, 2147483648
      %v592 = vxor.u32 %v590, 2147483648
      %v593 = vmul.f32 %v591, 1.442695
      %v594 = vpow.pop %v593
      %v595 = vmul.f32 %v592, 1.442695
      %v596 = vpow.pop %v595
      %v597 = vadd.f32 %v594, 1.0
      %v598 = vadd.f32 %v596, 1.0
      %v599 = vrcp.pop %v597
      %v600 = vmul.f32 1.0, %v599
      %v601 = vrcp.pop %v598
      %v602 = vmul.f32 1.0, %v601
      %v603 = vmul.f32 %v589, %v600
      %v604 = vmul.f32 %v590, %v602
      %v605 = vpack.c.bf16 %v604, %v603
      %v606 = vld [vmem:[%s4] sm:$0xf]
      %v607 = vld [vmem:[%s4 + $0x4] sm:$0xf]
      %v608 = vld [vmem:[%s4 + $0x8] sm:$0xf]
      %v609 = vld [vmem:[%s4 + $0xc] sm:$0xf]
      %v610 = vld [vmem:[%s4 + $0x10] sm:$0xf]
      %v611 = vld [vmem:[%s4 + $0x14] sm:$0xf]
      %v612 = vld [vmem:[%s4 + $0x18] sm:$0xf]
      %v613 = vld [vmem:[%s4 + $0x1c] sm:$0xf]
      %v615 = vshrl.u32 %v605, 16
      %v617 = vrot.slane %v615, 1
      %v618 = vshll.u32 %v605, 16
      %v620 = vrot.slane %v618, 2
      %v621 = vor.u32 %v617, %v620
      %v630 = vunpack.c.l.b16 %v606
      %v631 = vunpack.c.l.b16 %v607
      %v632 = vunpack.c.l.b16 %v608
      %v633 = vunpack.c.l.b16 %v609
      %v634 = vunpack.c.l.b16 %v610
      %v635 = vunpack.c.l.b16 %v611
      %v636 = vunpack.c.l.b16 %v612
      %v637 = vunpack.c.l.b16 %v613
      %v638 = vpack.c.b16 %v631, %v630
      %v639 = vpack.c.b16 %v633, %v632
      %v640 = vpack.c.b16 %v635, %v634
      %v641 = vpack.c.b16 %v637, %v636
      %vm646 = vcmask 523264
      %v648 = vsel %vm646, %v621, 0
      %650 = vmatprep.subr.bf16.mxu0 0
      %651 = vmatpush1.bf16.msra.mxu0 %v638
      %652 = vmatprep.subr.bf16.mxu0 0
      %653 = vmatpush1.bf16.msra.mxu0 %v639
      %654 = vmatprep.subr.bf16.mxu0 0
      %655 = vmatpush1.bf16.msra.mxu0 %v640
      %656 = vmatprep.subr.bf16.mxu0 0
      %657 = vmatpush1.bf16.msra.mxu0 %v641
      %658 = vmatprep.subr.bf16.mxu0 0
      %659 = vmatpush1.bf16.msra.mxu0 0
      %660 = vmatprep.subr.bf16.mxu0 0
      %661 = vmatpush1.bf16.msra.mxu0 0
      %662 = vmatprep.subr.bf16.mxu0 0
      %663 = vmatpush1.bf16.msra.mxu0 0
      %664 = vmatprep.subr.bf16.mxu0 0
      %665 = vmatpush1.bf16.msra.mxu0 0
      %666 = vmatprep.subr.bf16.mxu0 0
      %667 = vmatpush1.bf16.msra.mxu0 0
      %668 = vmatprep.subr.bf16.mxu0 0
      %669 = vmatpush1.bf16.msra.mxu0 0
      %670 = vmatprep.subr.bf16.mxu0 0
      %671 = vmatpush1.bf16.msra.mxu0 0
      %672 = vmatprep.subr.bf16.mxu0 0
      %673 = vmatpush1.bf16.msra.mxu0 0
      %674 = vmatprep.subr.bf16.mxu0 0
      %675 = vmatpush1.bf16.msra.mxu0 0
      %676 = vmatprep.subr.bf16.mxu0 0
      %677 = vmatpush1.bf16.msra.mxu0 0
      %678 = vmatprep.subr.bf16.mxu0 0
      %679 = vmatpush1.bf16.msra.mxu0 0
      %680 = vmatprep.subr.bf16.mxu0 0
      %681 = vmatpush1.bf16.msra.mxu0 0
      %682 = vmatprep.mubr.bf16.mxu0 0
      %683 = vmatmul.mubr.bf16.gmra.mrb[0].mxu0 %v648
      %v684 = vpop.f32.mrb[0].mxu0
      %v685 = vadd.f32 0.0, %v684
      %v686 = vpop.f32.mrb[0].mxu0
      %v687 = vpop.f32.mrb[0].mxu0
      %v688 = vpop.f32.mrb[0].mxu0
      %689 = vdwg.mxu0
      %v690 = vpack.c.bf16 %v685, %v685
      %v691 = vld [vmem:[%s5] sm:$0x1]
      %v692 = vld [vmem:[%s6] sm:$0x1]
      %v694 = vlaneseq
      %v695 = vshrl.u32 %v694, 7
      %v696 = vsub.s32 0, %v695
      %v697 = vrot.slane %v692, %v696
      %vm699 = vcmask 15360
      %v701 = vsel %vm699, %v690, 0
      %v704 = vsel %vm557, %v691, 0
      %706 = vmatprep.subr.bf16.mxu0 0
      %707 = vmatpush1.bf16.msra.mxu0 %v704
      %708 = vmatprep.subr.bf16.mxu0 0
      %709 = vmatpush1.bf16.msra.mxu0 0
      %710 = vmatprep.subr.bf16.mxu0 0
      %711 = vmatpush1.bf16.msra.mxu0 0
      %712 = vmatprep.subr.bf16.mxu0 0
      %713 = vmatpush1.bf16.msra.mxu0 0
      %714 = vmatprep.subr.bf16.mxu0 0
      %715 = vmatpush1.bf16.msra.mxu0 0
      %716 = vmatprep.subr.bf16.mxu0 0
      %717 = vmatpush1.bf16.msra.mxu0 0
      %718 = vmatprep.subr.bf16.mxu0 0
      %719 = vmatpush1.bf16.msra.mxu0 0
      %720 = vmatprep.subr.bf16.mxu0 0
      %721 = vmatpush1.bf16.msra.mxu0 0
      %722 = vmatprep.subr.bf16.mxu0 0
      %723 = vmatpush1.bf16.msra.mxu0 0
      %724 = vmatprep.subr.bf16.mxu0 0
      %725 = vmatpush1.bf16.msra.mxu0 0
      %726 = vmatprep.subr.bf16.mxu0 0
      %727 = vmatpush1.bf16.msra.mxu0 0
      %728 = vmatprep.subr.bf16.mxu0 0
      %729 = vmatpush1.bf16.msra.mxu0 0
      %730 = vmatprep.subr.bf16.mxu0 0
      %731 = vmatpush1.bf16.msra.mxu0 0
      %732 = vmatprep.subr.bf16.mxu0 0
      %733 = vmatpush1.bf16.msra.mxu0 0
      %734 = vmatprep.subr.bf16.mxu0 0
      %735 = vmatpush1.bf16.msra.mxu0 0
      %736 = vmatprep.subr.bf16.mxu0 0
      %737 = vmatpush1.bf16.msra.mxu0 0
      %738 = vmatprep.mubr.bf16.mxu0 0
      %739 = vmatmul.mubr.bf16.gmra.mrb[0].mxu0 %v701
      %v740 = vpop.f32.mrb[0].mxu0
      %v741 = vadd.f32 %v697, %v740
      %v742 = vpop.f32.mrb[0].mxu0
      %v743 = vpop.f32.mrb[0].mxu0
      %v744 = vpop.f32.mrb[0].mxu0
      %745 = vdwg.mxu0
      %v746 = vand.u32 2147483647, %v741
      %v747 = vsub.f32 0.0, %v746
      %v748 = vmul.f32 %v747, 1.442695
      %v749 = vpow.pop %v748
      %v750 = vadd.f32 %v749, 1.0
      %v751 = vlog2.pop %v750
      %v752 = vmul.f32 %v751, 0.6931472
      %v753 = vmul.f32 -0.5, %v749
      %v754 = vadd.f32 %v753, 1.0
      %v755 = vmul.f32 %v754, %v749
      %v756 = vand.u32 2147483647, %v749
      %vm757 = vcmp.lt.f32.partialorder %v756, 0.0004427343
      %v758 = vsel %vm757, %v755, %v752
      %v759 = vmax.f32 %v741, 0.0
      %v760 = vadd.f32 %v758, %v759
      %v761 = vld [vmem:[%s7] sm:$0xff]
      %v762 = vld [vmem:[%s7 + $0x8] sm:$0xff]
      %vm765 = vcmask 1044480
      %v766 = vrot.slane %v603, 3
      %v767 = vrot.slane %v604, 3
      %v768 = vsel %vm765, %v766, %v767
      %v770 = vmul.f32 %v760, %v768
      %v771 = vlaneseq
      %v772 = vshrl.u32 %v771, 7
      %v773 = vsub.s32 0, %v772
      %v774 = vrot.slane %v761, %v773
      %v775 = vmul.f32 %v760, %v774
      %v776 = vmul.f32 %v775, 1.442695
      %v777 = vpow.pop %v776
      %778 = vst [vmem:[#allocation2] ss:$16 sm:$0x3] %v777
      %779 = vst [vmem:[#allocation2] ss:$16 sm:$0xc] %v777
      %780 = vst [vmem:[#allocation2] ss:$16 sm:$0x30] %v777
      %781 = vst [vmem:[#allocation2] ss:$16 sm:$0xc0] %v777
      %783 = vset.pattern.permute.xlu0 2
      %784 = vperm.xlu0 %783, %v685
      %v785 = vpop.permute.xlu0 %784
      %v787 = vmul.f32 %v770, %v785
      %788 = vst [vmem:[#allocation3] ss:$16 sm:$0x3] %v787
      %789 = vst [vmem:[#allocation3] ss:$16 sm:$0xc] %v787
      %790 = vst [vmem:[#allocation3] ss:$16 sm:$0x30] %v787
      %791 = vst [vmem:[#allocation3] ss:$16 sm:$0xc0] %v787
      %v792 = vlaneseq
      %v793 = vshrl.u32 %v792, 7
      %v794 = vsub.s32 1, %v793
      %v795 = vrot.slane %v761, %v794
      %v796 = vmul.f32 %v760, %v795
      %v797 = vmul.f32 %v796, 1.442695
      %v798 = vpow.pop %v797
      %s799 = scalar_lea.vmem [#allocation2], 1
      %800 = vst [vmem:[%s799] ss:$16 sm:$0x3] %v798
      %801 = vst [vmem:[%s799] ss:$16 sm:$0xc] %v798
      %802 = vst [vmem:[%s799] ss:$16 sm:$0x30] %v798
      %803 = vst [vmem:[%s799] ss:$16 sm:$0xc0] %v798
      %804 = vset.pattern.permute.xlu0 3
      %805 = vperm.xlu0 %804, %v685
      %v806 = vpop.permute.xlu0 %805
      %v808 = vmul.f32 %v770, %v806
      %s809 = scalar_lea.vmem [#allocation3], 1
      %810 = vst [vmem:[%s809] ss:$16 sm:$0x3] %v808
      %811 = vst [vmem:[%s809] ss:$16 sm:$0xc] %v808
      %812 = vst [vmem:[%s809] ss:$16 sm:$0x30] %v808
      %813 = vst [vmem:[%s809] ss:$16 sm:$0xc0] %v808
      %v814 = vlaneseq
      %v815 = vshrl.u32 %v814, 7
      %v816 = vsub.s32 2, %v815
      %v817 = vrot.slane %v761, %v816
      %v818 = vmul.f32 %v760, %v817
      %v819 = vmul.f32 %v818, 1.442695
      %v820 = vpow.pop %v819
      %s821 = scalar_lea.vmem [#allocation2], 2
      %822 = vst [vmem:[%s821] ss:$16 sm:$0x3] %v820
      %823 = vst [vmem:[%s821] ss:$16 sm:$0xc] %v820
      %824 = vst [vmem:[%s821] ss:$16 sm:$0x30] %v820
      %825 = vst [vmem:[%s821] ss:$16 sm:$0xc0] %v820
      %826 = vset.pattern.permute.xlu0 4
      %827 = vperm.xlu0 %826, %v685
      %v828 = vpop.permute.xlu0 %827
      %v830 = vmul.f32 %v770, %v828
      %s831 = scalar_lea.vmem [#allocation3], 2
      %832 = vst [vmem:[%s831] ss:$16 sm:$0x3] %v830
      %833 = vst [vmem:[%s831] ss:$16 sm:$0xc] %v830
      %834 = vst [vmem:[%s831] ss:$16 sm:$0x30] %v830
      %835 = vst [vmem:[%s831] ss:$16 sm:$0xc0] %v830
      %v836 = vlaneseq
      %v837 = vshrl.u32 %v836, 7
      %v838 = vsub.s32 3, %v837
      %v839 = vrot.slane %v761, %v838
      %v840 = vmul.f32 %v760, %v839
      %v841 = vmul.f32 %v840, 1.442695
      %v842 = vpow.pop %v841
      %s843 = scalar_lea.vmem [#allocation2], 3
      %844 = vst [vmem:[%s843] ss:$16 sm:$0x3] %v842
      %845 = vst [vmem:[%s843] ss:$16 sm:$0xc] %v842
      %846 = vst [vmem:[%s843] ss:$16 sm:$0x30] %v842
      %847 = vst [vmem:[%s843] ss:$16 sm:$0xc0] %v842
      %848 = vset.pattern.permute.xlu0 5
      %849 = vperm.xlu0 %848, %v685
      %v850 = vpop.permute.xlu0 %849
      %v852 = vmul.f32 %v770, %v850
      %s853 = scalar_lea.vmem [#allocation3], 3
      %854 = vst [vmem:[%s853] ss:$16 sm:$0x3] %v852
      %855 = vst [vmem:[%s853] ss:$16 sm:$0xc] %v852
      %856 = vst [vmem:[%s853] ss:$16 sm:$0x30] %v852
      %857 = vst [vmem:[%s853] ss:$16 sm:$0xc0] %v852
      %v858 = vlaneseq
      %v859 = vshrl.u32 %v858, 7
      %v860 = vsub.s32 4, %v859
      %v861 = vrot.slane %v761, %v860
      %v862 = vmul.f32 %v760, %v861
      %v863 = vmul.f32 %v862, 1.442695
      %v864 = vpow.pop %v863
      %s865 = scalar_lea.vmem [#allocation2], 4
      %866 = vst [vmem:[%s865] ss:$16 sm:$0x3] %v864
      %867 = vst [vmem:[%s865] ss:$16 sm:$0xc] %v864
      %868 = vst [vmem:[%s865] ss:$16 sm:$0x30] %v864
      %869 = vst [vmem:[%s865] ss:$16 sm:$0xc0] %v864
      %870 = vset.pattern.permute.xlu0 6
      %871 = vperm.xlu0 %870, %v685
      %v872 = vpop.permute.xlu0 %871
      %v874 = vmul.f32 %v770, %v872
      %s875 = scalar_lea.vmem [#allocation3], 4
      %876 = vst [vmem:[%s875] ss:$16 sm:$0x3] %v874
      %877 = vst [vmem:[%s875] ss:$16 sm:$0xc] %v874
      %878 = vst [vmem:[%s875] ss:$16 sm:$0x30] %v874
      %879 = vst [vmem:[%s875] ss:$16 sm:$0xc0] %v874
      %v880 = vlaneseq
      %v881 = vshrl.u32 %v880, 7
      %v882 = vsub.s32 5, %v881
      %v883 = vrot.slane %v761, %v882
      %v884 = vmul.f32 %v760, %v883
      %v885 = vmul.f32 %v884, 1.442695
      %v886 = vpow.pop %v885
      %s887 = scalar_lea.vmem [#allocation2], 5
      %888 = vst [vmem:[%s887] ss:$16 sm:$0x3] %v886
      %889 = vst [vmem:[%s887] ss:$16 sm:$0xc] %v886
      %890 = vst [vmem:[%s887] ss:$16 sm:$0x30] %v886
      %891 = vst [vmem:[%s887] ss:$16 sm:$0xc0] %v886
      %892 = vset.pattern.permute.xlu0 7
      %893 = vperm.xlu0 %892, %v685
      %v894 = vpop.permute.xlu0 %893
      %v896 = vmul.f32 %v770, %v894
      %s897 = scalar_lea.vmem [#allocation3], 5
      %898 = vst [vmem:[%s897] ss:$16 sm:$0x3] %v896
      %899 = vst [vmem:[%s897] ss:$16 sm:$0xc] %v896
      %900 = vst [vmem:[%s897] ss:$16 sm:$0x30] %v896
      %901 = vst [vmem:[%s897] ss:$16 sm:$0xc0] %v896
      %v902 = vlaneseq
      %v903 = vshrl.u32 %v902, 7
      %v904 = vsub.s32 6, %v903
      %v905 = vrot.slane %v761, %v904
      %v906 = vmul.f32 %v760, %v905
      %v907 = vmul.f32 %v906, 1.442695
      %v908 = vpow.pop %v907
      %s909 = scalar_lea.vmem [#allocation2], 6
      %910 = vst [vmem:[%s909] ss:$16 sm:$0x3] %v908
      %911 = vst [vmem:[%s909] ss:$16 sm:$0xc] %v908
      %912 = vst [vmem:[%s909] ss:$16 sm:$0x30] %v908
      %913 = vst [vmem:[%s909] ss:$16 sm:$0xc0] %v908
      %914 = vset.pattern.permute.xlu0 8
      %915 = vperm.xlu0 %914, %v685
      %v916 = vpop.permute.xlu0 %915
      %v918 = vmul.f32 %v770, %v916
      %s919 = scalar_lea.vmem [#allocation3], 6
      %920 = vst [vmem:[%s919] ss:$16 sm:$0x3] %v918
      %921 = vst [vmem:[%s919] ss:$16 sm:$0xc] %v918
      %922 = vst [vmem:[%s919] ss:$16 sm:$0x30] %v918
      %923 = vst [vmem:[%s919] ss:$16 sm:$0xc0] %v918
      %v924 = vlaneseq
      %v925 = vshrl.u32 %v924, 7
      %v926 = vsub.s32 7, %v925
      %v927 = vrot.slane %v761, %v926
      %v928 = vmul.f32 %v760, %v927
      %v929 = vmul.f32 %v928, 1.442695
      %v930 = vpow.pop %v929
      %s931 = scalar_lea.vmem [#allocation2], 7
      %932 = vst [vmem:[%s931] ss:$16 sm:$0x3] %v930
      %933 = vst [vmem:[%s931] ss:$16 sm:$0xc] %v930
      %934 = vst [vmem:[%s931] ss:$16 sm:$0x30] %v930
      %935 = vst [vmem:[%s931] ss:$16 sm:$0xc0] %v930
      %936 = vset.pattern.permute.xlu0 9
      %937 = vperm.xlu0 %936, %v685
      %v938 = vpop.permute.xlu0 %937
      %v940 = vmul.f32 %v770, %v938
      %s941 = scalar_lea.vmem [#allocation3], 7
      %942 = vst [vmem:[%s941] ss:$16 sm:$0x3] %v940
      %943 = vst [vmem:[%s941] ss:$16 sm:$0xc] %v940
      %944 = vst [vmem:[%s941] ss:$16 sm:$0x30] %v940
      %945 = vst [vmem:[%s941] ss:$16 sm:$0xc0] %v940
      %v946 = vlaneseq
      %v947 = vshrl.u32 %v946, 7
      %v948 = vsub.s32 0, %v947
      %v949 = vrot.slane %v762, %v948
      %v950 = vmul.f32 %v760, %v949
      %v951 = vmul.f32 %v950, 1.442695
      %v952 = vpow.pop %v951
      %s953 = scalar_lea.vmem [#allocation2], 8
      %954 = vst [vmem:[%s953] ss:$16 sm:$0x3] %v952
      %955 = vst [vmem:[%s953] ss:$16 sm:$0xc] %v952
      %956 = vst [vmem:[%s953] ss:$16 sm:$0x30] %v952
      %957 = vst [vmem:[%s953] ss:$16 sm:$0xc0] %v952
      %958 = vset.pattern.permute.xlu0 10
      %959 = vperm.xlu0 %958, %v685
      %v960 = vpop.permute.xlu0 %959
      %v962 = vmul.f32 %v770, %v960
      %s963 = scalar_lea.vmem [#allocation3], 8
      %964 = vst [vmem:[%s963] ss:$16 sm:$0x3] %v962
      %965 = vst [vmem:[%s963] ss:$16 sm:$0xc] %v962
      %966 = vst [vmem:[%s963] ss:$16 sm:$0x30] %v962
      %967 = vst [vmem:[%s963] ss:$16 sm:$0xc0] %v962
      %v968 = vlaneseq
      %v969 = vshrl.u32 %v968, 7
      %v970 = vsub.s32 1, %v969
      %v971 = vrot.slane %v762, %v970
      %v972 = vmul.f32 %v760, %v971
      %v973 = vmul.f32 %v972, 1.442695
      %v974 = vpow.pop %v973
      %s975 = scalar_lea.vmem [#allocation2], 9
      %976 = vst [vmem:[%s975] ss:$16 sm:$0x3] %v974
      %977 = vst [vmem:[%s975] ss:$16 sm:$0xc] %v974
      %978 = vst [vmem:[%s975] ss:$16 sm:$0x30] %v974
      %979 = vst [vmem:[%s975] ss:$16 sm:$0xc0] %v974
      %980 = vset.pattern.permute.xlu0 11
      %981 = vperm.xlu0 %980, %v685
      %v982 = vpop.permute.xlu0 %981
      %v984 = vmul.f32 %v770, %v982
      %s985 = scalar_lea.vmem [#allocation3], 9
      %986 = vst [vmem:[%s985] ss:$16 sm:$0x3] %v984
      %987 = vst [vmem:[%s985] ss:$16 sm:$0xc] %v984
      %988 = vst [vmem:[%s985] ss:$16 sm:$0x30] %v984
      %989 = vst [vmem:[%s985] ss:$16 sm:$0xc0] %v984
      %v990 = vlaneseq
      %v991 = vshrl.u32 %v990, 7
      %v992 = vsub.s32 2, %v991
      %v993 = vrot.slane %v762, %v992
      %v994 = vmul.f32 %v760, %v993
      %v995 = vmul.f32 %v994, 1.442695
      %v996 = vpow.pop %v995
      %s997 = scalar_lea.vmem [#allocation2], 10
      %998 = vst [vmem:[%s997] ss:$16 sm:$0x3] %v996
      %999 = vst [vmem:[%s997] ss:$16 sm:$0xc] %v996
      %1000 = vst [vmem:[%s997] ss:$16 sm:$0x30] %v996
      %1001 = vst [vmem:[%s997] ss:$16 sm:$0xc0] %v996
      %1002 = vset.pattern.permute.xlu0 12
      %1003 = vperm.xlu0 %1002, %v685
      %v1004 = vpop.permute.xlu0 %1003
      %v1006 = vmul.f32 %v770, %v1004
      %s1007 = scalar_lea.vmem [#allocation3], 10
      %1008 = vst [vmem:[%s1007] ss:$16 sm:$0x3] %v1006
      %1009 = vst [vmem:[%s1007] ss:$16 sm:$0xc] %v1006
      %1010 = vst [vmem:[%s1007] ss:$16 sm:$0x30] %v1006
      %1011 = vst [vmem:[%s1007] ss:$16 sm:$0xc0] %v1006
      %v1012 = vlaneseq
      %v1013 = vshrl.u32 %v1012, 7
      %v1014 = vsub.s32 3, %v1013
      %v1015 = vrot.slane %v762, %v1014
      %v1016 = vmul.f32 %v760, %v1015
      %v1017 = vmul.f32 %v1016, 1.442695
      %v1018 = vpow.pop %v1017
      %s1019 = scalar_lea.vmem [#allocation2], 11
      %1020 = vst [vmem:[%s1019] ss:$16 sm:$0x3] %v1018
      %1021 = vst [vmem:[%s1019] ss:$16 sm:$0xc] %v1018
      %1022 = vst [vmem:[%s1019] ss:$16 sm:$0x30] %v1018
      %1023 = vst [vmem:[%s1019] ss:$16 sm:$0xc0] %v1018
      %1024 = vset.pattern.permute.xlu0 13
      %1025 = vperm.xlu0 %1024, %v685
      %v1026 = vpop.permute.xlu0 %1025
      %v1028 = vmul.f32 %v770, %v1026
      %s1029 = scalar_lea.vmem [#allocation3], 11
      %1030 = vst [vmem:[%s1029] ss:$16 sm:$0x3] %v1028
      %1031 = vst [vmem:[%s1029] ss:$16 sm:$0xc] %v1028
      %1032 = vst [vmem:[%s1029] ss:$16 sm:$0x30] %v1028
      %1033 = vst [vmem:[%s1029] ss:$16 sm:$0xc0] %v1028
      %v1034 = vlaneseq
      %v1035 = vshrl.u32 %v1034, 7
      %v1036 = vsub.s32 4, %v1035
      %v1037 = vrot.slane %v762, %v1036
      %v1038 = vmul.f32 %v760, %v1037
      %v1039 = vmul.f32 %v1038, 1.442695
      %v1040 = vpow.pop %v1039
      %s1041 = scalar_lea.vmem [#allocation2], 12
      %1042 = vst [vmem:[%s1041] ss:$16 sm:$0x3] %v1040
      %1043 = vst [vmem:[%s1041] ss:$16 sm:$0xc] %v1040
      %1044 = vst [vmem:[%s1041] ss:$16 sm:$0x30] %v1040
      %1045 = vst [vmem:[%s1041] ss:$16 sm:$0xc0] %v1040
      %1046 = vset.pattern.permute.xlu0 14
      %1047 = vperm.xlu0 %1046, %v685
      %v1048 = vpop.permute.xlu0 %1047
      %v1050 = vmul.f32 %v770, %v1048
      %s1051 = scalar_lea.vmem [#allocation3], 12
      %1052 = vst [vmem:[%s1051] ss:$16 sm:$0x3] %v1050
      %1053 = vst [vmem:[%s1051] ss:$16 sm:$0xc] %v1050
      %1054 = vst [vmem:[%s1051] ss:$16 sm:$0x30] %v1050
      %1055 = vst [vmem:[%s1051] ss:$16 sm:$0xc0] %v1050
      %v1056 = vlaneseq
      %v1057 = vshrl.u32 %v1056, 7
      %v1058 = vsub.s32 5, %v1057
      %v1059 = vrot.slane %v762, %v1058
      %v1060 = vmul.f32 %v760, %v1059
      %v1061 = vmul.f32 %v1060, 1.442695
      %v1062 = vpow.pop %v1061
      %s1063 = scalar_lea.vmem [#allocation2], 13
      %1064 = vst [vmem:[%s1063] ss:$16 sm:$0x3] %v1062
      %1065 = vst [vmem:[%s1063] ss:$16 sm:$0xc] %v1062
      %1066 = vst [vmem:[%s1063] ss:$16 sm:$0x30] %v1062
      %1067 = vst [vmem:[%s1063] ss:$16 sm:$0xc0] %v1062
      %1068 = vset.pattern.permute.xlu0 15
      %1069 = vperm.xlu0 %1068, %v685
      %v1070 = vpop.permute.xlu0 %1069
      %v1072 = vmul.f32 %v770, %v1070
      %s1073 = scalar_lea.vmem [#allocation3], 13
      %1074 = vst [vmem:[%s1073] ss:$16 sm:$0x3] %v1072
      %1075 = vst [vmem:[%s1073] ss:$16 sm:$0xc] %v1072
      %1076 = vst [vmem:[%s1073] ss:$16 sm:$0x30] %v1072
      %1077 = vst [vmem:[%s1073] ss:$16 sm:$0xc0] %v1072
      %v1078 = vlaneseq
      %v1079 = vshrl.u32 %v1078, 7
      %v1080 = vsub.s32 6, %v1079
      %v1081 = vrot.slane %v762, %v1080
      %v1082 = vmul.f32 %v760, %v1081
      %v1083 = vmul.f32 %v1082, 1.442695
      %v1084 = vpow.pop %v1083
      %s1085 = scalar_lea.vmem [#allocation2], 14
      %1086 = vst [vmem:[%s1085] ss:$16 sm:$0x3] %v1084
      %1087 = vst [vmem:[%s1085] ss:$16 sm:$0xc] %v1084
      %1088 = vst [vmem:[%s1085] ss:$16 sm:$0x30] %v1084
      %1089 = vst [vmem:[%s1085] ss:$16 sm:$0xc0] %v1084
      %1090 = vset.pattern.permute.xlu0 16
      %1091 = vperm.xlu0 %1090, %v685
      %v1092 = vpop.permute.xlu0 %1091
      %v1094 = vmul.f32 %v770, %v1092
      %s1095 = scalar_lea.vmem [#allocation3], 14
      %1096 = vst [vmem:[%s1095] ss:$16 sm:$0x3] %v1094
      %1097 = vst [vmem:[%s1095] ss:$16 sm:$0xc] %v1094
      %1098 = vst [vmem:[%s1095] ss:$16 sm:$0x30] %v1094
      %1099 = vst [vmem:[%s1095] ss:$16 sm:$0xc0] %v1094
      %v1100 = vlaneseq
      %v1101 = vshrl.u32 %v1100, 7
      %v1102 = vsub.s32 7, %v1101
      %v1103 = vrot.slane %v762, %v1102
      %v1104 = vmul.f32 %v760, %v1103
      %v1105 = vmul.f32 %v1104, 1.442695
      %v1106 = vpow.pop %v1105
      %s1107 = scalar_lea.vmem [#allocation2], 15
      %1108 = vst [vmem:[%s1107] ss:$16 sm:$0x3] %v1106
      %1109 = vst [vmem:[%s1107] ss:$16 sm:$0xc] %v1106
      %1110 = vst [vmem:[%s1107] ss:$16 sm:$0x30] %v1106
      %1111 = vst [vmem:[%s1107] ss:$16 sm:$0xc0] %v1106
      %1112 = vset.pattern.permute.xlu0 17
      %1113 = vperm.xlu0 %1112, %v685
      %v1114 = vpop.permute.xlu0 %1113
      %v1116 = vmul.f32 %v770, %v1114
      %s1117 = scalar_lea.vmem [#allocation3], 15
      %1118 = vst [vmem:[%s1117] ss:$16 sm:$0x3] %v1116
      %1119 = vst [vmem:[%s1117] ss:$16 sm:$0xc] %v1116
      %1120 = vst [vmem:[%s1117] ss:$16 sm:$0x30] %v1116
      %1121 = vst [vmem:[%s1117] ss:$16 sm:$0xc0] %v1116
      %v1122 = vld [vmem:[#allocation4] sm:$0xff]
      %v1123 = vld [vmem:[#allocation4 + $0x8] sm:$0xff]
      %s1124 = scalar_lea.vmem [#allocation2], 112
      %v1125 = vld [vmem:[%s1124] sm:$0xff]
      %v1126 = vld [vmem:[%s1124 + $0x8] sm:$0xff]
      %v1127 = vmul.f32 %v1125, %v1122
      %v1128 = vmul.f32 %v1126, %v1123
      %s1129 = scalar_lea.vmem [#allocation3], 112
      %v1130 = vld [vmem:[%s1129] sm:$0xff]
      %v1131 = vld [vmem:[%s1129 + $0x8] sm:$0xff]
      %v1132 = vadd.f32 %v1127, %v1130
      %v1133 = vadd.f32 %v1128, %v1131
      %1134 = vst.msk [vmem:[%s1129] sm:$0xff] %vm646, %v1132
      %1135 = vst.msk [vmem:[%s1129 + $0x8] sm:$0xff] %vm646, %v1133
      %s1136 = scalar_lea.vmem [#allocation2], 96
      %v1137 = vld [vmem:[%s1136] sm:$0xff]
      %v1138 = vld [vmem:[%s1136 + $0x8] sm:$0xff]
      %v1139 = vmul.f32 %v1137, %v1132
      %v1140 = vmul.f32 %v1138, %v1133
      %s1141 = scalar_lea.vmem [#allocation3], 96
      %v1142 = vld [vmem:[%s1141] sm:$0xff]
      %v1143 = vld [vmem:[%s1141 + $0x8] sm:$0xff]
      %v1144 = vadd.f32 %v1139, %v1142
      %v1145 = vadd.f32 %v1140, %v1143
      %1146 = vst.msk [vmem:[%s1141] sm:$0xff] %vm646, %v1144
      %1147 = vst.msk [vmem:[%s1141 + $0x8] sm:$0xff] %vm646, %v1145
      %s1148 = scalar_lea.vmem [#allocation2], 80
      %v1149 = vld [vmem:[%s1148] sm:$0xff]
      %v1150 = vld [vmem:[%s1148 + $0x8] sm:$0xff]
      %v1151 = vmul.f32 %v1149, %v1144
      %v1152 = vmul.f32 %v1150, %v1145
      %s1153 = scalar_lea.vmem [#allocation3], 80
      %v1154 = vld [vmem:[%s1153] sm:$0xff]
      %v1155 = vld [vmem:[%s1153 + $0x8] sm:$0xff]
      %v1156 = vadd.f32 %v1151, %v1154
      %v1157 = vadd.f32 %v1152, %v1155
      %1158 = vst.msk [vmem:[%s1153] sm:$0xff] %vm646, %v1156
      %1159 = vst.msk [vmem:[%s1153 + $0x8] sm:$0xff] %vm646, %v1157
      %s1160 = scalar_lea.vmem [#allocation2], 64
      %v1161 = vld [vmem:[%s1160] sm:$0xff]
      %v1162 = vld [vmem:[%s1160 + $0x8] sm:$0xff]
      %v1163 = vmul.f32 %v1161, %v1156
      %v1164 = vmul.f32 %v1162, %v1157
      %s1165 = scalar_lea.vmem [#allocation3], 64
      %v1166 = vld [vmem:[%s1165] sm:$0xff]
      %v1167 = vld [vmem:[%s1165 + $0x8] sm:$0xff]
      %v1168 = vadd.f32 %v1163, %v1166
      %v1169 = vadd.f32 %v1164, %v1167
      %1170 = vst.msk [vmem:[%s1165] sm:$0xff] %vm646, %v1168
      %1171 = vst.msk [vmem:[%s1165 + $0x8] sm:$0xff] %vm646, %v1169
      %s1172 = scalar_lea.vmem [#allocation2], 48
      %v1173 = vld [vmem:[%s1172] sm:$0xff]
      %v1174 = vld [vmem:[%s1172 + $0x8] sm:$0xff]
      %v1175 = vmul.f32 %v1173, %v1168
      %v1176 = vmul.f32 %v1174, %v1169
      %s1177 = scalar_lea.vmem [#allocation3], 48
      %v1178 = vld [vmem:[%s1177] sm:$0xff]
      %v1179 = vld [vmem:[%s1177 + $0x8] sm:$0xff]
      %v1180 = vadd.f32 %v1175, %v1178
      %v1181 = vadd.f32 %v1176, %v1179
      %1182 = vst.msk [vmem:[%s1177] sm:$0xff] %vm646, %v1180
      %1183 = vst.msk [vmem:[%s1177 + $0x8] sm:$0xff] %vm646, %v1181
      %s1184 = scalar_lea.vmem [#allocation2], 32
      %v1185 = vld [vmem:[%s1184] sm:$0xff]
      %v1186 = vld [vmem:[%s1184 + $0x8] sm:$0xff]
      %v1187 = vmul.f32 %v1185, %v1180
      %v1188 = vmul.f32 %v1186, %v1181
      %s1189 = scalar_lea.vmem [#allocation3], 32
      %v1190 = vld [vmem:[%s1189] sm:$0xff]
      %v1191 = vld [vmem:[%s1189 + $0x8] sm:$0xff]
      %v1192 = vadd.f32 %v1187, %v1190
      %v1193 = vadd.f32 %v1188, %v1191
      %1194 = vst.msk [vmem:[%s1189] sm:$0xff] %vm646, %v1192
      %1195 = vst.msk [vmem:[%s1189 + $0x8] sm:$0xff] %vm646, %v1193
      %s1196 = scalar_lea.vmem [#allocation2], 16
      %v1197 = vld [vmem:[%s1196] sm:$0xff]
      %v1198 = vld [vmem:[%s1196 + $0x8] sm:$0xff]
      %v1199 = vmul.f32 %v1197, %v1192
      %v1200 = vmul.f32 %v1198, %v1193
      %s1201 = scalar_lea.vmem [#allocation3], 16
      %v1202 = vld [vmem:[%s1201] sm:$0xff]
      %v1203 = vld [vmem:[%s1201 + $0x8] sm:$0xff]
      %v1204 = vadd.f32 %v1199, %v1202
      %v1205 = vadd.f32 %v1200, %v1203
      %1206 = vst.msk [vmem:[%s1201] sm:$0xff] %vm646, %v1204
      %1207 = vst.msk [vmem:[%s1201 + $0x8] sm:$0xff] %vm646, %v1205
      %v1208 = vld [vmem:[#allocation2] sm:$0xff]
      %v1209 = vld [vmem:[#allocation2 + $0x8] sm:$0xff]
      %v1210 = vmul.f32 %v1208, %v1204
      %v1211 = vmul.f32 %v1209, %v1205
      %v1212 = vld [vmem:[#allocation3] sm:$0xff]
      %v1213 = vld [vmem:[#allocation3 + $0x8] sm:$0xff]
      %v1214 = vadd.f32 %v1210, %v1212
      %v1215 = vadd.f32 %v1211, %v1213
      %1216 = vst.msk [vmem:[#allocation3] sm:$0xff] %vm646, %v1214
      %1217 = vst.msk [vmem:[#allocation3 + $0x8] sm:$0xff] %vm646, %v1215
      %1218 = vst.msk [vmem:[#allocation4] sm:$0xff] %vm646, %v1214
      %1219 = vst.msk [vmem:[#allocation4 + $0x8] sm:$0xff] %vm646, %v1215
      %v1220 = vld [vmem:[%s8] sm:$0x1]
      %v1222 = vlaneseq
      %v1223 = vshrl.u32 %v1222, 7
      %v1224 = vsub.s32 0, %v1223
      %v1225 = vrot.slane %v1220, %v1224
      %v1227 = vmul.f32 %v1225, %v603
      %v1228 = vmul.f32 %v1225, %v604
      %v1229 = vld [vmem:[#allocation3] ss:$16 sm:$0x3]
      %v1230 = vld [vmem:[#allocation3] ss:$16 sm:$0xc]
      %v1231 = vor.u32 %v1229, %v1230
      %v1232 = vld [vmem:[#allocation3] ss:$16 sm:$0x30]
      %v1233 = vor.u32 %v1231, %v1232
      %v1234 = vld [vmem:[#allocation3] ss:$16 sm:$0xc0]
      %v1235 = vor.u32 %v1233, %v1234
      %1236 = vset.pattern.permute.xlu0 18
      %1237 = vperm.xlu0 %1236, %v685
      %v1238 = vpop.permute.xlu0 %1237
      %v1240 = vmul.f32 %v1238, %v1235
      %v1242 = vrot.slane %v1240, 5
      %v1244 = vadd.f32 %v1227, %v1242
      %v1245 = vadd.f32 %v1228, %v1242
      %v1246 = vld [vmem:[%s809] ss:$16 sm:$0x3]
      %v1247 = vld [vmem:[%s809] ss:$16 sm:$0xc]
      %v1248 = vor.u32 %v1246, %v1247
      %v1249 = vld [vmem:[%s809] ss:$16 sm:$0x30]
      %v1250 = vor.u32 %v1248, %v1249
      %v1251 = vld [vmem:[%s809] ss:$16 sm:$0xc0]
      %v1252 = vor.u32 %v1250, %v1251
      %1253 = vset.pattern.permute.xlu0 19
      %1254 = vperm.xlu0 %1253, %v685
      %v1255 = vpop.permute.xlu0 %1254
      %v1257 = vmul.f32 %v1255, %v1252
      %v1259 = vrot.slane %v1257, 5
      %v1261 = vadd.f32 %v1244, %v1259
      %v1262 = vadd.f32 %v1245, %v1259
      %v1263 = vld [vmem:[%s831] ss:$16 sm:$0x3]
      %v1264 = vld [vmem:[%s831] ss:$16 sm:$0xc]
      %v1265 = vor.u32 %v1263, %v1264
      %v1266 = vld [vmem:[%s831] ss:$16 sm:$0x30]
      %v1267 = vor.u32 %v1265, %v1266
      %v1268 = vld [vmem:[%s831] ss:$16 sm:$0xc0]
      %v1269 = vor.u32 %v1267, %v1268
      %1270 = vset.pattern.permute.xlu0 20
      %1271 = vperm.xlu0 %1270, %v685
      %v1272 = vpop.permute.xlu0 %1271
      %v1274 = vmul.f32 %v1272, %v1269
      %v1276 = vrot.slane %v1274, 5
      %v1278 = vadd.f32 %v1261, %v1276
      %v1279 = vadd.f32 %v1262, %v1276
      %v1280 = vld [vmem:[%s853] ss:$16 sm:$0x3]
      %v1281 = vld [vmem:[%s853] ss:$16 sm:$0xc]
      %v1282 = vor.u32 %v1280, %v1281
      %v1283 = vld [vmem:[%s853] ss:$16 sm:$0x30]
      %v1284 = vor.u32 %v1282, %v1283
      %v1285 = vld [vmem:[%s853] ss:$16 sm:$0xc0]
      %v1286 = vor.u32 %v1284, %v1285
      %1287 = vset.pattern.permute.xlu0 21
      %1288 = vperm.xlu0 %1287, %v685
      %v1289 = vpop.permute.xlu0 %1288
      %v1291 = vmul.f32 %v1289, %v1286
      %v1293 = vrot.slane %v1291, 5
      %v1295 = vadd.f32 %v1278, %v1293
      %v1296 = vadd.f32 %v1279, %v1293
      %v1297 = vld [vmem:[%s875] ss:$16 sm:$0x3]
      %v1298 = vld [vmem:[%s875] ss:$16 sm:$0xc]
      %v1299 = vor.u32 %v1297, %v1298
      %v1300 = vld [vmem:[%s875] ss:$16 sm:$0x30]
      %v1301 = vor.u32 %v1299, %v1300
      %v1302 = vld [vmem:[%s875] ss:$16 sm:$0xc0]
      %v1303 = vor.u32 %v1301, %v1302
      %1304 = vset.pattern.permute.xlu0 22
      %1305 = vperm.xlu0 %1304, %v685
      %v1306 = vpop.permute.xlu0 %1305
      %v1308 = vmul.f32 %v1306, %v1303
      %v1310 = vrot.slane %v1308, 5
      %v1312 = vadd.f32 %v1295, %v1310
      %v1313 = vadd.f32 %v1296, %v1310
      %v1314 = vld [vmem:[%s897] ss:$16 sm:$0x3]
      %v1315 = vld [vmem:[%s897] ss:$16 sm:$0xc]
      %v1316 = vor.u32 %v1314, %v1315
      %v1317 = vld [vmem:[%s897] ss:$16 sm:$0x30]
      %v1318 = vor.u32 %v1316, %v1317
      %v1319 = vld [vmem:[%s897] ss:$16 sm:$0xc0]
      %v1320 = vor.u32 %v1318, %v1319
      %1321 = vset.pattern.permute.xlu0 23
      %1322 = vperm.xlu0 %1321, %v685
      %v1323 = vpop.permute.xlu0 %1322
      %v1325 = vmul.f32 %v1323, %v1320
      %v1327 = vrot.slane %v1325, 5
      %v1329 = vadd.f32 %v1312, %v1327
      %v1330 = vadd.f32 %v1313, %v1327
      %v1331 = vld [vmem:[%s919] ss:$16 sm:$0x3]
      %v1332 = vld [vmem:[%s919] ss:$16 sm:$0xc]
      %v1333 = vor.u32 %v1331, %v1332
      %v1334 = vld [vmem:[%s919] ss:$16 sm:$0x30]
      %v1335 = vor.u32 %v1333, %v1334
      %v1336 = vld [vmem:[%s919] ss:$16 sm:$0xc0]
      %v1337 = vor.u32 %v1335, %v1336
      %1338 = vset.pattern.permute.xlu0 24
      %1339 = vperm.xlu0 %1338, %v685
      %v1340 = vpop.permute.xlu0 %1339
      %v1342 = vmul.f32 %v1340, %v1337
      %v1344 = vrot.slane %v1342, 5
      %v1346 = vadd.f32 %v1329, %v1344
      %v1347 = vadd.f32 %v1330, %v1344
      %v1348 = vld [vmem:[%s941] ss:$16 sm:$0x3]
      %v1349 = vld [vmem:[%s941] ss:$16 sm:$0xc]
      %v1350 = vor.u32 %v1348, %v1349
      %v1351 = vld [vmem:[%s941] ss:$16 sm:$0x30]
      %v1352 = vor.u32 %v1350, %v1351
      %v1353 = vld [vmem:[%s941] ss:$16 sm:$0xc0]
      %v1354 = vor.u32 %v1352, %v1353
      %1355 = vset.pattern.permute.xlu0 25
      %1356 = vperm.xlu0 %1355, %v685
      %v1357 = vpop.permute.xlu0 %1356
      %v1359 = vmul.f32 %v1357, %v1354
      %v1361 = vrot.slane %v1359, 5
      %v1363 = vadd.f32 %v1346, %v1361
      %v1364 = vadd.f32 %v1347, %v1361
      %v1365 = vld [vmem:[%s963] ss:$16 sm:$0x3]
      %v1366 = vld [vmem:[%s963] ss:$16 sm:$0xc]
      %v1367 = vor.u32 %v1365, %v1366
      %v1368 = vld [vmem:[%s963] ss:$16 sm:$0x30]
      %v1369 = vor.u32 %v1367, %v1368
      %v1370 = vld [vmem:[%s963] ss:$16 sm:$0xc0]
      %v1371 = vor.u32 %v1369, %v1370
      %1372 = vset.pattern.permute.xlu0 26
      %1373 = vperm.xlu0 %1372, %v685
      %v1374 = vpop.permute.xlu0 %1373
      %v1376 = vmul.f32 %v1374, %v1371
      %v1378 = vrot.slane %v1376, 5
      %v1380 = vadd.f32 %v1363, %v1378
      %v1381 = vadd.f32 %v1364, %v1378
      %v1382 = vld [vmem:[%s985] ss:$16 sm:$0x3]
      %v1383 = vld [vmem:[%s985] ss:$16 sm:$0xc]
      %v1384 = vor.u32 %v1382, %v1383
      %v1385 = vld [vmem:[%s985] ss:$16 sm:$0x30]
      %v1386 = vor.u32 %v1384, %v1385
      %v1387 = vld [vmem:[%s985] ss:$16 sm:$0xc0]
      %v1388 = vor.u32 %v1386, %v1387
      %1389 = vset.pattern.permute.xlu0 27
      %1390 = vperm.xlu0 %1389, %v685
      %v1391 = vpop.permute.xlu0 %1390
      %v1393 = vmul.f32 %v1391, %v1388
      %v1395 = vrot.slane %v1393, 5
      %v1397 = vadd.f32 %v1380, %v1395
      %v1398 = vadd.f32 %v1381, %v1395
      %v1399 = vld [vmem:[%s1007] ss:$16 sm:$0x3]
      %v1400 = vld [vmem:[%s1007] ss:$16 sm:$0xc]
      %v1401 = vor.u32 %v1399, %v1400
      %v1402 = vld [vmem:[%s1007] ss:$16 sm:$0x30]
      %v1403 = vor.u32 %v1401, %v1402
      %v1404 = vld [vmem:[%s1007] ss:$16 sm:$0xc0]
      %v1405 = vor.u32 %v1403, %v1404
      %1406 = vset.pattern.permute.xlu0 28
      %1407 = vperm.xlu0 %1406, %v685
      %v1408 = vpop.permute.xlu0 %1407
      %v1410 = vmul.f32 %v1408, %v1405
      %v1412 = vrot.slane %v1410, 5
      %v1414 = vadd.f32 %v1397, %v1412
      %v1415 = vadd.f32 %v1398, %v1412
      %v1416 = vld [vmem:[%s1029] ss:$16 sm:$0x3]
      %v1417 = vld [vmem:[%s1029] ss:$16 sm:$0xc]
      %v1418 = vor.u32 %v1416, %v1417
      %v1419 = vld [vmem:[%s1029] ss:$16 sm:$0x30]
      %v1420 = vor.u32 %v1418, %v1419
      %v1421 = vld [vmem:[%s1029] ss:$16 sm:$0xc0]
      %v1422 = vor.u32 %v1420, %v1421
      %1423 = vset.pattern.permute.xlu0 29
      %1424 = vperm.xlu0 %1423, %v685
      %v1425 = vpop.permute.xlu0 %1424
      %v1427 = vmul.f32 %v1425, %v1422
      %v1429 = vrot.slane %v1427, 5
      %v1431 = vadd.f32 %v1414, %v1429
      %v1432 = vadd.f32 %v1415, %v1429
      %v1433 = vld [vmem:[%s1051] ss:$16 sm:$0x3]
      %v1434 = vld [vmem:[%s1051] ss:$16 sm:$0xc]
      %v1435 = vor.u32 %v1433, %v1434
      %v1436 = vld [vmem:[%s1051] ss:$16 sm:$0x30]
      %v1437 = vor.u32 %v1435, %v1436
      %v1438 = vld [vmem:[%s1051] ss:$16 sm:$0xc0]
      %v1439 = vor.u32 %v1437, %v1438
      %1440 = vset.pattern.permute.xlu0 30
      %1441 = vperm.xlu0 %1440, %v685
      %v1442 = vpop.permute.xlu0 %1441
      %v1444 = vmul.f32 %v1442, %v1439
      %v1446 = vrot.slane %v1444, 5
      %v1448 = vadd.f32 %v1431, %v1446
      %v1449 = vadd.f32 %v1432, %v1446
      %v1450 = vld [vmem:[%s1073] ss:$16 sm:$0x3]
      %v1451 = vld [vmem:[%s1073] ss:$16 sm:$0xc]
      %v1452 = vor.u32 %v1450, %v1451
      %v1453 = vld [vmem:[%s1073] ss:$16 sm:$0x30]
      %v1454 = vor.u32 %v1452, %v1453
      %v1455 = vld [vmem:[%s1073] ss:$16 sm:$0xc0]
      %v1456 = vor.u32 %v1454, %v1455
      %1457 = vset.pattern.permute.xlu0 31
      %1458 = vperm.xlu0 %1457, %v685
      %v1459 = vpop.permute.xlu0 %1458
      %v1461 = vmul.f32 %v1459, %v1456
      %v1463 = vrot.slane %v1461, 5
      %v1465 = vadd.f32 %v1448, %v1463
      %v1466 = vadd.f32 %v1449, %v1463
      %v1467 = vld [vmem:[%s1095] ss:$16 sm:$0x3]
      %v1468 = vld [vmem:[%s1095] ss:$16 sm:$0xc]
      %v1469 = vor.u32 %v1467, %v1468
      %v1470 = vld [vmem:[%s1095] ss:$16 sm:$0x30]
      %v1471 = vor.u32 %v1469, %v1470
      %v1472 = vld [vmem:[%s1095] ss:$16 sm:$0xc0]
      %v1473 = vor.u32 %v1471, %v1472
      %1474 = vset.pattern.permute.xlu0 32
      %1475 = vperm.xlu0 %1474, %v685
      %v1476 = vpop.permute.xlu0 %1475
      %v1478 = vmul.f32 %v1476, %v1473
      %v1480 = vrot.slane %v1478, 5
      %v1482 = vadd.f32 %v1465, %v1480
      %v1483 = vadd.f32 %v1466, %v1480
      %v1484 = vld [vmem:[%s1117] ss:$16 sm:$0x3]
      %v1485 = vld [vmem:[%s1117] ss:$16 sm:$0xc]
      %v1486 = vor.u32 %v1484, %v1485
      %v1487 = vld [vmem:[%s1117] ss:$16 sm:$0x30]
      %v1488 = vor.u32 %v1486, %v1487
      %v1489 = vld [vmem:[%s1117] ss:$16 sm:$0xc0]
      %v1490 = vor.u32 %v1488, %v1489
      %1491 = vset.pattern.permute.xlu0 33
      %1492 = vperm.xlu0 %1491, %v685
      %v1493 = vpop.permute.xlu0 %1492
      %v1495 = vmul.f32 %v1493, %v1490
      %v1497 = vrot.slane %v1495, 5
      %v1499 = vadd.f32 %v1482, %v1497
      %v1500 = vadd.f32 %v1483, %v1497
      %v1501 = vxor.u32 %v524, 2147483648
      %v1502 = vmul.f32 %v1501, 1.442695
      %v1503 = vpow.pop %v1502
      %v1504 = vadd.f32 %v1503, 1.0
      %v1505 = vrcp.pop %v1504
      %v1506 = vmul.f32 1.0, %v1505
      %v1507 = vmul.f32 %v524, %v1506
      %v1509 = vrot.slane %v1507, 5
      %1510 = vrot.lane.b32.xlu0 %v1509, 64
      %v1511 = vpop.permute.xlu0 %1510
      %v1513 = vmul.f32 %v1499, %v1511
      %v1514 = vmul.f32 %v1500, %v1511
      %v1515 = vpack.c.bf16 %v1514, %v1513
      %v1516 = vld [vmem:[%s9] sm:$0xf]
      %v1517 = vld [vmem:[%s9 + $0x4] sm:$0xf]
      %v1518 = vld [vmem:[%s9 + $0x8] sm:$0xf]
      %v1519 = vld [vmem:[%s9 + $0xc] sm:$0xf]
      %v1520 = vld [vmem:[%s9 + $0x10] sm:$0xf]
      %v1521 = vld [vmem:[%s9 + $0x14] sm:$0xf]
      %v1522 = vld [vmem:[%s9 + $0x18] sm:$0xf]
      %v1523 = vld [vmem:[%s9 + $0x1c] sm:$0xf]
      %v1525 = vshrl.u32 %v1515, 16
      %v1527 = vrot.slane %v1525, 1
      %v1528 = vshll.u32 %v1515, 16
      %v1530 = vrot.slane %v1528, 2
      %v1531 = vor.u32 %v1527, %v1530
      %v1540 = vunpack.c.l.b16 %v1516
      %v1541 = vunpack.c.l.b16 %v1517
      %v1542 = vunpack.c.l.b16 %v1518
      %v1543 = vunpack.c.l.b16 %v1519
      %v1544 = vunpack.c.l.b16 %v1520
      %v1545 = vunpack.c.l.b16 %v1521
      %v1546 = vunpack.c.l.b16 %v1522
      %v1547 = vunpack.c.l.b16 %v1523
      %v1548 = vpack.c.b16 %v1541, %v1540
      %v1549 = vpack.c.b16 %v1543, %v1542
      %v1550 = vpack.c.b16 %v1545, %v1544
      %v1551 = vpack.c.b16 %v1547, %v1546
      %v1557 = vsel %vm646, %v1531, 0
      %1559 = vmatprep.subr.bf16.mxu0 0
      %1560 = vmatpush1.bf16.msra.mxu0 %v1548
      %1561 = vmatprep.subr.bf16.mxu0 0
      %1562 = vmatpush1.bf16.msra.mxu0 %v1549
      %1563 = vmatprep.subr.bf16.mxu0 0
      %1564 = vmatpush1.bf16.msra.mxu0 %v1550
      %1565 = vmatprep.subr.bf16.mxu0 0
      %1566 = vmatpush1.bf16.msra.mxu0 %v1551
      %1567 = vmatprep.subr.bf16.mxu0 0
      %1568 = vmatpush1.bf16.msra.mxu0 0
      %1569 = vmatprep.subr.bf16.mxu0 0
      %1570 = vmatpush1.bf16.msra.mxu0 0
      %1571 = vmatprep.subr.bf16.mxu0 0
      %1572 = vmatpush1.bf16.msra.mxu0 0
      %1573 = vmatprep.subr.bf16.mxu0 0
      %1574 = vmatpush1.bf16.msra.mxu0 0
      %1575 = vmatprep.subr.bf16.mxu0 0
      %1576 = vmatpush1.bf16.msra.mxu0 0
      %1577 = vmatprep.subr.bf16.mxu0 0
      %1578 = vmatpush1.bf16.msra.mxu0 0
      %1579 = vmatprep.subr.bf16.mxu0 0
      %1580 = vmatpush1.bf16.msra.mxu0 0
      %1581 = vmatprep.subr.bf16.mxu0 0
      %1582 = vmatpush1.bf16.msra.mxu0 0
      %1583 = vmatprep.subr.bf16.mxu0 0
      %1584 = vmatpush1.bf16.msra.mxu0 0
      %1585 = vmatprep.subr.bf16.mxu0 0
      %1586 = vmatpush1.bf16.msra.mxu0 0
      %1587 = vmatprep.subr.bf16.mxu0 0
      %1588 = vmatpush1.bf16.msra.mxu0 0
      %1589 = vmatprep.subr.bf16.mxu0 0
      %1590 = vmatpush1.bf16.msra.mxu0 0
      %1591 = vmatprep.mubr.bf16.mxu0 0
      %1592 = vmatmul.mubr.bf16.gmra.mrb[0].mxu0 %v1557
      %v1593 = vpop.f32.mrb[0].mxu0
      %v1594 = vadd.f32 %v467, %v1593
      %v1595 = vpop.f32.mrb[0].mxu0
      %v1596 = vpop.f32.mrb[0].mxu0
      %v1597 = vpop.f32.mrb[0].mxu0
      %1598 = vdwg.mxu0
      %v1599 = vsel %vm485, %v1594, 0.0
      %1600 = vadd.xlane.f32.xlu0 %v1599
      %v1601 = vpop.xlane.xlu0 %1600
      %v1602 = vrcp.pop 32.0
      %v1603 = vmul.f32 %v1601, %v1602
      %v1604 = vsub.f32 %v1594, %v1603
      %v1605 = vmul.f32 %v1604, %v1604
      %v1606 = vsel %vm485, %v1605, 0.0
      %1607 = vadd.xlane.f32.xlu0 %v1606
      %v1608 = vpop.xlane.xlu0 %1607
      %v1609 = vmul.f32 %v1608, %v1602
      %v1610 = vadd.f32 %v1609, 1e-05
      %v1611 = vrsqrt.pop %v1610
      %v1612 = vmul.f32 %v1604, %v1611
      %v1613 = vld [vmem:[%s10] sm:$0x1]
      %v1615 = vlaneseq
      %v1616 = vshrl.u32 %v1615, 7
      %v1617 = vsub.s32 0, %v1616
      %v1618 = vrot.slane %v1613, %v1617
      %v1620 = vmul.f32 %v1612, %v1618
      %v1621 = vld [vmem:[%s11] sm:$0x1]
      %v1623 = vlaneseq
      %v1624 = vshrl.u32 %v1623, 7
      %v1625 = vsub.s32 0, %v1624
      %v1626 = vrot.slane %v1621, %v1625
      %v1628 = vadd.f32 %v1620, %v1626
      %1629 = vst.msk [vmem:[%s455] sm:$0xff] %vm485, %v1628
      %s1630 = ssub.s32 1, %s28
      %p1631 = scmp.lt.s32.totalorder %s27, 1
      %s1632 = scalar_select %p1631, %s27, 1
      %p1633 = scmp.lt.s32.totalorder %s1630, 1
      %s1634 = scalar_select %p1633, %s1630, 1
      %s1635 = smul.addr %s1632, 2
      %s1636 = sadd.s32 %s1634, %s1635
      %s1637 = smul.addr %s1636, 8
      %s1638 = scalar_lea.vmem %s12, %s1637
      // Predicated region
      $region73: #{bimamba_encoder_layer.5} parent=67 // pred_check
        %p1639 = pneg %p318
      $region74: #{bimamba_encoder_layer.5} parent=67 // pred_check_branch
        %1641 = sbr.rel (%p1639) target = $region76
      $region75: #{bimamba_encoder_layer.5} parent=67 // pred_region
        %s1642 = ssub.s32 1, %s28
      $region76: #{bimamba_encoder_layer.5} parent=67 // pred_fallthru
        _
    $region68: #{bimamba_encoder_layer.5} parent=5 // pred_fallthru
      _
    %p1643 = scmp.le.s32.totalorder 2, %s18
    // Predicated region
    $region77: #{bimamba_encoder_layer.5} parent=5 // pred_check
      %p1644 = pneg %p1643
    $region78: #{bimamba_encoder_layer.5} parent=5 // pred_check_branch
      %1646 = sbr.rel (%p1644) target = $region80
    $region79: #{bimamba_encoder_layer.5} parent=5 // pred_region
      %s1647 = ssub.s32 %s18, 2
      // Predicated region
      $region81: #{bimamba_encoder_layer.5} parent=79 // pred_check
        %p1648 = pneg %p324
      $region82: #{bimamba_encoder_layer.5} parent=79 // pred_check_branch
        %1650 = sbr.rel (%p1648) target = $region84
      $region83: #{bimamba_encoder_layer.5} parent=79 // pred_region
        %s1651 = ssub.s32 1, %s30
        %p1652 = scmp.lt.s32.totalorder %s29, 1
        %s1653 = scalar_select %p1652, %s29, 1
        %p1654 = scmp.lt.s32.totalorder %s1651, 1
        %s1655 = scalar_select %p1654, %s1651, 1
        %s1656 = smul.addr %s1653, 2
        %s1657 = sadd.s32 %s1655, %s1656
        %s1658 = smul.addr %s1657, 8
        %s1659 = scalar_lea.vmem %s12, %s1658
      $region84: #{bimamba_encoder_layer.5} parent=79 // pred_fallthru
        _
    $region80: #{bimamba_encoder_layer.5} parent=5 // pred_fallthru
      _
  $region6: #{bimamba_encoder_layer.5} parent=0 // loop_footer
    %s22 = sadd.s32 1, %s18
  $region7: #{bimamba_encoder_layer.5} parent=0 // loop_footer_branch
    %17 = sbr.rel target = $region3
  $region8: #{bimamba_encoder_layer.5} parent=0 // loop_exit
    _

</llo_original>
